<compile_context>
chip_gen: v7x
topology: tpu7x:2x2x1
jax: 0.10.0
libtpu: 0.0.40
codegen_flags: <defaults>
</compile_context>

<pallas_src>
import jax
import jax.numpy as jnp
from jax import lax
from jax.experimental import pallas as pl
from jax.experimental.pallas import tpu as pltpu


# ------------------------------ geometry helpers ------------------------------ #

def _round_up(v, m):
    return (v + m - 1) // m * m


def _layer_geom(H, W, cin_p, cout_p):
    Hp, Wp = H + 2, W + 2          # spatially padded (ring of zeros)
    Lp = Hp * Wp                   # padded rows per image (flattened row-major)
    G = Wp + 1                     # guard rows before/after the image block
    return dict(H=H, W=W, Hp=Hp, Wp=Wp, Lp=Lp, G=G, Cin=cin_p, Cout=cout_p)


# --------------------------------- fused kernel -------------------------------- #

def _make_kernel(B, geoms):
    """B images per grid step; geoms: per-layer static geometry dicts."""
    n = len(geoms)

    def kernel(x_ref, *refs):
        w_refs = refs[:n]                       # (9*Cin, Cout) bf16, BN-folded
        s_refs = refs[n:2 * n]                  # (1, Cout) f32 folded shift
        o_ref = refs[2 * n]                     # (1, B, Cout_last)
        canv_refs = refs[2 * n + 1:2 * n + 1 + (n - 1)]   # canvases for layers 2..n
        hm_refs = refs[2 * n + 1 + (n - 1):]              # pool intermediates, layers 1..n-1

        # Ring / guard rows of every canvas must be zero (they realize padding=1);
        # interiors are fully overwritten below.  Zeroing every step keeps this correct
        # even when the grid is split across TensorCores (scratch is per-core).
        for c in canv_refs:
            c[...] = jnp.zeros(c.shape, c.dtype)

        src = x_ref                              # layer-1 canvas, prepared by the wrapper
        for l in range(n):
            g = geoms[l]
            Wp, Lp, G = g["Wp"], g["Lp"], g["G"]
            H, W = g["H"], g["W"]
            M = B * Lp
            H2, W2 = H // 2, W // 2

            # ---- Conv3x3(pad=1) + folded BN + ReLU: 9 contiguous tap slices of the
            #      zero-padded canvas, concatenated along K, ONE bf16 MXU matmul ----
            taps = []
            for dh in (-1, 0, 1):
                for dw in (-1, 0, 1):
                    s0 = G + dh * Wp + dw        # static offset; slice length M
                    taps.append(src[pl.ds(s0, M), :])
            patches = jnp.concatenate(taps, axis=-1).astype(jnp.bfloat16)  # (M, 9*Cin)

            z = jnp.dot(patches, w_refs[l][...], preferred_element_type=jnp.float32)
            z = jnp.maximum(z + s_refs[l][...], 0.0)          # (M, Cout) f32

            # ---- MaxPool 2x2 stride 2: H-pair on the value (contiguous slices), then
            #      W-pair via stride-2 row loads; channels stay on lanes throughout ----
            if l < n - 1:
                hm_refs[l][...] = jnp.maximum(z[:M - Wp, :], z[Wp:, :])
                hm = hm_refs[l]
                gn = geoms[l + 1]
                Wpn, Lpn, Gn = gn["Wp"], gn["Lp"], gn["G"]
                dst = canv_refs[l]
                for b in range(B):
                    for ho in range(H2):
                        r0 = b * Lp + (2 * ho + 1) * Wp + 1
                        row = jnp.maximum(hm[pl.ds(r0, W2, stride=2), :],
                                          hm[pl.ds(r0 + 1, W2, stride=2), :])
                        d0 = Gn + b * Lpn + (ho + 1) * Wpn + 1
                        dst[pl.ds(d0, W2), :] = row.astype(dst.dtype)
                src = dst                        # next layer's input (never leaves VMEM)
            else:
                # Last layer pools 2x2 -> 1x1: pure value slices, one lane-dense store.
                hmv = jnp.maximum(z[:M - Wp, :], z[Wp:, :])
                rows = []
                for b in range(B):
                    r0 = b * Lp + Wp + 1
                    rows.append(jnp.maximum(hmv[r0:r0 + 1, :], hmv[r0 + 1:r0 + 2, :]))
                o_ref[0] = jnp.concatenate(rows, axis=0).astype(o_ref.dtype)

    return kernel


# ----------------------------------- wrapper ----------------------------------- #

def convnet256_forward(x, params):
    """x: (N, H, W, 3) NHWC; params: list of (w_bf16 (9*Cin_p, Cout_p), shift (1, Cout_p))."""
    N, H, W, C0 = x.shape
    n = len(params)
    cinps = [wq.shape[0] // 9 for (wq, _) in params]
    coutps = [wq.shape[1] for (wq, _) in params]

    # Images per grid step: pack as many as divide N (raises MXU row occupancy).
    # (On v7x, keeping the resulting grid even lets both TensorCores work; with N=2 we
    #  trade that for a 2x larger matmul M.)
    B = next(b for b in (8, 4, 2, 1) if N % b == 0)
    nb = N // B

    geoms = []
    h, w = H, W
    for l in range(n):
        geoms.append(_layer_geom(h, w, cinps[l], coutps[l]))
        h, w = h // 2, w // 2
    assert (h, w) == (1, 1), "this script handles 16x16 inputs (four 2x2 pools -> 1x1)"

    # Wrapper-side prep of the layer-1 canvas: zero-pad the spatial ring and the channels,
    # flatten (Hp*Wp) row-major, add guard rows per block (replaces the old 9x im2col).
    g0 = geoms[0]
    Lp, G, C0p = g0["Lp"], g0["G"], g0["Cin"]
    xp = jnp.pad(x, ((0, 0), (1, 1), (1, 1), (0, C0p - C0)))        # (N, Hp, Wp, C0p)
    xp = xp.reshape(N, Lp, C0p).reshape(nb, B * Lp, C0p)
    rows_core = 2 * G + B * Lp
    tail = (-rows_core) % 8                                          # 8-align block rows
    head = jnp.zeros((nb, G, C0p), xp.dtype)
    tailz = jnp.zeros((nb, G + tail, C0p), xp.dtype)
    xp = jnp.concatenate([head, xp, tailz], axis=1)
    R1 = rows_core + tail
    xp = xp.reshape(nb * R1, C0p)

    in_specs = [pl.BlockSpec((R1, C0p), lambda i: (i, 0))]
    in_specs += [pl.BlockSpec(wq.shape, lambda i: (0, 0)) for (wq, _) in params]
    in_specs += [pl.BlockSpec(sh.shape, lambda i: (0, 0)) for (_, sh) in params]

    scratch = []
    for l in range(1, n):                                   # canvases for layers 2..n
        gl = geoms[l]
        scratch.append(pltpu.VMEM((2 * gl["G"] + B * gl["Lp"], gl["Cin"]), jnp.float32))
    for l in range(0, n - 1):                               # pool intermediates 1..n-1
        gl = geoms[l]
        scratch.append(pltpu.VMEM((B * gl["Lp"] - gl["Wp"], gl["Cout"]), jnp.float32))

    Cf = coutps[-1]
    out = pl.pallas_call(
        _make_kernel(B, geoms),
        out_shape=jax.ShapeDtypeStruct((nb, B, Cf), jnp.float32),
        grid_spec=pltpu.PrefetchScalarGridSpec(
            num_scalar_prefetch=0,
            grid=(nb,),
            in_specs=in_specs,
            out_specs=pl.BlockSpec((1, B, Cf), lambda i: (i, 0, 0)),
            scratch_shapes=scratch,
        ),
        compiler_params=pltpu.CompilerParams(dimension_semantics=("parallel",)),
    )(xp, *[wq for (wq, _) in params], *[sh for (_, sh) in params])
    return out.reshape(N, 1, 1, Cf)


# --------------------------------- parameters ---------------------------------- #

def init_block_params(key, cin, cout):
    """Conv2d(cin, cout, 3, padding=1) + BatchNorm2d(cout) (bn.weight ~ uniform_(0,1))."""
    kw, kb, kg = jax.random.split(key, 3)
    w = jax.random.normal(kw, (3, 3, cin, cout), jnp.float32) * (2.0 / (9 * cin)) ** 0.5
    b = jax.random.normal(kb, (cout,), jnp.float32) * 0.01
    gamma = jax.random.uniform(kg, (cout,), jnp.float32)
    beta = jnp.zeros((cout,), jnp.float32)
    eps = 1e-5
    # eval-mode BN (running_mean=0, running_var=1) folded into per-channel scale/shift:
    scale = gamma / jnp.sqrt(1.0 + eps)
    shift = b * scale + beta
    return w, scale, shift


def prepare_params(raw_params):
    """Fold the BN scale into bf16 conv weights, pad channels to lane-friendly widths and
    lay the 9 taps out along K so the kernel does one matmul per layer."""
    prepared = []
    for i, (w, scale, shift) in enumerate(raw_params):
        kh, kw_, cin, cout = w.shape
        cinp = 32 if i == 0 else _round_up(cin, 128)
        coutp = _round_up(cout, 128)
        wf = w * scale
        wf = jnp.pad(wf, ((0, 0), (0, 0), (0, cinp - cin), (0, coutp - cout)))
        wq = wf.reshape(kh * kw_ * cinp, coutp).astype(jnp.bfloat16)   # (9*Cin_p, Cout_p)
        sh = jnp.pad(shift, (0, coutp - cout)).reshape(1, coutp).astype(jnp.float32)
        prepared.append((wq, sh))
    return prepared


def convnet256_reference(x, raw_params):
    """Pure-JAX reference (uses the same bf16-quantized, BN-folded weights)."""
    y = x
    for (w, scale, shift) in raw_params:
        wq = (w * scale).astype(jnp.bfloat16).astype(jnp.float32)
        y = lax.conv_general_dilated(y, wq, (1, 1), ((1, 1), (1, 1)),
                                     dimension_numbers=("NHWC", "HWIO", "NHWC"))
        y = jnp.maximum(y + shift, 0.0)
        y = lax.reduce_window(y, -jnp.inf, lax.max, (1, 2, 2, 1), (1, 2, 2, 1), "VALID")
    return y


# ------------------------------------- main ------------------------------------- #

if __name__ == "__main__":
    key = jax.random.PRNGKey(0)
    kx, kp = jax.random.split(key)

    N, H, W = 2, 16, 16
    x = jax.random.normal(kx, (N, H, W, 3), jnp.float32)    # NHWC (== NCHW [2,3,16,16])

    hidden = 64
    channels = [3, hidden, int(1.5 * hidden), 2 * hidden, 4 * hidden]  # 3,64,96,128,256
    keys = jax.random.split(kp, 4)
    raw = [init_block_params(keys[i], channels[i], channels[i + 1]) for i in range(4)]
    params = prepare_params(raw)

    out = jax.block_until_ready(jax.jit(convnet256_forward)(x, params))
    assert out.shape == (N, 1, 1, 4 * hidden), out.shape
    assert bool(jnp.all(jnp.isfinite(out)))

    ref = jax.block_until_ready(jax.jit(convnet256_reference)(x, raw))
    num = float(jnp.sqrt(jnp.sum((out - ref) ** 2)))
    den = float(jnp.sqrt(jnp.sum(ref ** 2))) + 1e-6
    assert num / den < 5e-2, ("relative L2 error too large", num / den)

    print("KERNEL_OK")
</pallas_src>

<mosaic_0001>
module attributes {stable_mosaic.version = 11 : i64} {
  func.func @kernel(%arg0: i32, %arg1: memref<688x32xf32, #tpu.memory_space<vmem>>, %arg2: memref<288x128xbf16, #tpu.memory_space<vmem>>, %arg3: memref<1152x128xbf16, #tpu.memory_space<vmem>>, %arg4: memref<1152x128xbf16, #tpu.memory_space<vmem>>, %arg5: memref<1152x256xbf16, #tpu.memory_space<vmem>>, %arg6: memref<1x128xf32, #tpu.memory_space<vmem>>, %arg7: memref<1x128xf32, #tpu.memory_space<vmem>>, %arg8: memref<1x128xf32, #tpu.memory_space<vmem>>, %arg9: memref<1x256xf32, #tpu.memory_space<vmem>>, %arg10: memref<1x2x256xf32, #tpu.memory_space<vmem>>, %arg11: memref<222x128xf32, #tpu.memory_space<vmem>>, %arg12: memref<86x128xf32, #tpu.memory_space<vmem>>, %arg13: memref<42x128xf32, #tpu.memory_space<vmem>>, %arg14: memref<630x128xf32, #tpu.memory_space<vmem>>, %arg15: memref<190x128xf32, #tpu.memory_space<vmem>>, %arg16: memref<66x128xf32, #tpu.memory_space<vmem>>) attributes {dimension_semantics = [#tpu.dimension_semantics<parallel>], iteration_bounds = array<i64: 1>, scalar_prefetch = 0 : i64, scratch_operands = 6 : i64, tpu.core_type = #tpu.core_type<tc>, window_params = [{transform_indices = @transform_0, window_bounds = array<i64: 688, 32>}, {pipeline_mode = #tpu.pipeline_mode<synchronous>, transform_indices = @transform_1, window_bounds = array<i64: 288, 128>}, {pipeline_mode = #tpu.pipeline_mode<synchronous>, transform_indices = @transform_2, window_bounds = array<i64: 1152, 128>}, {pipeline_mode = #tpu.pipeline_mode<synchronous>, transform_indices = @transform_3, window_bounds = array<i64: 1152, 128>}, {pipeline_mode = #tpu.pipeline_mode<synchronous>, transform_indices = @transform_4, window_bounds = array<i64: 1152, 256>}, {pipeline_mode = #tpu.pipeline_mode<synchronous>, transform_indices = @transform_5, window_bounds = array<i64: 1, 128>}, {pipeline_mode = #tpu.pipeline_mode<synchronous>, transform_indices = @transform_6, window_bounds = array<i64: 1, 128>}, {pipeline_mode = #tpu.pipeline_mode<synchronous>, transform_indices = @transform_7, window_bounds = array<i64: 1, 128>}, {pipeline_mode = #tpu.pipeline_mode<synchronous>, transform_indices = @transform_8, window_bounds = array<i64: 1, 256>}, {transform_indices = @transform_9, window_bounds = array<i64: 1, 2, 256>}]} {
    %cst = arith.constant 0.000000e+00 : f32
    %0 = vector.broadcast %cst : f32 to vector<222x128xf32>
    %c0 = arith.constant 0 : index
    %c0_0 = arith.constant 0 : index
    %1 = vector.load %arg11[%c0, %c0_0] : memref<222x128xf32, #tpu.memory_space<vmem>>, vector<222x128xf32>
    tpu.vector_store %arg11[%c0, %c0_0], %0 {strides = array<i32>} : memref<222x128xf32, #tpu.memory_space<vmem>>, vector<222x128xf32>,
    %cst_1 = arith.constant 0.000000e+00 : f32
    %2 = vector.broadcast %cst_1 : f32 to vector<86x128xf32>
    %c0_2 = arith.constant 0 : index
    %c0_3 = arith.constant 0 : index
    %3 = vector.load %arg12[%c0_2, %c0_3] : memref<86x128xf32, #tpu.memory_space<vmem>>, vector<86x128xf32>
    tpu.vector_store %arg12[%c0_2, %c0_3], %2 {strides = array<i32>} : memref<86x128xf32, #tpu.memory_space<vmem>>, vector<86x128xf32>,
    %cst_4 = arith.constant 0.000000e+00 : f32
    %4 = vector.broadcast %cst_4 : f32 to vector<42x128xf32>
    %c0_5 = arith.constant 0 : index
    %c0_6 = arith.constant 0 : index
    %5 = vector.load %arg13[%c0_5, %c0_6] : memref<42x128xf32, #tpu.memory_space<vmem>>, vector<42x128xf32>
    tpu.vector_store %arg13[%c0_5, %c0_6], %4 {strides = array<i32>} : memref<42x128xf32, #tpu.memory_space<vmem>>, vector<42x128xf32>,
    %c0_7 = arith.constant 0 : index
    %c0_8 = arith.constant 0 : index
    %6 = vector.load %arg1[%c0_7, %c0_8] : memref<688x32xf32, #tpu.memory_space<vmem>>, vector<648x32xf32>
    %c1 = arith.constant 1 : index
    %c0_9 = arith.constant 0 : index
    %7 = vector.load %arg1[%c1, %c0_9] : memref<688x32xf32, #tpu.memory_space<vmem>>, vector<648x32xf32>
    %c2 = arith.constant 2 : index
    %c0_10 = arith.constant 0 : index
    %8 = vector.load %arg1[%c2, %c0_10] : memref<688x32xf32, #tpu.memory_space<vmem>>, vector<648x32xf32>
    %c18 = arith.constant 18 : index
    %c0_11 = arith.constant 0 : index
    %9 = vector.load %arg1[%c18, %c0_11] : memref<688x32xf32, #tpu.memory_space<vmem>>, vector<648x32xf32>
    %c19 = arith.constant 19 : index
    %c0_12 = arith.constant 0 : index
    %10 = vector.load %arg1[%c19, %c0_12] : memref<688x32xf32, #tpu.memory_space<vmem>>, vector<648x32xf32>
    %c20 = arith.constant 20 : index
    %c0_13 = arith.constant 0 : index
    %11 = vector.load %arg1[%c20, %c0_13] : memref<688x32xf32, #tpu.memory_space<vmem>>, vector<648x32xf32>
    %c36 = arith.constant 36 : index
    %c0_14 = arith.constant 0 : index
    %12 = vector.load %arg1[%c36, %c0_14] : memref<688x32xf32, #tpu.memory_space<vmem>>, vector<648x32xf32>
    %c37 = arith.constant 37 : index
    %c0_15 = arith.constant 0 : index
    %13 = vector.load %arg1[%c37, %c0_15] : memref<688x32xf32, #tpu.memory_space<vmem>>, vector<648x32xf32>
    %c38 = arith.constant 38 : index
    %c0_16 = arith.constant 0 : index
    %14 = vector.load %arg1[%c38, %c0_16] : memref<688x32xf32, #tpu.memory_space<vmem>>, vector<648x32xf32>
    %15 = tpu.concatenate %6, %7, %8, %9, %10, %11, %12, %13, %14 in 1 : vector<648x32xf32>, vector<648x32xf32>, vector<648x32xf32>, vector<648x32xf32>, vector<648x32xf32>, vector<648x32xf32>, vector<648x32xf32>, vector<648x32xf32>, vector<648x32xf32> -> vector<648x288xf32>
    %16 = arith.truncf %15 : vector<648x288xf32> to vector<648x288xbf16>
    %c0_17 = arith.constant 0 : index
    %c0_18 = arith.constant 0 : index
    %17 = vector.load %arg2[%c0_17, %c0_18] : memref<288x128xbf16, #tpu.memory_space<vmem>>, vector<288x128xbf16>
    %cst_19 = arith.constant dense<0.000000e+00> : vector<648x128xf32>
    %18 = tpu.matmul %16, %17, %cst_19 {dimension_numbers = #tpu.dot_dimension_numbers<[1], [0], [0], [1], [0, 0, 1, 1], [], []>} : vector<648x288xbf16>, vector<288x128xbf16>, vector<648x128xf32> -> vector<648x128xf32>
    %c0_20 = arith.constant 0 : index
    %c0_21 = arith.constant 0 : index
    %19 = vector.load %arg6[%c0_20, %c0_21] : memref<1x128xf32, #tpu.memory_space<vmem>>, vector<1x128xf32>
    %20 = vector.broadcast %19 : vector<1x128xf32> to vector<648x128xf32>
    %21 = arith.addf %18, %20 : vector<648x128xf32>
    %cst_22 = arith.constant 0.000000e+00 : f32
    %22 = vector.broadcast %cst_22 : f32 to vector<648x128xf32>
    %23 = arith.maximumf %21, %22 : vector<648x128xf32>
    %24 = vector.extract_strided_slice %23 {offsets = [0, 0], sizes = [630, 128], strides = [1, 1]} : vector<648x128xf32> to vector<630x128xf32>
    %25 = vector.extract_strided_slice %23 {offsets = [18, 0], sizes = [630, 128], strides = [1, 1]} : vector<648x128xf32> to vector<630x128xf32>
    %26 = arith.maximumf %24, %25 : vector<630x128xf32>
    %c0_23 = arith.constant 0 : index
    %c0_24 = arith.constant 0 : index
    %27 = vector.load %arg14[%c0_23, %c0_24] : memref<630x128xf32, #tpu.memory_space<vmem>>, vector<630x128xf32>
    tpu.vector_store %arg14[%c0_23, %c0_24], %26 {strides = array<i32>} : memref<630x128xf32, #tpu.memory_space<vmem>>, vector<630x128xf32>,
    %c19_25 = arith.constant 19 : index
    %c0_26 = arith.constant 0 : index
    %28 = tpu.strided_load %arg14[%c19_25, %c0_26] {strides = array<i32: 2, 1>} : memref<630x128xf32, #tpu.memory_space<vmem>>, vector<8x128xf32>
    %c20_27 = arith.constant 20 : index
    %c0_28 = arith.constant 0 : index
    %29 = tpu.strided_load %arg14[%c20_27, %c0_28] {strides = array<i32: 2, 1>} : memref<630x128xf32, #tpu.memory_space<vmem>>, vector<8x128xf32>
    %30 = arith.maximumf %28, %29 : vector<8x128xf32>
    %c22 = arith.constant 22 : index
    %c0_29 = arith.constant 0 : index
    %31 = vector.load %arg11[%c22, %c0_29] : memref<222x128xf32, #tpu.memory_space<vmem>>, vector<8x128xf32>
    tpu.vector_store %arg11[%c22, %c0_29], %30 {strides = array<i32>} : memref<222x128xf32, #tpu.memory_space<vmem>>, vector<8x128xf32>,
    %c55 = arith.constant 55 : index
    %c0_30 = arith.constant 0 : index
    %32 = tpu.strided_load %arg14[%c55, %c0_30] {strides = array<i32: 2, 1>} : memref<630x128xf32, #tpu.memory_space<vmem>>, vector<8x128xf32>
    %c56 = arith.constant 56 : index
    %c0_31 = arith.constant 0 : index
    %33 = tpu.strided_load %arg14[%c56, %c0_31] {strides = array<i32: 2, 1>} : memref<630x128xf32, #tpu.memory_space<vmem>>, vector<8x128xf32>
    %34 = arith.maximumf %32, %33 : vector<8x128xf32>
    %c32 = arith.constant 32 : index
    %c0_32 = arith.constant 0 : index
    %35 = vector.load %arg11[%c32, %c0_32] : memref<222x128xf32, #tpu.memory_space<vmem>>, vector<8x128xf32>
    tpu.vector_store %arg11[%c32, %c0_32], %34 {strides = array<i32>} : memref<222x128xf32, #tpu.memory_space<vmem>>, vector<8x128xf32>,
    %c91 = arith.constant 91 : index
    %c0_33 = arith.constant 0 : index
    %36 = tpu.strided_load %arg14[%c91, %c0_33] {strides = array<i32: 2, 1>} : memref<630x128xf32, #tpu.memory_space<vmem>>, vector<8x128xf32>
    %c92 = arith.constant 92 : index
    %c0_34 = arith.constant 0 : index
    %37 = tpu.strided_load %arg14[%c92, %c0_34] {strides = array<i32: 2, 1>} : memref<630x128xf32, #tpu.memory_space<vmem>>, vector<8x128xf32>
    %38 = arith.maximumf %36, %37 : vector<8x128xf32>
    %c42 = arith.constant 42 : index
    %c0_35 = arith.constant 0 : index
    %39 = vector.load %arg11[%c42, %c0_35] : memref<222x128xf32, #tpu.memory_space<vmem>>, vector<8x128xf32>
    tpu.vector_store %arg11[%c42, %c0_35], %38 {strides = array<i32>} : memref<222x128xf32, #tpu.memory_space<vmem>>, vector<8x128xf32>,
    %c127 = arith.constant 127 : index
    %c0_36 = arith.constant 0 : index
    %40 = tpu.strided_load %arg14[%c127, %c0_36] {strides = array<i32: 2, 1>} : memref<630x128xf32, #tpu.memory_space<vmem>>, vector<8x128xf32>
    %c128 = arith.constant 128 : index
    %c0_37 = arith.constant 0 : index
    %41 = tpu.strided_load %arg14[%c128, %c0_37] {strides = array<i32: 2, 1>} : memref<630x128xf32, #tpu.memory_space<vmem>>, vector<8x128xf32>
    %42 = arith.maximumf %40, %41 : vector<8x128xf32>
    %c52 = arith.constant 52 : index
    %c0_38 = arith.constant 0 : index
    %43 = vector.load %arg11[%c52, %c0_38] : memref<222x128xf32, #tpu.memory_space<vmem>>, vector<8x128xf32>
    tpu.vector_store %arg11[%c52, %c0_38], %42 {strides = array<i32>} : memref<222x128xf32, #tpu.memory_space<vmem>>, vector<8x128xf32>,
    %c163 = arith.constant 163 : index
    %c0_39 = arith.constant 0 : index
    %44 = tpu.strided_load %arg14[%c163, %c0_39] {strides = array<i32: 2, 1>} : memref<630x128xf32, #tpu.memory_space<vmem>>, vector<8x128xf32>
    %c164 = arith.constant 164 : index
    %c0_40 = arith.constant 0 : index
    %45 = tpu.strided_load %arg14[%c164, %c0_40] {strides = array<i32: 2, 1>} : memref<630x128xf32, #tpu.memory_space<vmem>>, vector<8x128xf32>
    %46 = arith.maximumf %44, %45 : vector<8x128xf32>
    %c62 = arith.constant 62 : index
    %c0_41 = arith.constant 0 : index
    %47 = vector.load %arg11[%c62, %c0_41] : memref<222x128xf32, #tpu.memory_space<vmem>>, vector<8x128xf32>
    tpu.vector_store %arg11[%c62, %c0_41], %46 {strides = array<i32>} : memref<222x128xf32, #tpu.memory_space<vmem>>, vector<8x128xf32>,
    %c199 = arith.constant 199 : index
    %c0_42 = arith.constant 0 : index
    %48 = tpu.strided_load %arg14[%c199, %c0_42] {strides = array<i32: 2, 1>} : memref<630x128xf32, #tpu.memory_space<vmem>>, vector<8x128xf32>
    %c200 = arith.constant 200 : index
    %c0_43 = arith.constant 0 : index
    %49 = tpu.strided_load %arg14[%c200, %c0_43] {strides = array<i32: 2, 1>} : memref<630x128xf32, #tpu.memory_space<vmem>>, vector<8x128xf32>
    %50 = arith.maximumf %48, %49 : vector<8x128xf32>
    %c72 = arith.constant 72 : index
    %c0_44 = arith.constant 0 : index
    %51 = vector.load %arg11[%c72, %c0_44] : memref<222x128xf32, #tpu.memory_space<vmem>>, vector<8x128xf32>
    tpu.vector_store %arg11[%c72, %c0_44], %50 {strides = array<i32>} : memref<222x128xf32, #tpu.memory_space<vmem>>, vector<8x128xf32>,
    %c235 = arith.constant 235 : index
    %c0_45 = arith.constant 0 : index
    %52 = tpu.strided_load %arg14[%c235, %c0_45] {strides = array<i32: 2, 1>} : memref<630x128xf32, #tpu.memory_space<vmem>>, vector<8x128xf32>
    %c236 = arith.constant 236 : index
    %c0_46 = arith.constant 0 : index
    %53 = tpu.strided_load %arg14[%c236, %c0_46] {strides = array<i32: 2, 1>} : memref<630x128xf32, #tpu.memory_space<vmem>>, vector<8x128xf32>
    %54 = arith.maximumf %52, %53 : vector<8x128xf32>
    %c82 = arith.constant 82 : index
    %c0_47 = arith.constant 0 : index
    %55 = vector.load %arg11[%c82, %c0_47] : memref<222x128xf32, #tpu.memory_space<vmem>>, vector<8x128xf32>
    tpu.vector_store %arg11[%c82, %c0_47], %54 {strides = array<i32>} : memref<222x128xf32, #tpu.memory_space<vmem>>, vector<8x128xf32>,
    %c271 = arith.constant 271 : index
    %c0_48 = arith.constant 0 : index
    %56 = tpu.strided_load %arg14[%c271, %c0_48] {strides = array<i32: 2, 1>} : memref<630x128xf32, #tpu.memory_space<vmem>>, vector<8x128xf32>
    %c272 = arith.constant 272 : index
    %c0_49 = arith.constant 0 : index
    %57 = tpu.strided_load %arg14[%c272, %c0_49] {strides = array<i32: 2, 1>} : memref<630x128xf32, #tpu.memory_space<vmem>>, vector<8x128xf32>
    %58 = arith.maximumf %56, %57 : vector<8x128xf32>
    %c92_50 = arith.constant 92 : index
    %c0_51 = arith.constant 0 : index
    %59 = vector.load %arg11[%c92_50, %c0_51] : memref<222x128xf32, #tpu.memory_space<vmem>>, vector<8x128xf32>
    tpu.vector_store %arg11[%c92_50, %c0_51], %58 {strides = array<i32>} : memref<222x128xf32, #tpu.memory_space<vmem>>, vector<8x128xf32>,
    %c343 = arith.constant 343 : index
    %c0_52 = arith.constant 0 : index
    %60 = tpu.strided_load %arg14[%c343, %c0_52] {strides = array<i32: 2, 1>} : memref<630x128xf32, #tpu.memory_space<vmem>>, vector<8x128xf32>
    %c344 = arith.constant 344 : index
    %c0_53 = arith.constant 0 : index
    %61 = tpu.strided_load %arg14[%c344, %c0_53] {strides = array<i32: 2, 1>} : memref<630x128xf32, #tpu.memory_space<vmem>>, vector<8x128xf32>
    %62 = arith.maximumf %60, %61 : vector<8x128xf32>
    %c122 = arith.constant 122 : index
    %c0_54 = arith.constant 0 : index
    %63 = vector.load %arg11[%c122, %c0_54] : memref<222x128xf32, #tpu.memory_space<vmem>>, vector<8x128xf32>
    tpu.vector_store %arg11[%c122, %c0_54], %62 {strides = array<i32>} : memref<222x128xf32, #tpu.memory_space<vmem>>, vector<8x128xf32>,
    %c379 = arith.constant 379 : index
    %c0_55 = arith.constant 0 : index
    %64 = tpu.strided_load %arg14[%c379, %c0_55] {strides = array<i32: 2, 1>} : memref<630x128xf32, #tpu.memory_space<vmem>>, vector<8x128xf32>
    %c380 = arith.constant 380 : index
    %c0_56 = arith.constant 0 : index
    %65 = tpu.strided_load %arg14[%c380, %c0_56] {strides = array<i32: 2, 1>} : memref<630x128xf32, #tpu.memory_space<vmem>>, vector<8x128xf32>
    %66 = arith.maximumf %64, %65 : vector<8x128xf32>
    %c132 = arith.constant 132 : index
    %c0_57 = arith.constant 0 : index
    %67 = vector.load %arg11[%c132, %c0_57] : memref<222x128xf32, #tpu.memory_space<vmem>>, vector<8x128xf32>
    tpu.vector_store %arg11[%c132, %c0_57], %66 {strides = array<i32>} : memref<222x128xf32, #tpu.memory_space<vmem>>, vector<8x128xf32>,
    %c415 = arith.constant 415 : index
    %c0_58 = arith.constant 0 : index
    %68 = tpu.strided_load %arg14[%c415, %c0_58] {strides = array<i32: 2, 1>} : memref<630x128xf32, #tpu.memory_space<vmem>>, vector<8x128xf32>
    %c416 = arith.constant 416 : index
    %c0_59 = arith.constant 0 : index
    %69 = tpu.strided_load %arg14[%c416, %c0_59] {strides = array<i32: 2, 1>} : memref<630x128xf32, #tpu.memory_space<vmem>>, vector<8x128xf32>
    %70 = arith.maximumf %68, %69 : vector<8x128xf32>
    %c142 = arith.constant 142 : index
    %c0_60 = arith.constant 0 : index
    %71 = vector.load %arg11[%c142, %c0_60] : memref<222x128xf32, #tpu.memory_space<vmem>>, vector<8x128xf32>
    tpu.vector_store %arg11[%c142, %c0_60], %70 {strides = array<i32>} : memref<222x128xf32, #tpu.memory_space<vmem>>, vector<8x128xf32>,
    %c451 = arith.constant 451 : index
    %c0_61 = arith.constant 0 : index
    %72 = tpu.strided_load %arg14[%c451, %c0_61] {strides = array<i32: 2, 1>} : memref<630x128xf32, #tpu.memory_space<vmem>>, vector<8x128xf32>
    %c452 = arith.constant 452 : index
    %c0_62 = arith.constant 0 : index
    %73 = tpu.strided_load %arg14[%c452, %c0_62] {strides = array<i32: 2, 1>} : memref<630x128xf32, #tpu.memory_space<vmem>>, vector<8x128xf32>
    %74 = arith.maximumf %72, %73 : vector<8x128xf32>
    %c152 = arith.constant 152 : index
    %c0_63 = arith.constant 0 : index
    %75 = vector.load %arg11[%c152, %c0_63] : memref<222x128xf32, #tpu.memory_space<vmem>>, vector<8x128xf32>
    tpu.vector_store %arg11[%c152, %c0_63], %74 {strides = array<i32>} : memref<222x128xf32, #tpu.memory_space<vmem>>, vector<8x128xf32>,
    %c487 = arith.constant 487 : index
    %c0_64 = arith.constant 0 : index
    %76 = tpu.strided_load %arg14[%c487, %c0_64] {strides = array<i32: 2, 1>} : memref<630x128xf32, #tpu.memory_space<vmem>>, vector<8x128xf32>
    %c488 = arith.constant 488 : index
    %c0_65 = arith.constant 0 : index
    %77 = tpu.strided_load %arg14[%c488, %c0_65] {strides = array<i32: 2, 1>} : memref<630x128xf32, #tpu.memory_space<vmem>>, vector<8x128xf32>
    %78 = arith.maximumf %76, %77 : vector<8x128xf32>
    %c162 = arith.constant 162 : index
    %c0_66 = arith.constant 0 : index
    %79 = vector.load %arg11[%c162, %c0_66] : memref<222x128xf32, #tpu.memory_space<vmem>>, vector<8x128xf32>
    tpu.vector_store %arg11[%c162, %c0_66], %78 {strides = array<i32>} : memref<222x128xf32, #tpu.memory_space<vmem>>, vector<8x128xf32>,
    %c523 = arith.constant 523 : index
    %c0_67 = arith.constant 0 : index
    %80 = tpu.strided_load %arg14[%c523, %c0_67] {strides = array<i32: 2, 1>} : memref<630x128xf32, #tpu.memory_space<vmem>>, vector<8x128xf32>
    %c524 = arith.constant 524 : index
    %c0_68 = arith.constant 0 : index
    %81 = tpu.strided_load %arg14[%c524, %c0_68] {strides = array<i32: 2, 1>} : memref<630x128xf32, #tpu.memory_space<vmem>>, vector<8x128xf32>
    %82 = arith.maximumf %80, %81 : vector<8x128xf32>
    %c172 = arith.constant 172 : index
    %c0_69 = arith.constant 0 : index
    %83 = vector.load %arg11[%c172, %c0_69] : memref<222x128xf32, #tpu.memory_space<vmem>>, vector<8x128xf32>
    tpu.vector_store %arg11[%c172, %c0_69], %82 {strides = array<i32>} : memref<222x128xf32, #tpu.memory_space<vmem>>, vector<8x128xf32>,
    %c559 = arith.constant 559 : index
    %c0_70 = arith.constant 0 : index
    %84 = tpu.strided_load %arg14[%c559, %c0_70] {strides = array<i32: 2, 1>} : memref<630x128xf32, #tpu.memory_space<vmem>>, vector<8x128xf32>
    %c560 = arith.constant 560 : index
    %c0_71 = arith.constant 0 : index
    %85 = tpu.strided_load %arg14[%c560, %c0_71] {strides = array<i32: 2, 1>} : memref<630x128xf32, #tpu.memory_space<vmem>>, vector<8x128xf32>
    %86 = arith.maximumf %84, %85 : vector<8x128xf32>
    %c182 = arith.constant 182 : index
    %c0_72 = arith.constant 0 : index
    %87 = vector.load %arg11[%c182, %c0_72] : memref<222x128xf32, #tpu.memory_space<vmem>>, vector<8x128xf32>
    tpu.vector_store %arg11[%c182, %c0_72], %86 {strides = array<i32>} : memref<222x128xf32, #tpu.memory_space<vmem>>, vector<8x128xf32>,
    %c595 = arith.constant 595 : index
    %c0_73 = arith.constant 0 : index
    %88 = tpu.strided_load %arg14[%c595, %c0_73] {strides = array<i32: 2, 1>} : memref<630x128xf32, #tpu.memory_space<vmem>>, vector<8x128xf32>
    %c596 = arith.constant 596 : index
    %c0_74 = arith.constant 0 : index
    %89 = tpu.strided_load %arg14[%c596, %c0_74] {strides = array<i32: 2, 1>} : memref<630x128xf32, #tpu.memory_space<vmem>>, vector<8x128xf32>
    %90 = arith.maximumf %88, %89 : vector<8x128xf32>
    %c192 = arith.constant 192 : index
    %c0_75 = arith.constant 0 : index
    %91 = vector.load %arg11[%c192, %c0_75] : memref<222x128xf32, #tpu.memory_space<vmem>>, vector<8x128xf32>
    tpu.vector_store %arg11[%c192, %c0_75], %90 {strides = array<i32>} : memref<222x128xf32, #tpu.memory_space<vmem>>, vector<8x128xf32>,
    %c0_76 = arith.constant 0 : index
    %c0_77 = arith.constant 0 : index
    %92 = vector.load %arg11[%c0_76, %c0_77] : memref<222x128xf32, #tpu.memory_space<vmem>>, vector<200x128xf32>
    %c1_78 = arith.constant 1 : index
    %c0_79 = arith.constant 0 : index
    %93 = vector.load %arg11[%c1_78, %c0_79] : memref<222x128xf32, #tpu.memory_space<vmem>>, vector<200x128xf32>
    %c2_80 = arith.constant 2 : index
    %c0_81 = arith.constant 0 : index
    %94 = vector.load %arg11[%c2_80, %c0_81] : memref<222x128xf32, #tpu.memory_space<vmem>>, vector<200x128xf32>
    %c10 = arith.constant 10 : index
    %c0_82 = arith.constant 0 : index
    %95 = vector.load %arg11[%c10, %c0_82] : memref<222x128xf32, #tpu.memory_space<vmem>>, vector<200x128xf32>
    %c11 = arith.constant 11 : index
    %c0_83 = arith.constant 0 : index
    %96 = vector.load %arg11[%c11, %c0_83] : memref<222x128xf32, #tpu.memory_space<vmem>>, vector<200x128xf32>
    %c12 = arith.constant 12 : index
    %c0_84 = arith.constant 0 : index
    %97 = vector.load %arg11[%c12, %c0_84] : memref<222x128xf32, #tpu.memory_space<vmem>>, vector<200x128xf32>
    %c20_85 = arith.constant 20 : index
    %c0_86 = arith.constant 0 : index
    %98 = vector.load %arg11[%c20_85, %c0_86] : memref<222x128xf32, #tpu.memory_space<vmem>>, vector<200x128xf32>
    %c21 = arith.constant 21 : index
    %c0_87 = arith.constant 0 : index
    %99 = vector.load %arg11[%c21, %c0_87] : memref<222x128xf32, #tpu.memory_space<vmem>>, vector<200x128xf32>
    %c22_88 = arith.constant 22 : index
    %c0_89 = arith.constant 0 : index
    %100 = vector.load %arg11[%c22_88, %c0_89] : memref<222x128xf32, #tpu.memory_space<vmem>>, vector<200x128xf32>
    %101 = tpu.concatenate %92, %93, %94, %95, %96, %97, %98, %99, %100 in 1 : vector<200x128xf32>, vector<200x128xf32>, vector<200x128xf32>, vector<200x128xf32>, vector<200x128xf32>, vector<200x128xf32>, vector<200x128xf32>, vector<200x128xf32>, vector<200x128xf32> -> vector<200x1152xf32>
    %102 = arith.truncf %101 : vector<200x1152xf32> to vector<200x1152xbf16>
    %c0_90 = arith.constant 0 : index
    %c0_91 = arith.constant 0 : index
    %103 = vector.load %arg3[%c0_90, %c0_91] : memref<1152x128xbf16, #tpu.memory_space<vmem>>, vector<1152x128xbf16>
    %cst_92 = arith.constant dense<0.000000e+00> : vector<200x128xf32>
    %104 = tpu.matmul %102, %103, %cst_92 {dimension_numbers = #tpu.dot_dimension_numbers<[1], [0], [0], [1], [0, 0, 1, 1], [], []>} : vector<200x1152xbf16>, vector<1152x128xbf16>, vector<200x128xf32> -> vector<200x128xf32>
    %c0_93 = arith.constant 0 : index
    %c0_94 = arith.constant 0 : index
    %105 = vector.load %arg7[%c0_93, %c0_94] : memref<1x128xf32, #tpu.memory_space<vmem>>, vector<1x128xf32>
    %106 = vector.broadcast %105 : vector<1x128xf32> to vector<200x128xf32>
    %107 = arith.addf %104, %106 : vector<200x128xf32>
    %cst_95 = arith.constant 0.000000e+00 : f32
    %108 = vector.broadcast %cst_95 : f32 to vector<200x128xf32>
    %109 = arith.maximumf %107, %108 : vector<200x128xf32>
    %110 = vector.extract_strided_slice %109 {offsets = [0, 0], sizes = [190, 128], strides = [1, 1]} : vector<200x128xf32> to vector<190x128xf32>
    %111 = vector.extract_strided_slice %109 {offsets = [10, 0], sizes = [190, 128], strides = [1, 1]} : vector<200x128xf32> to vector<190x128xf32>
    %112 = arith.maximumf %110, %111 : vector<190x128xf32>
    %c0_96 = arith.constant 0 : index
    %c0_97 = arith.constant 0 : index
    %113 = vector.load %arg15[%c0_96, %c0_97] : memref<190x128xf32, #tpu.memory_space<vmem>>, vector<190x128xf32>
    tpu.vector_store %arg15[%c0_96, %c0_97], %112 {strides = array<i32>} : memref<190x128xf32, #tpu.memory_space<vmem>>, vector<190x128xf32>,
    %c11_98 = arith.constant 11 : index
    %c0_99 = arith.constant 0 : index
    %114 = tpu.strided_load %arg15[%c11_98, %c0_99] {strides = array<i32: 2, 1>} : memref<190x128xf32, #tpu.memory_space<vmem>>, vector<4x128xf32>
    %c12_100 = arith.constant 12 : index
    %c0_101 = arith.constant 0 : index
    %115 = tpu.strided_load %arg15[%c12_100, %c0_101] {strides = array<i32: 2, 1>} : memref<190x128xf32, #tpu.memory_space<vmem>>, vector<4x128xf32>
    %116 = arith.maximumf %114, %115 : vector<4x128xf32>
    %c14 = arith.constant 14 : index
    %c0_102 = arith.constant 0 : index
    %117 = vector.load %arg12[%c14, %c0_102] : memref<86x128xf32, #tpu.memory_space<vmem>>, vector<4x128xf32>
    tpu.vector_store %arg12[%c14, %c0_102], %116 {strides = array<i32>} : memref<86x128xf32, #tpu.memory_space<vmem>>, vector<4x128xf32>,
    %c31 = arith.constant 31 : index
    %c0_103 = arith.constant 0 : index
    %118 = tpu.strided_load %arg15[%c31, %c0_103] {strides = array<i32: 2, 1>} : memref<190x128xf32, #tpu.memory_space<vmem>>, vector<4x128xf32>
    %c32_104 = arith.constant 32 : index
    %c0_105 = arith.constant 0 : index
    %119 = tpu.strided_load %arg15[%c32_104, %c0_105] {strides = array<i32: 2, 1>} : memref<190x128xf32, #tpu.memory_space<vmem>>, vector<4x128xf32>
    %120 = arith.maximumf %118, %119 : vector<4x128xf32>
    %c20_106 = arith.constant 20 : index
    %c0_107 = arith.constant 0 : index
    %121 = vector.load %arg12[%c20_106, %c0_107] : memref<86x128xf32, #tpu.memory_space<vmem>>, vector<4x128xf32>
    tpu.vector_store %arg12[%c20_106, %c0_107], %120 {strides = array<i32>} : memref<86x128xf32, #tpu.memory_space<vmem>>, vector<4x128xf32>,
    %c51 = arith.constant 51 : index
    %c0_108 = arith.constant 0 : index
    %122 = tpu.strided_load %arg15[%c51, %c0_108] {strides = array<i32: 2, 1>} : memref<190x128xf32, #tpu.memory_space<vmem>>, vector<4x128xf32>
    %c52_109 = arith.constant 52 : index
    %c0_110 = arith.constant 0 : index
    %123 = tpu.strided_load %arg15[%c52_109, %c0_110] {strides = array<i32: 2, 1>} : memref<190x128xf32, #tpu.memory_space<vmem>>, vector<4x128xf32>
    %124 = arith.maximumf %122, %123 : vector<4x128xf32>
    %c26 = arith.constant 26 : index
    %c0_111 = arith.constant 0 : index
    %125 = vector.load %arg12[%c26, %c0_111] : memref<86x128xf32, #tpu.memory_space<vmem>>, vector<4x128xf32>
    tpu.vector_store %arg12[%c26, %c0_111], %124 {strides = array<i32>} : memref<86x128xf32, #tpu.memory_space<vmem>>, vector<4x128xf32>,
    %c71 = arith.constant 71 : index
    %c0_112 = arith.constant 0 : index
    %126 = tpu.strided_load %arg15[%c71, %c0_112] {strides = array<i32: 2, 1>} : memref<190x128xf32, #tpu.memory_space<vmem>>, vector<4x128xf32>
    %c72_113 = arith.constant 72 : index
    %c0_114 = arith.constant 0 : index
    %127 = tpu.strided_load %arg15[%c72_113, %c0_114] {strides = array<i32: 2, 1>} : memref<190x128xf32, #tpu.memory_space<vmem>>, vector<4x128xf32>
    %128 = arith.maximumf %126, %127 : vector<4x128xf32>
    %c32_115 = arith.constant 32 : index
    %c0_116 = arith.constant 0 : index
    %129 = vector.load %arg12[%c32_115, %c0_116] : memref<86x128xf32, #tpu.memory_space<vmem>>, vector<4x128xf32>
    tpu.vector_store %arg12[%c32_115, %c0_116], %128 {strides = array<i32>} : memref<86x128xf32, #tpu.memory_space<vmem>>, vector<4x128xf32>,
    %c111 = arith.constant 111 : index
    %c0_117 = arith.constant 0 : index
    %130 = tpu.strided_load %arg15[%c111, %c0_117] {strides = array<i32: 2, 1>} : memref<190x128xf32, #tpu.memory_space<vmem>>, vector<4x128xf32>
    %c112 = arith.constant 112 : index
    %c0_118 = arith.constant 0 : index
    %131 = tpu.strided_load %arg15[%c112, %c0_118] {strides = array<i32: 2, 1>} : memref<190x128xf32, #tpu.memory_space<vmem>>, vector<4x128xf32>
    %132 = arith.maximumf %130, %131 : vector<4x128xf32>
    %c50 = arith.constant 50 : index
    %c0_119 = arith.constant 0 : index
    %133 = vector.load %arg12[%c50, %c0_119] : memref<86x128xf32, #tpu.memory_space<vmem>>, vector<4x128xf32>
    tpu.vector_store %arg12[%c50, %c0_119], %132 {strides = array<i32>} : memref<86x128xf32, #tpu.memory_space<vmem>>, vector<4x128xf32>,
    %c131 = arith.constant 131 : index
    %c0_120 = arith.constant 0 : index
    %134 = tpu.strided_load %arg15[%c131, %c0_120] {strides = array<i32: 2, 1>} : memref<190x128xf32, #tpu.memory_space<vmem>>, vector<4x128xf32>
    %c132_121 = arith.constant 132 : index
    %c0_122 = arith.constant 0 : index
    %135 = tpu.strided_load %arg15[%c132_121, %c0_122] {strides = array<i32: 2, 1>} : memref<190x128xf32, #tpu.memory_space<vmem>>, vector<4x128xf32>
    %136 = arith.maximumf %134, %135 : vector<4x128xf32>
    %c56_123 = arith.constant 56 : index
    %c0_124 = arith.constant 0 : index
    %137 = vector.load %arg12[%c56_123, %c0_124] : memref<86x128xf32, #tpu.memory_space<vmem>>, vector<4x128xf32>
    tpu.vector_store %arg12[%c56_123, %c0_124], %136 {strides = array<i32>} : memref<86x128xf32, #tpu.memory_space<vmem>>, vector<4x128xf32>,
    %c151 = arith.constant 151 : index
    %c0_125 = arith.constant 0 : index
    %138 = tpu.strided_load %arg15[%c151, %c0_125] {strides = array<i32: 2, 1>} : memref<190x128xf32, #tpu.memory_space<vmem>>, vector<4x128xf32>
    %c152_126 = arith.constant 152 : index
    %c0_127 = arith.constant 0 : index
    %139 = tpu.strided_load %arg15[%c152_126, %c0_127] {strides = array<i32: 2, 1>} : memref<190x128xf32, #tpu.memory_space<vmem>>, vector<4x128xf32>
    %140 = arith.maximumf %138, %139 : vector<4x128xf32>
    %c62_128 = arith.constant 62 : index
    %c0_129 = arith.constant 0 : index
    %141 = vector.load %arg12[%c62_128, %c0_129] : memref<86x128xf32, #tpu.memory_space<vmem>>, vector<4x128xf32>
    tpu.vector_store %arg12[%c62_128, %c0_129], %140 {strides = array<i32>} : memref<86x128xf32, #tpu.memory_space<vmem>>, vector<4x128xf32>,
    %c171 = arith.constant 171 : index
    %c0_130 = arith.constant 0 : index
    %142 = tpu.strided_load %arg15[%c171, %c0_130] {strides = array<i32: 2, 1>} : memref<190x128xf32, #tpu.memory_space<vmem>>, vector<4x128xf32>
    %c172_131 = arith.constant 172 : index
    %c0_132 = arith.constant 0 : index
    %143 = tpu.strided_load %arg15[%c172_131, %c0_132] {strides = array<i32: 2, 1>} : memref<190x128xf32, #tpu.memory_space<vmem>>, vector<4x128xf32>
    %144 = arith.maximumf %142, %143 : vector<4x128xf32>
    %c68 = arith.constant 68 : index
    %c0_133 = arith.constant 0 : index
    %145 = vector.load %arg12[%c68, %c0_133] : memref<86x128xf32, #tpu.memory_space<vmem>>, vector<4x128xf32>
    tpu.vector_store %arg12[%c68, %c0_133], %144 {strides = array<i32>} : memref<86x128xf32, #tpu.memory_space<vmem>>, vector<4x128xf32>,
    %c0_134 = arith.constant 0 : index
    %c0_135 = arith.constant 0 : index
    %146 = vector.load %arg12[%c0_134, %c0_135] : memref<86x128xf32, #tpu.memory_space<vmem>>, vector<72x128xf32>
    %c1_136 = arith.constant 1 : index
    %c0_137 = arith.constant 0 : index
    %147 = vector.load %arg12[%c1_136, %c0_137] : memref<86x128xf32, #tpu.memory_space<vmem>>, vector<72x128xf32>
    %c2_138 = arith.constant 2 : index
    %c0_139 = arith.constant 0 : index
    %148 = vector.load %arg12[%c2_138, %c0_139] : memref<86x128xf32, #tpu.memory_space<vmem>>, vector<72x128xf32>
    %c6 = arith.constant 6 : index
    %c0_140 = arith.constant 0 : index
    %149 = vector.load %arg12[%c6, %c0_140] : memref<86x128xf32, #tpu.memory_space<vmem>>, vector<72x128xf32>
    %c7 = arith.constant 7 : index
    %c0_141 = arith.constant 0 : index
    %150 = vector.load %arg12[%c7, %c0_141] : memref<86x128xf32, #tpu.memory_space<vmem>>, vector<72x128xf32>
    %c8 = arith.constant 8 : index
    %c0_142 = arith.constant 0 : index
    %151 = vector.load %arg12[%c8, %c0_142] : memref<86x128xf32, #tpu.memory_space<vmem>>, vector<72x128xf32>
    %c12_143 = arith.constant 12 : index
    %c0_144 = arith.constant 0 : index
    %152 = vector.load %arg12[%c12_143, %c0_144] : memref<86x128xf32, #tpu.memory_space<vmem>>, vector<72x128xf32>
    %c13 = arith.constant 13 : index
    %c0_145 = arith.constant 0 : index
    %153 = vector.load %arg12[%c13, %c0_145] : memref<86x128xf32, #tpu.memory_space<vmem>>, vector<72x128xf32>
    %c14_146 = arith.constant 14 : index
    %c0_147 = arith.constant 0 : index
    %154 = vector.load %arg12[%c14_146, %c0_147] : memref<86x128xf32, #tpu.memory_space<vmem>>, vector<72x128xf32>
    %155 = tpu.concatenate %146, %147, %148, %149, %150, %151, %152, %153, %154 in 1 : vector<72x128xf32>, vector<72x128xf32>, vector<72x128xf32>, vector<72x128xf32>, vector<72x128xf32>, vector<72x128xf32>, vector<72x128xf32>, vector<72x128xf32>, vector<72x128xf32> -> vector<72x1152xf32>
    %156 = arith.truncf %155 : vector<72x1152xf32> to vector<72x1152xbf16>
    %c0_148 = arith.constant 0 : index
    %c0_149 = arith.constant 0 : index
    %157 = vector.load %arg4[%c0_148, %c0_149] : memref<1152x128xbf16, #tpu.memory_space<vmem>>, vector<1152x128xbf16>
    %cst_150 = arith.constant dense<0.000000e+00> : vector<72x128xf32>
    %158 = tpu.matmul %156, %157, %cst_150 {dimension_numbers = #tpu.dot_dimension_numbers<[1], [0], [0], [1], [0, 0, 1, 1], [], []>} : vector<72x1152xbf16>, vector<1152x128xbf16>, vector<72x128xf32> -> vector<72x128xf32>
    %c0_151 = arith.constant 0 : index
    %c0_152 = arith.constant 0 : index
    %159 = vector.load %arg8[%c0_151, %c0_152] : memref<1x128xf32, #tpu.memory_space<vmem>>, vector<1x128xf32>
    %160 = vector.broadcast %159 : vector<1x128xf32> to vector<72x128xf32>
    %161 = arith.addf %158, %160 : vector<72x128xf32>
    %cst_153 = arith.constant 0.000000e+00 : f32
    %162 = vector.broadcast %cst_153 : f32 to vector<72x128xf32>
    %163 = arith.maximumf %161, %162 : vector<72x128xf32>
    %164 = vector.extract_strided_slice %163 {offsets = [0, 0], sizes = [66, 128], strides = [1, 1]} : vector<72x128xf32> to vector<66x128xf32>
    %165 = vector.extract_strided_slice %163 {offsets = [6, 0], sizes = [66, 128], strides = [1, 1]} : vector<72x128xf32> to vector<66x128xf32>
    %166 = arith.maximumf %164, %165 : vector<66x128xf32>
    %c0_154 = arith.constant 0 : index
    %c0_155 = arith.constant 0 : index
    %167 = vector.load %arg16[%c0_154, %c0_155] : memref<66x128xf32, #tpu.memory_space<vmem>>, vector<66x128xf32>
    tpu.vector_store %arg16[%c0_154, %c0_155], %166 {strides = array<i32>} : memref<66x128xf32, #tpu.memory_space<vmem>>, vector<66x128xf32>,
    %c7_156 = arith.constant 7 : index
    %c0_157 = arith.constant 0 : index
    %168 = tpu.strided_load %arg16[%c7_156, %c0_157] {strides = array<i32: 2, 1>} : memref<66x128xf32, #tpu.memory_space<vmem>>, vector<2x128xf32>
    %c8_158 = arith.constant 8 : index
    %c0_159 = arith.constant 0 : index
    %169 = tpu.strided_load %arg16[%c8_158, %c0_159] {strides = array<i32: 2, 1>} : memref<66x128xf32, #tpu.memory_space<vmem>>, vector<2x128xf32>
    %170 = arith.maximumf %168, %169 : vector<2x128xf32>
    %c10_160 = arith.constant 10 : index
    %c0_161 = arith.constant 0 : index
    %171 = vector.load %arg13[%c10_160, %c0_161] : memref<42x128xf32, #tpu.memory_space<vmem>>, vector<2x128xf32>
    tpu.vector_store %arg13[%c10_160, %c0_161], %170 {strides = array<i32>} : memref<42x128xf32, #tpu.memory_space<vmem>>, vector<2x128xf32>,
    %c19_162 = arith.constant 19 : index
    %c0_163 = arith.constant 0 : index
    %172 = tpu.strided_load %arg16[%c19_162, %c0_163] {strides = array<i32: 2, 1>} : memref<66x128xf32, #tpu.memory_space<vmem>>, vector<2x128xf32>
    %c20_164 = arith.constant 20 : index
    %c0_165 = arith.constant 0 : index
    %173 = tpu.strided_load %arg16[%c20_164, %c0_165] {strides = array<i32: 2, 1>} : memref<66x128xf32, #tpu.memory_space<vmem>>, vector<2x128xf32>
    %174 = arith.maximumf %172, %173 : vector<2x128xf32>
    %c14_166 = arith.constant 14 : index
    %c0_167 = arith.constant 0 : index
    %175 = vector.load %arg13[%c14_166, %c0_167] : memref<42x128xf32, #tpu.memory_space<vmem>>, vector<2x128xf32>
    tpu.vector_store %arg13[%c14_166, %c0_167], %174 {strides = array<i32>} : memref<42x128xf32, #tpu.memory_space<vmem>>, vector<2x128xf32>,
    %c43 = arith.constant 43 : index
    %c0_168 = arith.constant 0 : index
    %176 = tpu.strided_load %arg16[%c43, %c0_168] {strides = array<i32: 2, 1>} : memref<66x128xf32, #tpu.memory_space<vmem>>, vector<2x128xf32>
    %c44 = arith.constant 44 : index
    %c0_169 = arith.constant 0 : index
    %177 = tpu.strided_load %arg16[%c44, %c0_169] {strides = array<i32: 2, 1>} : memref<66x128xf32, #tpu.memory_space<vmem>>, vector<2x128xf32>
    %178 = arith.maximumf %176, %177 : vector<2x128xf32>
    %c26_170 = arith.constant 26 : index
    %c0_171 = arith.constant 0 : index
    %179 = vector.load %arg13[%c26_170, %c0_171] : memref<42x128xf32, #tpu.memory_space<vmem>>, vector<2x128xf32>
    tpu.vector_store %arg13[%c26_170, %c0_171], %178 {strides = array<i32>} : memref<42x128xf32, #tpu.memory_space<vmem>>, vector<2x128xf32>,
    %c55_172 = arith.constant 55 : index
    %c0_173 = arith.constant 0 : index
    %180 = tpu.strided_load %arg16[%c55_172, %c0_173] {strides = array<i32: 2, 1>} : memref<66x128xf32, #tpu.memory_space<vmem>>, vector<2x128xf32>
    %c56_174 = arith.constant 56 : index
    %c0_175 = arith.constant 0 : index
    %181 = tpu.strided_load %arg16[%c56_174, %c0_175] {strides = array<i32: 2, 1>} : memref<66x128xf32, #tpu.memory_space<vmem>>, vector<2x128xf32>
    %182 = arith.maximumf %180, %181 : vector<2x128xf32>
    %c30 = arith.constant 30 : index
    %c0_176 = arith.constant 0 : index
    %183 = vector.load %arg13[%c30, %c0_176] : memref<42x128xf32, #tpu.memory_space<vmem>>, vector<2x128xf32>
    tpu.vector_store %arg13[%c30, %c0_176], %182 {strides = array<i32>} : memref<42x128xf32, #tpu.memory_space<vmem>>, vector<2x128xf32>,
    %c0_177 = arith.constant 0 : index
    %c0_178 = arith.constant 0 : index
    %184 = vector.load %arg13[%c0_177, %c0_178] : memref<42x128xf32, #tpu.memory_space<vmem>>, vector<32x128xf32>
    %c1_179 = arith.constant 1 : index
    %c0_180 = arith.constant 0 : index
    %185 = vector.load %arg13[%c1_179, %c0_180] : memref<42x128xf32, #tpu.memory_space<vmem>>, vector<32x128xf32>
    %c2_181 = arith.constant 2 : index
    %c0_182 = arith.constant 0 : index
    %186 = vector.load %arg13[%c2_181, %c0_182] : memref<42x128xf32, #tpu.memory_space<vmem>>, vector<32x128xf32>
    %c4 = arith.constant 4 : index
    %c0_183 = arith.constant 0 : index
    %187 = vector.load %arg13[%c4, %c0_183] : memref<42x128xf32, #tpu.memory_space<vmem>>, vector<32x128xf32>
    %c5 = arith.constant 5 : index
    %c0_184 = arith.constant 0 : index
    %188 = vector.load %arg13[%c5, %c0_184] : memref<42x128xf32, #tpu.memory_space<vmem>>, vector<32x128xf32>
    %c6_185 = arith.constant 6 : index
    %c0_186 = arith.constant 0 : index
    %189 = vector.load %arg13[%c6_185, %c0_186] : memref<42x128xf32, #tpu.memory_space<vmem>>, vector<32x128xf32>
    %c8_187 = arith.constant 8 : index
    %c0_188 = arith.constant 0 : index
    %190 = vector.load %arg13[%c8_187, %c0_188] : memref<42x128xf32, #tpu.memory_space<vmem>>, vector<32x128xf32>
    %c9 = arith.constant 9 : index
    %c0_189 = arith.constant 0 : index
    %191 = vector.load %arg13[%c9, %c0_189] : memref<42x128xf32, #tpu.memory_space<vmem>>, vector<32x128xf32>
    %c10_190 = arith.constant 10 : index
    %c0_191 = arith.constant 0 : index
    %192 = vector.load %arg13[%c10_190, %c0_191] : memref<42x128xf32, #tpu.memory_space<vmem>>, vector<32x128xf32>
    %193 = tpu.concatenate %184, %185, %186, %187, %188, %189, %190, %191, %192 in 1 : vector<32x128xf32>, vector<32x128xf32>, vector<32x128xf32>, vector<32x128xf32>, vector<32x128xf32>, vector<32x128xf32>, vector<32x128xf32>, vector<32x128xf32>, vector<32x128xf32> -> vector<32x1152xf32>
    %194 = arith.truncf %193 : vector<32x1152xf32> to vector<32x1152xbf16>
    %c0_192 = arith.constant 0 : index
    %c0_193 = arith.constant 0 : index
    %195 = vector.load %arg5[%c0_192, %c0_193] : memref<1152x256xbf16, #tpu.memory_space<vmem>>, vector<1152x256xbf16>
    %cst_194 = arith.constant dense<0.000000e+00> : vector<32x256xf32>
    %196 = tpu.matmul %194, %195, %cst_194 {dimension_numbers = #tpu.dot_dimension_numbers<[1], [0], [0], [1], [0, 0, 1, 1], [], []>} : vector<32x1152xbf16>, vector<1152x256xbf16>, vector<32x256xf32> -> vector<32x256xf32>
    %c0_195 = arith.constant 0 : index
    %c0_196 = arith.constant 0 : index
    %197 = vector.load %arg9[%c0_195, %c0_196] : memref<1x256xf32, #tpu.memory_space<vmem>>, vector<1x256xf32>
    %198 = vector.broadcast %197 : vector<1x256xf32> to vector<32x256xf32>
    %199 = arith.addf %196, %198 : vector<32x256xf32>
    %cst_197 = arith.constant 0.000000e+00 : f32
    %200 = vector.broadcast %cst_197 : f32 to vector<32x256xf32>
    %201 = arith.maximumf %199, %200 : vector<32x256xf32>
    %202 = vector.extract_strided_slice %201 {offsets = [0, 0], sizes = [28, 256], strides = [1, 1]} : vector<32x256xf32> to vector<28x256xf32>
    %203 = vector.extract_strided_slice %201 {offsets = [4, 0], sizes = [28, 256], strides = [1, 1]} : vector<32x256xf32> to vector<28x256xf32>
    %204 = arith.maximumf %202, %203 : vector<28x256xf32>
    %205 = vector.extract_strided_slice %204 {offsets = [5, 0], sizes = [1, 256], strides = [1, 1]} : vector<28x256xf32> to vector<1x256xf32>
    %206 = vector.extract_strided_slice %204 {offsets = [6, 0], sizes = [1, 256], strides = [1, 1]} : vector<28x256xf32> to vector<1x256xf32>
    %207 = arith.maximumf %205, %206 : vector<1x256xf32>
    %208 = vector.extract_strided_slice %204 {offsets = [21, 0], sizes = [1, 256], strides = [1, 1]} : vector<28x256xf32> to vector<1x256xf32>
    %209 = vector.extract_strided_slice %204 {offsets = [22, 0], sizes = [1, 256], strides = [1, 1]} : vector<28x256xf32> to vector<1x256xf32>
    %210 = arith.maximumf %208, %209 : vector<1x256xf32>
    %211 = tpu.concatenate %207, %210 in 0 : vector<1x256xf32>, vector<1x256xf32> -> vector<2x256xf32>
    %c0_198 = arith.constant 0 : index
    %c0_199 = arith.constant 0 : index
    %c0_200 = arith.constant 0 : index
    %212 = vector.load %arg10[%c0_198, %c0_199, %c0_200] : memref<1x2x256xf32, #tpu.memory_space<vmem>>, vector<1x2x256xf32>
    %213 = vector.shape_cast %212 : vector<1x2x256xf32> to vector<2x256xf32>
    %214 = vector.shape_cast %211 : vector<2x256xf32> to vector<1x2x256xf32>
    tpu.vector_store %arg10[%c0_198, %c0_199, %c0_200], %214 {strides = array<i32>} : memref<1x2x256xf32, #tpu.memory_space<vmem>>, vector<1x2x256xf32>,
    return
  }
  func.func @transform_0(%arg0: i32) -> (i32, i32) {
    %c0_i32 = arith.constant 0 : i32
    %c0_i32_0 = arith.constant 0 : i32
    return %arg0, %c0_i32 : i32, i32
  }
  func.func @transform_1(%arg0: i32) -> (i32, i32) {
    %c0_i32 = arith.constant 0 : i32
    %c0_i32_0 = arith.constant 0 : i32
    %c0_i32_1 = arith.constant 0 : i32
    return %c0_i32, %c0_i32_0 : i32, i32
  }
  func.func @transform_2(%arg0: i32) -> (i32, i32) {
    %c0_i32 = arith.constant 0 : i32
    %c0_i32_0 = arith.constant 0 : i32
    %c0_i32_1 = arith.constant 0 : i32
    return %c0_i32, %c0_i32_0 : i32, i32
  }
  func.func @transform_3(%arg0: i32) -> (i32, i32) {
    %c0_i32 = arith.constant 0 : i32
    %c0_i32_0 = arith.constant 0 : i32
    %c0_i32_1 = arith.constant 0 : i32
    return %c0_i32, %c0_i32_0 : i32, i32
  }
  func.func @transform_4(%arg0: i32) -> (i32, i32) {
    %c0_i32 = arith.constant 0 : i32
    %c0_i32_0 = arith.constant 0 : i32
    %c0_i32_1 = arith.constant 0 : i32
    return %c0_i32, %c0_i32_0 : i32, i32
  }
  func.func @transform_5(%arg0: i32) -> (i32, i32) {
    %c0_i32 = arith.constant 0 : i32
    %c0_i32_0 = arith.constant 0 : i32
    %c0_i32_1 = arith.constant 0 : i32
    return %c0_i32, %c0_i32_0 : i32, i32
  }
  func.func @transform_6(%arg0: i32) -> (i32, i32) {
    %c0_i32 = arith.constant 0 : i32
    %c0_i32_0 = arith.constant 0 : i32
    %c0_i32_1 = arith.constant 0 : i32
    return %c0_i32, %c0_i32_0 : i32, i32
  }
  func.func @transform_7(%arg0: i32) -> (i32, i32) {
    %c0_i32 = arith.constant 0 : i32
    %c0_i32_0 = arith.constant 0 : i32
    %c0_i32_1 = arith.constant 0 : i32
    return %c0_i32, %c0_i32_0 : i32, i32
  }
  func.func @transform_8(%arg0: i32) -> (i32, i32) {
    %c0_i32 = arith.constant 0 : i32
    %c0_i32_0 = arith.constant 0 : i32
    %c0_i32_1 = arith.constant 0 : i32
    return %c0_i32, %c0_i32_0 : i32, i32
  }
  func.func @transform_9(%arg0: i32) -> (i32, i32, i32) {
    %c0_i32 = arith.constant 0 : i32
    %c0_i32_0 = arith.constant 0 : i32
    %c0_i32_1 = arith.constant 0 : i32
    return %arg0, %c0_i32, %c0_i32_0 : i32, i32, i32
  }
}

</mosaic_0001>

<llo_original>
// kernel: convnet256_forward.1
$region0: #{convnet256_forward.1}
  #allocation0 [shape = 'u32[]', space=smem, size = 0x4, offset = 0x4, fixed_abs, tag = 'smem constant byte address 0x4 - core index']
  #allocation1 [shape = 'u32[144,128]{1,0:T(1,128)}', space=vmem, size = 0x12000, scoped, tag = 'internal scratch']
  #allocation2 [shape = 'f32[222,128]{1,0:T(8,128)}', space=vmem, size = 0x1c000, scoped, tag = 'scratch operand']
  #allocation3 [shape = 'f32[86,128]{1,0:T(8,128)}', space=vmem, size = 0xb000, scoped, tag = 'scratch operand']
  #allocation4 [shape = 'f32[42,128]{1,0:T(8,128)}', space=vmem, size = 0x6000, scoped, tag = 'scratch operand']
  #allocation5 [shape = 'f32[630,128]{1,0:T(8,128)}', space=vmem, size = 0x4f000, scoped, tag = 'scratch operand']
  #allocation6 [shape = 'f32[190,128]{1,0:T(8,128)}', space=vmem, size = 0x18000, scoped, tag = 'scratch operand']
  #allocation7 [shape = 'f32[66,128]{1,0:T(8,128)}', space=vmem, size = 0x9000, scoped, tag = 'scratch operand']
  %s0 = inlined_call_operand.vmem [shape: f32[688,32], index: 0, kind: input, shape index: {}]
  %s1 = inlined_call_operand.vmem [shape: bf16[288,128], index: 1, kind: input, shape index: {}]
  %s2 = inlined_call_operand.vmem [shape: bf16[1152,128], index: 2, kind: input, shape index: {}]
  %s3 = inlined_call_operand.vmem [shape: bf16[1152,128], index: 3, kind: input, shape index: {}]
  %s4 = inlined_call_operand.vmem [shape: bf16[1152,256], index: 4, kind: input, shape index: {}]
  %s5 = inlined_call_operand.vmem [shape: f32[1,128], index: 5, kind: input, shape index: {}]
  %s6 = inlined_call_operand.vmem [shape: f32[1,128], index: 6, kind: input, shape index: {}]
  %s7 = inlined_call_operand.vmem [shape: f32[1,128], index: 7, kind: input, shape index: {}]
  %s8 = inlined_call_operand.vmem [shape: f32[1,256], index: 8, kind: input, shape index: {}]
  %s9 = inlined_call_operand.vmem [shape: f32[1,2,256], index: 9, kind: output, shape index: {}]
  %s10 = sld [smem:[#allocation0]]
  $region46: #{convnet256_forward.1} parent=0
    _
  %s12 = ssub.s32 1, %s10
  %s13 = scalar_select 0, %s12, %s10
  // Predicated region
  $region2: #{convnet256_forward.1} parent=0 // pred_check
    _
  $region3: #{convnet256_forward.1} parent=0 // pred_check_branch
    %15 = sbr.rel (0) target = $region5
  $region4: #{convnet256_forward.1} parent=0 // pred_region
    _
  $region5: #{convnet256_forward.1} parent=0 // pred_fallthru
    _
  // Predicated region
  $region6: #{convnet256_forward.1} parent=0 // pred_check
    _
  $region7: #{convnet256_forward.1} parent=0 // pred_check_branch
    %17 = sbr.rel (0) target = $region9
  $region8: #{convnet256_forward.1} parent=0 // pred_region
    _
  $region9: #{convnet256_forward.1} parent=0 // pred_fallthru
    _
  // Predicated region
  $region10: #{convnet256_forward.1} parent=0 // pred_check
    _
  $region11: #{convnet256_forward.1} parent=0 // pred_check_branch
    %19 = sbr.rel (0) target = $region13
  $region12: #{convnet256_forward.1} parent=0 // pred_region
    _
  $region13: #{convnet256_forward.1} parent=0 // pred_fallthru
    _
  // Predicated region
  $region14: #{convnet256_forward.1} parent=0 // pred_check
    _
  $region15: #{convnet256_forward.1} parent=0 // pred_check_branch
    %21 = sbr.rel (0) target = $region17
  $region16: #{convnet256_forward.1} parent=0 // pred_region
    _
  $region17: #{convnet256_forward.1} parent=0 // pred_fallthru
    _
  // Predicated region
  $region18: #{convnet256_forward.1} parent=0 // pred_check
    _
  $region19: #{convnet256_forward.1} parent=0 // pred_check_branch
    %23 = sbr.rel (0) target = $region21
  $region20: #{convnet256_forward.1} parent=0 // pred_region
    _
  $region21: #{convnet256_forward.1} parent=0 // pred_fallthru
    _
  // Predicated region
  $region22: #{convnet256_forward.1} parent=0 // pred_check
    _
  $region23: #{convnet256_forward.1} parent=0 // pred_check_branch
    %25 = sbr.rel (0) target = $region25
  $region24: #{convnet256_forward.1} parent=0 // pred_region
    _
  $region25: #{convnet256_forward.1} parent=0 // pred_fallthru
    _
  // Predicated region
  $region26: #{convnet256_forward.1} parent=0 // pred_check
    _
  $region27: #{convnet256_forward.1} parent=0 // pred_check_branch
    %27 = sbr.rel (0) target = $region29
  $region28: #{convnet256_forward.1} parent=0 // pred_region
    _
  $region29: #{convnet256_forward.1} parent=0 // pred_fallthru
    _
  // Predicated region
  $region30: #{convnet256_forward.1} parent=0 // pred_check
    _
  $region31: #{convnet256_forward.1} parent=0 // pred_check_branch
    %29 = sbr.rel (0) target = $region33
  $region32: #{convnet256_forward.1} parent=0 // pred_region
    _
  $region33: #{convnet256_forward.1} parent=0 // pred_fallthru
    _
  // Predicated region
  $region34: #{convnet256_forward.1} parent=0 // pred_check
    _
  $region35: #{convnet256_forward.1} parent=0 // pred_check_branch
    %31 = sbr.rel (0) target = $region37
  $region36: #{convnet256_forward.1} parent=0 // pred_region
    _
  $region37: #{convnet256_forward.1} parent=0 // pred_fallthru
    _
  %33 = vst [vmem:[#allocation2] sm:$0xff] 0.0
  %34 = vst [vmem:[#allocation2 + $0x8] sm:$0xff] 0.0
  %35 = vst [vmem:[#allocation2 + $0x10] sm:$0xff] 0.0
  %36 = vst [vmem:[#allocation2 + $0x18] sm:$0xff] 0.0
  %37 = vst [vmem:[#allocation2 + $0x20] sm:$0xff] 0.0
  %38 = vst [vmem:[#allocation2 + $0x28] sm:$0xff] 0.0
  %39 = vst [vmem:[#allocation2 + $0x30] sm:$0xff] 0.0
  %40 = vst [vmem:[#allocation2 + $0x38] sm:$0xff] 0.0
  %41 = vst [vmem:[#allocation2 + $0x40] sm:$0xff] 0.0
  %42 = vst [vmem:[#allocation2 + $0x48] sm:$0xff] 0.0
  %43 = vst [vmem:[#allocation2 + $0x50] sm:$0xff] 0.0
  %44 = vst [vmem:[#allocation2 + $0x58] sm:$0xff] 0.0
  %45 = vst [vmem:[#allocation2 + $0x60] sm:$0xff] 0.0
  %46 = vst [vmem:[#allocation2 + $0x68] sm:$0xff] 0.0
  %47 = vst [vmem:[#allocation2 + $0x70] sm:$0xff] 0.0
  %48 = vst [vmem:[#allocation2 + $0x78] sm:$0xff] 0.0
  %49 = vst [vmem:[#allocation2 + $0x80] sm:$0xff] 0.0
  %50 = vst [vmem:[#allocation2 + $0x88] sm:$0xff] 0.0
  %51 = vst [vmem:[#allocation2 + $0x90] sm:$0xff] 0.0
  %52 = vst [vmem:[#allocation2 + $0x98] sm:$0xff] 0.0
  %53 = vst [vmem:[#allocation2 + $0xa0] sm:$0xff] 0.0
  %54 = vst [vmem:[#allocation2 + $0xa8] sm:$0xff] 0.0
  %55 = vst [vmem:[#allocation2 + $0xb0] sm:$0xff] 0.0
  %56 = vst [vmem:[#allocation2 + $0xb8] sm:$0xff] 0.0
  %57 = vst [vmem:[#allocation2 + $0xc0] sm:$0xff] 0.0
  %58 = vst [vmem:[#allocation2 + $0xc8] sm:$0xff] 0.0
  %59 = vst [vmem:[#allocation2 + $0xd0] sm:$0xff] 0.0
  %60 = vst [vmem:[#allocation2 + $0xd8] sm:$0x3f] 0.0
  %61 = vst [vmem:[#allocation3] sm:$0xff] 0.0
  %62 = vst [vmem:[#allocation3 + $0x8] sm:$0xff] 0.0
  %63 = vst [vmem:[#allocation3 + $0x10] sm:$0xff] 0.0
  %64 = vst [vmem:[#allocation3 + $0x18] sm:$0xff] 0.0
  %65 = vst [vmem:[#allocation3 + $0x20] sm:$0xff] 0.0
  %66 = vst [vmem:[#allocation3 + $0x28] sm:$0xff] 0.0
  %67 = vst [vmem:[#allocation3 + $0x30] sm:$0xff] 0.0
  %68 = vst [vmem:[#allocation3 + $0x38] sm:$0xff] 0.0
  %69 = vst [vmem:[#allocation3 + $0x40] sm:$0xff] 0.0
  %70 = vst [vmem:[#allocation3 + $0x48] sm:$0xff] 0.0
  %71 = vst [vmem:[#allocation3 + $0x50] sm:$0x3f] 0.0
  %72 = vst [vmem:[#allocation4] sm:$0xff] 0.0
  %73 = vst [vmem:[#allocation4 + $0x8] sm:$0xff] 0.0
  %74 = vst [vmem:[#allocation4 + $0x10] sm:$0xff] 0.0
  %75 = vst [vmem:[#allocation4 + $0x18] sm:$0xff] 0.0
  %76 = vst [vmem:[#allocation4 + $0x20] sm:$0xff] 0.0
  %77 = vst [vmem:[#allocation4 + $0x28] sm:$0x3] 0.0
  %v78 = vld [vmem:[%s0] sm:$0xff]
  %v79 = vld [vmem:[%s0 + $0x8] sm:$0xff]
  %v80 = vld [vmem:[%s0 + $0x10] sm:$0xff]
  %v81 = vld [vmem:[%s0 + $0x18] sm:$0xff]
  %v82 = vld [vmem:[%s0 + $0x20] sm:$0xff]
  %v83 = vld [vmem:[%s0 + $0x28] sm:$0xff]
  %v84 = vld [vmem:[%s0 + $0x30] sm:$0xff]
  %v85 = vld [vmem:[%s0 + $0x38] sm:$0xff]
  %v86 = vld [vmem:[%s0 + $0x40] sm:$0xff]
  %v87 = vld [vmem:[%s0 + $0x48] sm:$0xff]
  %v88 = vld [vmem:[%s0 + $0x50] sm:$0xff]
  %v89 = vld [vmem:[%s0 + $0x58] sm:$0xff]
  %v90 = vld [vmem:[%s0 + $0x60] sm:$0xff]
  %v91 = vld [vmem:[%s0 + $0x68] sm:$0xff]
  %v92 = vld [vmem:[%s0 + $0x70] sm:$0xff]
  %v93 = vld [vmem:[%s0 + $0x78] sm:$0xff]
  %v94 = vld [vmem:[%s0 + $0x80] sm:$0xff]
  %v95 = vld [vmem:[%s0 + $0x88] sm:$0xff]
  %v96 = vld [vmem:[%s0 + $0x90] sm:$0xff]
  %v97 = vld [vmem:[%s0 + $0x98] sm:$0xff]
  %v98 = vld [vmem:[%s0 + $0xa0] sm:$0xff]
  %v99 = vld [vmem:[%s0 + $0xa8] sm:$0xff]
  %v100 = vld [vmem:[%s0 + $0xb0] sm:$0xff]
  %v101 = vld [vmem:[%s0 + $0xb8] sm:$0xff]
  %v102 = vld [vmem:[%s0 + $0xc0] sm:$0xff]
  %v103 = vld [vmem:[%s0 + $0xc8] sm:$0xff]
  %v104 = vld [vmem:[%s0 + $0xd0] sm:$0xff]
  %v105 = vld [vmem:[%s0 + $0xd8] sm:$0xff]
  %v106 = vld [vmem:[%s0 + $0xe0] sm:$0xff]
  %v107 = vld [vmem:[%s0 + $0xe8] sm:$0xff]
  %v108 = vld [vmem:[%s0 + $0xf0] sm:$0xff]
  %v109 = vld [vmem:[%s0 + $0xf8] sm:$0xff]
  %v110 = vld [vmem:[%s0 + $0x100] sm:$0xff]
  %v111 = vld [vmem:[%s0 + $0x108] sm:$0xff]
  %v112 = vld [vmem:[%s0 + $0x110] sm:$0xff]
  %v113 = vld [vmem:[%s0 + $0x118] sm:$0xff]
  %v114 = vld [vmem:[%s0 + $0x120] sm:$0xff]
  %v115 = vld [vmem:[%s0 + $0x128] sm:$0xff]
  %v116 = vld [vmem:[%s0 + $0x130] sm:$0xff]
  %v117 = vld [vmem:[%s0 + $0x138] sm:$0xff]
  %v118 = vld [vmem:[%s0 + $0x140] sm:$0xff]
  %v119 = vld [vmem:[%s0 + $0x148] sm:$0xff]
  %v120 = vld [vmem:[%s0 + $0x150] sm:$0xff]
  %v121 = vld [vmem:[%s0 + $0x158] sm:$0xff]
  %v122 = vld [vmem:[%s0 + $0x160] sm:$0xff]
  %v123 = vld [vmem:[%s0 + $0x168] sm:$0xff]
  %v124 = vld [vmem:[%s0 + $0x170] sm:$0xff]
  %v125 = vld [vmem:[%s0 + $0x178] sm:$0xff]
  %v126 = vld [vmem:[%s0 + $0x180] sm:$0xff]
  %v127 = vld [vmem:[%s0 + $0x188] sm:$0xff]
  %v128 = vld [vmem:[%s0 + $0x190] sm:$0xff]
  %v129 = vld [vmem:[%s0 + $0x198] sm:$0xff]
  %v130 = vld [vmem:[%s0 + $0x1a0] sm:$0xff]
  %v131 = vld [vmem:[%s0 + $0x1a8] sm:$0xff]
  %v132 = vld [vmem:[%s0 + $0x1b0] sm:$0xff]
  %v133 = vld [vmem:[%s0 + $0x1b8] sm:$0xff]
  %v134 = vld [vmem:[%s0 + $0x1c0] sm:$0xff]
  %v135 = vld [vmem:[%s0 + $0x1c8] sm:$0xff]
  %v136 = vld [vmem:[%s0 + $0x1d0] sm:$0xff]
  %v137 = vld [vmem:[%s0 + $0x1d8] sm:$0xff]
  %v138 = vld [vmem:[%s0 + $0x1e0] sm:$0xff]
  %v139 = vld [vmem:[%s0 + $0x1e8] sm:$0xff]
  %v140 = vld [vmem:[%s0 + $0x1f0] sm:$0xff]
  %v141 = vld [vmem:[%s0 + $0x1f8] sm:$0xff]
  %v142 = vld [vmem:[%s0 + $0x200] sm:$0xff]
  %v143 = vld [vmem:[%s0 + $0x208] sm:$0xff]
  %v144 = vld [vmem:[%s0 + $0x210] sm:$0xff]
  %v145 = vld [vmem:[%s0 + $0x218] sm:$0xff]
  %v146 = vld [vmem:[%s0 + $0x220] sm:$0xff]
  %v147 = vld [vmem:[%s0 + $0x228] sm:$0xff]
  %v148 = vld [vmem:[%s0 + $0x230] sm:$0xff]
  %v149 = vld [vmem:[%s0 + $0x238] sm:$0xff]
  %v150 = vld [vmem:[%s0 + $0x240] sm:$0xff]
  %v151 = vld [vmem:[%s0 + $0x248] sm:$0xff]
  %v152 = vld [vmem:[%s0 + $0x250] sm:$0xff]
  %v153 = vld [vmem:[%s0 + $0x258] sm:$0xff]
  %v154 = vld [vmem:[%s0 + $0x260] sm:$0xff]
  %v155 = vld [vmem:[%s0 + $0x268] sm:$0xff]
  %v156 = vld [vmem:[%s0 + $0x270] sm:$0xff]
  %v157 = vld [vmem:[%s0 + $0x278] sm:$0xff]
  %v158 = vld [vmem:[%s0 + $0x280] sm:$0xff]
  %v159 = vld [vmem:[%s0 + $0x1] sm:$0xff]
  %v160 = vld [vmem:[%s0 + $0x9] sm:$0xff]
  %v161 = vld [vmem:[%s0 + $0x11] sm:$0xff]
  %v162 = vld [vmem:[%s0 + $0x19] sm:$0xff]
  %v163 = vld [vmem:[%s0 + $0x21] sm:$0xff]
  %v164 = vld [vmem:[%s0 + $0x29] sm:$0xff]
  %v165 = vld [vmem:[%s0 + $0x31] sm:$0xff]
  %v166 = vld [vmem:[%s0 + $0x39] sm:$0xff]
  %v167 = vld [vmem:[%s0 + $0x41] sm:$0xff]
  %v168 = vld [vmem:[%s0 + $0x49] sm:$0xff]
  %v169 = vld [vmem:[%s0 + $0x51] sm:$0xff]
  %v170 = vld [vmem:[%s0 + $0x59] sm:$0xff]
  %v171 = vld [vmem:[%s0 + $0x61] sm:$0xff]
  %v172 = vld [vmem:[%s0 + $0x69] sm:$0xff]
  %v173 = vld [vmem:[%s0 + $0x71] sm:$0xff]
  %v174 = vld [vmem:[%s0 + $0x79] sm:$0xff]
  %v175 = vld [vmem:[%s0 + $0x81] sm:$0xff]
  %v176 = vld [vmem:[%s0 + $0x89] sm:$0xff]
  %v177 = vld [vmem:[%s0 + $0x91] sm:$0xff]
  %v178 = vld [vmem:[%s0 + $0x99] sm:$0xff]
  %v179 = vld [vmem:[%s0 + $0xa1] sm:$0xff]
  %v180 = vld [vmem:[%s0 + $0xa9] sm:$0xff]
  %v181 = vld [vmem:[%s0 + $0xb1] sm:$0xff]
  %v182 = vld [vmem:[%s0 + $0xb9] sm:$0xff]
  %v183 = vld [vmem:[%s0 + $0xc1] sm:$0xff]
  %v184 = vld [vmem:[%s0 + $0xc9] sm:$0xff]
  %v185 = vld [vmem:[%s0 + $0xd1] sm:$0xff]
  %v186 = vld [vmem:[%s0 + $0xd9] sm:$0xff]
  %v187 = vld [vmem:[%s0 + $0xe1] sm:$0xff]
  %v188 = vld [vmem:[%s0 + $0xe9] sm:$0xff]
  %v189 = vld [vmem:[%s0 + $0xf1] sm:$0xff]
  %v190 = vld [vmem:[%s0 + $0xf9] sm:$0xff]
  %v191 = vld [vmem:[%s0 + $0x101] sm:$0xff]
  %v192 = vld [vmem:[%s0 + $0x109] sm:$0xff]
  %v193 = vld [vmem:[%s0 + $0x111] sm:$0xff]
  %v194 = vld [vmem:[%s0 + $0x119] sm:$0xff]
  %v195 = vld [vmem:[%s0 + $0x121] sm:$0xff]
  %v196 = vld [vmem:[%s0 + $0x129] sm:$0xff]
  %v197 = vld [vmem:[%s0 + $0x131] sm:$0xff]
  %v198 = vld [vmem:[%s0 + $0x139] sm:$0xff]
  %v199 = vld [vmem:[%s0 + $0x141] sm:$0xff]
  %v200 = vld [vmem:[%s0 + $0x149] sm:$0xff]
  %v201 = vld [vmem:[%s0 + $0x151] sm:$0xff]
  %v202 = vld [vmem:[%s0 + $0x159] sm:$0xff]
  %v203 = vld [vmem:[%s0 + $0x161] sm:$0xff]
  %v204 = vld [vmem:[%s0 + $0x169] sm:$0xff]
  %v205 = vld [vmem:[%s0 + $0x171] sm:$0xff]
  %v206 = vld [vmem:[%s0 + $0x179] sm:$0xff]
  %v207 = vld [vmem:[%s0 + $0x181] sm:$0xff]
  %v208 = vld [vmem:[%s0 + $0x189] sm:$0xff]
  %v209 = vld [vmem:[%s0 + $0x191] sm:$0xff]
  %v210 = vld [vmem:[%s0 + $0x199] sm:$0xff]
  %v211 = vld [vmem:[%s0 + $0x1a1] sm:$0xff]
  %v212 = vld [vmem:[%s0 + $0x1a9] sm:$0xff]
  %v213 = vld [vmem:[%s0 + $0x1b1] sm:$0xff]
  %v214 = vld [vmem:[%s0 + $0x1b9] sm:$0xff]
  %v215 = vld [vmem:[%s0 + $0x1c1] sm:$0xff]
  %v216 = vld [vmem:[%s0 + $0x1c9] sm:$0xff]
  %v217 = vld [vmem:[%s0 + $0x1d1] sm:$0xff]
  %v218 = vld [vmem:[%s0 + $0x1d9] sm:$0xff]
  %v219 = vld [vmem:[%s0 + $0x1e1] sm:$0xff]
  %v220 = vld [vmem:[%s0 + $0x1e9] sm:$0xff]
  %v221 = vld [vmem:[%s0 + $0x1f1] sm:$0xff]
  %v222 = vld [vmem:[%s0 + $0x1f9] sm:$0xff]
  %v223 = vld [vmem:[%s0 + $0x201] sm:$0xff]
  %v224 = vld [vmem:[%s0 + $0x209] sm:$0xff]
  %v225 = vld [vmem:[%s0 + $0x211] sm:$0xff]
  %v226 = vld [vmem:[%s0 + $0x219] sm:$0xff]
  %v227 = vld [vmem:[%s0 + $0x221] sm:$0xff]
  %v228 = vld [vmem:[%s0 + $0x229] sm:$0xff]
  %v229 = vld [vmem:[%s0 + $0x231] sm:$0xff]
  %v230 = vld [vmem:[%s0 + $0x239] sm:$0xff]
  %v231 = vld [vmem:[%s0 + $0x241] sm:$0xff]
  %v232 = vld [vmem:[%s0 + $0x249] sm:$0xff]
  %v233 = vld [vmem:[%s0 + $0x251] sm:$0xff]
  %v234 = vld [vmem:[%s0 + $0x259] sm:$0xff]
  %v235 = vld [vmem:[%s0 + $0x261] sm:$0xff]
  %v236 = vld [vmem:[%s0 + $0x269] sm:$0xff]
  %v237 = vld [vmem:[%s0 + $0x271] sm:$0xff]
  %v238 = vld [vmem:[%s0 + $0x279] sm:$0xff]
  %v239 = vld [vmem:[%s0 + $0x281] sm:$0xff]
  %v240 = vld [vmem:[%s0 + $0x2] sm:$0xff]
  %v241 = vld [vmem:[%s0 + $0xa] sm:$0xff]
  %v242 = vld [vmem:[%s0 + $0x12] sm:$0xff]
  %v243 = vld [vmem:[%s0 + $0x1a] sm:$0xff]
  %v244 = vld [vmem:[%s0 + $0x22] sm:$0xff]
  %v245 = vld [vmem:[%s0 + $0x2a] sm:$0xff]
  %v246 = vld [vmem:[%s0 + $0x32] sm:$0xff]
  %v247 = vld [vmem:[%s0 + $0x3a] sm:$0xff]
  %v248 = vld [vmem:[%s0 + $0x42] sm:$0xff]
  %v249 = vld [vmem:[%s0 + $0x4a] sm:$0xff]
  %v250 = vld [vmem:[%s0 + $0x52] sm:$0xff]
  %v251 = vld [vmem:[%s0 + $0x5a] sm:$0xff]
  %v252 = vld [vmem:[%s0 + $0x62] sm:$0xff]
  %v253 = vld [vmem:[%s0 + $0x6a] sm:$0xff]
  %v254 = vld [vmem:[%s0 + $0x72] sm:$0xff]
  %v255 = vld [vmem:[%s0 + $0x7a] sm:$0xff]
  %v256 = vld [vmem:[%s0 + $0x82] sm:$0xff]
  %v257 = vld [vmem:[%s0 + $0x8a] sm:$0xff]
  %v258 = vld [vmem:[%s0 + $0x92] sm:$0xff]
  %v259 = vld [vmem:[%s0 + $0x9a] sm:$0xff]
  %v260 = vld [vmem:[%s0 + $0xa2] sm:$0xff]
  %v261 = vld [vmem:[%s0 + $0xaa] sm:$0xff]
  %v262 = vld [vmem:[%s0 + $0xb2] sm:$0xff]
  %v263 = vld [vmem:[%s0 + $0xba] sm:$0xff]
  %v264 = vld [vmem:[%s0 + $0xc2] sm:$0xff]
  %v265 = vld [vmem:[%s0 + $0xca] sm:$0xff]
  %v266 = vld [vmem:[%s0 + $0xd2] sm:$0xff]
  %v267 = vld [vmem:[%s0 + $0xda] sm:$0xff]
  %v268 = vld [vmem:[%s0 + $0xe2] sm:$0xff]
  %v269 = vld [vmem:[%s0 + $0xea] sm:$0xff]
  %v270 = vld [vmem:[%s0 + $0xf2] sm:$0xff]
  %v271 = vld [vmem:[%s0 + $0xfa] sm:$0xff]
  %v272 = vld [vmem:[%s0 + $0x102] sm:$0xff]
  %v273 = vld [vmem:[%s0 + $0x10a] sm:$0xff]
  %v274 = vld [vmem:[%s0 + $0x112] sm:$0xff]
  %v275 = vld [vmem:[%s0 + $0x11a] sm:$0xff]
  %v276 = vld [vmem:[%s0 + $0x122] sm:$0xff]
  %v277 = vld [vmem:[%s0 + $0x12a] sm:$0xff]
  %v278 = vld [vmem:[%s0 + $0x132] sm:$0xff]
  %v279 = vld [vmem:[%s0 + $0x13a] sm:$0xff]
  %v280 = vld [vmem:[%s0 + $0x142] sm:$0xff]
  %v281 = vld [vmem:[%s0 + $0x14a] sm:$0xff]
  %v282 = vld [vmem:[%s0 + $0x152] sm:$0xff]
  %v283 = vld [vmem:[%s0 + $0x15a] sm:$0xff]
  %v284 = vld [vmem:[%s0 + $0x162] sm:$0xff]
  %v285 = vld [vmem:[%s0 + $0x16a] sm:$0xff]
  %v286 = vld [vmem:[%s0 + $0x172] sm:$0xff]
  %v287 = vld [vmem:[%s0 + $0x17a] sm:$0xff]
  %v288 = vld [vmem:[%s0 + $0x182] sm:$0xff]
  %v289 = vld [vmem:[%s0 + $0x18a] sm:$0xff]
  %v290 = vld [vmem:[%s0 + $0x192] sm:$0xff]
  %v291 = vld [vmem:[%s0 + $0x19a] sm:$0xff]
  %v292 = vld [vmem:[%s0 + $0x1a2] sm:$0xff]
  %v293 = vld [vmem:[%s0 + $0x1aa] sm:$0xff]
  %v294 = vld [vmem:[%s0 + $0x1b2] sm:$0xff]
  %v295 = vld [vmem:[%s0 + $0x1ba] sm:$0xff]
  %v296 = vld [vmem:[%s0 + $0x1c2] sm:$0xff]
  %v297 = vld [vmem:[%s0 + $0x1ca] sm:$0xff]
  %v298 = vld [vmem:[%s0 + $0x1d2] sm:$0xff]
  %v299 = vld [vmem:[%s0 + $0x1da] sm:$0xff]
  %v300 = vld [vmem:[%s0 + $0x1e2] sm:$0xff]
  %v301 = vld [vmem:[%s0 + $0x1ea] sm:$0xff]
  %v302 = vld [vmem:[%s0 + $0x1f2] sm:$0xff]
  %v303 = vld [vmem:[%s0 + $0x1fa] sm:$0xff]
  %v304 = vld [vmem:[%s0 + $0x202] sm:$0xff]
  %v305 = vld [vmem:[%s0 + $0x20a] sm:$0xff]
  %v306 = vld [vmem:[%s0 + $0x212] sm:$0xff]
  %v307 = vld [vmem:[%s0 + $0x21a] sm:$0xff]
  %v308 = vld [vmem:[%s0 + $0x222] sm:$0xff]
  %v309 = vld [vmem:[%s0 + $0x22a] sm:$0xff]
  %v310 = vld [vmem:[%s0 + $0x232] sm:$0xff]
  %v311 = vld [vmem:[%s0 + $0x23a] sm:$0xff]
  %v312 = vld [vmem:[%s0 + $0x242] sm:$0xff]
  %v313 = vld [vmem:[%s0 + $0x24a] sm:$0xff]
  %v314 = vld [vmem:[%s0 + $0x252] sm:$0xff]
  %v315 = vld [vmem:[%s0 + $0x25a] sm:$0xff]
  %v316 = vld [vmem:[%s0 + $0x262] sm:$0xff]
  %v317 = vld [vmem:[%s0 + $0x26a] sm:$0xff]
  %v318 = vld [vmem:[%s0 + $0x272] sm:$0xff]
  %v319 = vld [vmem:[%s0 + $0x27a] sm:$0xff]
  %v320 = vld [vmem:[%s0 + $0x282] sm:$0xff]
  %v321 = vld [vmem:[%s0 + $0x28a] sm:$0xff]
  %v322 = vld [vmem:[%s0 + $0x292] sm:$0xff]
  %v323 = vld [vmem:[%s0 + $0x13] sm:$0xff]
  %v324 = vld [vmem:[%s0 + $0x1b] sm:$0xff]
  %v325 = vld [vmem:[%s0 + $0x23] sm:$0xff]
  %v326 = vld [vmem:[%s0 + $0x2b] sm:$0xff]
  %v327 = vld [vmem:[%s0 + $0x33] sm:$0xff]
  %v328 = vld [vmem:[%s0 + $0x3b] sm:$0xff]
  %v329 = vld [vmem:[%s0 + $0x43] sm:$0xff]
  %v330 = vld [vmem:[%s0 + $0x4b] sm:$0xff]
  %v331 = vld [vmem:[%s0 + $0x53] sm:$0xff]
  %v332 = vld [vmem:[%s0 + $0x5b] sm:$0xff]
  %v333 = vld [vmem:[%s0 + $0x63] sm:$0xff]
  %v334 = vld [vmem:[%s0 + $0x6b] sm:$0xff]
  %v335 = vld [vmem:[%s0 + $0x73] sm:$0xff]
  %v336 = vld [vmem:[%s0 + $0x7b] sm:$0xff]
  %v337 = vld [vmem:[%s0 + $0x83] sm:$0xff]
  %v338 = vld [vmem:[%s0 + $0x8b] sm:$0xff]
  %v339 = vld [vmem:[%s0 + $0x93] sm:$0xff]
  %v340 = vld [vmem:[%s0 + $0x9b] sm:$0xff]
  %v341 = vld [vmem:[%s0 + $0xa3] sm:$0xff]
  %v342 = vld [vmem:[%s0 + $0xab] sm:$0xff]
  %v343 = vld [vmem:[%s0 + $0xb3] sm:$0xff]
  %v344 = vld [vmem:[%s0 + $0xbb] sm:$0xff]
  %v345 = vld [vmem:[%s0 + $0xc3] sm:$0xff]
  %v346 = vld [vmem:[%s0 + $0xcb] sm:$0xff]
  %v347 = vld [vmem:[%s0 + $0xd3] sm:$0xff]
  %v348 = vld [vmem:[%s0 + $0xdb] sm:$0xff]
  %v349 = vld [vmem:[%s0 + $0xe3] sm:$0xff]
  %v350 = vld [vmem:[%s0 + $0xeb] sm:$0xff]
  %v351 = vld [vmem:[%s0 + $0xf3] sm:$0xff]
  %v352 = vld [vmem:[%s0 + $0xfb] sm:$0xff]
  %v353 = vld [vmem:[%s0 + $0x103] sm:$0xff]
  %v354 = vld [vmem:[%s0 + $0x10b] sm:$0xff]
  %v355 = vld [vmem:[%s0 + $0x113] sm:$0xff]
  %v356 = vld [vmem:[%s0 + $0x11b] sm:$0xff]
  %v357 = vld [vmem:[%s0 + $0x123] sm:$0xff]
  %v358 = vld [vmem:[%s0 + $0x12b] sm:$0xff]
  %v359 = vld [vmem:[%s0 + $0x133] sm:$0xff]
  %v360 = vld [vmem:[%s0 + $0x13b] sm:$0xff]
  %v361 = vld [vmem:[%s0 + $0x143] sm:$0xff]
  %v362 = vld [vmem:[%s0 + $0x14b] sm:$0xff]
  %v363 = vld [vmem:[%s0 + $0x153] sm:$0xff]
  %v364 = vld [vmem:[%s0 + $0x15b] sm:$0xff]
  %v365 = vld [vmem:[%s0 + $0x163] sm:$0xff]
  %v366 = vld [vmem:[%s0 + $0x16b] sm:$0xff]
  %v367 = vld [vmem:[%s0 + $0x173] sm:$0xff]
  %v368 = vld [vmem:[%s0 + $0x17b] sm:$0xff]
  %v369 = vld [vmem:[%s0 + $0x183] sm:$0xff]
  %v370 = vld [vmem:[%s0 + $0x18b] sm:$0xff]
  %v371 = vld [vmem:[%s0 + $0x193] sm:$0xff]
  %v372 = vld [vmem:[%s0 + $0x19b] sm:$0xff]
  %v373 = vld [vmem:[%s0 + $0x1a3] sm:$0xff]
  %v374 = vld [vmem:[%s0 + $0x1ab] sm:$0xff]
  %v375 = vld [vmem:[%s0 + $0x1b3] sm:$0xff]
  %v376 = vld [vmem:[%s0 + $0x1bb] sm:$0xff]
  %v377 = vld [vmem:[%s0 + $0x1c3] sm:$0xff]
  %v378 = vld [vmem:[%s0 + $0x1cb] sm:$0xff]
  %v379 = vld [vmem:[%s0 + $0x1d3] sm:$0xff]
  %v380 = vld [vmem:[%s0 + $0x1db] sm:$0xff]
  %v381 = vld [vmem:[%s0 + $0x1e3] sm:$0xff]
  %v382 = vld [vmem:[%s0 + $0x1eb] sm:$0xff]
  %v383 = vld [vmem:[%s0 + $0x1f3] sm:$0xff]
  %v384 = vld [vmem:[%s0 + $0x1fb] sm:$0xff]
  %v385 = vld [vmem:[%s0 + $0x203] sm:$0xff]
  %v386 = vld [vmem:[%s0 + $0x20b] sm:$0xff]
  %v387 = vld [vmem:[%s0 + $0x213] sm:$0xff]
  %v388 = vld [vmem:[%s0 + $0x21b] sm:$0xff]
  %v389 = vld [vmem:[%s0 + $0x223] sm:$0xff]
  %v390 = vld [vmem:[%s0 + $0x22b] sm:$0xff]
  %v391 = vld [vmem:[%s0 + $0x233] sm:$0xff]
  %v392 = vld [vmem:[%s0 + $0x23b] sm:$0xff]
  %v393 = vld [vmem:[%s0 + $0x243] sm:$0xff]
  %v394 = vld [vmem:[%s0 + $0x24b] sm:$0xff]
  %v395 = vld [vmem:[%s0 + $0x253] sm:$0xff]
  %v396 = vld [vmem:[%s0 + $0x25b] sm:$0xff]
  %v397 = vld [vmem:[%s0 + $0x263] sm:$0xff]
  %v398 = vld [vmem:[%s0 + $0x26b] sm:$0xff]
  %v399 = vld [vmem:[%s0 + $0x273] sm:$0xff]
  %v400 = vld [vmem:[%s0 + $0x27b] sm:$0xff]
  %v401 = vld [vmem:[%s0 + $0x283] sm:$0xff]
  %v402 = vld [vmem:[%s0 + $0x28b] sm:$0xff]
  %v403 = vld [vmem:[%s0 + $0x293] sm:$0xff]
  %v404 = vld [vmem:[%s0 + $0x14] sm:$0xff]
  %v405 = vld [vmem:[%s0 + $0x1c] sm:$0xff]
  %v406 = vld [vmem:[%s0 + $0x24] sm:$0xff]
  %v407 = vld [vmem:[%s0 + $0x2c] sm:$0xff]
  %v408 = vld [vmem:[%s0 + $0x34] sm:$0xff]
  %v409 = vld [vmem:[%s0 + $0x3c] sm:$0xff]
  %v410 = vld [vmem:[%s0 + $0x44] sm:$0xff]
  %v411 = vld [vmem:[%s0 + $0x4c] sm:$0xff]
  %v412 = vld [vmem:[%s0 + $0x54] sm:$0xff]
  %v413 = vld [vmem:[%s0 + $0x5c] sm:$0xff]
  %v414 = vld [vmem:[%s0 + $0x64] sm:$0xff]
  %v415 = vld [vmem:[%s0 + $0x6c] sm:$0xff]
  %v416 = vld [vmem:[%s0 + $0x74] sm:$0xff]
  %v417 = vld [vmem:[%s0 + $0x7c] sm:$0xff]
  %v418 = vld [vmem:[%s0 + $0x84] sm:$0xff]
  %v419 = vld [vmem:[%s0 + $0x8c] sm:$0xff]
  %v420 = vld [vmem:[%s0 + $0x94] sm:$0xff]
  %v421 = vld [vmem:[%s0 + $0x9c] sm:$0xff]
  %v422 = vld [vmem:[%s0 + $0xa4] sm:$0xff]
  %v423 = vld [vmem:[%s0 + $0xac] sm:$0xff]
  %v424 = vld [vmem:[%s0 + $0xb4] sm:$0xff]
  %v425 = vld [vmem:[%s0 + $0xbc] sm:$0xff]
  %v426 = vld [vmem:[%s0 + $0xc4] sm:$0xff]
  %v427 = vld [vmem:[%s0 + $0xcc] sm:$0xff]
  %v428 = vld [vmem:[%s0 + $0xd4] sm:$0xff]
  %v429 = vld [vmem:[%s0 + $0xdc] sm:$0xff]
  %v430 = vld [vmem:[%s0 + $0xe4] sm:$0xff]
  %v431 = vld [vmem:[%s0 + $0xec] sm:$0xff]
  %v432 = vld [vmem:[%s0 + $0xf4] sm:$0xff]
  %v433 = vld [vmem:[%s0 + $0xfc] sm:$0xff]
  %v434 = vld [vmem:[%s0 + $0x104] sm:$0xff]
  %v435 = vld [vmem:[%s0 + $0x10c] sm:$0xff]
  %v436 = vld [vmem:[%s0 + $0x114] sm:$0xff]
  %v437 = vld [vmem:[%s0 + $0x11c] sm:$0xff]
  %v438 = vld [vmem:[%s0 + $0x124] sm:$0xff]
  %v439 = vld [vmem:[%s0 + $0x12c] sm:$0xff]
  %v440 = vld [vmem:[%s0 + $0x134] sm:$0xff]
  %v441 = vld [vmem:[%s0 + $0x13c] sm:$0xff]
  %v442 = vld [vmem:[%s0 + $0x144] sm:$0xff]
  %v443 = vld [vmem:[%s0 + $0x14c] sm:$0xff]
  %v444 = vld [vmem:[%s0 + $0x154] sm:$0xff]
  %v445 = vld [vmem:[%s0 + $0x15c] sm:$0xff]
  %v446 = vld [vmem:[%s0 + $0x164] sm:$0xff]
  %v447 = vld [vmem:[%s0 + $0x16c] sm:$0xff]
  %v448 = vld [vmem:[%s0 + $0x174] sm:$0xff]
  %v449 = vld [vmem:[%s0 + $0x17c] sm:$0xff]
  %v450 = vld [vmem:[%s0 + $0x184] sm:$0xff]
  %v451 = vld [vmem:[%s0 + $0x18c] sm:$0xff]
  %v452 = vld [vmem:[%s0 + $0x194] sm:$0xff]
  %v453 = vld [vmem:[%s0 + $0x19c] sm:$0xff]
  %v454 = vld [vmem:[%s0 + $0x1a4] sm:$0xff]
  %v455 = vld [vmem:[%s0 + $0x1ac] sm:$0xff]
  %v456 = vld [vmem:[%s0 + $0x1b4] sm:$0xff]
  %v457 = vld [vmem:[%s0 + $0x1bc] sm:$0xff]
  %v458 = vld [vmem:[%s0 + $0x1c4] sm:$0xff]
  %v459 = vld [vmem:[%s0 + $0x1cc] sm:$0xff]
  %v460 = vld [vmem:[%s0 + $0x1d4] sm:$0xff]
  %v461 = vld [vmem:[%s0 + $0x1dc] sm:$0xff]
  %v462 = vld [vmem:[%s0 + $0x1e4] sm:$0xff]
  %v463 = vld [vmem:[%s0 + $0x1ec] sm:$0xff]
  %v464 = vld [vmem:[%s0 + $0x1f4] sm:$0xff]
  %v465 = vld [vmem:[%s0 + $0x1fc] sm:$0xff]
  %v466 = vld [vmem:[%s0 + $0x204] sm:$0xff]
  %v467 = vld [vmem:[%s0 + $0x20c] sm:$0xff]
  %v468 = vld [vmem:[%s0 + $0x214] sm:$0xff]
  %v469 = vld [vmem:[%s0 + $0x21c] sm:$0xff]
  %v470 = vld [vmem:[%s0 + $0x224] sm:$0xff]
  %v471 = vld [vmem:[%s0 + $0x22c] sm:$0xff]
  %v472 = vld [vmem:[%s0 + $0x234] sm:$0xff]
  %v473 = vld [vmem:[%s0 + $0x23c] sm:$0xff]
  %v474 = vld [vmem:[%s0 + $0x244] sm:$0xff]
  %v475 = vld [vmem:[%s0 + $0x24c] sm:$0xff]
  %v476 = vld [vmem:[%s0 + $0x254] sm:$0xff]
  %v477 = vld [vmem:[%s0 + $0x25c] sm:$0xff]
  %v478 = vld [vmem:[%s0 + $0x264] sm:$0xff]
  %v479 = vld [vmem:[%s0 + $0x26c] sm:$0xff]
  %v480 = vld [vmem:[%s0 + $0x274] sm:$0xff]
  %v481 = vld [vmem:[%s0 + $0x27c] sm:$0xff]
  %v482 = vld [vmem:[%s0 + $0x284] sm:$0xff]
  %v483 = vld [vmem:[%s0 + $0x28c] sm:$0xff]
  %v484 = vld [vmem:[%s0 + $0x294] sm:$0xff]
  %v485 = vld [vmem:[%s0 + $0x29c] sm:$0xff]
  %v486 = vld [vmem:[%s0 + $0x2a4] sm:$0xff]
  %v487 = vld [vmem:[%s0 + $0x25] sm:$0xff]
  %v488 = vld [vmem:[%s0 + $0x2d] sm:$0xff]
  %v489 = vld [vmem:[%s0 + $0x35] sm:$0xff]
  %v490 = vld [vmem:[%s0 + $0x3d] sm:$0xff]
  %v491 = vld [vmem:[%s0 + $0x45] sm:$0xff]
  %v492 = vld [vmem:[%s0 + $0x4d] sm:$0xff]
  %v493 = vld [vmem:[%s0 + $0x55] sm:$0xff]
  %v494 = vld [vmem:[%s0 + $0x5d] sm:$0xff]
  %v495 = vld [vmem:[%s0 + $0x65] sm:$0xff]
  %v496 = vld [vmem:[%s0 + $0x6d] sm:$0xff]
  %v497 = vld [vmem:[%s0 + $0x75] sm:$0xff]
  %v498 = vld [vmem:[%s0 + $0x7d] sm:$0xff]
  %v499 = vld [vmem:[%s0 + $0x85] sm:$0xff]
  %v500 = vld [vmem:[%s0 + $0x8d] sm:$0xff]
  %v501 = vld [vmem:[%s0 + $0x95] sm:$0xff]
  %v502 = vld [vmem:[%s0 + $0x9d] sm:$0xff]
  %v503 = vld [vmem:[%s0 + $0xa5] sm:$0xff]
  %v504 = vld [vmem:[%s0 + $0xad] sm:$0xff]
  %v505 = vld [vmem:[%s0 + $0xb5] sm:$0xff]
  %v506 = vld [vmem:[%s0 + $0xbd] sm:$0xff]
  %v507 = vld [vmem:[%s0 + $0xc5] sm:$0xff]
  %v508 = vld [vmem:[%s0 + $0xcd] sm:$0xff]
  %v509 = vld [vmem:[%s0 + $0xd5] sm:$0xff]
  %v510 = vld [vmem:[%s0 + $0xdd] sm:$0xff]
  %v511 = vld [vmem:[%s0 + $0xe5] sm:$0xff]
  %v512 = vld [vmem:[%s0 + $0xed] sm:$0xff]
  %v513 = vld [vmem:[%s0 + $0xf5] sm:$0xff]
  %v514 = vld [vmem:[%s0 + $0xfd] sm:$0xff]
  %v515 = vld [vmem:[%s0 + $0x105] sm:$0xff]
  %v516 = vld [vmem:[%s0 + $0x10d] sm:$0xff]
  %v517 = vld [vmem:[%s0 + $0x115] sm:$0xff]
  %v518 = vld [vmem:[%s0 + $0x11d] sm:$0xff]
  %v519 = vld [vmem:[%s0 + $0x125] sm:$0xff]
  %v520 = vld [vmem:[%s0 + $0x12d] sm:$0xff]
  %v521 = vld [vmem:[%s0 + $0x135] sm:$0xff]
  %v522 = vld [vmem:[%s0 + $0x13d] sm:$0xff]
  %v523 = vld [vmem:[%s0 + $0x145] sm:$0xff]
  %v524 = vld [vmem:[%s0 + $0x14d] sm:$0xff]
  %v525 = vld [vmem:[%s0 + $0x155] sm:$0xff]
  %v526 = vld [vmem:[%s0 + $0x15d] sm:$0xff]
  %v527 = vld [vmem:[%s0 + $0x165] sm:$0xff]
  %v528 = vld [vmem:[%s0 + $0x16d] sm:$0xff]
  %v529 = vld [vmem:[%s0 + $0x175] sm:$0xff]
  %v530 = vld [vmem:[%s0 + $0x17d] sm:$0xff]
  %v531 = vld [vmem:[%s0 + $0x185] sm:$0xff]
  %v532 = vld [vmem:[%s0 + $0x18d] sm:$0xff]
  %v533 = vld [vmem:[%s0 + $0x195] sm:$0xff]
  %v534 = vld [vmem:[%s0 + $0x19d] sm:$0xff]
  %v535 = vld [vmem:[%s0 + $0x1a5] sm:$0xff]
  %v536 = vld [vmem:[%s0 + $0x1ad] sm:$0xff]
  %v537 = vld [vmem:[%s0 + $0x1b5] sm:$0xff]
  %v538 = vld [vmem:[%s0 + $0x1bd] sm:$0xff]
  %v539 = vld [vmem:[%s0 + $0x1c5] sm:$0xff]
  %v540 = vld [vmem:[%s0 + $0x1cd] sm:$0xff]
  %v541 = vld [vmem:[%s0 + $0x1d5] sm:$0xff]
  %v542 = vld [vmem:[%s0 + $0x1dd] sm:$0xff]
  %v543 = vld [vmem:[%s0 + $0x1e5] sm:$0xff]
  %v544 = vld [vmem:[%s0 + $0x1ed] sm:$0xff]
  %v545 = vld [vmem:[%s0 + $0x1f5] sm:$0xff]
  %v546 = vld [vmem:[%s0 + $0x1fd] sm:$0xff]
  %v547 = vld [vmem:[%s0 + $0x205] sm:$0xff]
  %v548 = vld [vmem:[%s0 + $0x20d] sm:$0xff]
  %v549 = vld [vmem:[%s0 + $0x215] sm:$0xff]
  %v550 = vld [vmem:[%s0 + $0x21d] sm:$0xff]
  %v551 = vld [vmem:[%s0 + $0x225] sm:$0xff]
  %v552 = vld [vmem:[%s0 + $0x22d] sm:$0xff]
  %v553 = vld [vmem:[%s0 + $0x235] sm:$0xff]
  %v554 = vld [vmem:[%s0 + $0x23d] sm:$0xff]
  %v555 = vld [vmem:[%s0 + $0x245] sm:$0xff]
  %v556 = vld [vmem:[%s0 + $0x24d] sm:$0xff]
  %v557 = vld [vmem:[%s0 + $0x255] sm:$0xff]
  %v558 = vld [vmem:[%s0 + $0x25d] sm:$0xff]
  %v559 = vld [vmem:[%s0 + $0x265] sm:$0xff]
  %v560 = vld [vmem:[%s0 + $0x26d] sm:$0xff]
  %v561 = vld [vmem:[%s0 + $0x275] sm:$0xff]
  %v562 = vld [vmem:[%s0 + $0x27d] sm:$0xff]
  %v563 = vld [vmem:[%s0 + $0x285] sm:$0xff]
  %v564 = vld [vmem:[%s0 + $0x28d] sm:$0xff]
  %v565 = vld [vmem:[%s0 + $0x295] sm:$0xff]
  %v566 = vld [vmem:[%s0 + $0x29d] sm:$0xff]
  %v567 = vld [vmem:[%s0 + $0x2a5] sm:$0xff]
  %v568 = vld [vmem:[%s0 + $0x26] sm:$0xff]
  %v569 = vld [vmem:[%s0 + $0x2e] sm:$0xff]
  %v570 = vld [vmem:[%s0 + $0x36] sm:$0xff]
  %v571 = vld [vmem:[%s0 + $0x3e] sm:$0xff]
  %v572 = vld [vmem:[%s0 + $0x46] sm:$0xff]
  %v573 = vld [vmem:[%s0 + $0x4e] sm:$0xff]
  %v574 = vld [vmem:[%s0 + $0x56] sm:$0xff]
  %v575 = vld [vmem:[%s0 + $0x5e] sm:$0xff]
  %v576 = vld [vmem:[%s0 + $0x66] sm:$0xff]
  %v577 = vld [vmem:[%s0 + $0x6e] sm:$0xff]
  %v578 = vld [vmem:[%s0 + $0x76] sm:$0xff]
  %v579 = vld [vmem:[%s0 + $0x7e] sm:$0xff]
  %v580 = vld [vmem:[%s0 + $0x86] sm:$0xff]
  %v581 = vld [vmem:[%s0 + $0x8e] sm:$0xff]
  %v582 = vld [vmem:[%s0 + $0x96] sm:$0xff]
  %v583 = vld [vmem:[%s0 + $0x9e] sm:$0xff]
  %v584 = vld [vmem:[%s0 + $0xa6] sm:$0xff]
  %v585 = vld [vmem:[%s0 + $0xae] sm:$0xff]
  %v586 = vld [vmem:[%s0 + $0xb6] sm:$0xff]
  %v587 = vld [vmem:[%s0 + $0xbe] sm:$0xff]
  %v588 = vld [vmem:[%s0 + $0xc6] sm:$0xff]
  %v589 = vld [vmem:[%s0 + $0xce] sm:$0xff]
  %v590 = vld [vmem:[%s0 + $0xd6] sm:$0xff]
  %v591 = vld [vmem:[%s0 + $0xde] sm:$0xff]
  %v592 = vld [vmem:[%s0 + $0xe6] sm:$0xff]
  %v593 = vld [vmem:[%s0 + $0xee] sm:$0xff]
  %v594 = vld [vmem:[%s0 + $0xf6] sm:$0xff]
  %v595 = vld [vmem:[%s0 + $0xfe] sm:$0xff]
  %v596 = vld [vmem:[%s0 + $0x106] sm:$0xff]
  %v597 = vld [vmem:[%s0 + $0x10e] sm:$0xff]
  %v598 = vld [vmem:[%s0 + $0x116] sm:$0xff]
  %v599 = vld [vmem:[%s0 + $0x11e] sm:$0xff]
  %v600 = vld [vmem:[%s0 + $0x126] sm:$0xff]
  %v601 = vld [vmem:[%s0 + $0x12e] sm:$0xff]
  %v602 = vld [vmem:[%s0 + $0x136] sm:$0xff]
  %v603 = vld [vmem:[%s0 + $0x13e] sm:$0xff]
  %v604 = vld [vmem:[%s0 + $0x146] sm:$0xff]
  %v605 = vld [vmem:[%s0 + $0x14e] sm:$0xff]
  %v606 = vld [vmem:[%s0 + $0x156] sm:$0xff]
  %v607 = vld [vmem:[%s0 + $0x15e] sm:$0xff]
  %v608 = vld [vmem:[%s0 + $0x166] sm:$0xff]
  %v609 = vld [vmem:[%s0 + $0x16e] sm:$0xff]
  %v610 = vld [vmem:[%s0 + $0x176] sm:$0xff]
  %v611 = vld [vmem:[%s0 + $0x17e] sm:$0xff]
  %v612 = vld [vmem:[%s0 + $0x186] sm:$0xff]
  %v613 = vld [vmem:[%s0 + $0x18e] sm:$0xff]
  %v614 = vld [vmem:[%s0 + $0x196] sm:$0xff]
  %v615 = vld [vmem:[%s0 + $0x19e] sm:$0xff]
  %v616 = vld [vmem:[%s0 + $0x1a6] sm:$0xff]
  %v617 = vld [vmem:[%s0 + $0x1ae] sm:$0xff]
  %v618 = vld [vmem:[%s0 + $0x1b6] sm:$0xff]
  %v619 = vld [vmem:[%s0 + $0x1be] sm:$0xff]
  %v620 = vld [vmem:[%s0 + $0x1c6] sm:$0xff]
  %v621 = vld [vmem:[%s0 + $0x1ce] sm:$0xff]
  %v622 = vld [vmem:[%s0 + $0x1d6] sm:$0xff]
  %v623 = vld [vmem:[%s0 + $0x1de] sm:$0xff]
  %v624 = vld [vmem:[%s0 + $0x1e6] sm:$0xff]
  %v625 = vld [vmem:[%s0 + $0x1ee] sm:$0xff]
  %v626 = vld [vmem:[%s0 + $0x1f6] sm:$0xff]
  %v627 = vld [vmem:[%s0 + $0x1fe] sm:$0xff]
  %v628 = vld [vmem:[%s0 + $0x206] sm:$0xff]
  %v629 = vld [vmem:[%s0 + $0x20e] sm:$0xff]
  %v630 = vld [vmem:[%s0 + $0x216] sm:$0xff]
  %v631 = vld [vmem:[%s0 + $0x21e] sm:$0xff]
  %v632 = vld [vmem:[%s0 + $0x226] sm:$0xff]
  %v633 = vld [vmem:[%s0 + $0x22e] sm:$0xff]
  %v634 = vld [vmem:[%s0 + $0x236] sm:$0xff]
  %v635 = vld [vmem:[%s0 + $0x23e] sm:$0xff]
  %v636 = vld [vmem:[%s0 + $0x246] sm:$0xff]
  %v637 = vld [vmem:[%s0 + $0x24e] sm:$0xff]
  %v638 = vld [vmem:[%s0 + $0x256] sm:$0xff]
  %v639 = vld [vmem:[%s0 + $0x25e] sm:$0xff]
  %v640 = vld [vmem:[%s0 + $0x266] sm:$0xff]
  %v641 = vld [vmem:[%s0 + $0x26e] sm:$0xff]
  %v642 = vld [vmem:[%s0 + $0x276] sm:$0xff]
  %v643 = vld [vmem:[%s0 + $0x27e] sm:$0xff]
  %v644 = vld [vmem:[%s0 + $0x286] sm:$0xff]
  %v645 = vld [vmem:[%s0 + $0x28e] sm:$0xff]
  %v646 = vld [vmem:[%s0 + $0x296] sm:$0xff]
  %v647 = vld [vmem:[%s0 + $0x29e] sm:$0xff]
  %v648 = vld [vmem:[%s0 + $0x2a6] sm:$0xff]
  %730 = vrot.lane.b32.xlu0 %v159, 32
  %v731 = vpop.permute.xlu0 %730
  %732 = vrot.lane.b32.xlu0 %v160, 32
  %v733 = vpop.permute.xlu0 %732
  %734 = vrot.lane.b32.xlu0 %v161, 32
  %v735 = vpop.permute.xlu0 %734
  %736 = vrot.lane.b32.xlu0 %v162, 32
  %v737 = vpop.permute.xlu0 %736
  %738 = vrot.lane.b32.xlu0 %v163, 32
  %v739 = vpop.permute.xlu0 %738
  %740 = vrot.lane.b32.xlu0 %v164, 32
  %v741 = vpop.permute.xlu0 %740
  %742 = vrot.lane.b32.xlu0 %v165, 32
  %v743 = vpop.permute.xlu0 %742
  %744 = vrot.lane.b32.xlu0 %v166, 32
  %v745 = vpop.permute.xlu0 %744
  %746 = vrot.lane.b32.xlu0 %v167, 32
  %v747 = vpop.permute.xlu0 %746
  %748 = vrot.lane.b32.xlu0 %v168, 32
  %v749 = vpop.permute.xlu0 %748
  %750 = vrot.lane.b32.xlu0 %v169, 32
  %v751 = vpop.permute.xlu0 %750
  %752 = vrot.lane.b32.xlu0 %v170, 32
  %v753 = vpop.permute.xlu0 %752
  %754 = vrot.lane.b32.xlu0 %v171, 32
  %v755 = vpop.permute.xlu0 %754
  %756 = vrot.lane.b32.xlu0 %v172, 32
  %v757 = vpop.permute.xlu0 %756
  %758 = vrot.lane.b32.xlu0 %v173, 32
  %v759 = vpop.permute.xlu0 %758
  %760 = vrot.lane.b32.xlu0 %v174, 32
  %v761 = vpop.permute.xlu0 %760
  %762 = vrot.lane.b32.xlu0 %v175, 32
  %v763 = vpop.permute.xlu0 %762
  %764 = vrot.lane.b32.xlu0 %v176, 32
  %v765 = vpop.permute.xlu0 %764
  %766 = vrot.lane.b32.xlu0 %v177, 32
  %v767 = vpop.permute.xlu0 %766
  %768 = vrot.lane.b32.xlu0 %v178, 32
  %v769 = vpop.permute.xlu0 %768
  %770 = vrot.lane.b32.xlu0 %v179, 32
  %v771 = vpop.permute.xlu0 %770
  %772 = vrot.lane.b32.xlu0 %v180, 32
  %v773 = vpop.permute.xlu0 %772
  %774 = vrot.lane.b32.xlu0 %v181, 32
  %v775 = vpop.permute.xlu0 %774
  %776 = vrot.lane.b32.xlu0 %v182, 32
  %v777 = vpop.permute.xlu0 %776
  %778 = vrot.lane.b32.xlu0 %v183, 32
  %v779 = vpop.permute.xlu0 %778
  %780 = vrot.lane.b32.xlu0 %v184, 32
  %v781 = vpop.permute.xlu0 %780
  %782 = vrot.lane.b32.xlu0 %v185, 32
  %v783 = vpop.permute.xlu0 %782
  %784 = vrot.lane.b32.xlu0 %v186, 32
  %v785 = vpop.permute.xlu0 %784
  %786 = vrot.lane.b32.xlu0 %v187, 32
  %v787 = vpop.permute.xlu0 %786
  %788 = vrot.lane.b32.xlu0 %v188, 32
  %v789 = vpop.permute.xlu0 %788
  %790 = vrot.lane.b32.xlu0 %v189, 32
  %v791 = vpop.permute.xlu0 %790
  %792 = vrot.lane.b32.xlu0 %v190, 32
  %v793 = vpop.permute.xlu0 %792
  %794 = vrot.lane.b32.xlu0 %v191, 32
  %v795 = vpop.permute.xlu0 %794
  %796 = vrot.lane.b32.xlu0 %v192, 32
  %v797 = vpop.permute.xlu0 %796
  %798 = vrot.lane.b32.xlu0 %v193, 32
  %v799 = vpop.permute.xlu0 %798
  %800 = vrot.lane.b32.xlu0 %v194, 32
  %v801 = vpop.permute.xlu0 %800
  %802 = vrot.lane.b32.xlu0 %v195, 32
  %v803 = vpop.permute.xlu0 %802
  %804 = vrot.lane.b32.xlu0 %v196, 32
  %v805 = vpop.permute.xlu0 %804
  %806 = vrot.lane.b32.xlu0 %v197, 32
  %v807 = vpop.permute.xlu0 %806
  %808 = vrot.lane.b32.xlu0 %v198, 32
  %v809 = vpop.permute.xlu0 %808
  %810 = vrot.lane.b32.xlu0 %v199, 32
  %v811 = vpop.permute.xlu0 %810
  %812 = vrot.lane.b32.xlu0 %v200, 32
  %v813 = vpop.permute.xlu0 %812
  %814 = vrot.lane.b32.xlu0 %v201, 32
  %v815 = vpop.permute.xlu0 %814
  %816 = vrot.lane.b32.xlu0 %v202, 32
  %v817 = vpop.permute.xlu0 %816
  %818 = vrot.lane.b32.xlu0 %v203, 32
  %v819 = vpop.permute.xlu0 %818
  %820 = vrot.lane.b32.xlu0 %v204, 32
  %v821 = vpop.permute.xlu0 %820
  %822 = vrot.lane.b32.xlu0 %v205, 32
  %v823 = vpop.permute.xlu0 %822
  %824 = vrot.lane.b32.xlu0 %v206, 32
  %v825 = vpop.permute.xlu0 %824
  %826 = vrot.lane.b32.xlu0 %v207, 32
  %v827 = vpop.permute.xlu0 %826
  %828 = vrot.lane.b32.xlu0 %v208, 32
  %v829 = vpop.permute.xlu0 %828
  %830 = vrot.lane.b32.xlu0 %v209, 32
  %v831 = vpop.permute.xlu0 %830
  %832 = vrot.lane.b32.xlu0 %v210, 32
  %v833 = vpop.permute.xlu0 %832
  %834 = vrot.lane.b32.xlu0 %v211, 32
  %v835 = vpop.permute.xlu0 %834
  %836 = vrot.lane.b32.xlu0 %v212, 32
  %v837 = vpop.permute.xlu0 %836
  %838 = vrot.lane.b32.xlu0 %v213, 32
  %v839 = vpop.permute.xlu0 %838
  %840 = vrot.lane.b32.xlu0 %v214, 32
  %v841 = vpop.permute.xlu0 %840
  %842 = vrot.lane.b32.xlu0 %v215, 32
  %v843 = vpop.permute.xlu0 %842
  %844 = vrot.lane.b32.xlu0 %v216, 32
  %v845 = vpop.permute.xlu0 %844
  %846 = vrot.lane.b32.xlu0 %v217, 32
  %v847 = vpop.permute.xlu0 %846
  %848 = vrot.lane.b32.xlu0 %v218, 32
  %v849 = vpop.permute.xlu0 %848
  %850 = vrot.lane.b32.xlu0 %v219, 32
  %v851 = vpop.permute.xlu0 %850
  %852 = vrot.lane.b32.xlu0 %v220, 32
  %v853 = vpop.permute.xlu0 %852
  %854 = vrot.lane.b32.xlu0 %v221, 32
  %v855 = vpop.permute.xlu0 %854
  %856 = vrot.lane.b32.xlu0 %v222, 32
  %v857 = vpop.permute.xlu0 %856
  %858 = vrot.lane.b32.xlu0 %v223, 32
  %v859 = vpop.permute.xlu0 %858
  %860 = vrot.lane.b32.xlu0 %v224, 32
  %v861 = vpop.permute.xlu0 %860
  %862 = vrot.lane.b32.xlu0 %v225, 32
  %v863 = vpop.permute.xlu0 %862
  %864 = vrot.lane.b32.xlu0 %v226, 32
  %v865 = vpop.permute.xlu0 %864
  %866 = vrot.lane.b32.xlu0 %v227, 32
  %v867 = vpop.permute.xlu0 %866
  %868 = vrot.lane.b32.xlu0 %v228, 32
  %v869 = vpop.permute.xlu0 %868
  %870 = vrot.lane.b32.xlu0 %v229, 32
  %v871 = vpop.permute.xlu0 %870
  %872 = vrot.lane.b32.xlu0 %v230, 32
  %v873 = vpop.permute.xlu0 %872
  %874 = vrot.lane.b32.xlu0 %v231, 32
  %v875 = vpop.permute.xlu0 %874
  %876 = vrot.lane.b32.xlu0 %v232, 32
  %v877 = vpop.permute.xlu0 %876
  %878 = vrot.lane.b32.xlu0 %v233, 32
  %v879 = vpop.permute.xlu0 %878
  %880 = vrot.lane.b32.xlu0 %v234, 32
  %v881 = vpop.permute.xlu0 %880
  %882 = vrot.lane.b32.xlu0 %v235, 32
  %v883 = vpop.permute.xlu0 %882
  %884 = vrot.lane.b32.xlu0 %v236, 32
  %v885 = vpop.permute.xlu0 %884
  %886 = vrot.lane.b32.xlu0 %v237, 32
  %v887 = vpop.permute.xlu0 %886
  %888 = vrot.lane.b32.xlu0 %v238, 32
  %v889 = vpop.permute.xlu0 %888
  %890 = vrot.lane.b32.xlu0 %v239, 32
  %v891 = vpop.permute.xlu0 %890
  %1054 = vrot.lane.b32.xlu0 %v240, 64
  %v1055 = vpop.permute.xlu0 %1054
  %1056 = vrot.lane.b32.xlu0 %v241, 64
  %v1057 = vpop.permute.xlu0 %1056
  %1058 = vrot.lane.b32.xlu0 %v242, 64
  %v1059 = vpop.permute.xlu0 %1058
  %1060 = vrot.lane.b32.xlu0 %v243, 64
  %v1061 = vpop.permute.xlu0 %1060
  %1062 = vrot.lane.b32.xlu0 %v244, 64
  %v1063 = vpop.permute.xlu0 %1062
  %1064 = vrot.lane.b32.xlu0 %v245, 64
  %v1065 = vpop.permute.xlu0 %1064
  %1066 = vrot.lane.b32.xlu0 %v246, 64
  %v1067 = vpop.permute.xlu0 %1066
  %1068 = vrot.lane.b32.xlu0 %v247, 64
  %v1069 = vpop.permute.xlu0 %1068
  %1070 = vrot.lane.b32.xlu0 %v248, 64
  %v1071 = vpop.permute.xlu0 %1070
  %1072 = vrot.lane.b32.xlu0 %v249, 64
  %v1073 = vpop.permute.xlu0 %1072
  %1074 = vrot.lane.b32.xlu0 %v250, 64
  %v1075 = vpop.permute.xlu0 %1074
  %1076 = vrot.lane.b32.xlu0 %v251, 64
  %v1077 = vpop.permute.xlu0 %1076
  %1078 = vrot.lane.b32.xlu0 %v252, 64
  %v1079 = vpop.permute.xlu0 %1078
  %1080 = vrot.lane.b32.xlu0 %v253, 64
  %v1081 = vpop.permute.xlu0 %1080
  %1082 = vrot.lane.b32.xlu0 %v254, 64
  %v1083 = vpop.permute.xlu0 %1082
  %1084 = vrot.lane.b32.xlu0 %v255, 64
  %v1085 = vpop.permute.xlu0 %1084
  %1086 = vrot.lane.b32.xlu0 %v256, 64
  %v1087 = vpop.permute.xlu0 %1086
  %1088 = vrot.lane.b32.xlu0 %v257, 64
  %v1089 = vpop.permute.xlu0 %1088
  %1090 = vrot.lane.b32.xlu0 %v258, 64
  %v1091 = vpop.permute.xlu0 %1090
  %1092 = vrot.lane.b32.xlu0 %v259, 64
  %v1093 = vpop.permute.xlu0 %1092
  %1094 = vrot.lane.b32.xlu0 %v260, 64
  %v1095 = vpop.permute.xlu0 %1094
  %1096 = vrot.lane.b32.xlu0 %v261, 64
  %v1097 = vpop.permute.xlu0 %1096
  %1098 = vrot.lane.b32.xlu0 %v262, 64
  %v1099 = vpop.permute.xlu0 %1098
  %1100 = vrot.lane.b32.xlu0 %v263, 64
  %v1101 = vpop.permute.xlu0 %1100
  %1102 = vrot.lane.b32.xlu0 %v264, 64
  %v1103 = vpop.permute.xlu0 %1102
  %1104 = vrot.lane.b32.xlu0 %v265, 64
  %v1105 = vpop.permute.xlu0 %1104
  %1106 = vrot.lane.b32.xlu0 %v266, 64
  %v1107 = vpop.permute.xlu0 %1106
  %1108 = vrot.lane.b32.xlu0 %v267, 64
  %v1109 = vpop.permute.xlu0 %1108
  %1110 = vrot.lane.b32.xlu0 %v268, 64
  %v1111 = vpop.permute.xlu0 %1110
  %1112 = vrot.lane.b32.xlu0 %v269, 64
  %v1113 = vpop.permute.xlu0 %1112
  %1114 = vrot.lane.b32.xlu0 %v270, 64
  %v1115 = vpop.permute.xlu0 %1114
  %1116 = vrot.lane.b32.xlu0 %v271, 64
  %v1117 = vpop.permute.xlu0 %1116
  %1118 = vrot.lane.b32.xlu0 %v272, 64
  %v1119 = vpop.permute.xlu0 %1118
  %1120 = vrot.lane.b32.xlu0 %v273, 64
  %v1121 = vpop.permute.xlu0 %1120
  %1122 = vrot.lane.b32.xlu0 %v274, 64
  %v1123 = vpop.permute.xlu0 %1122
  %1124 = vrot.lane.b32.xlu0 %v275, 64
  %v1125 = vpop.permute.xlu0 %1124
  %1126 = vrot.lane.b32.xlu0 %v276, 64
  %v1127 = vpop.permute.xlu0 %1126
  %1128 = vrot.lane.b32.xlu0 %v277, 64
  %v1129 = vpop.permute.xlu0 %1128
  %1130 = vrot.lane.b32.xlu0 %v278, 64
  %v1131 = vpop.permute.xlu0 %1130
  %1132 = vrot.lane.b32.xlu0 %v279, 64
  %v1133 = vpop.permute.xlu0 %1132
  %1134 = vrot.lane.b32.xlu0 %v280, 64
  %v1135 = vpop.permute.xlu0 %1134
  %1136 = vrot.lane.b32.xlu0 %v281, 64
  %v1137 = vpop.permute.xlu0 %1136
  %1138 = vrot.lane.b32.xlu0 %v282, 64
  %v1139 = vpop.permute.xlu0 %1138
  %1140 = vrot.lane.b32.xlu0 %v283, 64
  %v1141 = vpop.permute.xlu0 %1140
  %1142 = vrot.lane.b32.xlu0 %v284, 64
  %v1143 = vpop.permute.xlu0 %1142
  %1144 = vrot.lane.b32.xlu0 %v285, 64
  %v1145 = vpop.permute.xlu0 %1144
  %1146 = vrot.lane.b32.xlu0 %v286, 64
  %v1147 = vpop.permute.xlu0 %1146
  %1148 = vrot.lane.b32.xlu0 %v287, 64
  %v1149 = vpop.permute.xlu0 %1148
  %1150 = vrot.lane.b32.xlu0 %v288, 64
  %v1151 = vpop.permute.xlu0 %1150
  %1152 = vrot.lane.b32.xlu0 %v289, 64
  %v1153 = vpop.permute.xlu0 %1152
  %1154 = vrot.lane.b32.xlu0 %v290, 64
  %v1155 = vpop.permute.xlu0 %1154
  %1156 = vrot.lane.b32.xlu0 %v291, 64
  %v1157 = vpop.permute.xlu0 %1156
  %1158 = vrot.lane.b32.xlu0 %v292, 64
  %v1159 = vpop.permute.xlu0 %1158
  %1160 = vrot.lane.b32.xlu0 %v293, 64
  %v1161 = vpop.permute.xlu0 %1160
  %1162 = vrot.lane.b32.xlu0 %v294, 64
  %v1163 = vpop.permute.xlu0 %1162
  %1164 = vrot.lane.b32.xlu0 %v295, 64
  %v1165 = vpop.permute.xlu0 %1164
  %1166 = vrot.lane.b32.xlu0 %v296, 64
  %v1167 = vpop.permute.xlu0 %1166
  %1168 = vrot.lane.b32.xlu0 %v297, 64
  %v1169 = vpop.permute.xlu0 %1168
  %1170 = vrot.lane.b32.xlu0 %v298, 64
  %v1171 = vpop.permute.xlu0 %1170
  %1172 = vrot.lane.b32.xlu0 %v299, 64
  %v1173 = vpop.permute.xlu0 %1172
  %1174 = vrot.lane.b32.xlu0 %v300, 64
  %v1175 = vpop.permute.xlu0 %1174
  %1176 = vrot.lane.b32.xlu0 %v301, 64
  %v1177 = vpop.permute.xlu0 %1176
  %1178 = vrot.lane.b32.xlu0 %v302, 64
  %v1179 = vpop.permute.xlu0 %1178
  %1180 = vrot.lane.b32.xlu0 %v303, 64
  %v1181 = vpop.permute.xlu0 %1180
  %1182 = vrot.lane.b32.xlu0 %v304, 64
  %v1183 = vpop.permute.xlu0 %1182
  %1184 = vrot.lane.b32.xlu0 %v305, 64
  %v1185 = vpop.permute.xlu0 %1184
  %1186 = vrot.lane.b32.xlu0 %v306, 64
  %v1187 = vpop.permute.xlu0 %1186
  %1188 = vrot.lane.b32.xlu0 %v307, 64
  %v1189 = vpop.permute.xlu0 %1188
  %1190 = vrot.lane.b32.xlu0 %v308, 64
  %v1191 = vpop.permute.xlu0 %1190
  %1192 = vrot.lane.b32.xlu0 %v309, 64
  %v1193 = vpop.permute.xlu0 %1192
  %1194 = vrot.lane.b32.xlu0 %v310, 64
  %v1195 = vpop.permute.xlu0 %1194
  %1196 = vrot.lane.b32.xlu0 %v311, 64
  %v1197 = vpop.permute.xlu0 %1196
  %1198 = vrot.lane.b32.xlu0 %v312, 64
  %v1199 = vpop.permute.xlu0 %1198
  %1200 = vrot.lane.b32.xlu0 %v313, 64
  %v1201 = vpop.permute.xlu0 %1200
  %1202 = vrot.lane.b32.xlu0 %v314, 64
  %v1203 = vpop.permute.xlu0 %1202
  %1204 = vrot.lane.b32.xlu0 %v315, 64
  %v1205 = vpop.permute.xlu0 %1204
  %1206 = vrot.lane.b32.xlu0 %v316, 64
  %v1207 = vpop.permute.xlu0 %1206
  %1208 = vrot.lane.b32.xlu0 %v317, 64
  %v1209 = vpop.permute.xlu0 %1208
  %1210 = vrot.lane.b32.xlu0 %v318, 64
  %v1211 = vpop.permute.xlu0 %1210
  %1212 = vrot.lane.b32.xlu0 %v319, 64
  %v1213 = vpop.permute.xlu0 %1212
  %1214 = vrot.lane.b32.xlu0 %v320, 64
  %v1215 = vpop.permute.xlu0 %1214
  %1299 = vrot.lane.b32.xlu0 %v242, 96
  %v1300 = vpop.permute.xlu0 %1299
  %1301 = vrot.lane.b32.xlu0 %v243, 96
  %v1302 = vpop.permute.xlu0 %1301
  %1303 = vrot.lane.b32.xlu0 %v244, 96
  %v1304 = vpop.permute.xlu0 %1303
  %1305 = vrot.lane.b32.xlu0 %v245, 96
  %v1306 = vpop.permute.xlu0 %1305
  %1307 = vrot.lane.b32.xlu0 %v246, 96
  %v1308 = vpop.permute.xlu0 %1307
  %1309 = vrot.lane.b32.xlu0 %v247, 96
  %v1310 = vpop.permute.xlu0 %1309
  %1311 = vrot.lane.b32.xlu0 %v248, 96
  %v1312 = vpop.permute.xlu0 %1311
  %1313 = vrot.lane.b32.xlu0 %v249, 96
  %v1314 = vpop.permute.xlu0 %1313
  %1315 = vrot.lane.b32.xlu0 %v250, 96
  %v1316 = vpop.permute.xlu0 %1315
  %1317 = vrot.lane.b32.xlu0 %v251, 96
  %v1318 = vpop.permute.xlu0 %1317
  %1319 = vrot.lane.b32.xlu0 %v252, 96
  %v1320 = vpop.permute.xlu0 %1319
  %1321 = vrot.lane.b32.xlu0 %v253, 96
  %v1322 = vpop.permute.xlu0 %1321
  %1323 = vrot.lane.b32.xlu0 %v254, 96
  %v1324 = vpop.permute.xlu0 %1323
  %1325 = vrot.lane.b32.xlu0 %v255, 96
  %v1326 = vpop.permute.xlu0 %1325
  %1327 = vrot.lane.b32.xlu0 %v256, 96
  %v1328 = vpop.permute.xlu0 %1327
  %1329 = vrot.lane.b32.xlu0 %v257, 96
  %v1330 = vpop.permute.xlu0 %1329
  %1331 = vrot.lane.b32.xlu0 %v258, 96
  %v1332 = vpop.permute.xlu0 %1331
  %1333 = vrot.lane.b32.xlu0 %v259, 96
  %v1334 = vpop.permute.xlu0 %1333
  %1335 = vrot.lane.b32.xlu0 %v260, 96
  %v1336 = vpop.permute.xlu0 %1335
  %1337 = vrot.lane.b32.xlu0 %v261, 96
  %v1338 = vpop.permute.xlu0 %1337
  %1339 = vrot.lane.b32.xlu0 %v262, 96
  %v1340 = vpop.permute.xlu0 %1339
  %1341 = vrot.lane.b32.xlu0 %v263, 96
  %v1342 = vpop.permute.xlu0 %1341
  %1343 = vrot.lane.b32.xlu0 %v264, 96
  %v1344 = vpop.permute.xlu0 %1343
  %1345 = vrot.lane.b32.xlu0 %v265, 96
  %v1346 = vpop.permute.xlu0 %1345
  %1347 = vrot.lane.b32.xlu0 %v266, 96
  %v1348 = vpop.permute.xlu0 %1347
  %1349 = vrot.lane.b32.xlu0 %v267, 96
  %v1350 = vpop.permute.xlu0 %1349
  %1351 = vrot.lane.b32.xlu0 %v268, 96
  %v1352 = vpop.permute.xlu0 %1351
  %1353 = vrot.lane.b32.xlu0 %v269, 96
  %v1354 = vpop.permute.xlu0 %1353
  %1355 = vrot.lane.b32.xlu0 %v270, 96
  %v1356 = vpop.permute.xlu0 %1355
  %1357 = vrot.lane.b32.xlu0 %v271, 96
  %v1358 = vpop.permute.xlu0 %1357
  %1359 = vrot.lane.b32.xlu0 %v272, 96
  %v1360 = vpop.permute.xlu0 %1359
  %1361 = vrot.lane.b32.xlu0 %v273, 96
  %v1362 = vpop.permute.xlu0 %1361
  %1363 = vrot.lane.b32.xlu0 %v274, 96
  %v1364 = vpop.permute.xlu0 %1363
  %1365 = vrot.lane.b32.xlu0 %v275, 96
  %v1366 = vpop.permute.xlu0 %1365
  %1367 = vrot.lane.b32.xlu0 %v276, 96
  %v1368 = vpop.permute.xlu0 %1367
  %1369 = vrot.lane.b32.xlu0 %v277, 96
  %v1370 = vpop.permute.xlu0 %1369
  %1371 = vrot.lane.b32.xlu0 %v278, 96
  %v1372 = vpop.permute.xlu0 %1371
  %1373 = vrot.lane.b32.xlu0 %v279, 96
  %v1374 = vpop.permute.xlu0 %1373
  %1375 = vrot.lane.b32.xlu0 %v280, 96
  %v1376 = vpop.permute.xlu0 %1375
  %1377 = vrot.lane.b32.xlu0 %v281, 96
  %v1378 = vpop.permute.xlu0 %1377
  %1379 = vrot.lane.b32.xlu0 %v282, 96
  %v1380 = vpop.permute.xlu0 %1379
  %1381 = vrot.lane.b32.xlu0 %v283, 96
  %v1382 = vpop.permute.xlu0 %1381
  %1383 = vrot.lane.b32.xlu0 %v284, 96
  %v1384 = vpop.permute.xlu0 %1383
  %1385 = vrot.lane.b32.xlu0 %v285, 96
  %v1386 = vpop.permute.xlu0 %1385
  %1387 = vrot.lane.b32.xlu0 %v286, 96
  %v1388 = vpop.permute.xlu0 %1387
  %1389 = vrot.lane.b32.xlu0 %v287, 96
  %v1390 = vpop.permute.xlu0 %1389
  %1391 = vrot.lane.b32.xlu0 %v288, 96
  %v1392 = vpop.permute.xlu0 %1391
  %1393 = vrot.lane.b32.xlu0 %v289, 96
  %v1394 = vpop.permute.xlu0 %1393
  %1395 = vrot.lane.b32.xlu0 %v290, 96
  %v1396 = vpop.permute.xlu0 %1395
  %1397 = vrot.lane.b32.xlu0 %v291, 96
  %v1398 = vpop.permute.xlu0 %1397
  %1399 = vrot.lane.b32.xlu0 %v292, 96
  %v1400 = vpop.permute.xlu0 %1399
  %1401 = vrot.lane.b32.xlu0 %v293, 96
  %v1402 = vpop.permute.xlu0 %1401
  %1403 = vrot.lane.b32.xlu0 %v294, 96
  %v1404 = vpop.permute.xlu0 %1403
  %1405 = vrot.lane.b32.xlu0 %v295, 96
  %v1406 = vpop.permute.xlu0 %1405
  %1407 = vrot.lane.b32.xlu0 %v296, 96
  %v1408 = vpop.permute.xlu0 %1407
  %1409 = vrot.lane.b32.xlu0 %v297, 96
  %v1410 = vpop.permute.xlu0 %1409
  %1411 = vrot.lane.b32.xlu0 %v298, 96
  %v1412 = vpop.permute.xlu0 %1411
  %1413 = vrot.lane.b32.xlu0 %v299, 96
  %v1414 = vpop.permute.xlu0 %1413
  %1415 = vrot.lane.b32.xlu0 %v300, 96
  %v1416 = vpop.permute.xlu0 %1415
  %1417 = vrot.lane.b32.xlu0 %v301, 96
  %v1418 = vpop.permute.xlu0 %1417
  %1419 = vrot.lane.b32.xlu0 %v302, 96
  %v1420 = vpop.permute.xlu0 %1419
  %1421 = vrot.lane.b32.xlu0 %v303, 96
  %v1422 = vpop.permute.xlu0 %1421
  %1423 = vrot.lane.b32.xlu0 %v304, 96
  %v1424 = vpop.permute.xlu0 %1423
  %1425 = vrot.lane.b32.xlu0 %v305, 96
  %v1426 = vpop.permute.xlu0 %1425
  %1427 = vrot.lane.b32.xlu0 %v306, 96
  %v1428 = vpop.permute.xlu0 %1427
  %1429 = vrot.lane.b32.xlu0 %v307, 96
  %v1430 = vpop.permute.xlu0 %1429
  %1431 = vrot.lane.b32.xlu0 %v308, 96
  %v1432 = vpop.permute.xlu0 %1431
  %1433 = vrot.lane.b32.xlu0 %v309, 96
  %v1434 = vpop.permute.xlu0 %1433
  %1435 = vrot.lane.b32.xlu0 %v310, 96
  %v1436 = vpop.permute.xlu0 %1435
  %1437 = vrot.lane.b32.xlu0 %v311, 96
  %v1438 = vpop.permute.xlu0 %1437
  %1439 = vrot.lane.b32.xlu0 %v312, 96
  %v1440 = vpop.permute.xlu0 %1439
  %1441 = vrot.lane.b32.xlu0 %v313, 96
  %v1442 = vpop.permute.xlu0 %1441
  %1443 = vrot.lane.b32.xlu0 %v314, 96
  %v1444 = vpop.permute.xlu0 %1443
  %1445 = vrot.lane.b32.xlu0 %v315, 96
  %v1446 = vpop.permute.xlu0 %1445
  %1447 = vrot.lane.b32.xlu0 %v316, 96
  %v1448 = vpop.permute.xlu0 %1447
  %1449 = vrot.lane.b32.xlu0 %v317, 96
  %v1450 = vpop.permute.xlu0 %1449
  %1451 = vrot.lane.b32.xlu0 %v318, 96
  %v1452 = vpop.permute.xlu0 %1451
  %1453 = vrot.lane.b32.xlu0 %v319, 96
  %v1454 = vpop.permute.xlu0 %1453
  %1455 = vrot.lane.b32.xlu0 %v320, 96
  %v1456 = vpop.permute.xlu0 %1455
  %1457 = vrot.lane.b32.xlu0 %v321, 96
  %v1458 = vpop.permute.xlu0 %1457
  %1459 = vrot.lane.b32.xlu0 %v322, 96
  %v1460 = vpop.permute.xlu0 %1459
  %1623 = vrot.lane.b32.xlu0 %v404, 32
  %v1624 = vpop.permute.xlu0 %1623
  %1625 = vrot.lane.b32.xlu0 %v405, 32
  %v1626 = vpop.permute.xlu0 %1625
  %1627 = vrot.lane.b32.xlu0 %v406, 32
  %v1628 = vpop.permute.xlu0 %1627
  %1629 = vrot.lane.b32.xlu0 %v407, 32
  %v1630 = vpop.permute.xlu0 %1629
  %1631 = vrot.lane.b32.xlu0 %v408, 32
  %v1632 = vpop.permute.xlu0 %1631
  %1633 = vrot.lane.b32.xlu0 %v409, 32
  %v1634 = vpop.permute.xlu0 %1633
  %1635 = vrot.lane.b32.xlu0 %v410, 32
  %v1636 = vpop.permute.xlu0 %1635
  %1637 = vrot.lane.b32.xlu0 %v411, 32
  %v1638 = vpop.permute.xlu0 %1637
  %1639 = vrot.lane.b32.xlu0 %v412, 32
  %v1640 = vpop.permute.xlu0 %1639
  %1641 = vrot.lane.b32.xlu0 %v413, 32
  %v1642 = vpop.permute.xlu0 %1641
  %1643 = vrot.lane.b32.xlu0 %v414, 32
  %v1644 = vpop.permute.xlu0 %1643
  %1645 = vrot.lane.b32.xlu0 %v415, 32
  %v1646 = vpop.permute.xlu0 %1645
  %1647 = vrot.lane.b32.xlu0 %v416, 32
  %v1648 = vpop.permute.xlu0 %1647
  %1649 = vrot.lane.b32.xlu0 %v417, 32
  %v1650 = vpop.permute.xlu0 %1649
  %1651 = vrot.lane.b32.xlu0 %v418, 32
  %v1652 = vpop.permute.xlu0 %1651
  %1653 = vrot.lane.b32.xlu0 %v419, 32
  %v1654 = vpop.permute.xlu0 %1653
  %1655 = vrot.lane.b32.xlu0 %v420, 32
  %v1656 = vpop.permute.xlu0 %1655
  %1657 = vrot.lane.b32.xlu0 %v421, 32
  %v1658 = vpop.permute.xlu0 %1657
  %1659 = vrot.lane.b32.xlu0 %v422, 32
  %v1660 = vpop.permute.xlu0 %1659
  %1661 = vrot.lane.b32.xlu0 %v423, 32
  %v1662 = vpop.permute.xlu0 %1661
  %1663 = vrot.lane.b32.xlu0 %v424, 32
  %v1664 = vpop.permute.xlu0 %1663
  %1665 = vrot.lane.b32.xlu0 %v425, 32
  %v1666 = vpop.permute.xlu0 %1665
  %1667 = vrot.lane.b32.xlu0 %v426, 32
  %v1668 = vpop.permute.xlu0 %1667
  %1669 = vrot.lane.b32.xlu0 %v427, 32
  %v1670 = vpop.permute.xlu0 %1669
  %1671 = vrot.lane.b32.xlu0 %v428, 32
  %v1672 = vpop.permute.xlu0 %1671
  %1673 = vrot.lane.b32.xlu0 %v429, 32
  %v1674 = vpop.permute.xlu0 %1673
  %1675 = vrot.lane.b32.xlu0 %v430, 32
  %v1676 = vpop.permute.xlu0 %1675
  %1677 = vrot.lane.b32.xlu0 %v431, 32
  %v1678 = vpop.permute.xlu0 %1677
  %1679 = vrot.lane.b32.xlu0 %v432, 32
  %v1680 = vpop.permute.xlu0 %1679
  %1681 = vrot.lane.b32.xlu0 %v433, 32
  %v1682 = vpop.permute.xlu0 %1681
  %1683 = vrot.lane.b32.xlu0 %v434, 32
  %v1684 = vpop.permute.xlu0 %1683
  %1685 = vrot.lane.b32.xlu0 %v435, 32
  %v1686 = vpop.permute.xlu0 %1685
  %1687 = vrot.lane.b32.xlu0 %v436, 32
  %v1688 = vpop.permute.xlu0 %1687
  %1689 = vrot.lane.b32.xlu0 %v437, 32
  %v1690 = vpop.permute.xlu0 %1689
  %1691 = vrot.lane.b32.xlu0 %v438, 32
  %v1692 = vpop.permute.xlu0 %1691
  %1693 = vrot.lane.b32.xlu0 %v439, 32
  %v1694 = vpop.permute.xlu0 %1693
  %1695 = vrot.lane.b32.xlu0 %v440, 32
  %v1696 = vpop.permute.xlu0 %1695
  %1697 = vrot.lane.b32.xlu0 %v441, 32
  %v1698 = vpop.permute.xlu0 %1697
  %1699 = vrot.lane.b32.xlu0 %v442, 32
  %v1700 = vpop.permute.xlu0 %1699
  %1701 = vrot.lane.b32.xlu0 %v443, 32
  %v1702 = vpop.permute.xlu0 %1701
  %1703 = vrot.lane.b32.xlu0 %v444, 32
  %v1704 = vpop.permute.xlu0 %1703
  %1705 = vrot.lane.b32.xlu0 %v445, 32
  %v1706 = vpop.permute.xlu0 %1705
  %1707 = vrot.lane.b32.xlu0 %v446, 32
  %v1708 = vpop.permute.xlu0 %1707
  %1709 = vrot.lane.b32.xlu0 %v447, 32
  %v1710 = vpop.permute.xlu0 %1709
  %1711 = vrot.lane.b32.xlu0 %v448, 32
  %v1712 = vpop.permute.xlu0 %1711
  %1713 = vrot.lane.b32.xlu0 %v449, 32
  %v1714 = vpop.permute.xlu0 %1713
  %1715 = vrot.lane.b32.xlu0 %v450, 32
  %v1716 = vpop.permute.xlu0 %1715
  %1717 = vrot.lane.b32.xlu0 %v451, 32
  %v1718 = vpop.permute.xlu0 %1717
  %1719 = vrot.lane.b32.xlu0 %v452, 32
  %v1720 = vpop.permute.xlu0 %1719
  %1721 = vrot.lane.b32.xlu0 %v453, 32
  %v1722 = vpop.permute.xlu0 %1721
  %1723 = vrot.lane.b32.xlu0 %v454, 32
  %v1724 = vpop.permute.xlu0 %1723
  %1725 = vrot.lane.b32.xlu0 %v455, 32
  %v1726 = vpop.permute.xlu0 %1725
  %1727 = vrot.lane.b32.xlu0 %v456, 32
  %v1728 = vpop.permute.xlu0 %1727
  %1729 = vrot.lane.b32.xlu0 %v457, 32
  %v1730 = vpop.permute.xlu0 %1729
  %1731 = vrot.lane.b32.xlu0 %v458, 32
  %v1732 = vpop.permute.xlu0 %1731
  %1733 = vrot.lane.b32.xlu0 %v459, 32
  %v1734 = vpop.permute.xlu0 %1733
  %1735 = vrot.lane.b32.xlu0 %v460, 32
  %v1736 = vpop.permute.xlu0 %1735
  %1737 = vrot.lane.b32.xlu0 %v461, 32
  %v1738 = vpop.permute.xlu0 %1737
  %1739 = vrot.lane.b32.xlu0 %v462, 32
  %v1740 = vpop.permute.xlu0 %1739
  %1741 = vrot.lane.b32.xlu0 %v463, 32
  %v1742 = vpop.permute.xlu0 %1741
  %1743 = vrot.lane.b32.xlu0 %v464, 32
  %v1744 = vpop.permute.xlu0 %1743
  %1745 = vrot.lane.b32.xlu0 %v465, 32
  %v1746 = vpop.permute.xlu0 %1745
  %1747 = vrot.lane.b32.xlu0 %v466, 32
  %v1748 = vpop.permute.xlu0 %1747
  %1749 = vrot.lane.b32.xlu0 %v467, 32
  %v1750 = vpop.permute.xlu0 %1749
  %1751 = vrot.lane.b32.xlu0 %v468, 32
  %v1752 = vpop.permute.xlu0 %1751
  %1753 = vrot.lane.b32.xlu0 %v469, 32
  %v1754 = vpop.permute.xlu0 %1753
  %1755 = vrot.lane.b32.xlu0 %v470, 32
  %v1756 = vpop.permute.xlu0 %1755
  %1757 = vrot.lane.b32.xlu0 %v471, 32
  %v1758 = vpop.permute.xlu0 %1757
  %1759 = vrot.lane.b32.xlu0 %v472, 32
  %v1760 = vpop.permute.xlu0 %1759
  %1761 = vrot.lane.b32.xlu0 %v473, 32
  %v1762 = vpop.permute.xlu0 %1761
  %1763 = vrot.lane.b32.xlu0 %v474, 32
  %v1764 = vpop.permute.xlu0 %1763
  %1765 = vrot.lane.b32.xlu0 %v475, 32
  %v1766 = vpop.permute.xlu0 %1765
  %1767 = vrot.lane.b32.xlu0 %v476, 32
  %v1768 = vpop.permute.xlu0 %1767
  %1769 = vrot.lane.b32.xlu0 %v477, 32
  %v1770 = vpop.permute.xlu0 %1769
  %1771 = vrot.lane.b32.xlu0 %v478, 32
  %v1772 = vpop.permute.xlu0 %1771
  %1773 = vrot.lane.b32.xlu0 %v479, 32
  %v1774 = vpop.permute.xlu0 %1773
  %1775 = vrot.lane.b32.xlu0 %v480, 32
  %v1776 = vpop.permute.xlu0 %1775
  %1777 = vrot.lane.b32.xlu0 %v481, 32
  %v1778 = vpop.permute.xlu0 %1777
  %1779 = vrot.lane.b32.xlu0 %v482, 32
  %v1780 = vpop.permute.xlu0 %1779
  %1781 = vrot.lane.b32.xlu0 %v483, 32
  %v1782 = vpop.permute.xlu0 %1781
  %1783 = vrot.lane.b32.xlu0 %v484, 32
  %v1784 = vpop.permute.xlu0 %1783
  %1868 = vrot.lane.b32.xlu0 %v406, 64
  %v1869 = vpop.permute.xlu0 %1868
  %1870 = vrot.lane.b32.xlu0 %v407, 64
  %v1871 = vpop.permute.xlu0 %1870
  %1872 = vrot.lane.b32.xlu0 %v408, 64
  %v1873 = vpop.permute.xlu0 %1872
  %1874 = vrot.lane.b32.xlu0 %v409, 64
  %v1875 = vpop.permute.xlu0 %1874
  %1876 = vrot.lane.b32.xlu0 %v410, 64
  %v1877 = vpop.permute.xlu0 %1876
  %1878 = vrot.lane.b32.xlu0 %v411, 64
  %v1879 = vpop.permute.xlu0 %1878
  %1880 = vrot.lane.b32.xlu0 %v412, 64
  %v1881 = vpop.permute.xlu0 %1880
  %1882 = vrot.lane.b32.xlu0 %v413, 64
  %v1883 = vpop.permute.xlu0 %1882
  %1884 = vrot.lane.b32.xlu0 %v414, 64
  %v1885 = vpop.permute.xlu0 %1884
  %1886 = vrot.lane.b32.xlu0 %v415, 64
  %v1887 = vpop.permute.xlu0 %1886
  %1888 = vrot.lane.b32.xlu0 %v416, 64
  %v1889 = vpop.permute.xlu0 %1888
  %1890 = vrot.lane.b32.xlu0 %v417, 64
  %v1891 = vpop.permute.xlu0 %1890
  %1892 = vrot.lane.b32.xlu0 %v418, 64
  %v1893 = vpop.permute.xlu0 %1892
  %1894 = vrot.lane.b32.xlu0 %v419, 64
  %v1895 = vpop.permute.xlu0 %1894
  %1896 = vrot.lane.b32.xlu0 %v420, 64
  %v1897 = vpop.permute.xlu0 %1896
  %1898 = vrot.lane.b32.xlu0 %v421, 64
  %v1899 = vpop.permute.xlu0 %1898
  %1900 = vrot.lane.b32.xlu0 %v422, 64
  %v1901 = vpop.permute.xlu0 %1900
  %1902 = vrot.lane.b32.xlu0 %v423, 64
  %v1903 = vpop.permute.xlu0 %1902
  %1904 = vrot.lane.b32.xlu0 %v424, 64
  %v1905 = vpop.permute.xlu0 %1904
  %1906 = vrot.lane.b32.xlu0 %v425, 64
  %v1907 = vpop.permute.xlu0 %1906
  %1908 = vrot.lane.b32.xlu0 %v426, 64
  %v1909 = vpop.permute.xlu0 %1908
  %1910 = vrot.lane.b32.xlu0 %v427, 64
  %v1911 = vpop.permute.xlu0 %1910
  %1912 = vrot.lane.b32.xlu0 %v428, 64
  %v1913 = vpop.permute.xlu0 %1912
  %1914 = vrot.lane.b32.xlu0 %v429, 64
  %v1915 = vpop.permute.xlu0 %1914
  %1916 = vrot.lane.b32.xlu0 %v430, 64
  %v1917 = vpop.permute.xlu0 %1916
  %1918 = vrot.lane.b32.xlu0 %v431, 64
  %v1919 = vpop.permute.xlu0 %1918
  %1920 = vrot.lane.b32.xlu0 %v432, 64
  %v1921 = vpop.permute.xlu0 %1920
  %1922 = vrot.lane.b32.xlu0 %v433, 64
  %v1923 = vpop.permute.xlu0 %1922
  %1924 = vrot.lane.b32.xlu0 %v434, 64
  %v1925 = vpop.permute.xlu0 %1924
  %1926 = vrot.lane.b32.xlu0 %v435, 64
  %v1927 = vpop.permute.xlu0 %1926
  %1928 = vrot.lane.b32.xlu0 %v436, 64
  %v1929 = vpop.permute.xlu0 %1928
  %1930 = vrot.lane.b32.xlu0 %v437, 64
  %v1931 = vpop.permute.xlu0 %1930
  %1932 = vrot.lane.b32.xlu0 %v438, 64
  %v1933 = vpop.permute.xlu0 %1932
  %1934 = vrot.lane.b32.xlu0 %v439, 64
  %v1935 = vpop.permute.xlu0 %1934
  %1936 = vrot.lane.b32.xlu0 %v440, 64
  %v1937 = vpop.permute.xlu0 %1936
  %1938 = vrot.lane.b32.xlu0 %v441, 64
  %v1939 = vpop.permute.xlu0 %1938
  %1940 = vrot.lane.b32.xlu0 %v442, 64
  %v1941 = vpop.permute.xlu0 %1940
  %1942 = vrot.lane.b32.xlu0 %v443, 64
  %v1943 = vpop.permute.xlu0 %1942
  %1944 = vrot.lane.b32.xlu0 %v444, 64
  %v1945 = vpop.permute.xlu0 %1944
  %1946 = vrot.lane.b32.xlu0 %v445, 64
  %v1947 = vpop.permute.xlu0 %1946
  %1948 = vrot.lane.b32.xlu0 %v446, 64
  %v1949 = vpop.permute.xlu0 %1948
  %1950 = vrot.lane.b32.xlu0 %v447, 64
  %v1951 = vpop.permute.xlu0 %1950
  %1952 = vrot.lane.b32.xlu0 %v448, 64
  %v1953 = vpop.permute.xlu0 %1952
  %1954 = vrot.lane.b32.xlu0 %v449, 64
  %v1955 = vpop.permute.xlu0 %1954
  %1956 = vrot.lane.b32.xlu0 %v450, 64
  %v1957 = vpop.permute.xlu0 %1956
  %1958 = vrot.lane.b32.xlu0 %v451, 64
  %v1959 = vpop.permute.xlu0 %1958
  %1960 = vrot.lane.b32.xlu0 %v452, 64
  %v1961 = vpop.permute.xlu0 %1960
  %1962 = vrot.lane.b32.xlu0 %v453, 64
  %v1963 = vpop.permute.xlu0 %1962
  %1964 = vrot.lane.b32.xlu0 %v454, 64
  %v1965 = vpop.permute.xlu0 %1964
  %1966 = vrot.lane.b32.xlu0 %v455, 64
  %v1967 = vpop.permute.xlu0 %1966
  %1968 = vrot.lane.b32.xlu0 %v456, 64
  %v1969 = vpop.permute.xlu0 %1968
  %1970 = vrot.lane.b32.xlu0 %v457, 64
  %v1971 = vpop.permute.xlu0 %1970
  %1972 = vrot.lane.b32.xlu0 %v458, 64
  %v1973 = vpop.permute.xlu0 %1972
  %1974 = vrot.lane.b32.xlu0 %v459, 64
  %v1975 = vpop.permute.xlu0 %1974
  %1976 = vrot.lane.b32.xlu0 %v460, 64
  %v1977 = vpop.permute.xlu0 %1976
  %1978 = vrot.lane.b32.xlu0 %v461, 64
  %v1979 = vpop.permute.xlu0 %1978
  %1980 = vrot.lane.b32.xlu0 %v462, 64
  %v1981 = vpop.permute.xlu0 %1980
  %1982 = vrot.lane.b32.xlu0 %v463, 64
  %v1983 = vpop.permute.xlu0 %1982
  %1984 = vrot.lane.b32.xlu0 %v464, 64
  %v1985 = vpop.permute.xlu0 %1984
  %1986 = vrot.lane.b32.xlu0 %v465, 64
  %v1987 = vpop.permute.xlu0 %1986
  %1988 = vrot.lane.b32.xlu0 %v466, 64
  %v1989 = vpop.permute.xlu0 %1988
  %1990 = vrot.lane.b32.xlu0 %v467, 64
  %v1991 = vpop.permute.xlu0 %1990
  %1992 = vrot.lane.b32.xlu0 %v468, 64
  %v1993 = vpop.permute.xlu0 %1992
  %1994 = vrot.lane.b32.xlu0 %v469, 64
  %v1995 = vpop.permute.xlu0 %1994
  %1996 = vrot.lane.b32.xlu0 %v470, 64
  %v1997 = vpop.permute.xlu0 %1996
  %1998 = vrot.lane.b32.xlu0 %v471, 64
  %v1999 = vpop.permute.xlu0 %1998
  %2000 = vrot.lane.b32.xlu0 %v472, 64
  %v2001 = vpop.permute.xlu0 %2000
  %2002 = vrot.lane.b32.xlu0 %v473, 64
  %v2003 = vpop.permute.xlu0 %2002
  %2004 = vrot.lane.b32.xlu0 %v474, 64
  %v2005 = vpop.permute.xlu0 %2004
  %2006 = vrot.lane.b32.xlu0 %v475, 64
  %v2007 = vpop.permute.xlu0 %2006
  %2008 = vrot.lane.b32.xlu0 %v476, 64
  %v2009 = vpop.permute.xlu0 %2008
  %2010 = vrot.lane.b32.xlu0 %v477, 64
  %v2011 = vpop.permute.xlu0 %2010
  %2012 = vrot.lane.b32.xlu0 %v478, 64
  %v2013 = vpop.permute.xlu0 %2012
  %2014 = vrot.lane.b32.xlu0 %v479, 64
  %v2015 = vpop.permute.xlu0 %2014
  %2016 = vrot.lane.b32.xlu0 %v480, 64
  %v2017 = vpop.permute.xlu0 %2016
  %2018 = vrot.lane.b32.xlu0 %v481, 64
  %v2019 = vpop.permute.xlu0 %2018
  %2020 = vrot.lane.b32.xlu0 %v482, 64
  %v2021 = vpop.permute.xlu0 %2020
  %2022 = vrot.lane.b32.xlu0 %v483, 64
  %v2023 = vpop.permute.xlu0 %2022
  %2024 = vrot.lane.b32.xlu0 %v484, 64
  %v2025 = vpop.permute.xlu0 %2024
  %2026 = vrot.lane.b32.xlu0 %v485, 64
  %v2027 = vpop.permute.xlu0 %2026
  %2028 = vrot.lane.b32.xlu0 %v486, 64
  %v2029 = vpop.permute.xlu0 %2028
  %2192 = vrot.lane.b32.xlu0 %v487, 96
  %v2193 = vpop.permute.xlu0 %2192
  %2194 = vrot.lane.b32.xlu0 %v488, 96
  %v2195 = vpop.permute.xlu0 %2194
  %2196 = vrot.lane.b32.xlu0 %v489, 96
  %v2197 = vpop.permute.xlu0 %2196
  %2198 = vrot.lane.b32.xlu0 %v490, 96
  %v2199 = vpop.permute.xlu0 %2198
  %2200 = vrot.lane.b32.xlu0 %v491, 96
  %v2201 = vpop.permute.xlu0 %2200
  %2202 = vrot.lane.b32.xlu0 %v492, 96
  %v2203 = vpop.permute.xlu0 %2202
  %2204 = vrot.lane.b32.xlu0 %v493, 96
  %v2205 = vpop.permute.xlu0 %2204
  %2206 = vrot.lane.b32.xlu0 %v494, 96
  %v2207 = vpop.permute.xlu0 %2206
  %2208 = vrot.lane.b32.xlu0 %v495, 96
  %v2209 = vpop.permute.xlu0 %2208
  %2210 = vrot.lane.b32.xlu0 %v496, 96
  %v2211 = vpop.permute.xlu0 %2210
  %2212 = vrot.lane.b32.xlu0 %v497, 96
  %v2213 = vpop.permute.xlu0 %2212
  %2214 = vrot.lane.b32.xlu0 %v498, 96
  %v2215 = vpop.permute.xlu0 %2214
  %2216 = vrot.lane.b32.xlu0 %v499, 96
  %v2217 = vpop.permute.xlu0 %2216
  %2218 = vrot.lane.b32.xlu0 %v500, 96
  %v2219 = vpop.permute.xlu0 %2218
  %2220 = vrot.lane.b32.xlu0 %v501, 96
  %v2221 = vpop.permute.xlu0 %2220
  %2222 = vrot.lane.b32.xlu0 %v502, 96
  %v2223 = vpop.permute.xlu0 %2222
  %2224 = vrot.lane.b32.xlu0 %v503, 96
  %v2225 = vpop.permute.xlu0 %2224
  %2226 = vrot.lane.b32.xlu0 %v504, 96
  %v2227 = vpop.permute.xlu0 %2226
  %2228 = vrot.lane.b32.xlu0 %v505, 96
  %v2229 = vpop.permute.xlu0 %2228
  %2230 = vrot.lane.b32.xlu0 %v506, 96
  %v2231 = vpop.permute.xlu0 %2230
  %2232 = vrot.lane.b32.xlu0 %v507, 96
  %v2233 = vpop.permute.xlu0 %2232
  %2234 = vrot.lane.b32.xlu0 %v508, 96
  %v2235 = vpop.permute.xlu0 %2234
  %2236 = vrot.lane.b32.xlu0 %v509, 96
  %v2237 = vpop.permute.xlu0 %2236
  %2238 = vrot.lane.b32.xlu0 %v510, 96
  %v2239 = vpop.permute.xlu0 %2238
  %2240 = vrot.lane.b32.xlu0 %v511, 96
  %v2241 = vpop.permute.xlu0 %2240
  %2242 = vrot.lane.b32.xlu0 %v512, 96
  %v2243 = vpop.permute.xlu0 %2242
  %2244 = vrot.lane.b32.xlu0 %v513, 96
  %v2245 = vpop.permute.xlu0 %2244
  %2246 = vrot.lane.b32.xlu0 %v514, 96
  %v2247 = vpop.permute.xlu0 %2246
  %2248 = vrot.lane.b32.xlu0 %v515, 96
  %v2249 = vpop.permute.xlu0 %2248
  %2250 = vrot.lane.b32.xlu0 %v516, 96
  %v2251 = vpop.permute.xlu0 %2250
  %2252 = vrot.lane.b32.xlu0 %v517, 96
  %v2253 = vpop.permute.xlu0 %2252
  %2254 = vrot.lane.b32.xlu0 %v518, 96
  %v2255 = vpop.permute.xlu0 %2254
  %2256 = vrot.lane.b32.xlu0 %v519, 96
  %v2257 = vpop.permute.xlu0 %2256
  %2258 = vrot.lane.b32.xlu0 %v520, 96
  %v2259 = vpop.permute.xlu0 %2258
  %2260 = vrot.lane.b32.xlu0 %v521, 96
  %v2261 = vpop.permute.xlu0 %2260
  %2262 = vrot.lane.b32.xlu0 %v522, 96
  %v2263 = vpop.permute.xlu0 %2262
  %2264 = vrot.lane.b32.xlu0 %v523, 96
  %v2265 = vpop.permute.xlu0 %2264
  %2266 = vrot.lane.b32.xlu0 %v524, 96
  %v2267 = vpop.permute.xlu0 %2266
  %2268 = vrot.lane.b32.xlu0 %v525, 96
  %v2269 = vpop.permute.xlu0 %2268
  %2270 = vrot.lane.b32.xlu0 %v526, 96
  %v2271 = vpop.permute.xlu0 %2270
  %2272 = vrot.lane.b32.xlu0 %v527, 96
  %v2273 = vpop.permute.xlu0 %2272
  %2274 = vrot.lane.b32.xlu0 %v528, 96
  %v2275 = vpop.permute.xlu0 %2274
  %2276 = vrot.lane.b32.xlu0 %v529, 96
  %v2277 = vpop.permute.xlu0 %2276
  %2278 = vrot.lane.b32.xlu0 %v530, 96
  %v2279 = vpop.permute.xlu0 %2278
  %2280 = vrot.lane.b32.xlu0 %v531, 96
  %v2281 = vpop.permute.xlu0 %2280
  %2282 = vrot.lane.b32.xlu0 %v532, 96
  %v2283 = vpop.permute.xlu0 %2282
  %2284 = vrot.lane.b32.xlu0 %v533, 96
  %v2285 = vpop.permute.xlu0 %2284
  %2286 = vrot.lane.b32.xlu0 %v534, 96
  %v2287 = vpop.permute.xlu0 %2286
  %2288 = vrot.lane.b32.xlu0 %v535, 96
  %v2289 = vpop.permute.xlu0 %2288
  %2290 = vrot.lane.b32.xlu0 %v536, 96
  %v2291 = vpop.permute.xlu0 %2290
  %2292 = vrot.lane.b32.xlu0 %v537, 96
  %v2293 = vpop.permute.xlu0 %2292
  %2294 = vrot.lane.b32.xlu0 %v538, 96
  %v2295 = vpop.permute.xlu0 %2294
  %2296 = vrot.lane.b32.xlu0 %v539, 96
  %v2297 = vpop.permute.xlu0 %2296
  %2298 = vrot.lane.b32.xlu0 %v540, 96
  %v2299 = vpop.permute.xlu0 %2298
  %2300 = vrot.lane.b32.xlu0 %v541, 96
  %v2301 = vpop.permute.xlu0 %2300
  %2302 = vrot.lane.b32.xlu0 %v542, 96
  %v2303 = vpop.permute.xlu0 %2302
  %2304 = vrot.lane.b32.xlu0 %v543, 96
  %v2305 = vpop.permute.xlu0 %2304
  %2306 = vrot.lane.b32.xlu0 %v544, 96
  %v2307 = vpop.permute.xlu0 %2306
  %2308 = vrot.lane.b32.xlu0 %v545, 96
  %v2309 = vpop.permute.xlu0 %2308
  %2310 = vrot.lane.b32.xlu0 %v546, 96
  %v2311 = vpop.permute.xlu0 %2310
  %2312 = vrot.lane.b32.xlu0 %v547, 96
  %v2313 = vpop.permute.xlu0 %2312
  %2314 = vrot.lane.b32.xlu0 %v548, 96
  %v2315 = vpop.permute.xlu0 %2314
  %2316 = vrot.lane.b32.xlu0 %v549, 96
  %v2317 = vpop.permute.xlu0 %2316
  %2318 = vrot.lane.b32.xlu0 %v550, 96
  %v2319 = vpop.permute.xlu0 %2318
  %2320 = vrot.lane.b32.xlu0 %v551, 96
  %v2321 = vpop.permute.xlu0 %2320
  %2322 = vrot.lane.b32.xlu0 %v552, 96
  %v2323 = vpop.permute.xlu0 %2322
  %2324 = vrot.lane.b32.xlu0 %v553, 96
  %v2325 = vpop.permute.xlu0 %2324
  %2326 = vrot.lane.b32.xlu0 %v554, 96
  %v2327 = vpop.permute.xlu0 %2326
  %2328 = vrot.lane.b32.xlu0 %v555, 96
  %v2329 = vpop.permute.xlu0 %2328
  %2330 = vrot.lane.b32.xlu0 %v556, 96
  %v2331 = vpop.permute.xlu0 %2330
  %2332 = vrot.lane.b32.xlu0 %v557, 96
  %v2333 = vpop.permute.xlu0 %2332
  %2334 = vrot.lane.b32.xlu0 %v558, 96
  %v2335 = vpop.permute.xlu0 %2334
  %2336 = vrot.lane.b32.xlu0 %v559, 96
  %v2337 = vpop.permute.xlu0 %2336
  %2338 = vrot.lane.b32.xlu0 %v560, 96
  %v2339 = vpop.permute.xlu0 %2338
  %2340 = vrot.lane.b32.xlu0 %v561, 96
  %v2341 = vpop.permute.xlu0 %2340
  %2342 = vrot.lane.b32.xlu0 %v562, 96
  %v2343 = vpop.permute.xlu0 %2342
  %2344 = vrot.lane.b32.xlu0 %v563, 96
  %v2345 = vpop.permute.xlu0 %2344
  %2346 = vrot.lane.b32.xlu0 %v564, 96
  %v2347 = vpop.permute.xlu0 %2346
  %2348 = vrot.lane.b32.xlu0 %v565, 96
  %v2349 = vpop.permute.xlu0 %2348
  %2350 = vrot.lane.b32.xlu0 %v566, 96
  %v2351 = vpop.permute.xlu0 %2350
  %2352 = vrot.lane.b32.xlu0 %v567, 96
  %v2353 = vpop.permute.xlu0 %2352
  %vm2435 = vcmask 261120
  %v2436 = vsel %vm2435, %v78, %v731
  %v2437 = vsel %vm2435, %v79, %v733
  %v2438 = vsel %vm2435, %v80, %v735
  %v2439 = vsel %vm2435, %v81, %v737
  %v2440 = vsel %vm2435, %v82, %v739
  %v2441 = vsel %vm2435, %v83, %v741
  %v2442 = vsel %vm2435, %v84, %v743
  %v2443 = vsel %vm2435, %v85, %v745
  %v2444 = vsel %vm2435, %v86, %v747
  %v2445 = vsel %vm2435, %v87, %v749
  %v2446 = vsel %vm2435, %v88, %v751
  %v2447 = vsel %vm2435, %v89, %v753
  %v2448 = vsel %vm2435, %v90, %v755
  %v2449 = vsel %vm2435, %v91, %v757
  %v2450 = vsel %vm2435, %v92, %v759
  %v2451 = vsel %vm2435, %v93, %v761
  %v2452 = vsel %vm2435, %v94, %v763
  %v2453 = vsel %vm2435, %v95, %v765
  %v2454 = vsel %vm2435, %v96, %v767
  %v2455 = vsel %vm2435, %v97, %v769
  %v2456 = vsel %vm2435, %v98, %v771
  %v2457 = vsel %vm2435, %v99, %v773
  %v2458 = vsel %vm2435, %v100, %v775
  %v2459 = vsel %vm2435, %v101, %v777
  %v2460 = vsel %vm2435, %v102, %v779
  %v2461 = vsel %vm2435, %v103, %v781
  %v2462 = vsel %vm2435, %v104, %v783
  %v2463 = vsel %vm2435, %v105, %v785
  %v2464 = vsel %vm2435, %v106, %v787
  %v2465 = vsel %vm2435, %v107, %v789
  %v2466 = vsel %vm2435, %v108, %v791
  %v2467 = vsel %vm2435, %v109, %v793
  %v2468 = vsel %vm2435, %v110, %v795
  %v2469 = vsel %vm2435, %v111, %v797
  %v2470 = vsel %vm2435, %v112, %v799
  %v2471 = vsel %vm2435, %v113, %v801
  %v2472 = vsel %vm2435, %v114, %v803
  %v2473 = vsel %vm2435, %v115, %v805
  %v2474 = vsel %vm2435, %v116, %v807
  %v2475 = vsel %vm2435, %v117, %v809
  %v2476 = vsel %vm2435, %v118, %v811
  %v2477 = vsel %vm2435, %v119, %v813
  %v2478 = vsel %vm2435, %v120, %v815
  %v2479 = vsel %vm2435, %v121, %v817
  %v2480 = vsel %vm2435, %v122, %v819
  %v2481 = vsel %vm2435, %v123, %v821
  %v2482 = vsel %vm2435, %v124, %v823
  %v2483 = vsel %vm2435, %v125, %v825
  %v2484 = vsel %vm2435, %v126, %v827
  %v2485 = vsel %vm2435, %v127, %v829
  %v2486 = vsel %vm2435, %v128, %v831
  %v2487 = vsel %vm2435, %v129, %v833
  %v2488 = vsel %vm2435, %v130, %v835
  %v2489 = vsel %vm2435, %v131, %v837
  %v2490 = vsel %vm2435, %v132, %v839
  %v2491 = vsel %vm2435, %v133, %v841
  %v2492 = vsel %vm2435, %v134, %v843
  %v2493 = vsel %vm2435, %v135, %v845
  %v2494 = vsel %vm2435, %v136, %v847
  %v2495 = vsel %vm2435, %v137, %v849
  %v2496 = vsel %vm2435, %v138, %v851
  %v2497 = vsel %vm2435, %v139, %v853
  %v2498 = vsel %vm2435, %v140, %v855
  %v2499 = vsel %vm2435, %v141, %v857
  %v2500 = vsel %vm2435, %v142, %v859
  %v2501 = vsel %vm2435, %v143, %v861
  %v2502 = vsel %vm2435, %v144, %v863
  %v2503 = vsel %vm2435, %v145, %v865
  %v2504 = vsel %vm2435, %v146, %v867
  %v2505 = vsel %vm2435, %v147, %v869
  %v2506 = vsel %vm2435, %v148, %v871
  %v2507 = vsel %vm2435, %v149, %v873
  %v2508 = vsel %vm2435, %v150, %v875
  %v2509 = vsel %vm2435, %v151, %v877
  %v2510 = vsel %vm2435, %v152, %v879
  %v2511 = vsel %vm2435, %v153, %v881
  %v2512 = vsel %vm2435, %v154, %v883
  %v2513 = vsel %vm2435, %v155, %v885
  %v2514 = vsel %vm2435, %v156, %v887
  %v2515 = vsel %vm2435, %v157, %v889
  %v2516 = vsel %vm2435, %v158, %v891
  %vm2517 = vcmask 523264
  %v2518 = vsel %vm2517, %v2436, %v1055
  %v2519 = vsel %vm2517, %v2437, %v1057
  %v2520 = vsel %vm2517, %v2438, %v1059
  %v2521 = vsel %vm2517, %v2439, %v1061
  %v2522 = vsel %vm2517, %v2440, %v1063
  %v2523 = vsel %vm2517, %v2441, %v1065
  %v2524 = vsel %vm2517, %v2442, %v1067
  %v2525 = vsel %vm2517, %v2443, %v1069
  %v2526 = vsel %vm2517, %v2444, %v1071
  %v2527 = vsel %vm2517, %v2445, %v1073
  %v2528 = vsel %vm2517, %v2446, %v1075
  %v2529 = vsel %vm2517, %v2447, %v1077
  %v2530 = vsel %vm2517, %v2448, %v1079
  %v2531 = vsel %vm2517, %v2449, %v1081
  %v2532 = vsel %vm2517, %v2450, %v1083
  %v2533 = vsel %vm2517, %v2451, %v1085
  %v2534 = vsel %vm2517, %v2452, %v1087
  %v2535 = vsel %vm2517, %v2453, %v1089
  %v2536 = vsel %vm2517, %v2454, %v1091
  %v2537 = vsel %vm2517, %v2455, %v1093
  %v2538 = vsel %vm2517, %v2456, %v1095
  %v2539 = vsel %vm2517, %v2457, %v1097
  %v2540 = vsel %vm2517, %v2458, %v1099
  %v2541 = vsel %vm2517, %v2459, %v1101
  %v2542 = vsel %vm2517, %v2460, %v1103
  %v2543 = vsel %vm2517, %v2461, %v1105
  %v2544 = vsel %vm2517, %v2462, %v1107
  %v2545 = vsel %vm2517, %v2463, %v1109
  %v2546 = vsel %vm2517, %v2464, %v1111
  %v2547 = vsel %vm2517, %v2465, %v1113
  %v2548 = vsel %vm2517, %v2466, %v1115
  %v2549 = vsel %vm2517, %v2467, %v1117
  %v2550 = vsel %vm2517, %v2468, %v1119
  %v2551 = vsel %vm2517, %v2469, %v1121
  %v2552 = vsel %vm2517, %v2470, %v1123
  %v2553 = vsel %vm2517, %v2471, %v1125
  %v2554 = vsel %vm2517, %v2472, %v1127
  %v2555 = vsel %vm2517, %v2473, %v1129
  %v2556 = vsel %vm2517, %v2474, %v1131
  %v2557 = vsel %vm2517, %v2475, %v1133
  %v2558 = vsel %vm2517, %v2476, %v1135
  %v2559 = vsel %vm2517, %v2477, %v1137
  %v2560 = vsel %vm2517, %v2478, %v1139
  %v2561 = vsel %vm2517, %v2479, %v1141
  %v2562 = vsel %vm2517, %v2480, %v1143
  %v2563 = vsel %vm2517, %v2481, %v1145
  %v2564 = vsel %vm2517, %v2482, %v1147
  %v2565 = vsel %vm2517, %v2483, %v1149
  %v2566 = vsel %vm2517, %v2484, %v1151
  %v2567 = vsel %vm2517, %v2485, %v1153
  %v2568 = vsel %vm2517, %v2486, %v1155
  %v2569 = vsel %vm2517, %v2487, %v1157
  %v2570 = vsel %vm2517, %v2488, %v1159
  %v2571 = vsel %vm2517, %v2489, %v1161
  %v2572 = vsel %vm2517, %v2490, %v1163
  %v2573 = vsel %vm2517, %v2491, %v1165
  %v2574 = vsel %vm2517, %v2492, %v1167
  %v2575 = vsel %vm2517, %v2493, %v1169
  %v2576 = vsel %vm2517, %v2494, %v1171
  %v2577 = vsel %vm2517, %v2495, %v1173
  %v2578 = vsel %vm2517, %v2496, %v1175
  %v2579 = vsel %vm2517, %v2497, %v1177
  %v2580 = vsel %vm2517, %v2498, %v1179
  %v2581 = vsel %vm2517, %v2499, %v1181
  %v2582 = vsel %vm2517, %v2500, %v1183
  %v2583 = vsel %vm2517, %v2501, %v1185
  %v2584 = vsel %vm2517, %v2502, %v1187
  %v2585 = vsel %vm2517, %v2503, %v1189
  %v2586 = vsel %vm2517, %v2504, %v1191
  %v2587 = vsel %vm2517, %v2505, %v1193
  %v2588 = vsel %vm2517, %v2506, %v1195
  %v2589 = vsel %vm2517, %v2507, %v1197
  %v2590 = vsel %vm2517, %v2508, %v1199
  %v2591 = vsel %vm2517, %v2509, %v1201
  %v2592 = vsel %vm2517, %v2510, %v1203
  %v2593 = vsel %vm2517, %v2511, %v1205
  %v2594 = vsel %vm2517, %v2512, %v1207
  %v2595 = vsel %vm2517, %v2513, %v1209
  %v2596 = vsel %vm2517, %v2514, %v1211
  %v2597 = vsel %vm2517, %v2515, %v1213
  %v2598 = vsel %vm2517, %v2516, %v1215
  %vm2599 = vcmask 785408
  %v2600 = vsel %vm2599, %v2518, %v1300
  %v2601 = vsel %vm2599, %v2519, %v1302
  %v2602 = vsel %vm2599, %v2520, %v1304
  %v2603 = vsel %vm2599, %v2521, %v1306
  %v2604 = vsel %vm2599, %v2522, %v1308
  %v2605 = vsel %vm2599, %v2523, %v1310
  %v2606 = vsel %vm2599, %v2524, %v1312
  %v2607 = vsel %vm2599, %v2525, %v1314
  %v2608 = vsel %vm2599, %v2526, %v1316
  %v2609 = vsel %vm2599, %v2527, %v1318
  %v2610 = vsel %vm2599, %v2528, %v1320
  %v2611 = vsel %vm2599, %v2529, %v1322
  %v2612 = vsel %vm2599, %v2530, %v1324
  %v2613 = vsel %vm2599, %v2531, %v1326
  %v2614 = vsel %vm2599, %v2532, %v1328
  %v2615 = vsel %vm2599, %v2533, %v1330
  %v2616 = vsel %vm2599, %v2534, %v1332
  %v2617 = vsel %vm2599, %v2535, %v1334
  %v2618 = vsel %vm2599, %v2536, %v1336
  %v2619 = vsel %vm2599, %v2537, %v1338
  %v2620 = vsel %vm2599, %v2538, %v1340
  %v2621 = vsel %vm2599, %v2539, %v1342
  %v2622 = vsel %vm2599, %v2540, %v1344
  %v2623 = vsel %vm2599, %v2541, %v1346
  %v2624 = vsel %vm2599, %v2542, %v1348
  %v2625 = vsel %vm2599, %v2543, %v1350
  %v2626 = vsel %vm2599, %v2544, %v1352
  %v2627 = vsel %vm2599, %v2545, %v1354
  %v2628 = vsel %vm2599, %v2546, %v1356
  %v2629 = vsel %vm2599, %v2547, %v1358
  %v2630 = vsel %vm2599, %v2548, %v1360
  %v2631 = vsel %vm2599, %v2549, %v1362
  %v2632 = vsel %vm2599, %v2550, %v1364
  %v2633 = vsel %vm2599, %v2551, %v1366
  %v2634 = vsel %vm2599, %v2552, %v1368
  %v2635 = vsel %vm2599, %v2553, %v1370
  %v2636 = vsel %vm2599, %v2554, %v1372
  %v2637 = vsel %vm2599, %v2555, %v1374
  %v2638 = vsel %vm2599, %v2556, %v1376
  %v2639 = vsel %vm2599, %v2557, %v1378
  %v2640 = vsel %vm2599, %v2558, %v1380
  %v2641 = vsel %vm2599, %v2559, %v1382
  %v2642 = vsel %vm2599, %v2560, %v1384
  %v2643 = vsel %vm2599, %v2561, %v1386
  %v2644 = vsel %vm2599, %v2562, %v1388
  %v2645 = vsel %vm2599, %v2563, %v1390
  %v2646 = vsel %vm2599, %v2564, %v1392
  %v2647 = vsel %vm2599, %v2565, %v1394
  %v2648 = vsel %vm2599, %v2566, %v1396
  %v2649 = vsel %vm2599, %v2567, %v1398
  %v2650 = vsel %vm2599, %v2568, %v1400
  %v2651 = vsel %vm2599, %v2569, %v1402
  %v2652 = vsel %vm2599, %v2570, %v1404
  %v2653 = vsel %vm2599, %v2571, %v1406
  %v2654 = vsel %vm2599, %v2572, %v1408
  %v2655 = vsel %vm2599, %v2573, %v1410
  %v2656 = vsel %vm2599, %v2574, %v1412
  %v2657 = vsel %vm2599, %v2575, %v1414
  %v2658 = vsel %vm2599, %v2576, %v1416
  %v2659 = vsel %vm2599, %v2577, %v1418
  %v2660 = vsel %vm2599, %v2578, %v1420
  %v2661 = vsel %vm2599, %v2579, %v1422
  %v2662 = vsel %vm2599, %v2580, %v1424
  %v2663 = vsel %vm2599, %v2581, %v1426
  %v2664 = vsel %vm2599, %v2582, %v1428
  %v2665 = vsel %vm2599, %v2583, %v1430
  %v2666 = vsel %vm2599, %v2584, %v1432
  %v2667 = vsel %vm2599, %v2585, %v1434
  %v2668 = vsel %vm2599, %v2586, %v1436
  %v2669 = vsel %vm2599, %v2587, %v1438
  %v2670 = vsel %vm2599, %v2588, %v1440
  %v2671 = vsel %vm2599, %v2589, %v1442
  %v2672 = vsel %vm2599, %v2590, %v1444
  %v2673 = vsel %vm2599, %v2591, %v1446
  %v2674 = vsel %vm2599, %v2592, %v1448
  %v2675 = vsel %vm2599, %v2593, %v1450
  %v2676 = vsel %vm2599, %v2594, %v1452
  %v2677 = vsel %vm2599, %v2595, %v1454
  %v2678 = vsel %vm2599, %v2596, %v1456
  %v2679 = vsel %vm2599, %v2597, %v1458
  %v2680 = vsel %vm2599, %v2598, %v1460
  %v2681 = vsel %vm2435, %v323, %v1624
  %v2682 = vsel %vm2435, %v324, %v1626
  %v2683 = vsel %vm2435, %v325, %v1628
  %v2684 = vsel %vm2435, %v326, %v1630
  %v2685 = vsel %vm2435, %v327, %v1632
  %v2686 = vsel %vm2435, %v328, %v1634
  %v2687 = vsel %vm2435, %v329, %v1636
  %v2688 = vsel %vm2435, %v330, %v1638
  %v2689 = vsel %vm2435, %v331, %v1640
  %v2690 = vsel %vm2435, %v332, %v1642
  %v2691 = vsel %vm2435, %v333, %v1644
  %v2692 = vsel %vm2435, %v334, %v1646
  %v2693 = vsel %vm2435, %v335, %v1648
  %v2694 = vsel %vm2435, %v336, %v1650
  %v2695 = vsel %vm2435, %v337, %v1652
  %v2696 = vsel %vm2435, %v338, %v1654
  %v2697 = vsel %vm2435, %v339, %v1656
  %v2698 = vsel %vm2435, %v340, %v1658
  %v2699 = vsel %vm2435, %v341, %v1660
  %v2700 = vsel %vm2435, %v342, %v1662
  %v2701 = vsel %vm2435, %v343, %v1664
  %v2702 = vsel %vm2435, %v344, %v1666
  %v2703 = vsel %vm2435, %v345, %v1668
  %v2704 = vsel %vm2435, %v346, %v1670
  %v2705 = vsel %vm2435, %v347, %v1672
  %v2706 = vsel %vm2435, %v348, %v1674
  %v2707 = vsel %vm2435, %v349, %v1676
  %v2708 = vsel %vm2435, %v350, %v1678
  %v2709 = vsel %vm2435, %v351, %v1680
  %v2710 = vsel %vm2435, %v352, %v1682
  %v2711 = vsel %vm2435, %v353, %v1684
  %v2712 = vsel %vm2435, %v354, %v1686
  %v2713 = vsel %vm2435, %v355, %v1688
  %v2714 = vsel %vm2435, %v356, %v1690
  %v2715 = vsel %vm2435, %v357, %v1692
  %v2716 = vsel %vm2435, %v358, %v1694
  %v2717 = vsel %vm2435, %v359, %v1696
  %v2718 = vsel %vm2435, %v360, %v1698
  %v2719 = vsel %vm2435, %v361, %v1700
  %v2720 = vsel %vm2435, %v362, %v1702
  %v2721 = vsel %vm2435, %v363, %v1704
  %v2722 = vsel %vm2435, %v364, %v1706
  %v2723 = vsel %vm2435, %v365, %v1708
  %v2724 = vsel %vm2435, %v366, %v1710
  %v2725 = vsel %vm2435, %v367, %v1712
  %v2726 = vsel %vm2435, %v368, %v1714
  %v2727 = vsel %vm2435, %v369, %v1716
  %v2728 = vsel %vm2435, %v370, %v1718
  %v2729 = vsel %vm2435, %v371, %v1720
  %v2730 = vsel %vm2435, %v372, %v1722
  %v2731 = vsel %vm2435, %v373, %v1724
  %v2732 = vsel %vm2435, %v374, %v1726
  %v2733 = vsel %vm2435, %v375, %v1728
  %v2734 = vsel %vm2435, %v376, %v1730
  %v2735 = vsel %vm2435, %v377, %v1732
  %v2736 = vsel %vm2435, %v378, %v1734
  %v2737 = vsel %vm2435, %v379, %v1736
  %v2738 = vsel %vm2435, %v380, %v1738
  %v2739 = vsel %vm2435, %v381, %v1740
  %v2740 = vsel %vm2435, %v382, %v1742
  %v2741 = vsel %vm2435, %v383, %v1744
  %v2742 = vsel %vm2435, %v384, %v1746
  %v2743 = vsel %vm2435, %v385, %v1748
  %v2744 = vsel %vm2435, %v386, %v1750
  %v2745 = vsel %vm2435, %v387, %v1752
  %v2746 = vsel %vm2435, %v388, %v1754
  %v2747 = vsel %vm2435, %v389, %v1756
  %v2748 = vsel %vm2435, %v390, %v1758
  %v2749 = vsel %vm2435, %v391, %v1760
  %v2750 = vsel %vm2435, %v392, %v1762
  %v2751 = vsel %vm2435, %v393, %v1764
  %v2752 = vsel %vm2435, %v394, %v1766
  %v2753 = vsel %vm2435, %v395, %v1768
  %v2754 = vsel %vm2435, %v396, %v1770
  %v2755 = vsel %vm2435, %v397, %v1772
  %v2756 = vsel %vm2435, %v398, %v1774
  %v2757 = vsel %vm2435, %v399, %v1776
  %v2758 = vsel %vm2435, %v400, %v1778
  %v2759 = vsel %vm2435, %v401, %v1780
  %v2760 = vsel %vm2435, %v402, %v1782
  %v2761 = vsel %vm2435, %v403, %v1784
  %v2762 = vsel %vm2517, %v2681, %v1869
  %v2763 = vsel %vm2517, %v2682, %v1871
  %v2764 = vsel %vm2517, %v2683, %v1873
  %v2765 = vsel %vm2517, %v2684, %v1875
  %v2766 = vsel %vm2517, %v2685, %v1877
  %v2767 = vsel %vm2517, %v2686, %v1879
  %v2768 = vsel %vm2517, %v2687, %v1881
  %v2769 = vsel %vm2517, %v2688, %v1883
  %v2770 = vsel %vm2517, %v2689, %v1885
  %v2771 = vsel %vm2517, %v2690, %v1887
  %v2772 = vsel %vm2517, %v2691, %v1889
  %v2773 = vsel %vm2517, %v2692, %v1891
  %v2774 = vsel %vm2517, %v2693, %v1893
  %v2775 = vsel %vm2517, %v2694, %v1895
  %v2776 = vsel %vm2517, %v2695, %v1897
  %v2777 = vsel %vm2517, %v2696, %v1899
  %v2778 = vsel %vm2517, %v2697, %v1901
  %v2779 = vsel %vm2517, %v2698, %v1903
  %v2780 = vsel %vm2517, %v2699, %v1905
  %v2781 = vsel %vm2517, %v2700, %v1907
  %v2782 = vsel %vm2517, %v2701, %v1909
  %v2783 = vsel %vm2517, %v2702, %v1911
  %v2784 = vsel %vm2517, %v2703, %v1913
  %v2785 = vsel %vm2517, %v2704, %v1915
  %v2786 = vsel %vm2517, %v2705, %v1917
  %v2787 = vsel %vm2517, %v2706, %v1919
  %v2788 = vsel %vm2517, %v2707, %v1921
  %v2789 = vsel %vm2517, %v2708, %v1923
  %v2790 = vsel %vm2517, %v2709, %v1925
  %v2791 = vsel %vm2517, %v2710, %v1927
  %v2792 = vsel %vm2517, %v2711, %v1929
  %v2793 = vsel %vm2517, %v2712, %v1931
  %v2794 = vsel %vm2517, %v2713, %v1933
  %v2795 = vsel %vm2517, %v2714, %v1935
  %v2796 = vsel %vm2517, %v2715, %v1937
  %v2797 = vsel %vm2517, %v2716, %v1939
  %v2798 = vsel %vm2517, %v2717, %v1941
  %v2799 = vsel %vm2517, %v2718, %v1943
  %v2800 = vsel %vm2517, %v2719, %v1945
  %v2801 = vsel %vm2517, %v2720, %v1947
  %v2802 = vsel %vm2517, %v2721, %v1949
  %v2803 = vsel %vm2517, %v2722, %v1951
  %v2804 = vsel %vm2517, %v2723, %v1953
  %v2805 = vsel %vm2517, %v2724, %v1955
  %v2806 = vsel %vm2517, %v2725, %v1957
  %v2807 = vsel %vm2517, %v2726, %v1959
  %v2808 = vsel %vm2517, %v2727, %v1961
  %v2809 = vsel %vm2517, %v2728, %v1963
  %v2810 = vsel %vm2517, %v2729, %v1965
  %v2811 = vsel %vm2517, %v2730, %v1967
  %v2812 = vsel %vm2517, %v2731, %v1969
  %v2813 = vsel %vm2517, %v2732, %v1971
  %v2814 = vsel %vm2517, %v2733, %v1973
  %v2815 = vsel %vm2517, %v2734, %v1975
  %v2816 = vsel %vm2517, %v2735, %v1977
  %v2817 = vsel %vm2517, %v2736, %v1979
  %v2818 = vsel %vm2517, %v2737, %v1981
  %v2819 = vsel %vm2517, %v2738, %v1983
  %v2820 = vsel %vm2517, %v2739, %v1985
  %v2821 = vsel %vm2517, %v2740, %v1987
  %v2822 = vsel %vm2517, %v2741, %v1989
  %v2823 = vsel %vm2517, %v2742, %v1991
  %v2824 = vsel %vm2517, %v2743, %v1993
  %v2825 = vsel %vm2517, %v2744, %v1995
  %v2826 = vsel %vm2517, %v2745, %v1997
  %v2827 = vsel %vm2517, %v2746, %v1999
  %v2828 = vsel %vm2517, %v2747, %v2001
  %v2829 = vsel %vm2517, %v2748, %v2003
  %v2830 = vsel %vm2517, %v2749, %v2005
  %v2831 = vsel %vm2517, %v2750, %v2007
  %v2832 = vsel %vm2517, %v2751, %v2009
  %v2833 = vsel %vm2517, %v2752, %v2011
  %v2834 = vsel %vm2517, %v2753, %v2013
  %v2835 = vsel %vm2517, %v2754, %v2015
  %v2836 = vsel %vm2517, %v2755, %v2017
  %v2837 = vsel %vm2517, %v2756, %v2019
  %v2838 = vsel %vm2517, %v2757, %v2021
  %v2839 = vsel %vm2517, %v2758, %v2023
  %v2840 = vsel %vm2517, %v2759, %v2025
  %v2841 = vsel %vm2517, %v2760, %v2027
  %v2842 = vsel %vm2517, %v2761, %v2029
  %v2843 = vsel %vm2599, %v2762, %v2193
  %v2844 = vsel %vm2599, %v2763, %v2195
  %v2845 = vsel %vm2599, %v2764, %v2197
  %v2846 = vsel %vm2599, %v2765, %v2199
  %v2847 = vsel %vm2599, %v2766, %v2201
  %v2848 = vsel %vm2599, %v2767, %v2203
  %v2849 = vsel %vm2599, %v2768, %v2205
  %v2850 = vsel %vm2599, %v2769, %v2207
  %v2851 = vsel %vm2599, %v2770, %v2209
  %v2852 = vsel %vm2599, %v2771, %v2211
  %v2853 = vsel %vm2599, %v2772, %v2213
  %v2854 = vsel %vm2599, %v2773, %v2215
  %v2855 = vsel %vm2599, %v2774, %v2217
  %v2856 = vsel %vm2599, %v2775, %v2219
  %v2857 = vsel %vm2599, %v2776, %v2221
  %v2858 = vsel %vm2599, %v2777, %v2223
  %v2859 = vsel %vm2599, %v2778, %v2225
  %v2860 = vsel %vm2599, %v2779, %v2227
  %v2861 = vsel %vm2599, %v2780, %v2229
  %v2862 = vsel %vm2599, %v2781, %v2231
  %v2863 = vsel %vm2599, %v2782, %v2233
  %v2864 = vsel %vm2599, %v2783, %v2235
  %v2865 = vsel %vm2599, %v2784, %v2237
  %v2866 = vsel %vm2599, %v2785, %v2239
  %v2867 = vsel %vm2599, %v2786, %v2241
  %v2868 = vsel %vm2599, %v2787, %v2243
  %v2869 = vsel %vm2599, %v2788, %v2245
  %v2870 = vsel %vm2599, %v2789, %v2247
  %v2871 = vsel %vm2599, %v2790, %v2249
  %v2872 = vsel %vm2599, %v2791, %v2251
  %v2873 = vsel %vm2599, %v2792, %v2253
  %v2874 = vsel %vm2599, %v2793, %v2255
  %v2875 = vsel %vm2599, %v2794, %v2257
  %v2876 = vsel %vm2599, %v2795, %v2259
  %v2877 = vsel %vm2599, %v2796, %v2261
  %v2878 = vsel %vm2599, %v2797, %v2263
  %v2879 = vsel %vm2599, %v2798, %v2265
  %v2880 = vsel %vm2599, %v2799, %v2267
  %v2881 = vsel %vm2599, %v2800, %v2269
  %v2882 = vsel %vm2599, %v2801, %v2271
  %v2883 = vsel %vm2599, %v2802, %v2273
  %v2884 = vsel %vm2599, %v2803, %v2275
  %v2885 = vsel %vm2599, %v2804, %v2277
  %v2886 = vsel %vm2599, %v2805, %v2279
  %v2887 = vsel %vm2599, %v2806, %v2281
  %v2888 = vsel %vm2599, %v2807, %v2283
  %v2889 = vsel %vm2599, %v2808, %v2285
  %v2890 = vsel %vm2599, %v2809, %v2287
  %v2891 = vsel %vm2599, %v2810, %v2289
  %v2892 = vsel %vm2599, %v2811, %v2291
  %v2893 = vsel %vm2599, %v2812, %v2293
  %v2894 = vsel %vm2599, %v2813, %v2295
  %v2895 = vsel %vm2599, %v2814, %v2297
  %v2896 = vsel %vm2599, %v2815, %v2299
  %v2897 = vsel %vm2599, %v2816, %v2301
  %v2898 = vsel %vm2599, %v2817, %v2303
  %v2899 = vsel %vm2599, %v2818, %v2305
  %v2900 = vsel %vm2599, %v2819, %v2307
  %v2901 = vsel %vm2599, %v2820, %v2309
  %v2902 = vsel %vm2599, %v2821, %v2311
  %v2903 = vsel %vm2599, %v2822, %v2313
  %v2904 = vsel %vm2599, %v2823, %v2315
  %v2905 = vsel %vm2599, %v2824, %v2317
  %v2906 = vsel %vm2599, %v2825, %v2319
  %v2907 = vsel %vm2599, %v2826, %v2321
  %v2908 = vsel %vm2599, %v2827, %v2323
  %v2909 = vsel %vm2599, %v2828, %v2325
  %v2910 = vsel %vm2599, %v2829, %v2327
  %v2911 = vsel %vm2599, %v2830, %v2329
  %v2912 = vsel %vm2599, %v2831, %v2331
  %v2913 = vsel %vm2599, %v2832, %v2333
  %v2914 = vsel %vm2599, %v2833, %v2335
  %v2915 = vsel %vm2599, %v2834, %v2337
  %v2916 = vsel %vm2599, %v2835, %v2339
  %v2917 = vsel %vm2599, %v2836, %v2341
  %v2918 = vsel %vm2599, %v2837, %v2343
  %v2919 = vsel %vm2599, %v2838, %v2345
  %v2920 = vsel %vm2599, %v2839, %v2347
  %v2921 = vsel %vm2599, %v2840, %v2349
  %v2922 = vsel %vm2599, %v2841, %v2351
  %v2923 = vsel %vm2599, %v2842, %v2353
  %v2924 = vpack.c.bf16 %v2601, %v2600
  %v2925 = vpack.c.bf16 %v2844, %v2843
  %v2926 = vpack.c.bf16 %v569, %v568
  %v2927 = vpack.c.bf16 %v2603, %v2602
  %v2928 = vpack.c.bf16 %v2846, %v2845
  %v2929 = vpack.c.bf16 %v571, %v570
  %v2930 = vpack.c.bf16 %v2605, %v2604
  %v2931 = vpack.c.bf16 %v2848, %v2847
  %v2932 = vpack.c.bf16 %v573, %v572
  %v2933 = vpack.c.bf16 %v2607, %v2606
  %v2934 = vpack.c.bf16 %v2850, %v2849
  %v2935 = vpack.c.bf16 %v575, %v574
  %v2936 = vpack.c.bf16 %v2609, %v2608
  %v2937 = vpack.c.bf16 %v2852, %v2851
  %v2938 = vpack.c.bf16 %v577, %v576
  %v2939 = vpack.c.bf16 %v2611, %v2610
  %v2940 = vpack.c.bf16 %v2854, %v2853
  %v2941 = vpack.c.bf16 %v579, %v578
  %v2942 = vpack.c.bf16 %v2613, %v2612
  %v2943 = vpack.c.bf16 %v2856, %v2855
  %v2944 = vpack.c.bf16 %v581, %v580
  %v2945 = vpack.c.bf16 %v2615, %v2614
  %v2946 = vpack.c.bf16 %v2858, %v2857
  %v2947 = vpack.c.bf16 %v583, %v582
  %v2948 = vpack.c.bf16 %v2617, %v2616
  %v2949 = vpack.c.bf16 %v2860, %v2859
  %v2950 = vpack.c.bf16 %v585, %v584
  %v2951 = vpack.c.bf16 %v2619, %v2618
  %v2952 = vpack.c.bf16 %v2862, %v2861
  %v2953 = vpack.c.bf16 %v587, %v586
  %v2954 = vpack.c.bf16 %v2621, %v2620
  %v2955 = vpack.c.bf16 %v2864, %v2863
  %v2956 = vpack.c.bf16 %v589, %v588
  %v2957 = vpack.c.bf16 %v2623, %v2622
  %v2958 = vpack.c.bf16 %v2866, %v2865
  %v2959 = vpack.c.bf16 %v591, %v590
  %v2960 = vpack.c.bf16 %v2625, %v2624
  %v2961 = vpack.c.bf16 %v2868, %v2867
  %v2962 = vpack.c.bf16 %v593, %v592
  %v2963 = vpack.c.bf16 %v2627, %v2626
  %v2964 = vpack.c.bf16 %v2870, %v2869
  %v2965 = vpack.c.bf16 %v595, %v594
  %v2966 = vpack.c.bf16 %v2629, %v2628
  %v2967 = vpack.c.bf16 %v2872, %v2871
  %v2968 = vpack.c.bf16 %v597, %v596
  %v2969 = vpack.c.bf16 %v2631, %v2630
  %v2970 = vpack.c.bf16 %v2874, %v2873
  %v2971 = vpack.c.bf16 %v599, %v598
  %v2972 = vpack.c.bf16 %v2633, %v2632
  %v2973 = vpack.c.bf16 %v2876, %v2875
  %v2974 = vpack.c.bf16 %v601, %v600
  %v2975 = vpack.c.bf16 %v2635, %v2634
  %v2976 = vpack.c.bf16 %v2878, %v2877
  %v2977 = vpack.c.bf16 %v603, %v602
  %v2978 = vpack.c.bf16 %v2637, %v2636
  %v2979 = vpack.c.bf16 %v2880, %v2879
  %v2980 = vpack.c.bf16 %v605, %v604
  %v2981 = vpack.c.bf16 %v2639, %v2638
  %v2982 = vpack.c.bf16 %v2882, %v2881
  %v2983 = vpack.c.bf16 %v607, %v606
  %v2984 = vpack.c.bf16 %v2641, %v2640
  %v2985 = vpack.c.bf16 %v2884, %v2883
  %v2986 = vpack.c.bf16 %v609, %v608
  %v2987 = vpack.c.bf16 %v2643, %v2642
  %v2988 = vpack.c.bf16 %v2886, %v2885
  %v2989 = vpack.c.bf16 %v611, %v610
  %v2990 = vpack.c.bf16 %v2645, %v2644
  %v2991 = vpack.c.bf16 %v2888, %v2887
  %v2992 = vpack.c.bf16 %v613, %v612
  %v2993 = vpack.c.bf16 %v2647, %v2646
  %v2994 = vpack.c.bf16 %v2890, %v2889
  %v2995 = vpack.c.bf16 %v615, %v614
  %v2996 = vpack.c.bf16 %v2649, %v2648
  %v2997 = vpack.c.bf16 %v2892, %v2891
  %v2998 = vpack.c.bf16 %v617, %v616
  %v2999 = vpack.c.bf16 %v2651, %v2650
  %v3000 = vpack.c.bf16 %v2894, %v2893
  %v3001 = vpack.c.bf16 %v619, %v618
  %v3002 = vpack.c.bf16 %v2653, %v2652
  %v3003 = vpack.c.bf16 %v2896, %v2895
  %v3004 = vpack.c.bf16 %v621, %v620
  %v3005 = vpack.c.bf16 %v2655, %v2654
  %v3006 = vpack.c.bf16 %v2898, %v2897
  %v3007 = vpack.c.bf16 %v623, %v622
  %v3008 = vpack.c.bf16 %v2657, %v2656
  %v3009 = vpack.c.bf16 %v2900, %v2899
  %v3010 = vpack.c.bf16 %v625, %v624
  %v3011 = vpack.c.bf16 %v2659, %v2658
  %v3012 = vpack.c.bf16 %v2902, %v2901
  %v3013 = vpack.c.bf16 %v627, %v626
  %v3014 = vpack.c.bf16 %v2661, %v2660
  %v3015 = vpack.c.bf16 %v2904, %v2903
  %v3016 = vpack.c.bf16 %v629, %v628
  %v3017 = vpack.c.bf16 %v2663, %v2662
  %v3018 = vpack.c.bf16 %v2906, %v2905
  %v3019 = vpack.c.bf16 %v631, %v630
  %v3020 = vpack.c.bf16 %v2665, %v2664
  %v3021 = vpack.c.bf16 %v2908, %v2907
  %v3022 = vpack.c.bf16 %v633, %v632
  %v3023 = vpack.c.bf16 %v2667, %v2666
  %v3024 = vpack.c.bf16 %v2910, %v2909
  %v3025 = vpack.c.bf16 %v635, %v634
  %v3026 = vpack.c.bf16 %v2669, %v2668
  %v3027 = vpack.c.bf16 %v2912, %v2911
  %v3028 = vpack.c.bf16 %v637, %v636
  %v3029 = vpack.c.bf16 %v2671, %v2670
  %v3030 = vpack.c.bf16 %v2914, %v2913
  %v3031 = vpack.c.bf16 %v639, %v638
  %v3032 = vpack.c.bf16 %v2673, %v2672
  %v3033 = vpack.c.bf16 %v2916, %v2915
  %v3034 = vpack.c.bf16 %v641, %v640
  %v3035 = vpack.c.bf16 %v2675, %v2674
  %v3036 = vpack.c.bf16 %v2918, %v2917
  %v3037 = vpack.c.bf16 %v643, %v642
  %v3038 = vpack.c.bf16 %v2677, %v2676
  %v3039 = vpack.c.bf16 %v2920, %v2919
  %v3040 = vpack.c.bf16 %v645, %v644
  %v3041 = vpack.c.bf16 %v2679, %v2678
  %v3042 = vpack.c.bf16 %v2922, %v2921
  %v3043 = vpack.c.bf16 %v647, %v646
  %v3044 = vpack.c.bf16 %v2680, %v2680
  %v3045 = vpack.c.bf16 %v2923, %v2923
  %v3046 = vpack.c.bf16 %v648, %v648
  %v3047 = vld [vmem:[%s1] sm:$0xf]
  %v3048 = vld [vmem:[%s1 + $0x4] sm:$0xf]
  %v3049 = vld [vmem:[%s1 + $0x8] sm:$0xf]
  %v3050 = vld [vmem:[%s1 + $0xc] sm:$0xf]
  %v3051 = vld [vmem:[%s1 + $0x10] sm:$0xf]
  %v3052 = vld [vmem:[%s1 + $0x14] sm:$0xf]
  %v3053 = vld [vmem:[%s1 + $0x18] sm:$0xf]
  %v3054 = vld [vmem:[%s1 + $0x1c] sm:$0xf]
  %v3055 = vld [vmem:[%s1 + $0x20] sm:$0xf]
  %v3056 = vld [vmem:[%s1 + $0x24] sm:$0xf]
  %v3057 = vld [vmem:[%s1 + $0x28] sm:$0xf]
  %v3058 = vld [vmem:[%s1 + $0x2c] sm:$0xf]
  %v3059 = vld [vmem:[%s1 + $0x30] sm:$0xf]
  %v3060 = vld [vmem:[%s1 + $0x34] sm:$0xf]
  %v3061 = vld [vmem:[%s1 + $0x38] sm:$0xf]
  %v3062 = vld [vmem:[%s1 + $0x3c] sm:$0xf]
  %v3063 = vld [vmem:[%s1 + $0x40] sm:$0xf]
  %v3064 = vld [vmem:[%s1 + $0x44] sm:$0xf]
  %v3065 = vld [vmem:[%s1 + $0x48] sm:$0xf]
  %v3066 = vld [vmem:[%s1 + $0x4c] sm:$0xf]
  %v3067 = vld [vmem:[%s1 + $0x50] sm:$0xf]
  %v3068 = vld [vmem:[%s1 + $0x54] sm:$0xf]
  %v3069 = vld [vmem:[%s1 + $0x58] sm:$0xf]
  %v3070 = vld [vmem:[%s1 + $0x5c] sm:$0xf]
  %v3071 = vld [vmem:[%s1 + $0x60] sm:$0xf]
  %v3072 = vld [vmem:[%s1 + $0x64] sm:$0xf]
  %v3073 = vld [vmem:[%s1 + $0x68] sm:$0xf]
  %v3074 = vld [vmem:[%s1 + $0x6c] sm:$0xf]
  %v3075 = vld [vmem:[%s1 + $0x70] sm:$0xf]
  %v3076 = vld [vmem:[%s1 + $0x74] sm:$0xf]
  %v3077 = vld [vmem:[%s1 + $0x78] sm:$0xf]
  %v3078 = vld [vmem:[%s1 + $0x7c] sm:$0xf]
  %v3079 = vld [vmem:[%s1 + $0x80] sm:$0xf]
  %v3080 = vld [vmem:[%s1 + $0x84] sm:$0xf]
  %v3081 = vld [vmem:[%s1 + $0x88] sm:$0xf]
  %v3082 = vld [vmem:[%s1 + $0x8c] sm:$0xf]
  %v3083 = vld [vmem:[%s5] sm:$0x1]
  %v3085 = vlaneseq
  %v3086 = vshrl.u32 %v3085, 7
  %v3087 = vsub.s32 0, %v3086
  %v3088 = vrot.slane %v3083, %v3087
  %v3126 = vunpack.c.l.b16 %v3047
  %v3127 = vunpack.c.l.b16 %v3048
  %v3128 = vunpack.c.l.b16 %v3049
  %v3129 = vunpack.c.l.b16 %v3050
  %v3130 = vunpack.c.l.b16 %v3051
  %v3131 = vunpack.c.l.b16 %v3052
  %v3132 = vunpack.c.l.b16 %v3053
  %v3133 = vunpack.c.l.b16 %v3054
  %v3134 = vunpack.c.l.b16 %v3055
  %v3135 = vunpack.c.l.b16 %v3056
  %v3136 = vunpack.c.l.b16 %v3057
  %v3137 = vunpack.c.l.b16 %v3058
  %v3138 = vunpack.c.l.b16 %v3059
  %v3139 = vunpack.c.l.b16 %v3060
  %v3140 = vunpack.c.l.b16 %v3061
  %v3141 = vunpack.c.l.b16 %v3062
  %v3142 = vunpack.c.l.b16 %v3063
  %v3143 = vunpack.c.l.b16 %v3064
  %v3144 = vunpack.c.l.b16 %v3065
  %v3145 = vunpack.c.l.b16 %v3066
  %v3146 = vunpack.c.l.b16 %v3067
  %v3147 = vunpack.c.l.b16 %v3068
  %v3148 = vunpack.c.l.b16 %v3069
  %v3149 = vunpack.c.l.b16 %v3070
  %v3150 = vunpack.c.l.b16 %v3071
  %v3151 = vunpack.c.l.b16 %v3072
  %v3152 = vunpack.c.l.b16 %v3073
  %v3153 = vunpack.c.l.b16 %v3074
  %v3154 = vunpack.c.l.b16 %v3075
  %v3155 = vunpack.c.l.b16 %v3076
  %v3156 = vunpack.c.l.b16 %v3077
  %v3157 = vunpack.c.l.b16 %v3078
  %v3158 = vunpack.c.l.b16 %v3079
  %v3159 = vunpack.c.l.b16 %v3080
  %v3160 = vunpack.c.l.b16 %v3081
  %v3161 = vunpack.c.l.b16 %v3082
  %v3162 = vpack.c.b16 %v3127, %v3126
  %v3163 = vpack.c.b16 %v3129, %v3128
  %v3164 = vpack.c.b16 %v3131, %v3130
  %v3165 = vpack.c.b16 %v3133, %v3132
  %v3166 = vpack.c.b16 %v3135, %v3134
  %v3167 = vpack.c.b16 %v3137, %v3136
  %v3168 = vpack.c.b16 %v3139, %v3138
  %v3169 = vpack.c.b16 %v3141, %v3140
  %v3170 = vpack.c.b16 %v3143, %v3142
  %v3171 = vpack.c.b16 %v3145, %v3144
  %v3172 = vpack.c.b16 %v3147, %v3146
  %v3173 = vpack.c.b16 %v3149, %v3148
  %v3174 = vpack.c.b16 %v3151, %v3150
  %v3175 = vpack.c.b16 %v3153, %v3152
  %v3176 = vpack.c.b16 %v3155, %v3154
  %v3177 = vpack.c.b16 %v3157, %v3156
  %v3178 = vpack.c.b16 %v3159, %v3158
  %v3179 = vpack.c.b16 %v3161, %v3160
  %v3199 = vsel %vm2435, %v2926, 0
  %v3202 = vsel %vm2435, %v2929, 0
  %v3205 = vsel %vm2435, %v2932, 0
  %v3208 = vsel %vm2435, %v2935, 0
  %v3211 = vsel %vm2435, %v2938, 0
  %v3214 = vsel %vm2435, %v2941, 0
  %v3217 = vsel %vm2435, %v2944, 0
  %v3220 = vsel %vm2435, %v2947, 0
  %v3223 = vsel %vm2435, %v2950, 0
  %v3226 = vsel %vm2435, %v2953, 0
  %v3229 = vsel %vm2435, %v2956, 0
  %v3232 = vsel %vm2435, %v2959, 0
  %v3235 = vsel %vm2435, %v2962, 0
  %v3238 = vsel %vm2435, %v2965, 0
  %v3241 = vsel %vm2435, %v2968, 0
  %v3244 = vsel %vm2435, %v2971, 0
  %v3247 = vsel %vm2435, %v2974, 0
  %v3250 = vsel %vm2435, %v2977, 0
  %v3253 = vsel %vm2435, %v2980, 0
  %v3256 = vsel %vm2435, %v2983, 0
  %v3259 = vsel %vm2435, %v2986, 0
  %v3262 = vsel %vm2435, %v2989, 0
  %v3265 = vsel %vm2435, %v2992, 0
  %v3268 = vsel %vm2435, %v2995, 0
  %v3271 = vsel %vm2435, %v2998, 0
  %v3274 = vsel %vm2435, %v3001, 0
  %v3277 = vsel %vm2435, %v3004, 0
  %v3280 = vsel %vm2435, %v3007, 0
  %v3283 = vsel %vm2435, %v3010, 0
  %v3286 = vsel %vm2435, %v3013, 0
  %v3289 = vsel %vm2435, %v3016, 0
  %v3292 = vsel %vm2435, %v3019, 0
  %v3295 = vsel %vm2435, %v3022, 0
  %v3298 = vsel %vm2435, %v3025, 0
  %v3301 = vsel %vm2435, %v3028, 0
  %v3304 = vsel %vm2435, %v3031, 0
  %v3307 = vsel %vm2435, %v3034, 0
  %v3310 = vsel %vm2435, %v3037, 0
  %v3313 = vsel %vm2435, %v3040, 0
  %v3316 = vsel %vm2435, %v3043, 0
  %v3319 = vsel %vm2435, %v3046, 0
  %3321 = vmatprep.subr.bf16.mxu0 0
  %3322 = vmatpush1.bf16.msra.mxu0 %v3162
  %3323 = vmatprep.subr.bf16.mxu0 0
  %3324 = vmatpush1.bf16.msra.mxu0 %v3163
  %3325 = vmatprep.subr.bf16.mxu0 0
  %3326 = vmatpush1.bf16.msra.mxu0 %v3164
  %3327 = vmatprep.subr.bf16.mxu0 0
  %3328 = vmatpush1.bf16.msra.mxu0 %v3165
  %3329 = vmatprep.subr.bf16.mxu0 0
  %3330 = vmatpush1.bf16.msra.mxu0 %v3166
  %3331 = vmatprep.subr.bf16.mxu0 0
  %3332 = vmatpush1.bf16.msra.mxu0 %v3167
  %3333 = vmatprep.subr.bf16.mxu0 0
  %3334 = vmatpush1.bf16.msra.mxu0 %v3168
  %3335 = vmatprep.subr.bf16.mxu0 0
  %3336 = vmatpush1.bf16.msra.mxu0 %v3169
  %3337 = vmatprep.subr.bf16.mxu0 0
  %3338 = vmatpush1.bf16.msra.mxu0 %v3170
  %3339 = vmatprep.subr.bf16.mxu0 0
  %3340 = vmatpush1.bf16.msra.mxu0 %v3171
  %3341 = vmatprep.subr.bf16.mxu0 0
  %3342 = vmatpush1.bf16.msra.mxu0 %v3172
  %3343 = vmatprep.subr.bf16.mxu0 0
  %3344 = vmatpush1.bf16.msra.mxu0 %v3173
  %3345 = vmatprep.subr.bf16.mxu0 0
  %3346 = vmatpush1.bf16.msra.mxu0 %v3174
  %3347 = vmatprep.subr.bf16.mxu0 0
  %3348 = vmatpush1.bf16.msra.mxu0 %v3175
  %3349 = vmatprep.subr.bf16.mxu0 0
  %3350 = vmatpush1.bf16.msra.mxu0 %v3176
  %3351 = vmatprep.subr.bf16.mxu0 0
  %3352 = vmatpush1.bf16.msra.mxu0 %v3177
  %3353 = vmatprep.mubr.bf16.mxu0 %v2925
  %3354 = vmatmul.mubr.bf16.gmra.mrb[0].mxu0 %v2924
  %v3355 = vpop.f32.mrb[0].mxu0
  %v3356 = vadd.f32 %v3088, %v3355
  %v3357 = vpop.f32.mrb[0].mxu0
  %v3358 = vpop.f32.mrb[0].mxu0
  %v3359 = vadd.f32 %v3088, %v3358
  %v3360 = vpop.f32.mrb[0].mxu0
  %3361 = vmatprep.mubr.bf16.mxu0 %v2928
  %3362 = vmatmul.mubr.bf16.gmra.mrb[0].mxu0 %v2927
  %v3363 = vpop.f32.mrb[0].mxu0
  %v3364 = vadd.f32 %v3088, %v3363
  %v3365 = vpop.f32.mrb[0].mxu0
  %v3366 = vpop.f32.mrb[0].mxu0
  %v3367 = vadd.f32 %v3088, %v3366
  %v3368 = vpop.f32.mrb[0].mxu0
  %3369 = vmatprep.mubr.bf16.mxu0 %v2931
  %3370 = vmatmul.mubr.bf16.gmra.mrb[0].mxu0 %v2930
  %v3371 = vpop.f32.mrb[0].mxu0
  %v3372 = vadd.f32 %v3088, %v3371
  %v3373 = vpop.f32.mrb[0].mxu0
  %v3374 = vpop.f32.mrb[0].mxu0
  %v3375 = vadd.f32 %v3088, %v3374
  %v3376 = vpop.f32.mrb[0].mxu0
  %3377 = vmatprep.mubr.bf16.mxu0 %v2934
  %3378 = vmatmul.mubr.bf16.gmra.mrb[0].mxu0 %v2933
  %v3379 = vpop.f32.mrb[0].mxu0
  %v3380 = vadd.f32 %v3088, %v3379
  %v3381 = vpop.f32.mrb[0].mxu0
  %v3382 = vpop.f32.mrb[0].mxu0
  %v3383 = vadd.f32 %v3088, %v3382
  %v3384 = vpop.f32.mrb[0].mxu0
  %3385 = vmatprep.mubr.bf16.mxu0 %v2937
  %3386 = vmatmul.mubr.bf16.gmra.mrb[0].mxu0 %v2936
  %v3387 = vpop.f32.mrb[0].mxu0
  %v3388 = vadd.f32 %v3088, %v3387
  %v3389 = vpop.f32.mrb[0].mxu0
  %v3390 = vpop.f32.mrb[0].mxu0
  %v3391 = vadd.f32 %v3088, %v3390
  %v3392 = vpop.f32.mrb[0].mxu0
  %3393 = vmatprep.mubr.bf16.mxu0 %v2940
  %3394 = vmatmul.mubr.bf16.gmra.mrb[0].mxu0 %v2939
  %v3395 = vpop.f32.mrb[0].mxu0
  %v3396 = vadd.f32 %v3088, %v3395
  %v3397 = vpop.f32.mrb[0].mxu0
  %v3398 = vpop.f32.mrb[0].mxu0
  %v3399 = vadd.f32 %v3088, %v3398
  %v3400 = vpop.f32.mrb[0].mxu0
  %3401 = vmatprep.mubr.bf16.mxu0 %v2943
  %3402 = vmatmul.mubr.bf16.gmra.mrb[0].mxu0 %v2942
  %v3403 = vpop.f32.mrb[0].mxu0
  %v3404 = vadd.f32 %v3088, %v3403
  %v3405 = vpop.f32.mrb[0].mxu0
  %v3406 = vpop.f32.mrb[0].mxu0
  %v3407 = vadd.f32 %v3088, %v3406
  %v3408 = vpop.f32.mrb[0].mxu0
  %3409 = vmatprep.mubr.bf16.mxu0 %v2946
  %3410 = vmatmul.mubr.bf16.gmra.mrb[0].mxu0 %v2945
  %v3411 = vpop.f32.mrb[0].mxu0
  %v3412 = vadd.f32 %v3088, %v3411
  %v3413 = vpop.f32.mrb[0].mxu0
  %v3414 = vpop.f32.mrb[0].mxu0
  %v3415 = vadd.f32 %v3088, %v3414
  %v3416 = vpop.f32.mrb[0].mxu0
  %3417 = vmatprep.mubr.bf16.mxu0 %v2949
  %3418 = vmatmul.mubr.bf16.gmra.mrb[0].mxu0 %v2948
  %v3419 = vpop.f32.mrb[0].mxu0
  %v3420 = vadd.f32 %v3088, %v3419
  %v3421 = vpop.f32.mrb[0].mxu0
  %v3422 = vpop.f32.mrb[0].mxu0
  %v3423 = vadd.f32 %v3088, %v3422
  %v3424 = vpop.f32.mrb[0].mxu0
  %3425 = vmatprep.mubr.bf16.mxu0 %v2952
  %3426 = vmatmul.mubr.bf16.gmra.mrb[0].mxu0 %v2951
  %v3427 = vpop.f32.mrb[0].mxu0
  %v3428 = vadd.f32 %v3088, %v3427
  %v3429 = vpop.f32.mrb[0].mxu0
  %v3430 = vpop.f32.mrb[0].mxu0
  %v3431 = vadd.f32 %v3088, %v3430
  %v3432 = vpop.f32.mrb[0].mxu0
  %3433 = vmatprep.mubr.bf16.mxu0 %v2955
  %3434 = vmatmul.mubr.bf16.gmra.mrb[0].mxu0 %v2954
  %v3435 = vpop.f32.mrb[0].mxu0
  %v3436 = vadd.f32 %v3088, %v3435
  %v3437 = vpop.f32.mrb[0].mxu0
  %v3438 = vpop.f32.mrb[0].mxu0
  %v3439 = vadd.f32 %v3088, %v3438
  %v3440 = vpop.f32.mrb[0].mxu0
  %3441 = vmatprep.mubr.bf16.mxu0 %v2958
  %3442 = vmatmul.mubr.bf16.gmra.mrb[0].mxu0 %v2957
  %v3443 = vpop.f32.mrb[0].mxu0
  %v3444 = vadd.f32 %v3088, %v3443
  %v3445 = vpop.f32.mrb[0].mxu0
  %v3446 = vpop.f32.mrb[0].mxu0
  %v3447 = vadd.f32 %v3088, %v3446
  %v3448 = vpop.f32.mrb[0].mxu0
  %3449 = vmatprep.mubr.bf16.mxu0 %v2961
  %3450 = vmatmul.mubr.bf16.gmra.mrb[0].mxu0 %v2960
  %v3451 = vpop.f32.mrb[0].mxu0
  %v3452 = vadd.f32 %v3088, %v3451
  %v3453 = vpop.f32.mrb[0].mxu0
  %v3454 = vpop.f32.mrb[0].mxu0
  %v3455 = vadd.f32 %v3088, %v3454
  %v3456 = vpop.f32.mrb[0].mxu0
  %3457 = vmatprep.mubr.bf16.mxu0 %v2964
  %3458 = vmatmul.mubr.bf16.gmra.mrb[0].mxu0 %v2963
  %v3459 = vpop.f32.mrb[0].mxu0
  %v3460 = vadd.f32 %v3088, %v3459
  %v3461 = vpop.f32.mrb[0].mxu0
  %v3462 = vpop.f32.mrb[0].mxu0
  %v3463 = vadd.f32 %v3088, %v3462
  %v3464 = vpop.f32.mrb[0].mxu0
  %3465 = vmatprep.mubr.bf16.mxu0 %v2967
  %3466 = vmatmul.mubr.bf16.gmra.mrb[0].mxu0 %v2966
  %v3467 = vpop.f32.mrb[0].mxu0
  %v3468 = vadd.f32 %v3088, %v3467
  %v3469 = vpop.f32.mrb[0].mxu0
  %v3470 = vpop.f32.mrb[0].mxu0
  %v3471 = vadd.f32 %v3088, %v3470
  %v3472 = vpop.f32.mrb[0].mxu0
  %3473 = vmatprep.mubr.bf16.mxu0 %v2970
  %3474 = vmatmul.mubr.bf16.gmra.mrb[0].mxu0 %v2969
  %v3475 = vpop.f32.mrb[0].mxu0
  %v3476 = vadd.f32 %v3088, %v3475
  %v3477 = vpop.f32.mrb[0].mxu0
  %v3478 = vpop.f32.mrb[0].mxu0
  %v3479 = vadd.f32 %v3088, %v3478
  %v3480 = vpop.f32.mrb[0].mxu0
  %3481 = vmatprep.mubr.bf16.mxu0 %v2973
  %3482 = vmatmul.mubr.bf16.gmra.mrb[0].mxu0 %v2972
  %v3483 = vpop.f32.mrb[0].mxu0
  %v3484 = vadd.f32 %v3088, %v3483
  %v3485 = vpop.f32.mrb[0].mxu0
  %v3486 = vpop.f32.mrb[0].mxu0
  %v3487 = vadd.f32 %v3088, %v3486
  %v3488 = vpop.f32.mrb[0].mxu0
  %3489 = vmatprep.mubr.bf16.mxu0 %v2976
  %3490 = vmatmul.mubr.bf16.gmra.mrb[0].mxu0 %v2975
  %v3491 = vpop.f32.mrb[0].mxu0
  %v3492 = vadd.f32 %v3088, %v3491
  %v3493 = vpop.f32.mrb[0].mxu0
  %v3494 = vpop.f32.mrb[0].mxu0
  %v3495 = vadd.f32 %v3088, %v3494
  %v3496 = vpop.f32.mrb[0].mxu0
  %3497 = vmatprep.mubr.bf16.mxu0 %v2979
  %3498 = vmatmul.mubr.bf16.gmra.mrb[0].mxu0 %v2978
  %v3499 = vpop.f32.mrb[0].mxu0
  %v3500 = vadd.f32 %v3088, %v3499
  %v3501 = vpop.f32.mrb[0].mxu0
  %v3502 = vpop.f32.mrb[0].mxu0
  %v3503 = vadd.f32 %v3088, %v3502
  %v3504 = vpop.f32.mrb[0].mxu0
  %3505 = vmatprep.mubr.bf16.mxu0 %v2982
  %3506 = vmatmul.mubr.bf16.gmra.mrb[0].mxu0 %v2981
  %v3507 = vpop.f32.mrb[0].mxu0
  %v3508 = vadd.f32 %v3088, %v3507
  %v3509 = vpop.f32.mrb[0].mxu0
  %v3510 = vpop.f32.mrb[0].mxu0
  %v3511 = vadd.f32 %v3088, %v3510
  %v3512 = vpop.f32.mrb[0].mxu0
  %3513 = vmatprep.mubr.bf16.mxu0 %v2985
  %3514 = vmatmul.mubr.bf16.gmra.mrb[0].mxu0 %v2984
  %v3515 = vpop.f32.mrb[0].mxu0
  %v3516 = vadd.f32 %v3088, %v3515
  %v3517 = vpop.f32.mrb[0].mxu0
  %v3518 = vpop.f32.mrb[0].mxu0
  %v3519 = vadd.f32 %v3088, %v3518
  %v3520 = vpop.f32.mrb[0].mxu0
  %3521 = vmatprep.mubr.bf16.mxu0 %v2988
  %3522 = vmatmul.mubr.bf16.gmra.mrb[0].mxu0 %v2987
  %v3523 = vpop.f32.mrb[0].mxu0
  %v3524 = vadd.f32 %v3088, %v3523
  %v3525 = vpop.f32.mrb[0].mxu0
  %v3526 = vpop.f32.mrb[0].mxu0
  %v3527 = vadd.f32 %v3088, %v3526
  %v3528 = vpop.f32.mrb[0].mxu0
  %3529 = vmatprep.mubr.bf16.mxu0 %v2991
  %3530 = vmatmul.mubr.bf16.gmra.mrb[0].mxu0 %v2990
  %v3531 = vpop.f32.mrb[0].mxu0
  %v3532 = vadd.f32 %v3088, %v3531
  %v3533 = vpop.f32.mrb[0].mxu0
  %v3534 = vpop.f32.mrb[0].mxu0
  %v3535 = vadd.f32 %v3088, %v3534
  %v3536 = vpop.f32.mrb[0].mxu0
  %3537 = vmatprep.mubr.bf16.mxu0 %v2994
  %3538 = vmatmul.mubr.bf16.gmra.mrb[0].mxu0 %v2993
  %v3539 = vpop.f32.mrb[0].mxu0
  %v3540 = vadd.f32 %v3088, %v3539
  %v3541 = vpop.f32.mrb[0].mxu0
  %v3542 = vpop.f32.mrb[0].mxu0
  %v3543 = vadd.f32 %v3088, %v3542
  %v3544 = vpop.f32.mrb[0].mxu0
  %3545 = vmatprep.mubr.bf16.mxu0 %v2997
  %3546 = vmatmul.mubr.bf16.gmra.mrb[0].mxu0 %v2996
  %v3547 = vpop.f32.mrb[0].mxu0
  %v3548 = vadd.f32 %v3088, %v3547
  %v3549 = vpop.f32.mrb[0].mxu0
  %v3550 = vpop.f32.mrb[0].mxu0
  %v3551 = vadd.f32 %v3088, %v3550
  %v3552 = vpop.f32.mrb[0].mxu0
  %3553 = vmatprep.mubr.bf16.mxu0 %v3000
  %3554 = vmatmul.mubr.bf16.gmra.mrb[0].mxu0 %v2999
  %v3555 = vpop.f32.mrb[0].mxu0
  %v3556 = vadd.f32 %v3088, %v3555
  %v3557 = vpop.f32.mrb[0].mxu0
  %v3558 = vpop.f32.mrb[0].mxu0
  %v3559 = vadd.f32 %v3088, %v3558
  %v3560 = vpop.f32.mrb[0].mxu0
  %3561 = vmatprep.mubr.bf16.mxu0 %v3003
  %3562 = vmatmul.mubr.bf16.gmra.mrb[0].mxu0 %v3002
  %v3563 = vpop.f32.mrb[0].mxu0
  %v3564 = vadd.f32 %v3088, %v3563
  %v3565 = vpop.f32.mrb[0].mxu0
  %v3566 = vpop.f32.mrb[0].mxu0
  %v3567 = vadd.f32 %v3088, %v3566
  %v3568 = vpop.f32.mrb[0].mxu0
  %3569 = vmatprep.mubr.bf16.mxu0 %v3006
  %3570 = vmatmul.mubr.bf16.gmra.mrb[0].mxu0 %v3005
  %v3571 = vpop.f32.mrb[0].mxu0
  %v3572 = vadd.f32 %v3088, %v3571
  %v3573 = vpop.f32.mrb[0].mxu0
  %v3574 = vpop.f32.mrb[0].mxu0
  %v3575 = vadd.f32 %v3088, %v3574
  %v3576 = vpop.f32.mrb[0].mxu0
  %3577 = vmatprep.mubr.bf16.mxu0 %v3009
  %3578 = vmatmul.mubr.bf16.gmra.mrb[0].mxu0 %v3008
  %v3579 = vpop.f32.mrb[0].mxu0
  %v3580 = vadd.f32 %v3088, %v3579
  %v3581 = vpop.f32.mrb[0].mxu0
  %v3582 = vpop.f32.mrb[0].mxu0
  %v3583 = vadd.f32 %v3088, %v3582
  %v3584 = vpop.f32.mrb[0].mxu0
  %3585 = vmatprep.mubr.bf16.mxu0 %v3012
  %3586 = vmatmul.mubr.bf16.gmra.mrb[0].mxu0 %v3011
  %v3587 = vpop.f32.mrb[0].mxu0
  %v3588 = vadd.f32 %v3088, %v3587
  %v3589 = vpop.f32.mrb[0].mxu0
  %v3590 = vpop.f32.mrb[0].mxu0
  %v3591 = vadd.f32 %v3088, %v3590
  %v3592 = vpop.f32.mrb[0].mxu0
  %3593 = vmatprep.mubr.bf16.mxu0 %v3015
  %3594 = vmatmul.mubr.bf16.gmra.mrb[0].mxu0 %v3014
  %v3595 = vpop.f32.mrb[0].mxu0
  %v3596 = vadd.f32 %v3088, %v3595
  %v3597 = vpop.f32.mrb[0].mxu0
  %v3598 = vpop.f32.mrb[0].mxu0
  %v3599 = vadd.f32 %v3088, %v3598
  %v3600 = vpop.f32.mrb[0].mxu0
  %3601 = vmatprep.mubr.bf16.mxu0 %v3018
  %3602 = vmatmul.mubr.bf16.gmra.mrb[0].mxu0 %v3017
  %v3603 = vpop.f32.mrb[0].mxu0
  %v3604 = vadd.f32 %v3088, %v3603
  %v3605 = vpop.f32.mrb[0].mxu0
  %v3606 = vpop.f32.mrb[0].mxu0
  %v3607 = vadd.f32 %v3088, %v3606
  %v3608 = vpop.f32.mrb[0].mxu0
  %3609 = vmatprep.mubr.bf16.mxu0 %v3021
  %3610 = vmatmul.mubr.bf16.gmra.mrb[0].mxu0 %v3020
  %v3611 = vpop.f32.mrb[0].mxu0
  %v3612 = vadd.f32 %v3088, %v3611
  %v3613 = vpop.f32.mrb[0].mxu0
  %v3614 = vpop.f32.mrb[0].mxu0
  %v3615 = vadd.f32 %v3088, %v3614
  %v3616 = vpop.f32.mrb[0].mxu0
  %3617 = vmatprep.mubr.bf16.mxu0 %v3024
  %3618 = vmatmul.mubr.bf16.gmra.mrb[0].mxu0 %v3023
  %v3619 = vpop.f32.mrb[0].mxu0
  %v3620 = vadd.f32 %v3088, %v3619
  %v3621 = vpop.f32.mrb[0].mxu0
  %v3622 = vpop.f32.mrb[0].mxu0
  %v3623 = vadd.f32 %v3088, %v3622
  %v3624 = vpop.f32.mrb[0].mxu0
  %3625 = vmatprep.mubr.bf16.mxu0 %v3027
  %3626 = vmatmul.mubr.bf16.gmra.mrb[0].mxu0 %v3026
  %v3627 = vpop.f32.mrb[0].mxu0
  %v3628 = vadd.f32 %v3088, %v3627
  %v3629 = vpop.f32.mrb[0].mxu0
  %v3630 = vpop.f32.mrb[0].mxu0
  %v3631 = vadd.f32 %v3088, %v3630
  %v3632 = vpop.f32.mrb[0].mxu0
  %3633 = vmatprep.mubr.bf16.mxu0 %v3030
  %3634 = vmatmul.mubr.bf16.gmra.mrb[0].mxu0 %v3029
  %v3635 = vpop.f32.mrb[0].mxu0
  %v3636 = vadd.f32 %v3088, %v3635
  %v3637 = vpop.f32.mrb[0].mxu0
  %v3638 = vpop.f32.mrb[0].mxu0
  %v3639 = vadd.f32 %v3088, %v3638
  %v3640 = vpop.f32.mrb[0].mxu0
  %3641 = vmatprep.mubr.bf16.mxu0 %v3033
  %3642 = vmatmul.mubr.bf16.gmra.mrb[0].mxu0 %v3032
  %v3643 = vpop.f32.mrb[0].mxu0
  %v3644 = vadd.f32 %v3088, %v3643
  %v3645 = vpop.f32.mrb[0].mxu0
  %v3646 = vpop.f32.mrb[0].mxu0
  %v3647 = vadd.f32 %v3088, %v3646
  %v3648 = vpop.f32.mrb[0].mxu0
  %3649 = vmatprep.mubr.bf16.mxu0 %v3036
  %3650 = vmatmul.mubr.bf16.gmra.mrb[0].mxu0 %v3035
  %v3651 = vpop.f32.mrb[0].mxu0
  %v3652 = vadd.f32 %v3088, %v3651
  %v3653 = vpop.f32.mrb[0].mxu0
  %v3654 = vpop.f32.mrb[0].mxu0
  %v3655 = vadd.f32 %v3088, %v3654
  %v3656 = vpop.f32.mrb[0].mxu0
  %3657 = vmatprep.mubr.bf16.mxu0 %v3039
  %3658 = vmatmul.mubr.bf16.gmra.mrb[0].mxu0 %v3038
  %v3659 = vpop.f32.mrb[0].mxu0
  %v3660 = vadd.f32 %v3088, %v3659
  %v3661 = vpop.f32.mrb[0].mxu0
  %v3662 = vpop.f32.mrb[0].mxu0
  %v3663 = vadd.f32 %v3088, %v3662
  %v3664 = vpop.f32.mrb[0].mxu0
  %3665 = vmatprep.mubr.bf16.mxu0 %v3042
  %3666 = vmatmul.mubr.bf16.gmra.mrb[0].mxu0 %v3041
  %v3667 = vpop.f32.mrb[0].mxu0
  %v3668 = vadd.f32 %v3088, %v3667
  %v3669 = vpop.f32.mrb[0].mxu0
  %v3670 = vpop.f32.mrb[0].mxu0
  %v3671 = vadd.f32 %v3088, %v3670
  %v3672 = vpop.f32.mrb[0].mxu0
  %3673 = vmatprep.mubr.bf16.mxu0 %v3045
  %3674 = vmatmul.mubr.bf16.gmra.mrb[0].mxu0 %v3044
  %v3675 = vpop.f32.mrb[0].mxu0
  %v3676 = vadd.f32 %v3088, %v3675
  %v3677 = vpop.f32.mrb[0].mxu0
  %v3678 = vpop.f32.mrb[0].mxu0
  %v3679 = vpop.f32.mrb[0].mxu0
  %3680 = vdwg.mxu0
  %3681 = vmatprep.subr.bf16.mxu0 0
  %3682 = vmatpush1.bf16.msra.mxu0 %v3178
  %3683 = vmatprep.subr.bf16.mxu0 0
  %3684 = vmatpush1.bf16.msra.mxu0 %v3179
  %3685 = vmatprep.subr.bf16.mxu0 0
  %3686 = vmatpush1.bf16.msra.mxu0 0
  %3687 = vmatprep.subr.bf16.mxu0 0
  %3688 = vmatpush1.bf16.msra.mxu0 0
  %3689 = vmatprep.subr.bf16.mxu0 0
  %3690 = vmatpush1.bf16.msra.mxu0 0
  %3691 = vmatprep.subr.bf16.mxu0 0
  %3692 = vmatpush1.bf16.msra.mxu0 0
  %3693 = vmatprep.subr.bf16.mxu0 0
  %3694 = vmatpush1.bf16.msra.mxu0 0
  %3695 = vmatprep.subr.bf16.mxu0 0
  %3696 = vmatpush1.bf16.msra.mxu0 0
  %3697 = vmatprep.subr.bf16.mxu0 0
  %3698 = vmatpush1.bf16.msra.mxu0 0
  %3699 = vmatprep.subr.bf16.mxu0 0
  %3700 = vmatpush1.bf16.msra.mxu0 0
  %3701 = vmatprep.subr.bf16.mxu0 0
  %3702 = vmatpush1.bf16.msra.mxu0 0
  %3703 = vmatprep.subr.bf16.mxu0 0
  %3704 = vmatpush1.bf16.msra.mxu0 0
  %3705 = vmatprep.subr.bf16.mxu0 0
  %3706 = vmatpush1.bf16.msra.mxu0 0
  %3707 = vmatprep.subr.bf16.mxu0 0
  %3708 = vmatpush1.bf16.msra.mxu0 0
  %3709 = vmatprep.subr.bf16.mxu0 0
  %3710 = vmatpush1.bf16.msra.mxu0 0
  %3711 = vmatprep.subr.bf16.mxu0 0
  %3712 = vmatpush1.bf16.msra.mxu0 0
  %3713 = vmatprep.mubr.bf16.mxu0 0
  %3714 = vmatmul.mubr.bf16.gmra.mrb[0].mxu0 %v3199
  %v3715 = vpop.f32.mrb[0].mxu0
  %v3716 = vadd.f32 %v3356, %v3715
  %v3717 = vpop.f32.mrb[0].mxu0
  %v3718 = vpop.f32.mrb[0].mxu0
  %v3719 = vadd.f32 %v3359, %v3718
  %v3720 = vpop.f32.mrb[0].mxu0
  %3721 = vmatprep.mubr.bf16.mxu0 0
  %3722 = vmatmul.mubr.bf16.gmra.mrb[0].mxu0 %v3202
  %v3723 = vpop.f32.mrb[0].mxu0
  %v3724 = vadd.f32 %v3364, %v3723
  %v3725 = vpop.f32.mrb[0].mxu0
  %v3726 = vpop.f32.mrb[0].mxu0
  %v3727 = vadd.f32 %v3367, %v3726
  %v3728 = vpop.f32.mrb[0].mxu0
  %3729 = vmatprep.mubr.bf16.mxu0 0
  %3730 = vmatmul.mubr.bf16.gmra.mrb[0].mxu0 %v3205
  %v3731 = vpop.f32.mrb[0].mxu0
  %v3732 = vadd.f32 %v3372, %v3731
  %v3733 = vpop.f32.mrb[0].mxu0
  %v3734 = vpop.f32.mrb[0].mxu0
  %v3735 = vadd.f32 %v3375, %v3734
  %v3736 = vpop.f32.mrb[0].mxu0
  %3737 = vmatprep.mubr.bf16.mxu0 0
  %3738 = vmatmul.mubr.bf16.gmra.mrb[0].mxu0 %v3208
  %v3739 = vpop.f32.mrb[0].mxu0
  %v3740 = vadd.f32 %v3380, %v3739
  %v3741 = vpop.f32.mrb[0].mxu0
  %v3742 = vpop.f32.mrb[0].mxu0
  %v3743 = vadd.f32 %v3383, %v3742
  %v3744 = vpop.f32.mrb[0].mxu0
  %3745 = vmatprep.mubr.bf16.mxu0 0
  %3746 = vmatmul.mubr.bf16.gmra.mrb[0].mxu0 %v3211
  %v3747 = vpop.f32.mrb[0].mxu0
  %v3748 = vadd.f32 %v3388, %v3747
  %v3749 = vpop.f32.mrb[0].mxu0
  %v3750 = vpop.f32.mrb[0].mxu0
  %v3751 = vadd.f32 %v3391, %v3750
  %v3752 = vpop.f32.mrb[0].mxu0
  %3753 = vmatprep.mubr.bf16.mxu0 0
  %3754 = vmatmul.mubr.bf16.gmra.mrb[0].mxu0 %v3214
  %v3755 = vpop.f32.mrb[0].mxu0
  %v3756 = vadd.f32 %v3396, %v3755
  %v3757 = vpop.f32.mrb[0].mxu0
  %v3758 = vpop.f32.mrb[0].mxu0
  %v3759 = vadd.f32 %v3399, %v3758
  %v3760 = vpop.f32.mrb[0].mxu0
  %3761 = vmatprep.mubr.bf16.mxu0 0
  %3762 = vmatmul.mubr.bf16.gmra.mrb[0].mxu0 %v3217
  %v3763 = vpop.f32.mrb[0].mxu0
  %v3764 = vadd.f32 %v3404, %v3763
  %v3765 = vpop.f32.mrb[0].mxu0
  %v3766 = vpop.f32.mrb[0].mxu0
  %v3767 = vadd.f32 %v3407, %v3766
  %v3768 = vpop.f32.mrb[0].mxu0
  %3769 = vmatprep.mubr.bf16.mxu0 0
  %3770 = vmatmul.mubr.bf16.gmra.mrb[0].mxu0 %v3220
  %v3771 = vpop.f32.mrb[0].mxu0
  %v3772 = vadd.f32 %v3412, %v3771
  %v3773 = vpop.f32.mrb[0].mxu0
  %v3774 = vpop.f32.mrb[0].mxu0
  %v3775 = vadd.f32 %v3415, %v3774
  %v3776 = vpop.f32.mrb[0].mxu0
  %3777 = vmatprep.mubr.bf16.mxu0 0
  %3778 = vmatmul.mubr.bf16.gmra.mrb[0].mxu0 %v3223
  %v3779 = vpop.f32.mrb[0].mxu0
  %v3780 = vadd.f32 %v3420, %v3779
  %v3781 = vpop.f32.mrb[0].mxu0
  %v3782 = vpop.f32.mrb[0].mxu0
  %v3783 = vadd.f32 %v3423, %v3782
  %v3784 = vpop.f32.mrb[0].mxu0
  %3785 = vmatprep.mubr.bf16.mxu0 0
  %3786 = vmatmul.mubr.bf16.gmra.mrb[0].mxu0 %v3226
  %v3787 = vpop.f32.mrb[0].mxu0
  %v3788 = vadd.f32 %v3428, %v3787
  %v3789 = vpop.f32.mrb[0].mxu0
  %v3790 = vpop.f32.mrb[0].mxu0
  %v3791 = vadd.f32 %v3431, %v3790
  %v3792 = vpop.f32.mrb[0].mxu0
  %3793 = vmatprep.mubr.bf16.mxu0 0
  %3794 = vmatmul.mubr.bf16.gmra.mrb[0].mxu0 %v3229
  %v3795 = vpop.f32.mrb[0].mxu0
  %v3796 = vadd.f32 %v3436, %v3795
  %v3797 = vpop.f32.mrb[0].mxu0
  %v3798 = vpop.f32.mrb[0].mxu0
  %v3799 = vadd.f32 %v3439, %v3798
  %v3800 = vpop.f32.mrb[0].mxu0
  %3801 = vmatprep.mubr.bf16.mxu0 0
  %3802 = vmatmul.mubr.bf16.gmra.mrb[0].mxu0 %v3232
  %v3803 = vpop.f32.mrb[0].mxu0
  %v3804 = vadd.f32 %v3444, %v3803
  %v3805 = vpop.f32.mrb[0].mxu0
  %v3806 = vpop.f32.mrb[0].mxu0
  %v3807 = vadd.f32 %v3447, %v3806
  %v3808 = vpop.f32.mrb[0].mxu0
  %3809 = vmatprep.mubr.bf16.mxu0 0
  %3810 = vmatmul.mubr.bf16.gmra.mrb[0].mxu0 %v3235
  %v3811 = vpop.f32.mrb[0].mxu0
  %v3812 = vadd.f32 %v3452, %v3811
  %v3813 = vpop.f32.mrb[0].mxu0
  %v3814 = vpop.f32.mrb[0].mxu0
  %v3815 = vadd.f32 %v3455, %v3814
  %v3816 = vpop.f32.mrb[0].mxu0
  %3817 = vmatprep.mubr.bf16.mxu0 0
  %3818 = vmatmul.mubr.bf16.gmra.mrb[0].mxu0 %v3238
  %v3819 = vpop.f32.mrb[0].mxu0
  %v3820 = vadd.f32 %v3460, %v3819
  %v3821 = vpop.f32.mrb[0].mxu0
  %v3822 = vpop.f32.mrb[0].mxu0
  %v3823 = vadd.f32 %v3463, %v3822
  %v3824 = vpop.f32.mrb[0].mxu0
  %3825 = vmatprep.mubr.bf16.mxu0 0
  %3826 = vmatmul.mubr.bf16.gmra.mrb[0].mxu0 %v3241
  %v3827 = vpop.f32.mrb[0].mxu0
  %v3828 = vadd.f32 %v3468, %v3827
  %v3829 = vpop.f32.mrb[0].mxu0
  %v3830 = vpop.f32.mrb[0].mxu0
  %v3831 = vadd.f32 %v3471, %v3830
  %v3832 = vpop.f32.mrb[0].mxu0
  %3833 = vmatprep.mubr.bf16.mxu0 0
  %3834 = vmatmul.mubr.bf16.gmra.mrb[0].mxu0 %v3244
  %v3835 = vpop.f32.mrb[0].mxu0
  %v3836 = vadd.f32 %v3476, %v3835
  %v3837 = vpop.f32.mrb[0].mxu0
  %v3838 = vpop.f32.mrb[0].mxu0
  %v3839 = vadd.f32 %v3479, %v3838
  %v3840 = vpop.f32.mrb[0].mxu0
  %3841 = vmatprep.mubr.bf16.mxu0 0
  %3842 = vmatmul.mubr.bf16.gmra.mrb[0].mxu0 %v3247
  %v3843 = vpop.f32.mrb[0].mxu0
  %v3844 = vadd.f32 %v3484, %v3843
  %v3845 = vpop.f32.mrb[0].mxu0
  %v3846 = vpop.f32.mrb[0].mxu0
  %v3847 = vadd.f32 %v3487, %v3846
  %v3848 = vpop.f32.mrb[0].mxu0
  %3849 = vmatprep.mubr.bf16.mxu0 0
  %3850 = vmatmul.mubr.bf16.gmra.mrb[0].mxu0 %v3250
  %v3851 = vpop.f32.mrb[0].mxu0
  %v3852 = vadd.f32 %v3492, %v3851
  %v3853 = vpop.f32.mrb[0].mxu0
  %v3854 = vpop.f32.mrb[0].mxu0
  %v3855 = vadd.f32 %v3495, %v3854
  %v3856 = vpop.f32.mrb[0].mxu0
  %3857 = vmatprep.mubr.bf16.mxu0 0
  %3858 = vmatmul.mubr.bf16.gmra.mrb[0].mxu0 %v3253
  %v3859 = vpop.f32.mrb[0].mxu0
  %v3860 = vadd.f32 %v3500, %v3859
  %v3861 = vpop.f32.mrb[0].mxu0
  %v3862 = vpop.f32.mrb[0].mxu0
  %v3863 = vadd.f32 %v3503, %v3862
  %v3864 = vpop.f32.mrb[0].mxu0
  %3865 = vmatprep.mubr.bf16.mxu0 0
  %3866 = vmatmul.mubr.bf16.gmra.mrb[0].mxu0 %v3256
  %v3867 = vpop.f32.mrb[0].mxu0
  %v3868 = vadd.f32 %v3508, %v3867
  %v3869 = vpop.f32.mrb[0].mxu0
  %v3870 = vpop.f32.mrb[0].mxu0
  %v3871 = vadd.f32 %v3511, %v3870
  %v3872 = vpop.f32.mrb[0].mxu0
  %3873 = vmatprep.mubr.bf16.mxu0 0
  %3874 = vmatmul.mubr.bf16.gmra.mrb[0].mxu0 %v3259
  %v3875 = vpop.f32.mrb[0].mxu0
  %v3876 = vadd.f32 %v3516, %v3875
  %v3877 = vpop.f32.mrb[0].mxu0
  %v3878 = vpop.f32.mrb[0].mxu0
  %v3879 = vadd.f32 %v3519, %v3878
  %v3880 = vpop.f32.mrb[0].mxu0
  %3881 = vmatprep.mubr.bf16.mxu0 0
  %3882 = vmatmul.mubr.bf16.gmra.mrb[0].mxu0 %v3262
  %v3883 = vpop.f32.mrb[0].mxu0
  %v3884 = vadd.f32 %v3524, %v3883
  %v3885 = vpop.f32.mrb[0].mxu0
  %v3886 = vpop.f32.mrb[0].mxu0
  %v3887 = vadd.f32 %v3527, %v3886
  %v3888 = vpop.f32.mrb[0].mxu0
  %3889 = vmatprep.mubr.bf16.mxu0 0
  %3890 = vmatmul.mubr.bf16.gmra.mrb[0].mxu0 %v3265
  %v3891 = vpop.f32.mrb[0].mxu0
  %v3892 = vadd.f32 %v3532, %v3891
  %v3893 = vpop.f32.mrb[0].mxu0
  %v3894 = vpop.f32.mrb[0].mxu0
  %v3895 = vadd.f32 %v3535, %v3894
  %v3896 = vpop.f32.mrb[0].mxu0
  %3897 = vmatprep.mubr.bf16.mxu0 0
  %3898 = vmatmul.mubr.bf16.gmra.mrb[0].mxu0 %v3268
  %v3899 = vpop.f32.mrb[0].mxu0
  %v3900 = vadd.f32 %v3540, %v3899
  %v3901 = vpop.f32.mrb[0].mxu0
  %v3902 = vpop.f32.mrb[0].mxu0
  %v3903 = vadd.f32 %v3543, %v3902
  %v3904 = vpop.f32.mrb[0].mxu0
  %3905 = vmatprep.mubr.bf16.mxu0 0
  %3906 = vmatmul.mubr.bf16.gmra.mrb[0].mxu0 %v3271
  %v3907 = vpop.f32.mrb[0].mxu0
  %v3908 = vadd.f32 %v3548, %v3907
  %v3909 = vpop.f32.mrb[0].mxu0
  %v3910 = vpop.f32.mrb[0].mxu0
  %v3911 = vadd.f32 %v3551, %v3910
  %v3912 = vpop.f32.mrb[0].mxu0
  %3913 = vmatprep.mubr.bf16.mxu0 0
  %3914 = vmatmul.mubr.bf16.gmra.mrb[0].mxu0 %v3274
  %v3915 = vpop.f32.mrb[0].mxu0
  %v3916 = vadd.f32 %v3556, %v3915
  %v3917 = vpop.f32.mrb[0].mxu0
  %v3918 = vpop.f32.mrb[0].mxu0
  %v3919 = vadd.f32 %v3559, %v3918
  %v3920 = vpop.f32.mrb[0].mxu0
  %3921 = vmatprep.mubr.bf16.mxu0 0
  %3922 = vmatmul.mubr.bf16.gmra.mrb[0].mxu0 %v3277
  %v3923 = vpop.f32.mrb[0].mxu0
  %v3924 = vadd.f32 %v3564, %v3923
  %v3925 = vpop.f32.mrb[0].mxu0
  %v3926 = vpop.f32.mrb[0].mxu0
  %v3927 = vadd.f32 %v3567, %v3926
  %v3928 = vpop.f32.mrb[0].mxu0
  %3929 = vmatprep.mubr.bf16.mxu0 0
  %3930 = vmatmul.mubr.bf16.gmra.mrb[0].mxu0 %v3280
  %v3931 = vpop.f32.mrb[0].mxu0
  %v3932 = vadd.f32 %v3572, %v3931
  %v3933 = vpop.f32.mrb[0].mxu0
  %v3934 = vpop.f32.mrb[0].mxu0
  %v3935 = vadd.f32 %v3575, %v3934
  %v3936 = vpop.f32.mrb[0].mxu0
  %3937 = vmatprep.mubr.bf16.mxu0 0
  %3938 = vmatmul.mubr.bf16.gmra.mrb[0].mxu0 %v3283
  %v3939 = vpop.f32.mrb[0].mxu0
  %v3940 = vadd.f32 %v3580, %v3939
  %v3941 = vpop.f32.mrb[0].mxu0
  %v3942 = vpop.f32.mrb[0].mxu0
  %v3943 = vadd.f32 %v3583, %v3942
  %v3944 = vpop.f32.mrb[0].mxu0
  %3945 = vmatprep.mubr.bf16.mxu0 0
  %3946 = vmatmul.mubr.bf16.gmra.mrb[0].mxu0 %v3286
  %v3947 = vpop.f32.mrb[0].mxu0
  %v3948 = vadd.f32 %v3588, %v3947
  %v3949 = vpop.f32.mrb[0].mxu0
  %v3950 = vpop.f32.mrb[0].mxu0
  %v3951 = vadd.f32 %v3591, %v3950
  %v3952 = vpop.f32.mrb[0].mxu0
  %3953 = vmatprep.mubr.bf16.mxu0 0
  %3954 = vmatmul.mubr.bf16.gmra.mrb[0].mxu0 %v3289
  %v3955 = vpop.f32.mrb[0].mxu0
  %v3956 = vadd.f32 %v3596, %v3955
  %v3957 = vpop.f32.mrb[0].mxu0
  %v3958 = vpop.f32.mrb[0].mxu0
  %v3959 = vadd.f32 %v3599, %v3958
  %v3960 = vpop.f32.mrb[0].mxu0
  %3961 = vmatprep.mubr.bf16.mxu0 0
  %3962 = vmatmul.mubr.bf16.gmra.mrb[0].mxu0 %v3292
  %v3963 = vpop.f32.mrb[0].mxu0
  %v3964 = vadd.f32 %v3604, %v3963
  %v3965 = vpop.f32.mrb[0].mxu0
  %v3966 = vpop.f32.mrb[0].mxu0
  %v3967 = vadd.f32 %v3607, %v3966
  %v3968 = vpop.f32.mrb[0].mxu0
  %3969 = vmatprep.mubr.bf16.mxu0 0
  %3970 = vmatmul.mubr.bf16.gmra.mrb[0].mxu0 %v3295
  %v3971 = vpop.f32.mrb[0].mxu0
  %v3972 = vadd.f32 %v3612, %v3971
  %v3973 = vpop.f32.mrb[0].mxu0
  %v3974 = vpop.f32.mrb[0].mxu0
  %v3975 = vadd.f32 %v3615, %v3974
  %v3976 = vpop.f32.mrb[0].mxu0
  %3977 = vmatprep.mubr.bf16.mxu0 0
  %3978 = vmatmul.mubr.bf16.gmra.mrb[0].mxu0 %v3298
  %v3979 = vpop.f32.mrb[0].mxu0
  %v3980 = vadd.f32 %v3620, %v3979
  %v3981 = vpop.f32.mrb[0].mxu0
  %v3982 = vpop.f32.mrb[0].mxu0
  %v3983 = vadd.f32 %v3623, %v3982
  %v3984 = vpop.f32.mrb[0].mxu0
  %3985 = vmatprep.mubr.bf16.mxu0 0
  %3986 = vmatmul.mubr.bf16.gmra.mrb[0].mxu0 %v3301
  %v3987 = vpop.f32.mrb[0].mxu0
  %v3988 = vadd.f32 %v3628, %v3987
  %v3989 = vpop.f32.mrb[0].mxu0
  %v3990 = vpop.f32.mrb[0].mxu0
  %v3991 = vadd.f32 %v3631, %v3990
  %v3992 = vpop.f32.mrb[0].mxu0
  %3993 = vmatprep.mubr.bf16.mxu0 0
  %3994 = vmatmul.mubr.bf16.gmra.mrb[0].mxu0 %v3304
  %v3995 = vpop.f32.mrb[0].mxu0
  %v3996 = vadd.f32 %v3636, %v3995
  %v3997 = vpop.f32.mrb[0].mxu0
  %v3998 = vpop.f32.mrb[0].mxu0
  %v3999 = vadd.f32 %v3639, %v3998
  %v4000 = vpop.f32.mrb[0].mxu0
  %4001 = vmatprep.mubr.bf16.mxu0 0
  %4002 = vmatmul.mubr.bf16.gmra.mrb[0].mxu0 %v3307
  %v4003 = vpop.f32.mrb[0].mxu0
  %v4004 = vadd.f32 %v3644, %v4003
  %v4005 = vpop.f32.mrb[0].mxu0
  %v4006 = vpop.f32.mrb[0].mxu0
  %v4007 = vadd.f32 %v3647, %v4006
  %v4008 = vpop.f32.mrb[0].mxu0
  %4009 = vmatprep.mubr.bf16.mxu0 0
  %4010 = vmatmul.mubr.bf16.gmra.mrb[0].mxu0 %v3310
  %v4011 = vpop.f32.mrb[0].mxu0
  %v4012 = vadd.f32 %v3652, %v4011
  %v4013 = vpop.f32.mrb[0].mxu0
  %v4014 = vpop.f32.mrb[0].mxu0
  %v4015 = vadd.f32 %v3655, %v4014
  %v4016 = vpop.f32.mrb[0].mxu0
  %4017 = vmatprep.mubr.bf16.mxu0 0
  %4018 = vmatmul.mubr.bf16.gmra.mrb[0].mxu0 %v3313
  %v4019 = vpop.f32.mrb[0].mxu0
  %v4020 = vadd.f32 %v3660, %v4019
  %v4021 = vpop.f32.mrb[0].mxu0
  %v4022 = vpop.f32.mrb[0].mxu0
  %v4023 = vadd.f32 %v3663, %v4022
  %v4024 = vpop.f32.mrb[0].mxu0
  %4025 = vmatprep.mubr.bf16.mxu0 0
  %4026 = vmatmul.mubr.bf16.gmra.mrb[0].mxu0 %v3316
  %v4027 = vpop.f32.mrb[0].mxu0
  %v4028 = vadd.f32 %v3668, %v4027
  %v4029 = vpop.f32.mrb[0].mxu0
  %v4030 = vpop.f32.mrb[0].mxu0
  %v4031 = vadd.f32 %v3671, %v4030
  %v4032 = vpop.f32.mrb[0].mxu0
  %4033 = vmatprep.mubr.bf16.mxu0 0
  %4034 = vmatmul.mubr.bf16.gmra.mrb[0].mxu0 %v3319
  %v4035 = vpop.f32.mrb[0].mxu0
  %v4036 = vadd.f32 %v3676, %v4035
  %v4037 = vpop.f32.mrb[0].mxu0
  %v4038 = vpop.f32.mrb[0].mxu0
  %v4039 = vpop.f32.mrb[0].mxu0
  %4040 = vdwg.mxu0
  %v4041 = vmax.f32 %v3716, 0.0
  %v4042 = vmax.f32 %v3719, 0.0
  %v4043 = vmax.f32 %v3724, 0.0
  %v4044 = vmax.f32 %v3727, 0.0
  %v4045 = vmax.f32 %v3732, 0.0
  %v4046 = vmax.f32 %v3735, 0.0
  %v4047 = vmax.f32 %v3740, 0.0
  %v4048 = vmax.f32 %v3743, 0.0
  %v4049 = vmax.f32 %v3748, 0.0
  %v4050 = vmax.f32 %v3751, 0.0
  %v4051 = vmax.f32 %v3756, 0.0
  %v4052 = vmax.f32 %v3759, 0.0
  %v4053 = vmax.f32 %v3764, 0.0
  %v4054 = vmax.f32 %v3767, 0.0
  %v4055 = vmax.f32 %v3772, 0.0
  %v4056 = vmax.f32 %v3775, 0.0
  %v4057 = vmax.f32 %v3780, 0.0
  %v4058 = vmax.f32 %v3783, 0.0
  %v4059 = vmax.f32 %v3788, 0.0
  %v4060 = vmax.f32 %v3791, 0.0
  %v4061 = vmax.f32 %v3796, 0.0
  %v4062 = vmax.f32 %v3799, 0.0
  %v4063 = vmax.f32 %v3804, 0.0
  %v4064 = vmax.f32 %v3807, 0.0
  %v4065 = vmax.f32 %v3812, 0.0
  %v4066 = vmax.f32 %v3815, 0.0
  %v4067 = vmax.f32 %v3820, 0.0
  %v4068 = vmax.f32 %v3823, 0.0
  %v4069 = vmax.f32 %v3828, 0.0
  %v4070 = vmax.f32 %v3831, 0.0
  %v4071 = vmax.f32 %v3836, 0.0
  %v4072 = vmax.f32 %v3839, 0.0
  %v4073 = vmax.f32 %v3844, 0.0
  %v4074 = vmax.f32 %v3847, 0.0
  %v4075 = vmax.f32 %v3852, 0.0
  %v4076 = vmax.f32 %v3855, 0.0
  %v4077 = vmax.f32 %v3860, 0.0
  %v4078 = vmax.f32 %v3863, 0.0
  %v4079 = vmax.f32 %v3868, 0.0
  %v4080 = vmax.f32 %v3871, 0.0
  %v4081 = vmax.f32 %v3876, 0.0
  %v4082 = vmax.f32 %v3879, 0.0
  %v4083 = vmax.f32 %v3884, 0.0
  %v4084 = vmax.f32 %v3887, 0.0
  %v4085 = vmax.f32 %v3892, 0.0
  %v4086 = vmax.f32 %v3895, 0.0
  %v4087 = vmax.f32 %v3900, 0.0
  %v4088 = vmax.f32 %v3903, 0.0
  %v4089 = vmax.f32 %v3908, 0.0
  %v4090 = vmax.f32 %v3911, 0.0
  %v4091 = vmax.f32 %v3916, 0.0
  %v4092 = vmax.f32 %v3919, 0.0
  %v4093 = vmax.f32 %v3924, 0.0
  %v4094 = vmax.f32 %v3927, 0.0
  %v4095 = vmax.f32 %v3932, 0.0
  %v4096 = vmax.f32 %v3935, 0.0
  %v4097 = vmax.f32 %v3940, 0.0
  %v4098 = vmax.f32 %v3943, 0.0
  %v4099 = vmax.f32 %v3948, 0.0
  %v4100 = vmax.f32 %v3951, 0.0
  %v4101 = vmax.f32 %v3956, 0.0
  %v4102 = vmax.f32 %v3959, 0.0
  %v4103 = vmax.f32 %v3964, 0.0
  %v4104 = vmax.f32 %v3967, 0.0
  %v4105 = vmax.f32 %v3972, 0.0
  %v4106 = vmax.f32 %v3975, 0.0
  %v4107 = vmax.f32 %v3980, 0.0
  %v4108 = vmax.f32 %v3983, 0.0
  %v4109 = vmax.f32 %v3988, 0.0
  %v4110 = vmax.f32 %v3991, 0.0
  %v4111 = vmax.f32 %v3996, 0.0
  %v4112 = vmax.f32 %v3999, 0.0
  %v4113 = vmax.f32 %v4004, 0.0
  %v4114 = vmax.f32 %v4007, 0.0
  %v4115 = vmax.f32 %v4012, 0.0
  %v4116 = vmax.f32 %v4015, 0.0
  %v4117 = vmax.f32 %v4020, 0.0
  %v4118 = vmax.f32 %v4023, 0.0
  %v4119 = vmax.f32 %v4028, 0.0
  %v4120 = vmax.f32 %v4031, 0.0
  %v4121 = vmax.f32 %v4036, 0.0
  %vm4201 = vcmask 1045504
  %v4202 = vrot.slane %v4043, 2
  %v4203 = vrot.slane %v4044, 2
  %v4204 = vsel %vm4201, %v4202, %v4203
  %v4205 = vrot.slane %v4045, 2
  %v4206 = vsel %vm4201, %v4203, %v4205
  %v4207 = vrot.slane %v4046, 2
  %v4208 = vsel %vm4201, %v4205, %v4207
  %v4209 = vrot.slane %v4047, 2
  %v4210 = vsel %vm4201, %v4207, %v4209
  %v4211 = vrot.slane %v4048, 2
  %v4212 = vsel %vm4201, %v4209, %v4211
  %v4213 = vrot.slane %v4049, 2
  %v4214 = vsel %vm4201, %v4211, %v4213
  %v4215 = vrot.slane %v4050, 2
  %v4216 = vsel %vm4201, %v4213, %v4215
  %v4217 = vrot.slane %v4051, 2
  %v4218 = vsel %vm4201, %v4215, %v4217
  %v4219 = vrot.slane %v4052, 2
  %v4220 = vsel %vm4201, %v4217, %v4219
  %v4221 = vrot.slane %v4053, 2
  %v4222 = vsel %vm4201, %v4219, %v4221
  %v4223 = vrot.slane %v4054, 2
  %v4224 = vsel %vm4201, %v4221, %v4223
  %v4225 = vrot.slane %v4055, 2
  %v4226 = vsel %vm4201, %v4223, %v4225
  %v4227 = vrot.slane %v4056, 2
  %v4228 = vsel %vm4201, %v4225, %v4227
  %v4229 = vrot.slane %v4057, 2
  %v4230 = vsel %vm4201, %v4227, %v4229
  %v4231 = vrot.slane %v4058, 2
  %v4232 = vsel %vm4201, %v4229, %v4231
  %v4233 = vrot.slane %v4059, 2
  %v4234 = vsel %vm4201, %v4231, %v4233
  %v4235 = vrot.slane %v4060, 2
  %v4236 = vsel %vm4201, %v4233, %v4235
  %v4237 = vrot.slane %v4061, 2
  %v4238 = vsel %vm4201, %v4235, %v4237
  %v4239 = vrot.slane %v4062, 2
  %v4240 = vsel %vm4201, %v4237, %v4239
  %v4241 = vrot.slane %v4063, 2
  %v4242 = vsel %vm4201, %v4239, %v4241
  %v4243 = vrot.slane %v4064, 2
  %v4244 = vsel %vm4201, %v4241, %v4243
  %v4245 = vrot.slane %v4065, 2
  %v4246 = vsel %vm4201, %v4243, %v4245
  %v4247 = vrot.slane %v4066, 2
  %v4248 = vsel %vm4201, %v4245, %v4247
  %v4249 = vrot.slane %v4067, 2
  %v4250 = vsel %vm4201, %v4247, %v4249
  %v4251 = vrot.slane %v4068, 2
  %v4252 = vsel %vm4201, %v4249, %v4251
  %v4253 = vrot.slane %v4069, 2
  %v4254 = vsel %vm4201, %v4251, %v4253
  %v4255 = vrot.slane %v4070, 2
  %v4256 = vsel %vm4201, %v4253, %v4255
  %v4257 = vrot.slane %v4071, 2
  %v4258 = vsel %vm4201, %v4255, %v4257
  %v4259 = vrot.slane %v4072, 2
  %v4260 = vsel %vm4201, %v4257, %v4259
  %v4261 = vrot.slane %v4073, 2
  %v4262 = vsel %vm4201, %v4259, %v4261
  %v4263 = vrot.slane %v4074, 2
  %v4264 = vsel %vm4201, %v4261, %v4263
  %v4265 = vrot.slane %v4075, 2
  %v4266 = vsel %vm4201, %v4263, %v4265
  %v4267 = vrot.slane %v4076, 2
  %v4268 = vsel %vm4201, %v4265, %v4267
  %v4269 = vrot.slane %v4077, 2
  %v4270 = vsel %vm4201, %v4267, %v4269
  %v4271 = vrot.slane %v4078, 2
  %v4272 = vsel %vm4201, %v4269, %v4271
  %v4273 = vrot.slane %v4079, 2
  %v4274 = vsel %vm4201, %v4271, %v4273
  %v4275 = vrot.slane %v4080, 2
  %v4276 = vsel %vm4201, %v4273, %v4275
  %v4277 = vrot.slane %v4081, 2
  %v4278 = vsel %vm4201, %v4275, %v4277
  %v4279 = vrot.slane %v4082, 2
  %v4280 = vsel %vm4201, %v4277, %v4279
  %v4281 = vrot.slane %v4083, 2
  %v4282 = vsel %vm4201, %v4279, %v4281
  %v4283 = vrot.slane %v4084, 2
  %v4284 = vsel %vm4201, %v4281, %v4283
  %v4285 = vrot.slane %v4085, 2
  %v4286 = vsel %vm4201, %v4283, %v4285
  %v4287 = vrot.slane %v4086, 2
  %v4288 = vsel %vm4201, %v4285, %v4287
  %v4289 = vrot.slane %v4087, 2
  %v4290 = vsel %vm4201, %v4287, %v4289
  %v4291 = vrot.slane %v4088, 2
  %v4292 = vsel %vm4201, %v4289, %v4291
  %v4293 = vrot.slane %v4089, 2
  %v4294 = vsel %vm4201, %v4291, %v4293
  %v4295 = vrot.slane %v4090, 2
  %v4296 = vsel %vm4201, %v4293, %v4295
  %v4297 = vrot.slane %v4091, 2
  %v4298 = vsel %vm4201, %v4295, %v4297
  %v4299 = vrot.slane %v4092, 2
  %v4300 = vsel %vm4201, %v4297, %v4299
  %v4301 = vrot.slane %v4093, 2
  %v4302 = vsel %vm4201, %v4299, %v4301
  %v4303 = vrot.slane %v4094, 2
  %v4304 = vsel %vm4201, %v4301, %v4303
  %v4305 = vrot.slane %v4095, 2
  %v4306 = vsel %vm4201, %v4303, %v4305
  %v4307 = vrot.slane %v4096, 2
  %v4308 = vsel %vm4201, %v4305, %v4307
  %v4309 = vrot.slane %v4097, 2
  %v4310 = vsel %vm4201, %v4307, %v4309
  %v4311 = vrot.slane %v4098, 2
  %v4312 = vsel %vm4201, %v4309, %v4311
  %v4313 = vrot.slane %v4099, 2
  %v4314 = vsel %vm4201, %v4311, %v4313
  %v4315 = vrot.slane %v4100, 2
  %v4316 = vsel %vm4201, %v4313, %v4315
  %v4317 = vrot.slane %v4101, 2
  %v4318 = vsel %vm4201, %v4315, %v4317
  %v4319 = vrot.slane %v4102, 2
  %v4320 = vsel %vm4201, %v4317, %v4319
  %v4321 = vrot.slane %v4103, 2
  %v4322 = vsel %vm4201, %v4319, %v4321
  %v4323 = vrot.slane %v4104, 2
  %v4324 = vsel %vm4201, %v4321, %v4323
  %v4325 = vrot.slane %v4105, 2
  %v4326 = vsel %vm4201, %v4323, %v4325
  %v4327 = vrot.slane %v4106, 2
  %v4328 = vsel %vm4201, %v4325, %v4327
  %v4329 = vrot.slane %v4107, 2
  %v4330 = vsel %vm4201, %v4327, %v4329
  %v4331 = vrot.slane %v4108, 2
  %v4332 = vsel %vm4201, %v4329, %v4331
  %v4333 = vrot.slane %v4109, 2
  %v4334 = vsel %vm4201, %v4331, %v4333
  %v4335 = vrot.slane %v4110, 2
  %v4336 = vsel %vm4201, %v4333, %v4335
  %v4337 = vrot.slane %v4111, 2
  %v4338 = vsel %vm4201, %v4335, %v4337
  %v4339 = vrot.slane %v4112, 2
  %v4340 = vsel %vm4201, %v4337, %v4339
  %v4341 = vrot.slane %v4113, 2
  %v4342 = vsel %vm4201, %v4339, %v4341
  %v4343 = vrot.slane %v4114, 2
  %v4344 = vsel %vm4201, %v4341, %v4343
  %v4345 = vrot.slane %v4115, 2
  %v4346 = vsel %vm4201, %v4343, %v4345
  %v4347 = vrot.slane %v4116, 2
  %v4348 = vsel %vm4201, %v4345, %v4347
  %v4349 = vrot.slane %v4117, 2
  %v4350 = vsel %vm4201, %v4347, %v4349
  %v4351 = vrot.slane %v4118, 2
  %v4352 = vsel %vm4201, %v4349, %v4351
  %v4353 = vrot.slane %v4119, 2
  %v4354 = vsel %vm4201, %v4351, %v4353
  %v4355 = vrot.slane %v4120, 2
  %v4356 = vsel %vm4201, %v4353, %v4355
  %v4357 = vrot.slane %v4121, 2
  %v4358 = vsel %vm4201, %v4355, %v4357
  %v4438 = vmax.f32 %v4041, %v4204
  %v4439 = vmax.f32 %v4042, %v4206
  %v4440 = vmax.f32 %v4043, %v4208
  %v4441 = vmax.f32 %v4044, %v4210
  %v4442 = vmax.f32 %v4045, %v4212
  %v4443 = vmax.f32 %v4046, %v4214
  %v4444 = vmax.f32 %v4047, %v4216
  %v4445 = vmax.f32 %v4048, %v4218
  %v4446 = vmax.f32 %v4049, %v4220
  %v4447 = vmax.f32 %v4050, %v4222
  %v4448 = vmax.f32 %v4051, %v4224
  %v4449 = vmax.f32 %v4052, %v4226
  %v4450 = vmax.f32 %v4053, %v4228
  %v4451 = vmax.f32 %v4054, %v4230
  %v4452 = vmax.f32 %v4055, %v4232
  %v4453 = vmax.f32 %v4056, %v4234
  %v4454 = vmax.f32 %v4057, %v4236
  %v4455 = vmax.f32 %v4058, %v4238
  %v4456 = vmax.f32 %v4059, %v4240
  %v4457 = vmax.f32 %v4060, %v4242
  %v4458 = vmax.f32 %v4061, %v4244
  %v4459 = vmax.f32 %v4062, %v4246
  %v4460 = vmax.f32 %v4063, %v4248
  %v4461 = vmax.f32 %v4064, %v4250
  %v4462 = vmax.f32 %v4065, %v4252
  %v4463 = vmax.f32 %v4066, %v4254
  %v4464 = vmax.f32 %v4067, %v4256
  %v4465 = vmax.f32 %v4068, %v4258
  %v4466 = vmax.f32 %v4069, %v4260
  %v4467 = vmax.f32 %v4070, %v4262
  %v4468 = vmax.f32 %v4071, %v4264
  %v4469 = vmax.f32 %v4072, %v4266
  %v4470 = vmax.f32 %v4073, %v4268
  %v4471 = vmax.f32 %v4074, %v4270
  %v4472 = vmax.f32 %v4075, %v4272
  %v4473 = vmax.f32 %v4076, %v4274
  %v4474 = vmax.f32 %v4077, %v4276
  %v4475 = vmax.f32 %v4078, %v4278
  %v4476 = vmax.f32 %v4079, %v4280
  %v4477 = vmax.f32 %v4080, %v4282
  %v4478 = vmax.f32 %v4081, %v4284
  %v4479 = vmax.f32 %v4082, %v4286
  %v4480 = vmax.f32 %v4083, %v4288
  %v4481 = vmax.f32 %v4084, %v4290
  %v4482 = vmax.f32 %v4085, %v4292
  %v4483 = vmax.f32 %v4086, %v4294
  %v4484 = vmax.f32 %v4087, %v4296
  %v4485 = vmax.f32 %v4088, %v4298
  %v4486 = vmax.f32 %v4089, %v4300
  %v4487 = vmax.f32 %v4090, %v4302
  %v4488 = vmax.f32 %v4091, %v4304
  %v4489 = vmax.f32 %v4092, %v4306
  %v4490 = vmax.f32 %v4093, %v4308
  %v4491 = vmax.f32 %v4094, %v4310
  %v4492 = vmax.f32 %v4095, %v4312
  %v4493 = vmax.f32 %v4096, %v4314
  %v4494 = vmax.f32 %v4097, %v4316
  %v4495 = vmax.f32 %v4098, %v4318
  %v4496 = vmax.f32 %v4099, %v4320
  %v4497 = vmax.f32 %v4100, %v4322
  %v4498 = vmax.f32 %v4101, %v4324
  %v4499 = vmax.f32 %v4102, %v4326
  %v4500 = vmax.f32 %v4103, %v4328
  %v4501 = vmax.f32 %v4104, %v4330
  %v4502 = vmax.f32 %v4105, %v4332
  %v4503 = vmax.f32 %v4106, %v4334
  %v4504 = vmax.f32 %v4107, %v4336
  %v4505 = vmax.f32 %v4108, %v4338
  %v4506 = vmax.f32 %v4109, %v4340
  %v4507 = vmax.f32 %v4110, %v4342
  %v4508 = vmax.f32 %v4111, %v4344
  %v4509 = vmax.f32 %v4112, %v4346
  %v4510 = vmax.f32 %v4113, %v4348
  %v4511 = vmax.f32 %v4114, %v4350
  %v4512 = vmax.f32 %v4115, %v4352
  %v4513 = vmax.f32 %v4116, %v4354
  %v4514 = vmax.f32 %v4117, %v4356
  %v4515 = vmax.f32 %v4118, %v4358
  %v4516 = vmax.f32 %v4119, %v4357
  %4517 = vst [vmem:[#allocation5] sm:$0xff] %v4438
  %4518 = vst [vmem:[#allocation5 + $0x8] sm:$0xff] %v4439
  %4519 = vst [vmem:[#allocation5 + $0x10] sm:$0xff] %v4440
  %4520 = vst [vmem:[#allocation5 + $0x18] sm:$0xff] %v4441
  %4521 = vst [vmem:[#allocation5 + $0x20] sm:$0xff] %v4442
  %4522 = vst [vmem:[#allocation5 + $0x28] sm:$0xff] %v4443
  %4523 = vst [vmem:[#allocation5 + $0x30] sm:$0xff] %v4444
  %4524 = vst [vmem:[#allocation5 + $0x38] sm:$0xff] %v4445
  %4525 = vst [vmem:[#allocation5 + $0x40] sm:$0xff] %v4446
  %4526 = vst [vmem:[#allocation5 + $0x48] sm:$0xff] %v4447
  %4527 = vst [vmem:[#allocation5 + $0x50] sm:$0xff] %v4448
  %4528 = vst [vmem:[#allocation5 + $0x58] sm:$0xff] %v4449
  %4529 = vst [vmem:[#allocation5 + $0x60] sm:$0xff] %v4450
  %4530 = vst [vmem:[#allocation5 + $0x68] sm:$0xff] %v4451
  %4531 = vst [vmem:[#allocation5 + $0x70] sm:$0xff] %v4452
  %4532 = vst [vmem:[#allocation5 + $0x78] sm:$0xff] %v4453
  %4533 = vst [vmem:[#allocation5 + $0x80] sm:$0xff] %v4454
  %4534 = vst [vmem:[#allocation5 + $0x88] sm:$0xff] %v4455
  %4535 = vst [vmem:[#allocation5 + $0x90] sm:$0xff] %v4456
  %4536 = vst [vmem:[#allocation5 + $0x98] sm:$0xff] %v4457
  %4537 = vst [vmem:[#allocation5 + $0xa0] sm:$0xff] %v4458
  %4538 = vst [vmem:[#allocation5 + $0xa8] sm:$0xff] %v4459
  %4539 = vst [vmem:[#allocation5 + $0xb0] sm:$0xff] %v4460
  %4540 = vst [vmem:[#allocation5 + $0xb8] sm:$0xff] %v4461
  %4541 = vst [vmem:[#allocation5 + $0xc0] sm:$0xff] %v4462
  %4542 = vst [vmem:[#allocation5 + $0xc8] sm:$0xff] %v4463
  %4543 = vst [vmem:[#allocation5 + $0xd0] sm:$0xff] %v4464
  %4544 = vst [vmem:[#allocation5 + $0xd8] sm:$0xff] %v4465
  %4545 = vst [vmem:[#allocation5 + $0xe0] sm:$0xff] %v4466
  %4546 = vst [vmem:[#allocation5 + $0xe8] sm:$0xff] %v4467
  %4547 = vst [vmem:[#allocation5 + $0xf0] sm:$0xff] %v4468
  %4548 = vst [vmem:[#allocation5 + $0xf8] sm:$0xff] %v4469
  %4549 = vst [vmem:[#allocation5 + $0x100] sm:$0xff] %v4470
  %4550 = vst [vmem:[#allocation5 + $0x108] sm:$0xff] %v4471
  %4551 = vst [vmem:[#allocation5 + $0x110] sm:$0xff] %v4472
  %4552 = vst [vmem:[#allocation5 + $0x118] sm:$0xff] %v4473
  %4553 = vst [vmem:[#allocation5 + $0x120] sm:$0xff] %v4474
  %4554 = vst [vmem:[#allocation5 + $0x128] sm:$0xff] %v4475
  %4555 = vst [vmem:[#allocation5 + $0x130] sm:$0xff] %v4476
  %4556 = vst [vmem:[#allocation5 + $0x138] sm:$0xff] %v4477
  %4557 = vst [vmem:[#allocation5 + $0x140] sm:$0xff] %v4478
  %4558 = vst [vmem:[#allocation5 + $0x148] sm:$0xff] %v4479
  %4559 = vst [vmem:[#allocation5 + $0x150] sm:$0xff] %v4480
  %4560 = vst [vmem:[#allocation5 + $0x158] sm:$0xff] %v4481
  %4561 = vst [vmem:[#allocation5 + $0x160] sm:$0xff] %v4482
  %4562 = vst [vmem:[#allocation5 + $0x168] sm:$0xff] %v4483
  %4563 = vst [vmem:[#allocation5 + $0x170] sm:$0xff] %v4484
  %4564 = vst [vmem:[#allocation5 + $0x178] sm:$0xff] %v4485
  %4565 = vst [vmem:[#allocation5 + $0x180] sm:$0xff] %v4486
  %4566 = vst [vmem:[#allocation5 + $0x188] sm:$0xff] %v4487
  %4567 = vst [vmem:[#allocation5 + $0x190] sm:$0xff] %v4488
  %4568 = vst [vmem:[#allocation5 + $0x198] sm:$0xff] %v4489
  %4569 = vst [vmem:[#allocation5 + $0x1a0] sm:$0xff] %v4490
  %4570 = vst [vmem:[#allocation5 + $0x1a8] sm:$0xff] %v4491
  %4571 = vst [vmem:[#allocation5 + $0x1b0] sm:$0xff] %v4492
  %4572 = vst [vmem:[#allocation5 + $0x1b8] sm:$0xff] %v4493
  %4573 = vst [vmem:[#allocation5 + $0x1c0] sm:$0xff] %v4494
  %4574 = vst [vmem:[#allocation5 + $0x1c8] sm:$0xff] %v4495
  %4575 = vst [vmem:[#allocation5 + $0x1d0] sm:$0xff] %v4496
  %4576 = vst [vmem:[#allocation5 + $0x1d8] sm:$0xff] %v4497
  %4577 = vst [vmem:[#allocation5 + $0x1e0] sm:$0xff] %v4498
  %4578 = vst [vmem:[#allocation5 + $0x1e8] sm:$0xff] %v4499
  %4579 = vst [vmem:[#allocation5 + $0x1f0] sm:$0xff] %v4500
  %4580 = vst [vmem:[#allocation5 + $0x1f8] sm:$0xff] %v4501
  %4581 = vst [vmem:[#allocation5 + $0x200] sm:$0xff] %v4502
  %4582 = vst [vmem:[#allocation5 + $0x208] sm:$0xff] %v4503
  %4583 = vst [vmem:[#allocation5 + $0x210] sm:$0xff] %v4504
  %4584 = vst [vmem:[#allocation5 + $0x218] sm:$0xff] %v4505
  %4585 = vst [vmem:[#allocation5 + $0x220] sm:$0xff] %v4506
  %4586 = vst [vmem:[#allocation5 + $0x228] sm:$0xff] %v4507
  %4587 = vst [vmem:[#allocation5 + $0x230] sm:$0xff] %v4508
  %4588 = vst [vmem:[#allocation5 + $0x238] sm:$0xff] %v4509
  %4589 = vst [vmem:[#allocation5 + $0x240] sm:$0xff] %v4510
  %4590 = vst [vmem:[#allocation5 + $0x248] sm:$0xff] %v4511
  %4591 = vst [vmem:[#allocation5 + $0x250] sm:$0xff] %v4512
  %4592 = vst [vmem:[#allocation5 + $0x258] sm:$0xff] %v4513
  %4593 = vst [vmem:[#allocation5 + $0x260] sm:$0xff] %v4514
  %4594 = vst [vmem:[#allocation5 + $0x268] sm:$0xff] %v4515
  %4595 = vst [vmem:[#allocation5 + $0x270] sm:$0x3f] %v4516
  %s4596 = scalar_lea.vmem [#allocation5], 19
  %v4597 = vld [vmem:[%s4596] ss:$2 sm:$0xff]
  %s4598 = scalar_lea.vmem [#allocation5], 20
  %v4599 = vld [vmem:[%s4598] ss:$2 sm:$0xff]
  %v4600 = vmax.f32 %v4597, %v4599
  %4601 = vst [vmem:[#allocation2 + $0x16] sm:$0xff] %v4600
  %s4602 = scalar_lea.vmem [#allocation5], 55
  %v4603 = vld [vmem:[%s4602] ss:$2 sm:$0xff]
  %s4604 = scalar_lea.vmem [#allocation5], 56
  %v4605 = vld [vmem:[%s4604] ss:$2 sm:$0xff]
  %v4606 = vmax.f32 %v4603, %v4605
  %4607 = vst [vmem:[#allocation2 + $0x20] sm:$0xff] %v4606
  %s4608 = scalar_lea.vmem [#allocation5], 91
  %v4609 = vld [vmem:[%s4608] ss:$2 sm:$0xff]
  %s4610 = scalar_lea.vmem [#allocation5], 92
  %v4611 = vld [vmem:[%s4610] ss:$2 sm:$0xff]
  %v4612 = vmax.f32 %v4609, %v4611
  %4613 = vst [vmem:[#allocation2 + $0x2a] sm:$0xff] %v4612
  %s4614 = scalar_lea.vmem [#allocation5], 127
  %v4615 = vld [vmem:[%s4614] ss:$2 sm:$0xff]
  %s4616 = scalar_lea.vmem [#allocation5], 128
  %v4617 = vld [vmem:[%s4616] ss:$2 sm:$0xff]
  %v4618 = vmax.f32 %v4615, %v4617
  %4619 = vst [vmem:[#allocation2 + $0x34] sm:$0xff] %v4618
  %s4620 = scalar_lea.vmem [#allocation5], 163
  %v4621 = vld [vmem:[%s4620] ss:$2 sm:$0xff]
  %s4622 = scalar_lea.vmem [#allocation5], 164
  %v4623 = vld [vmem:[%s4622] ss:$2 sm:$0xff]
  %v4624 = vmax.f32 %v4621, %v4623
  %4625 = vst [vmem:[#allocation2 + $0x3e] sm:$0xff] %v4624
  %s4626 = scalar_lea.vmem [#allocation5], 199
  %v4627 = vld [vmem:[%s4626] ss:$2 sm:$0xff]
  %s4628 = scalar_lea.vmem [#allocation5], 200
  %v4629 = vld [vmem:[%s4628] ss:$2 sm:$0xff]
  %v4630 = vmax.f32 %v4627, %v4629
  %4631 = vst [vmem:[#allocation2 + $0x48] sm:$0xff] %v4630
  %s4632 = scalar_lea.vmem [#allocation5], 235
  %v4633 = vld [vmem:[%s4632] ss:$2 sm:$0xff]
  %s4634 = scalar_lea.vmem [#allocation5], 236
  %v4635 = vld [vmem:[%s4634] ss:$2 sm:$0xff]
  %v4636 = vmax.f32 %v4633, %v4635
  %4637 = vst [vmem:[#allocation2 + $0x52] sm:$0xff] %v4636
  %s4638 = scalar_lea.vmem [#allocation5], 271
  %v4639 = vld [vmem:[%s4638] ss:$2 sm:$0xff]
  %s4640 = scalar_lea.vmem [#allocation5], 272
  %v4641 = vld [vmem:[%s4640] ss:$2 sm:$0xff]
  %v4642 = vmax.f32 %v4639, %v4641
  %4643 = vst [vmem:[#allocation2 + $0x5c] sm:$0xff] %v4642
  %s4644 = scalar_lea.vmem [#allocation5], 343
  %v4645 = vld [vmem:[%s4644] ss:$2 sm:$0xff]
  %s4646 = scalar_lea.vmem [#allocation5], 344
  %v4647 = vld [vmem:[%s4646] ss:$2 sm:$0xff]
  %v4648 = vmax.f32 %v4645, %v4647
  %4649 = vst [vmem:[#allocation2 + $0x7a] sm:$0xff] %v4648
  %s4650 = scalar_lea.vmem [#allocation5], 379
  %v4651 = vld [vmem:[%s4650] ss:$2 sm:$0xff]
  %s4652 = scalar_lea.vmem [#allocation5], 380
  %v4653 = vld [vmem:[%s4652] ss:$2 sm:$0xff]
  %v4654 = vmax.f32 %v4651, %v4653
  %4655 = vst [vmem:[#allocation2 + $0x84] sm:$0xff] %v4654
  %s4656 = scalar_lea.vmem [#allocation5], 415
  %v4657 = vld [vmem:[%s4656] ss:$2 sm:$0xff]
  %s4658 = scalar_lea.vmem [#allocation5], 416
  %v4659 = vld [vmem:[%s4658] ss:$2 sm:$0xff]
  %v4660 = vmax.f32 %v4657, %v4659
  %4661 = vst [vmem:[#allocation2 + $0x8e] sm:$0xff] %v4660
  %s4662 = scalar_lea.vmem [#allocation5], 451
  %v4663 = vld [vmem:[%s4662] ss:$2 sm:$0xff]
  %s4664 = scalar_lea.vmem [#allocation5], 452
  %v4665 = vld [vmem:[%s4664] ss:$2 sm:$0xff]
  %v4666 = vmax.f32 %v4663, %v4665
  %4667 = vst [vmem:[#allocation2 + $0x98] sm:$0xff] %v4666
  %s4668 = scalar_lea.vmem [#allocation5], 487
  %v4669 = vld [vmem:[%s4668] ss:$2 sm:$0xff]
  %s4670 = scalar_lea.vmem [#allocation5], 488
  %v4671 = vld [vmem:[%s4670] ss:$2 sm:$0xff]
  %v4672 = vmax.f32 %v4669, %v4671
  %4673 = vst [vmem:[#allocation2 + $0xa2] sm:$0xff] %v4672
  %s4674 = scalar_lea.vmem [#allocation5], 523
  %v4675 = vld [vmem:[%s4674] ss:$2 sm:$0xff]
  %s4676 = scalar_lea.vmem [#allocation5], 524
  %v4677 = vld [vmem:[%s4676] ss:$2 sm:$0xff]
  %v4678 = vmax.f32 %v4675, %v4677
  %4679 = vst [vmem:[#allocation2 + $0xac] sm:$0xff] %v4678
  %s4680 = scalar_lea.vmem [#allocation5], 559
  %v4681 = vld [vmem:[%s4680] ss:$2 sm:$0xff]
  %s4682 = scalar_lea.vmem [#allocation5], 560
  %v4683 = vld [vmem:[%s4682] ss:$2 sm:$0xff]
  %v4684 = vmax.f32 %v4681, %v4683
  %4685 = vst [vmem:[#allocation2 + $0xb6] sm:$0xff] %v4684
  %s4686 = scalar_lea.vmem [#allocation5], 595
  %v4687 = vld [vmem:[%s4686] ss:$2 sm:$0xff]
  %s4688 = scalar_lea.vmem [#allocation5], 596
  %v4689 = vld [vmem:[%s4688] ss:$2 sm:$0xff]
  %v4690 = vmax.f32 %v4687, %v4689
  %4691 = vst [vmem:[#allocation2 + $0xc0] sm:$0xff] %v4690
  %v4692 = vld [vmem:[#allocation2] sm:$0xff]
  %v4693 = vld [vmem:[#allocation2 + $0x8] sm:$0xff]
  %v4694 = vld [vmem:[#allocation2 + $0x10] sm:$0xff]
  %v4695 = vld [vmem:[#allocation2 + $0x18] sm:$0xff]
  %v4696 = vld [vmem:[#allocation2 + $0x20] sm:$0xff]
  %v4697 = vld [vmem:[#allocation2 + $0x28] sm:$0xff]
  %v4698 = vld [vmem:[#allocation2 + $0x30] sm:$0xff]
  %v4699 = vld [vmem:[#allocation2 + $0x38] sm:$0xff]
  %v4700 = vld [vmem:[#allocation2 + $0x40] sm:$0xff]
  %v4701 = vld [vmem:[#allocation2 + $0x48] sm:$0xff]
  %v4702 = vld [vmem:[#allocation2 + $0x50] sm:$0xff]
  %v4703 = vld [vmem:[#allocation2 + $0x58] sm:$0xff]
  %v4704 = vld [vmem:[#allocation2 + $0x60] sm:$0xff]
  %v4705 = vld [vmem:[#allocation2 + $0x68] sm:$0xff]
  %v4706 = vld [vmem:[#allocation2 + $0x70] sm:$0xff]
  %v4707 = vld [vmem:[#allocation2 + $0x78] sm:$0xff]
  %v4708 = vld [vmem:[#allocation2 + $0x80] sm:$0xff]
  %v4709 = vld [vmem:[#allocation2 + $0x88] sm:$0xff]
  %v4710 = vld [vmem:[#allocation2 + $0x90] sm:$0xff]
  %v4711 = vld [vmem:[#allocation2 + $0x98] sm:$0xff]
  %v4712 = vld [vmem:[#allocation2 + $0xa0] sm:$0xff]
  %v4713 = vld [vmem:[#allocation2 + $0xa8] sm:$0xff]
  %v4714 = vld [vmem:[#allocation2 + $0xb0] sm:$0xff]
  %v4715 = vld [vmem:[#allocation2 + $0xb8] sm:$0xff]
  %v4716 = vld [vmem:[#allocation2 + $0xc0] sm:$0xff]
  %v4717 = vld [vmem:[#allocation2 + $0x1] sm:$0xff]
  %v4718 = vld [vmem:[#allocation2 + $0x9] sm:$0xff]
  %v4719 = vld [vmem:[#allocation2 + $0x11] sm:$0xff]
  %v4720 = vld [vmem:[#allocation2 + $0x19] sm:$0xff]
  %v4721 = vld [vmem:[#allocation2 + $0x21] sm:$0xff]
  %v4722 = vld [vmem:[#allocation2 + $0x29] sm:$0xff]
  %v4723 = vld [vmem:[#allocation2 + $0x31] sm:$0xff]
  %v4724 = vld [vmem:[#allocation2 + $0x39] sm:$0xff]
  %v4725 = vld [vmem:[#allocation2 + $0x41] sm:$0xff]
  %v4726 = vld [vmem:[#allocation2 + $0x49] sm:$0xff]
  %v4727 = vld [vmem:[#allocation2 + $0x51] sm:$0xff]
  %v4728 = vld [vmem:[#allocation2 + $0x59] sm:$0xff]
  %v4729 = vld [vmem:[#allocation2 + $0x61] sm:$0xff]
  %v4730 = vld [vmem:[#allocation2 + $0x69] sm:$0xff]
  %v4731 = vld [vmem:[#allocation2 + $0x71] sm:$0xff]
  %v4732 = vld [vmem:[#allocation2 + $0x79] sm:$0xff]
  %v4733 = vld [vmem:[#allocation2 + $0x81] sm:$0xff]
  %v4734 = vld [vmem:[#allocation2 + $0x89] sm:$0xff]
  %v4735 = vld [vmem:[#allocation2 + $0x91] sm:$0xff]
  %v4736 = vld [vmem:[#allocation2 + $0x99] sm:$0xff]
  %v4737 = vld [vmem:[#allocation2 + $0xa1] sm:$0xff]
  %v4738 = vld [vmem:[#allocation2 + $0xa9] sm:$0xff]
  %v4739 = vld [vmem:[#allocation2 + $0xb1] sm:$0xff]
  %v4740 = vld [vmem:[#allocation2 + $0xb9] sm:$0xff]
  %v4741 = vld [vmem:[#allocation2 + $0xc1] sm:$0xff]
  %v4742 = vld [vmem:[#allocation2 + $0x2] sm:$0xff]
  %v4743 = vld [vmem:[#allocation2 + $0xa] sm:$0xff]
  %v4744 = vld [vmem:[#allocation2 + $0x12] sm:$0xff]
  %v4745 = vld [vmem:[#allocation2 + $0x1a] sm:$0xff]
  %v4746 = vld [vmem:[#allocation2 + $0x22] sm:$0xff]
  %v4747 = vld [vmem:[#allocation2 + $0x2a] sm:$0xff]
  %v4748 = vld [vmem:[#allocation2 + $0x32] sm:$0xff]
  %v4749 = vld [vmem:[#allocation2 + $0x3a] sm:$0xff]
  %v4750 = vld [vmem:[#allocation2 + $0x42] sm:$0xff]
  %v4751 = vld [vmem:[#allocation2 + $0x4a] sm:$0xff]
  %v4752 = vld [vmem:[#allocation2 + $0x52] sm:$0xff]
  %v4753 = vld [vmem:[#allocation2 + $0x5a] sm:$0xff]
  %v4754 = vld [vmem:[#allocation2 + $0x62] sm:$0xff]
  %v4755 = vld [vmem:[#allocation2 + $0x6a] sm:$0xff]
  %v4756 = vld [vmem:[#allocation2 + $0x72] sm:$0xff]
  %v4757 = vld [vmem:[#allocation2 + $0x7a] sm:$0xff]
  %v4758 = vld [vmem:[#allocation2 + $0x82] sm:$0xff]
  %v4759 = vld [vmem:[#allocation2 + $0x8a] sm:$0xff]
  %v4760 = vld [vmem:[#allocation2 + $0x92] sm:$0xff]
  %v4761 = vld [vmem:[#allocation2 + $0x9a] sm:$0xff]
  %v4762 = vld [vmem:[#allocation2 + $0xa2] sm:$0xff]
  %v4763 = vld [vmem:[#allocation2 + $0xaa] sm:$0xff]
  %v4764 = vld [vmem:[#allocation2 + $0xb2] sm:$0xff]
  %v4765 = vld [vmem:[#allocation2 + $0xba] sm:$0xff]
  %v4766 = vld [vmem:[#allocation2 + $0xc2] sm:$0xff]
  %v4767 = vld [vmem:[#allocation2 + $0xca] sm:$0xff]
  %v4768 = vld [vmem:[#allocation2 + $0xb] sm:$0xff]
  %v4769 = vld [vmem:[#allocation2 + $0x13] sm:$0xff]
  %v4770 = vld [vmem:[#allocation2 + $0x1b] sm:$0xff]
  %v4771 = vld [vmem:[#allocation2 + $0x23] sm:$0xff]
  %v4772 = vld [vmem:[#allocation2 + $0x2b] sm:$0xff]
  %v4773 = vld [vmem:[#allocation2 + $0x33] sm:$0xff]
  %v4774 = vld [vmem:[#allocation2 + $0x3b] sm:$0xff]
  %v4775 = vld [vmem:[#allocation2 + $0x43] sm:$0xff]
  %v4776 = vld [vmem:[#allocation2 + $0x4b] sm:$0xff]
  %v4777 = vld [vmem:[#allocation2 + $0x53] sm:$0xff]
  %v4778 = vld [vmem:[#allocation2 + $0x5b] sm:$0xff]
  %v4779 = vld [vmem:[#allocation2 + $0x63] sm:$0xff]
  %v4780 = vld [vmem:[#allocation2 + $0x6b] sm:$0xff]
  %v4781 = vld [vmem:[#allocation2 + $0x73] sm:$0xff]
  %v4782 = vld [vmem:[#allocation2 + $0x7b] sm:$0xff]
  %v4783 = vld [vmem:[#allocation2 + $0x83] sm:$0xff]
  %v4784 = vld [vmem:[#allocation2 + $0x8b] sm:$0xff]
  %v4785 = vld [vmem:[#allocation2 + $0x93] sm:$0xff]
  %v4786 = vld [vmem:[#allocation2 + $0x9b] sm:$0xff]
  %v4787 = vld [vmem:[#allocation2 + $0xa3] sm:$0xff]
  %v4788 = vld [vmem:[#allocation2 + $0xab] sm:$0xff]
  %v4789 = vld [vmem:[#allocation2 + $0xb3] sm:$0xff]
  %v4790 = vld [vmem:[#allocation2 + $0xbb] sm:$0xff]
  %v4791 = vld [vmem:[#allocation2 + $0xc3] sm:$0xff]
  %v4792 = vld [vmem:[#allocation2 + $0xcb] sm:$0xff]
  %v4793 = vld [vmem:[#allocation2 + $0xc] sm:$0xff]
  %v4794 = vld [vmem:[#allocation2 + $0x14] sm:$0xff]
  %v4795 = vld [vmem:[#allocation2 + $0x1c] sm:$0xff]
  %v4796 = vld [vmem:[#allocation2 + $0x24] sm:$0xff]
  %v4797 = vld [vmem:[#allocation2 + $0x2c] sm:$0xff]
  %v4798 = vld [vmem:[#allocation2 + $0x34] sm:$0xff]
  %v4799 = vld [vmem:[#allocation2 + $0x3c] sm:$0xff]
  %v4800 = vld [vmem:[#allocation2 + $0x44] sm:$0xff]
  %v4801 = vld [vmem:[#allocation2 + $0x4c] sm:$0xff]
  %v4802 = vld [vmem:[#allocation2 + $0x54] sm:$0xff]
  %v4803 = vld [vmem:[#allocation2 + $0x5c] sm:$0xff]
  %v4804 = vld [vmem:[#allocation2 + $0x64] sm:$0xff]
  %v4805 = vld [vmem:[#allocation2 + $0x6c] sm:$0xff]
  %v4806 = vld [vmem:[#allocation2 + $0x74] sm:$0xff]
  %v4807 = vld [vmem:[#allocation2 + $0x7c] sm:$0xff]
  %v4808 = vld [vmem:[#allocation2 + $0x84] sm:$0xff]
  %v4809 = vld [vmem:[#allocation2 + $0x8c] sm:$0xff]
  %v4810 = vld [vmem:[#allocation2 + $0x94] sm:$0xff]
  %v4811 = vld [vmem:[#allocation2 + $0x9c] sm:$0xff]
  %v4812 = vld [vmem:[#allocation2 + $0xa4] sm:$0xff]
  %v4813 = vld [vmem:[#allocation2 + $0xac] sm:$0xff]
  %v4814 = vld [vmem:[#allocation2 + $0xb4] sm:$0xff]
  %v4815 = vld [vmem:[#allocation2 + $0xbc] sm:$0xff]
  %v4816 = vld [vmem:[#allocation2 + $0xc4] sm:$0xff]
  %v4817 = vld [vmem:[#allocation2 + $0xcc] sm:$0xff]
  %v4818 = vld [vmem:[#allocation2 + $0xd4] sm:$0xff]
  %v4819 = vld [vmem:[#allocation2 + $0x15] sm:$0xff]
  %v4820 = vld [vmem:[#allocation2 + $0x1d] sm:$0xff]
  %v4821 = vld [vmem:[#allocation2 + $0x25] sm:$0xff]
  %v4822 = vld [vmem:[#allocation2 + $0x2d] sm:$0xff]
  %v4823 = vld [vmem:[#allocation2 + $0x35] sm:$0xff]
  %v4824 = vld [vmem:[#allocation2 + $0x3d] sm:$0xff]
  %v4825 = vld [vmem:[#allocation2 + $0x45] sm:$0xff]
  %v4826 = vld [vmem:[#allocation2 + $0x4d] sm:$0xff]
  %v4827 = vld [vmem:[#allocation2 + $0x55] sm:$0xff]
  %v4828 = vld [vmem:[#allocation2 + $0x5d] sm:$0xff]
  %v4829 = vld [vmem:[#allocation2 + $0x65] sm:$0xff]
  %v4830 = vld [vmem:[#allocation2 + $0x6d] sm:$0xff]
  %v4831 = vld [vmem:[#allocation2 + $0x75] sm:$0xff]
  %v4832 = vld [vmem:[#allocation2 + $0x7d] sm:$0xff]
  %v4833 = vld [vmem:[#allocation2 + $0x85] sm:$0xff]
  %v4834 = vld [vmem:[#allocation2 + $0x8d] sm:$0xff]
  %v4835 = vld [vmem:[#allocation2 + $0x95] sm:$0xff]
  %v4836 = vld [vmem:[#allocation2 + $0x9d] sm:$0xff]
  %v4837 = vld [vmem:[#allocation2 + $0xa5] sm:$0xff]
  %v4838 = vld [vmem:[#allocation2 + $0xad] sm:$0xff]
  %v4839 = vld [vmem:[#allocation2 + $0xb5] sm:$0xff]
  %v4840 = vld [vmem:[#allocation2 + $0xbd] sm:$0xff]
  %v4841 = vld [vmem:[#allocation2 + $0xc5] sm:$0xff]
  %v4842 = vld [vmem:[#allocation2 + $0xcd] sm:$0xff]
  %v4843 = vld [vmem:[#allocation2 + $0xd5] sm:$0xff]
  %v4844 = vld [vmem:[#allocation2 + $0x16] sm:$0xff]
  %v4845 = vld [vmem:[#allocation2 + $0x1e] sm:$0xff]
  %v4846 = vld [vmem:[#allocation2 + $0x26] sm:$0xff]
  %v4847 = vld [vmem:[#allocation2 + $0x2e] sm:$0xff]
  %v4848 = vld [vmem:[#allocation2 + $0x36] sm:$0xff]
  %v4849 = vld [vmem:[#allocation2 + $0x3e] sm:$0xff]
  %v4850 = vld [vmem:[#allocation2 + $0x46] sm:$0xff]
  %v4851 = vld [vmem:[#allocation2 + $0x4e] sm:$0xff]
  %v4852 = vld [vmem:[#allocation2 + $0x56] sm:$0xff]
  %v4853 = vld [vmem:[#allocation2 + $0x5e] sm:$0xff]
  %v4854 = vld [vmem:[#allocation2 + $0x66] sm:$0xff]
  %v4855 = vld [vmem:[#allocation2 + $0x6e] sm:$0xff]
  %v4856 = vld [vmem:[#allocation2 + $0x76] sm:$0xff]
  %v4857 = vld [vmem:[#allocation2 + $0x7e] sm:$0xff]
  %v4858 = vld [vmem:[#allocation2 + $0x86] sm:$0xff]
  %v4859 = vld [vmem:[#allocation2 + $0x8e] sm:$0xff]
  %v4860 = vld [vmem:[#allocation2 + $0x96] sm:$0xff]
  %v4861 = vld [vmem:[#allocation2 + $0x9e] sm:$0xff]
  %v4862 = vld [vmem:[#allocation2 + $0xa6] sm:$0xff]
  %v4863 = vld [vmem:[#allocation2 + $0xae] sm:$0xff]
  %v4864 = vld [vmem:[#allocation2 + $0xb6] sm:$0xff]
  %v4865 = vld [vmem:[#allocation2 + $0xbe] sm:$0xff]
  %v4866 = vld [vmem:[#allocation2 + $0xc6] sm:$0xff]
  %v4867 = vld [vmem:[#allocation2 + $0xce] sm:$0xff]
  %v4868 = vld [vmem:[#allocation2 + $0xd6] sm:$0xff]
  %v4869 = vpack.c.bf16 %v4693, %v4692
  %v4870 = vpack.c.bf16 %v4718, %v4717
  %v4871 = vpack.c.bf16 %v4743, %v4742
  %v4872 = vpack.c.bf16 %v4744, %v4743
  %v4873 = vpack.c.bf16 %v4769, %v4768
  %v4874 = vpack.c.bf16 %v4794, %v4793
  %v4875 = vpack.c.bf16 %v4795, %v4794
  %v4876 = vpack.c.bf16 %v4820, %v4819
  %v4877 = vpack.c.bf16 %v4845, %v4844
  %v4878 = vpack.c.bf16 %v4695, %v4694
  %v4879 = vpack.c.bf16 %v4720, %v4719
  %v4880 = vpack.c.bf16 %v4745, %v4744
  %v4881 = vpack.c.bf16 %v4746, %v4745
  %v4882 = vpack.c.bf16 %v4771, %v4770
  %v4883 = vpack.c.bf16 %v4796, %v4795
  %v4884 = vpack.c.bf16 %v4797, %v4796
  %v4885 = vpack.c.bf16 %v4822, %v4821
  %v4886 = vpack.c.bf16 %v4847, %v4846
  %v4887 = vpack.c.bf16 %v4697, %v4696
  %v4888 = vpack.c.bf16 %v4722, %v4721
  %v4889 = vpack.c.bf16 %v4747, %v4746
  %v4890 = vpack.c.bf16 %v4748, %v4747
  %v4891 = vpack.c.bf16 %v4773, %v4772
  %v4892 = vpack.c.bf16 %v4798, %v4797
  %v4893 = vpack.c.bf16 %v4799, %v4798
  %v4894 = vpack.c.bf16 %v4824, %v4823
  %v4895 = vpack.c.bf16 %v4849, %v4848
  %v4896 = vpack.c.bf16 %v4699, %v4698
  %v4897 = vpack.c.bf16 %v4724, %v4723
  %v4898 = vpack.c.bf16 %v4749, %v4748
  %v4899 = vpack.c.bf16 %v4750, %v4749
  %v4900 = vpack.c.bf16 %v4775, %v4774
  %v4901 = vpack.c.bf16 %v4800, %v4799
  %v4902 = vpack.c.bf16 %v4801, %v4800
  %v4903 = vpack.c.bf16 %v4826, %v4825
  %v4904 = vpack.c.bf16 %v4851, %v4850
  %v4905 = vpack.c.bf16 %v4701, %v4700
  %v4906 = vpack.c.bf16 %v4726, %v4725
  %v4907 = vpack.c.bf16 %v4751, %v4750
  %v4908 = vpack.c.bf16 %v4752, %v4751
  %v4909 = vpack.c.bf16 %v4777, %v4776
  %v4910 = vpack.c.bf16 %v4802, %v4801
  %v4911 = vpack.c.bf16 %v4803, %v4802
  %v4912 = vpack.c.bf16 %v4828, %v4827
  %v4913 = vpack.c.bf16 %v4853, %v4852
  %v4914 = vpack.c.bf16 %v4703, %v4702
  %v4915 = vpack.c.bf16 %v4728, %v4727
  %v4916 = vpack.c.bf16 %v4753, %v4752
  %v4917 = vpack.c.bf16 %v4754, %v4753
  %v4918 = vpack.c.bf16 %v4779, %v4778
  %v4919 = vpack.c.bf16 %v4804, %v4803
  %v4920 = vpack.c.bf16 %v4805, %v4804
  %v4921 = vpack.c.bf16 %v4830, %v4829
  %v4922 = vpack.c.bf16 %v4855, %v4854
  %v4923 = vpack.c.bf16 %v4705, %v4704
  %v4924 = vpack.c.bf16 %v4730, %v4729
  %v4925 = vpack.c.bf16 %v4755, %v4754
  %v4926 = vpack.c.bf16 %v4756, %v4755
  %v4927 = vpack.c.bf16 %v4781, %v4780
  %v4928 = vpack.c.bf16 %v4806, %v4805
  %v4929 = vpack.c.bf16 %v4807, %v4806
  %v4930 = vpack.c.bf16 %v4832, %v4831
  %v4931 = vpack.c.bf16 %v4857, %v4856
  %v4932 = vpack.c.bf16 %v4707, %v4706
  %v4933 = vpack.c.bf16 %v4732, %v4731
  %v4934 = vpack.c.bf16 %v4757, %v4756
  %v4935 = vpack.c.bf16 %v4758, %v4757
  %v4936 = vpack.c.bf16 %v4783, %v4782
  %v4937 = vpack.c.bf16 %v4808, %v4807
  %v4938 = vpack.c.bf16 %v4809, %v4808
  %v4939 = vpack.c.bf16 %v4834, %v4833
  %v4940 = vpack.c.bf16 %v4859, %v4858
  %v4941 = vpack.c.bf16 %v4709, %v4708
  %v4942 = vpack.c.bf16 %v4734, %v4733
  %v4943 = vpack.c.bf16 %v4759, %v4758
  %v4944 = vpack.c.bf16 %v4760, %v4759
  %v4945 = vpack.c.bf16 %v4785, %v4784
  %v4946 = vpack.c.bf16 %v4810, %v4809
  %v4947 = vpack.c.bf16 %v4811, %v4810
  %v4948 = vpack.c.bf16 %v4836, %v4835
  %v4949 = vpack.c.bf16 %v4861, %v4860
  %v4950 = vpack.c.bf16 %v4711, %v4710
  %v4951 = vpack.c.bf16 %v4736, %v4735
  %v4952 = vpack.c.bf16 %v4761, %v4760
  %v4953 = vpack.c.bf16 %v4762, %v4761
  %v4954 = vpack.c.bf16 %v4787, %v4786
  %v4955 = vpack.c.bf16 %v4812, %v4811
  %v4956 = vpack.c.bf16 %v4813, %v4812
  %v4957 = vpack.c.bf16 %v4838, %v4837
  %v4958 = vpack.c.bf16 %v4863, %v4862
  %v4959 = vpack.c.bf16 %v4713, %v4712
  %v4960 = vpack.c.bf16 %v4738, %v4737
  %v4961 = vpack.c.bf16 %v4763, %v4762
  %v4962 = vpack.c.bf16 %v4764, %v4763
  %v4963 = vpack.c.bf16 %v4789, %v4788
  %v4964 = vpack.c.bf16 %v4814, %v4813
  %v4965 = vpack.c.bf16 %v4815, %v4814
  %v4966 = vpack.c.bf16 %v4840, %v4839
  %v4967 = vpack.c.bf16 %v4865, %v4864
  %v4968 = vpack.c.bf16 %v4715, %v4714
  %v4969 = vpack.c.bf16 %v4740, %v4739
  %v4970 = vpack.c.bf16 %v4765, %v4764
  %v4971 = vpack.c.bf16 %v4766, %v4765
  %v4972 = vpack.c.bf16 %v4791, %v4790
  %v4973 = vpack.c.bf16 %v4816, %v4815
  %v4974 = vpack.c.bf16 %v4817, %v4816
  %v4975 = vpack.c.bf16 %v4842, %v4841
  %v4976 = vpack.c.bf16 %v4867, %v4866
  %v4977 = vpack.c.bf16 %v4716, %v4716
  %v4978 = vpack.c.bf16 %v4741, %v4741
  %v4979 = vpack.c.bf16 %v4766, %v4766
  %v4980 = vpack.c.bf16 %v4767, %v4767
  %v4981 = vpack.c.bf16 %v4792, %v4792
  %v4982 = vpack.c.bf16 %v4817, %v4817
  %v4983 = vpack.c.bf16 %v4818, %v4818
  %v4984 = vpack.c.bf16 %v4843, %v4843
  %v4985 = vpack.c.bf16 %v4868, %v4868
  %v4986 = vld [vmem:[%s2] sm:$0xf]
  %v4987 = vld [vmem:[%s2 + $0x4] sm:$0xf]
  %v4988 = vld [vmem:[%s2 + $0x8] sm:$0xf]
  %v4989 = vld [vmem:[%s2 + $0xc] sm:$0xf]
  %v4990 = vld [vmem:[%s2 + $0x10] sm:$0xf]
  %v4991 = vld [vmem:[%s2 + $0x14] sm:$0xf]
  %v4992 = vld [vmem:[%s2 + $0x18] sm:$0xf]
  %v4993 = vld [vmem:[%s2 + $0x1c] sm:$0xf]
  %v4994 = vld [vmem:[%s2 + $0x20] sm:$0xf]
  %v4995 = vld [vmem:[%s2 + $0x24] sm:$0xf]
  %v4996 = vld [vmem:[%s2 + $0x28] sm:$0xf]
  %v4997 = vld [vmem:[%s2 + $0x2c] sm:$0xf]
  %v4998 = vld [vmem:[%s2 + $0x30] sm:$0xf]
  %v4999 = vld [vmem:[%s2 + $0x34] sm:$0xf]
  %v5000 = vld [vmem:[%s2 + $0x38] sm:$0xf]
  %v5001 = vld [vmem:[%s2 + $0x3c] sm:$0xf]
  %v5002 = vld [vmem:[%s2 + $0x40] sm:$0xf]
  %v5003 = vld [vmem:[%s2 + $0x44] sm:$0xf]
  %v5004 = vld [vmem:[%s2 + $0x48] sm:$0xf]
  %v5005 = vld [vmem:[%s2 + $0x4c] sm:$0xf]
  %v5006 = vld [vmem:[%s2 + $0x50] sm:$0xf]
  %v5007 = vld [vmem:[%s2 + $0x54] sm:$0xf]
  %v5008 = vld [vmem:[%s2 + $0x58] sm:$0xf]
  %v5009 = vld [vmem:[%s2 + $0x5c] sm:$0xf]
  %v5010 = vld [vmem:[%s2 + $0x60] sm:$0xf]
  %v5011 = vld [vmem:[%s2 + $0x64] sm:$0xf]
  %v5012 = vld [vmem:[%s2 + $0x68] sm:$0xf]
  %v5013 = vld [vmem:[%s2 + $0x6c] sm:$0xf]
  %v5014 = vld [vmem:[%s2 + $0x70] sm:$0xf]
  %v5015 = vld [vmem:[%s2 + $0x74] sm:$0xf]
  %v5016 = vld [vmem:[%s2 + $0x78] sm:$0xf]
  %v5017 = vld [vmem:[%s2 + $0x7c] sm:$0xf]
  %v5018 = vld [vmem:[%s2 + $0x80] sm:$0xf]
  %v5019 = vld [vmem:[%s2 + $0x84] sm:$0xf]
  %v5020 = vld [vmem:[%s2 + $0x88] sm:$0xf]
  %v5021 = vld [vmem:[%s2 + $0x8c] sm:$0xf]
  %v5022 = vld [vmem:[%s2 + $0x90] sm:$0xf]
  %v5023 = vld [vmem:[%s2 + $0x94] sm:$0xf]
  %v5024 = vld [vmem:[%s2 + $0x98] sm:$0xf]
  %v5025 = vld [vmem:[%s2 + $0x9c] sm:$0xf]
  %v5026 = vld [vmem:[%s2 + $0xa0] sm:$0xf]
  %v5027 = vld [vmem:[%s2 + $0xa4] sm:$0xf]
  %v5028 = vld [vmem:[%s2 + $0xa8] sm:$0xf]
  %v5029 = vld [vmem:[%s2 + $0xac] sm:$0xf]
  %v5030 = vld [vmem:[%s2 + $0xb0] sm:$0xf]
  %v5031 = vld [vmem:[%s2 + $0xb4] sm:$0xf]
  %v5032 = vld [vmem:[%s2 + $0xb8] sm:$0xf]
  %v5033 = vld [vmem:[%s2 + $0xbc] sm:$0xf]
  %v5034 = vld [vmem:[%s2 + $0xc0] sm:$0xf]
  %v5035 = vld [vmem:[%s2 + $0xc4] sm:$0xf]
  %v5036 = vld [vmem:[%s2 + $0xc8] sm:$0xf]
  %v5037 = vld [vmem:[%s2 + $0xcc] sm:$0xf]
  %v5038 = vld [vmem:[%s2 + $0xd0] sm:$0xf]
  %v5039 = vld [vmem:[%s2 + $0xd4] sm:$0xf]
  %v5040 = vld [vmem:[%s2 + $0xd8] sm:$0xf]
  %v5041 = vld [vmem:[%s2 + $0xdc] sm:$0xf]
  %v5042 = vld [vmem:[%s2 + $0xe0] sm:$0xf]
  %v5043 = vld [vmem:[%s2 + $0xe4] sm:$0xf]
  %v5044 = vld [vmem:[%s2 + $0xe8] sm:$0xf]
  %v5045 = vld [vmem:[%s2 + $0xec] sm:$0xf]
  %v5046 = vld [vmem:[%s2 + $0xf0] sm:$0xf]
  %v5047 = vld [vmem:[%s2 + $0xf4] sm:$0xf]
  %v5048 = vld [vmem:[%s2 + $0xf8] sm:$0xf]
  %v5049 = vld [vmem:[%s2 + $0xfc] sm:$0xf]
  %v5050 = vld [vmem:[%s2 + $0x100] sm:$0xf]
  %v5051 = vld [vmem:[%s2 + $0x104] sm:$0xf]
  %v5052 = vld [vmem:[%s2 + $0x108] sm:$0xf]
  %v5053 = vld [vmem:[%s2 + $0x10c] sm:$0xf]
  %v5054 = vld [vmem:[%s2 + $0x110] sm:$0xf]
  %v5055 = vld [vmem:[%s2 + $0x114] sm:$0xf]
  %v5056 = vld [vmem:[%s2 + $0x118] sm:$0xf]
  %v5057 = vld [vmem:[%s2 + $0x11c] sm:$0xf]
  %v5058 = vld [vmem:[%s2 + $0x120] sm:$0xf]
  %v5059 = vld [vmem:[%s2 + $0x124] sm:$0xf]
  %v5060 = vld [vmem:[%s2 + $0x128] sm:$0xf]
  %v5061 = vld [vmem:[%s2 + $0x12c] sm:$0xf]
  %v5062 = vld [vmem:[%s2 + $0x130] sm:$0xf]
  %v5063 = vld [vmem:[%s2 + $0x134] sm:$0xf]
  %v5064 = vld [vmem:[%s2 + $0x138] sm:$0xf]
  %v5065 = vld [vmem:[%s2 + $0x13c] sm:$0xf]
  %v5066 = vld [vmem:[%s2 + $0x140] sm:$0xf]
  %v5067 = vld [vmem:[%s2 + $0x144] sm:$0xf]
  %v5068 = vld [vmem:[%s2 + $0x148] sm:$0xf]
  %v5069 = vld [vmem:[%s2 + $0x14c] sm:$0xf]
  %v5070 = vld [vmem:[%s2 + $0x150] sm:$0xf]
  %v5071 = vld [vmem:[%s2 + $0x154] sm:$0xf]
  %v5072 = vld [vmem:[%s2 + $0x158] sm:$0xf]
  %v5073 = vld [vmem:[%s2 + $0x15c] sm:$0xf]
  %v5074 = vld [vmem:[%s2 + $0x160] sm:$0xf]
  %v5075 = vld [vmem:[%s2 + $0x164] sm:$0xf]
  %v5076 = vld [vmem:[%s2 + $0x168] sm:$0xf]
  %v5077 = vld [vmem:[%s2 + $0x16c] sm:$0xf]
  %v5078 = vld [vmem:[%s2 + $0x170] sm:$0xf]
  %v5079 = vld [vmem:[%s2 + $0x174] sm:$0xf]
  %v5080 = vld [vmem:[%s2 + $0x178] sm:$0xf]
  %v5081 = vld [vmem:[%s2 + $0x17c] sm:$0xf]
  %v5082 = vld [vmem:[%s2 + $0x180] sm:$0xf]
  %v5083 = vld [vmem:[%s2 + $0x184] sm:$0xf]
  %v5084 = vld [vmem:[%s2 + $0x188] sm:$0xf]
  %v5085 = vld [vmem:[%s2 + $0x18c] sm:$0xf]
  %v5086 = vld [vmem:[%s2 + $0x190] sm:$0xf]
  %v5087 = vld [vmem:[%s2 + $0x194] sm:$0xf]
  %v5088 = vld [vmem:[%s2 + $0x198] sm:$0xf]
  %v5089 = vld [vmem:[%s2 + $0x19c] sm:$0xf]
  %v5090 = vld [vmem:[%s2 + $0x1a0] sm:$0xf]
  %v5091 = vld [vmem:[%s2 + $0x1a4] sm:$0xf]
  %v5092 = vld [vmem:[%s2 + $0x1a8] sm:$0xf]
  %v5093 = vld [vmem:[%s2 + $0x1ac] sm:$0xf]
  %v5094 = vld [vmem:[%s2 + $0x1b0] sm:$0xf]
  %v5095 = vld [vmem:[%s2 + $0x1b4] sm:$0xf]
  %v5096 = vld [vmem:[%s2 + $0x1b8] sm:$0xf]
  %v5097 = vld [vmem:[%s2 + $0x1bc] sm:$0xf]
  %v5098 = vld [vmem:[%s2 + $0x1c0] sm:$0xf]
  %v5099 = vld [vmem:[%s2 + $0x1c4] sm:$0xf]
  %v5100 = vld [vmem:[%s2 + $0x1c8] sm:$0xf]
  %v5101 = vld [vmem:[%s2 + $0x1cc] sm:$0xf]
  %v5102 = vld [vmem:[%s2 + $0x1d0] sm:$0xf]
  %v5103 = vld [vmem:[%s2 + $0x1d4] sm:$0xf]
  %v5104 = vld [vmem:[%s2 + $0x1d8] sm:$0xf]
  %v5105 = vld [vmem:[%s2 + $0x1dc] sm:$0xf]
  %v5106 = vld [vmem:[%s2 + $0x1e0] sm:$0xf]
  %v5107 = vld [vmem:[%s2 + $0x1e4] sm:$0xf]
  %v5108 = vld [vmem:[%s2 + $0x1e8] sm:$0xf]
  %v5109 = vld [vmem:[%s2 + $0x1ec] sm:$0xf]
  %v5110 = vld [vmem:[%s2 + $0x1f0] sm:$0xf]
  %v5111 = vld [vmem:[%s2 + $0x1f4] sm:$0xf]
  %v5112 = vld [vmem:[%s2 + $0x1f8] sm:$0xf]
  %v5113 = vld [vmem:[%s2 + $0x1fc] sm:$0xf]
  %v5114 = vld [vmem:[%s2 + $0x200] sm:$0xf]
  %v5115 = vld [vmem:[%s2 + $0x204] sm:$0xf]
  %v5116 = vld [vmem:[%s2 + $0x208] sm:$0xf]
  %v5117 = vld [vmem:[%s2 + $0x20c] sm:$0xf]
  %v5118 = vld [vmem:[%s2 + $0x210] sm:$0xf]
  %v5119 = vld [vmem:[%s2 + $0x214] sm:$0xf]
  %v5120 = vld [vmem:[%s2 + $0x218] sm:$0xf]
  %v5121 = vld [vmem:[%s2 + $0x21c] sm:$0xf]
  %v5122 = vld [vmem:[%s2 + $0x220] sm:$0xf]
  %v5123 = vld [vmem:[%s2 + $0x224] sm:$0xf]
  %v5124 = vld [vmem:[%s2 + $0x228] sm:$0xf]
  %v5125 = vld [vmem:[%s2 + $0x22c] sm:$0xf]
  %v5126 = vld [vmem:[%s2 + $0x230] sm:$0xf]
  %v5127 = vld [vmem:[%s2 + $0x234] sm:$0xf]
  %v5128 = vld [vmem:[%s2 + $0x238] sm:$0xf]
  %v5129 = vld [vmem:[%s2 + $0x23c] sm:$0xf]
  %v5130 = vld [vmem:[%s6] sm:$0x1]
  %v5132 = vlaneseq
  %v5133 = vshrl.u32 %v5132, 7
  %v5134 = vsub.s32 0, %v5133
  %v5135 = vrot.slane %v5130, %v5134
  %v5281 = vunpack.c.l.b16 %v4986
  %v5282 = vunpack.c.l.b16 %v4987
  %v5283 = vunpack.c.l.b16 %v4988
  %v5284 = vunpack.c.l.b16 %v4989
  %v5285 = vunpack.c.l.b16 %v4990
  %v5286 = vunpack.c.l.b16 %v4991
  %v5287 = vunpack.c.l.b16 %v4992
  %v5288 = vunpack.c.l.b16 %v4993
  %v5289 = vunpack.c.l.b16 %v4994
  %v5290 = vunpack.c.l.b16 %v4995
  %v5291 = vunpack.c.l.b16 %v4996
  %v5292 = vunpack.c.l.b16 %v4997
  %v5293 = vunpack.c.l.b16 %v4998
  %v5294 = vunpack.c.l.b16 %v4999
  %v5295 = vunpack.c.l.b16 %v5000
  %v5296 = vunpack.c.l.b16 %v5001
  %v5297 = vunpack.c.l.b16 %v5002
  %v5298 = vunpack.c.l.b16 %v5003
  %v5299 = vunpack.c.l.b16 %v5004
  %v5300 = vunpack.c.l.b16 %v5005
  %v5301 = vunpack.c.l.b16 %v5006
  %v5302 = vunpack.c.l.b16 %v5007
  %v5303 = vunpack.c.l.b16 %v5008
  %v5304 = vunpack.c.l.b16 %v5009
  %v5305 = vunpack.c.l.b16 %v5010
  %v5306 = vunpack.c.l.b16 %v5011
  %v5307 = vunpack.c.l.b16 %v5012
  %v5308 = vunpack.c.l.b16 %v5013
  %v5309 = vunpack.c.l.b16 %v5014
  %v5310 = vunpack.c.l.b16 %v5015
  %v5311 = vunpack.c.l.b16 %v5016
  %v5312 = vunpack.c.l.b16 %v5017
  %v5313 = vunpack.c.l.b16 %v5018
  %v5314 = vunpack.c.l.b16 %v5019
  %v5315 = vunpack.c.l.b16 %v5020
  %v5316 = vunpack.c.l.b16 %v5021
  %v5317 = vunpack.c.l.b16 %v5022
  %v5318 = vunpack.c.l.b16 %v5023
  %v5319 = vunpack.c.l.b16 %v5024
  %v5320 = vunpack.c.l.b16 %v5025
  %v5321 = vunpack.c.l.b16 %v5026
  %v5322 = vunpack.c.l.b16 %v5027
  %v5323 = vunpack.c.l.b16 %v5028
  %v5324 = vunpack.c.l.b16 %v5029
  %v5325 = vunpack.c.l.b16 %v5030
  %v5326 = vunpack.c.l.b16 %v5031
  %v5327 = vunpack.c.l.b16 %v5032
  %v5328 = vunpack.c.l.b16 %v5033
  %v5329 = vunpack.c.l.b16 %v5034
  %v5330 = vunpack.c.l.b16 %v5035
  %v5331 = vunpack.c.l.b16 %v5036
  %v5332 = vunpack.c.l.b16 %v5037
  %v5333 = vunpack.c.l.b16 %v5038
  %v5334 = vunpack.c.l.b16 %v5039
  %v5335 = vunpack.c.l.b16 %v5040
  %v5336 = vunpack.c.l.b16 %v5041
  %v5337 = vunpack.c.l.b16 %v5042
  %v5338 = vunpack.c.l.b16 %v5043
  %v5339 = vunpack.c.l.b16 %v5044
  %v5340 = vunpack.c.l.b16 %v5045
  %v5341 = vunpack.c.l.b16 %v5046
  %v5342 = vunpack.c.l.b16 %v5047
  %v5343 = vunpack.c.l.b16 %v5048
  %v5344 = vunpack.c.l.b16 %v5049
  %v5345 = vunpack.c.l.b16 %v5050
  %v5346 = vunpack.c.l.b16 %v5051
  %v5347 = vunpack.c.l.b16 %v5052
  %v5348 = vunpack.c.l.b16 %v5053
  %v5349 = vunpack.c.l.b16 %v5054
  %v5350 = vunpack.c.l.b16 %v5055
  %v5351 = vunpack.c.l.b16 %v5056
  %v5352 = vunpack.c.l.b16 %v5057
  %v5353 = vunpack.c.l.b16 %v5058
  %v5354 = vunpack.c.l.b16 %v5059
  %v5355 = vunpack.c.l.b16 %v5060
  %v5356 = vunpack.c.l.b16 %v5061
  %v5357 = vunpack.c.l.b16 %v5062
  %v5358 = vunpack.c.l.b16 %v5063
  %v5359 = vunpack.c.l.b16 %v5064
  %v5360 = vunpack.c.l.b16 %v5065
  %v5361 = vunpack.c.l.b16 %v5066
  %v5362 = vunpack.c.l.b16 %v5067
  %v5363 = vunpack.c.l.b16 %v5068
  %v5364 = vunpack.c.l.b16 %v5069
  %v5365 = vunpack.c.l.b16 %v5070
  %v5366 = vunpack.c.l.b16 %v5071
  %v5367 = vunpack.c.l.b16 %v5072
  %v5368 = vunpack.c.l.b16 %v5073
  %v5369 = vunpack.c.l.b16 %v5074
  %v5370 = vunpack.c.l.b16 %v5075
  %v5371 = vunpack.c.l.b16 %v5076
  %v5372 = vunpack.c.l.b16 %v5077
  %v5373 = vunpack.c.l.b16 %v5078
  %v5374 = vunpack.c.l.b16 %v5079
  %v5375 = vunpack.c.l.b16 %v5080
  %v5376 = vunpack.c.l.b16 %v5081
  %v5377 = vunpack.c.l.b16 %v5082
  %v5378 = vunpack.c.l.b16 %v5083
  %v5379 = vunpack.c.l.b16 %v5084
  %v5380 = vunpack.c.l.b16 %v5085
  %v5381 = vunpack.c.l.b16 %v5086
  %v5382 = vunpack.c.l.b16 %v5087
  %v5383 = vunpack.c.l.b16 %v5088
  %v5384 = vunpack.c.l.b16 %v5089
  %v5385 = vunpack.c.l.b16 %v5090
  %v5386 = vunpack.c.l.b16 %v5091
  %v5387 = vunpack.c.l.b16 %v5092
  %v5388 = vunpack.c.l.b16 %v5093
  %v5389 = vunpack.c.l.b16 %v5094
  %v5390 = vunpack.c.l.b16 %v5095
  %v5391 = vunpack.c.l.b16 %v5096
  %v5392 = vunpack.c.l.b16 %v5097
  %v5393 = vunpack.c.l.b16 %v5098
  %v5394 = vunpack.c.l.b16 %v5099
  %v5395 = vunpack.c.l.b16 %v5100
  %v5396 = vunpack.c.l.b16 %v5101
  %v5397 = vunpack.c.l.b16 %v5102
  %v5398 = vunpack.c.l.b16 %v5103
  %v5399 = vunpack.c.l.b16 %v5104
  %v5400 = vunpack.c.l.b16 %v5105
  %v5401 = vunpack.c.l.b16 %v5106
  %v5402 = vunpack.c.l.b16 %v5107
  %v5403 = vunpack.c.l.b16 %v5108
  %v5404 = vunpack.c.l.b16 %v5109
  %v5405 = vunpack.c.l.b16 %v5110
  %v5406 = vunpack.c.l.b16 %v5111
  %v5407 = vunpack.c.l.b16 %v5112
  %v5408 = vunpack.c.l.b16 %v5113
  %v5409 = vunpack.c.l.b16 %v5114
  %v5410 = vunpack.c.l.b16 %v5115
  %v5411 = vunpack.c.l.b16 %v5116
  %v5412 = vunpack.c.l.b16 %v5117
  %v5413 = vunpack.c.l.b16 %v5118
  %v5414 = vunpack.c.l.b16 %v5119
  %v5415 = vunpack.c.l.b16 %v5120
  %v5416 = vunpack.c.l.b16 %v5121
  %v5417 = vunpack.c.l.b16 %v5122
  %v5418 = vunpack.c.l.b16 %v5123
  %v5419 = vunpack.c.l.b16 %v5124
  %v5420 = vunpack.c.l.b16 %v5125
  %v5421 = vunpack.c.l.b16 %v5126
  %v5422 = vunpack.c.l.b16 %v5127
  %v5423 = vunpack.c.l.b16 %v5128
  %v5424 = vunpack.c.l.b16 %v5129
  %v5425 = vpack.c.b16 %v5282, %v5281
  %v5426 = vpack.c.b16 %v5284, %v5283
  %v5427 = vpack.c.b16 %v5286, %v5285
  %v5428 = vpack.c.b16 %v5288, %v5287
  %v5429 = vpack.c.b16 %v5290, %v5289
  %v5430 = vpack.c.b16 %v5292, %v5291
  %v5431 = vpack.c.b16 %v5294, %v5293
  %v5432 = vpack.c.b16 %v5296, %v5295
  %v5433 = vpack.c.b16 %v5298, %v5297
  %v5434 = vpack.c.b16 %v5300, %v5299
  %v5435 = vpack.c.b16 %v5302, %v5301
  %v5436 = vpack.c.b16 %v5304, %v5303
  %v5437 = vpack.c.b16 %v5306, %v5305
  %v5438 = vpack.c.b16 %v5308, %v5307
  %v5439 = vpack.c.b16 %v5310, %v5309
  %v5440 = vpack.c.b16 %v5312, %v5311
  %v5441 = vpack.c.b16 %v5314, %v5313
  %v5442 = vpack.c.b16 %v5316, %v5315
  %v5443 = vpack.c.b16 %v5318, %v5317
  %v5444 = vpack.c.b16 %v5320, %v5319
  %v5445 = vpack.c.b16 %v5322, %v5321
  %v5446 = vpack.c.b16 %v5324, %v5323
  %v5447 = vpack.c.b16 %v5326, %v5325
  %v5448 = vpack.c.b16 %v5328, %v5327
  %v5449 = vpack.c.b16 %v5330, %v5329
  %v5450 = vpack.c.b16 %v5332, %v5331
  %v5451 = vpack.c.b16 %v5334, %v5333
  %v5452 = vpack.c.b16 %v5336, %v5335
  %v5453 = vpack.c.b16 %v5338, %v5337
  %v5454 = vpack.c.b16 %v5340, %v5339
  %v5455 = vpack.c.b16 %v5342, %v5341
  %v5456 = vpack.c.b16 %v5344, %v5343
  %v5457 = vpack.c.b16 %v5346, %v5345
  %v5458 = vpack.c.b16 %v5348, %v5347
  %v5459 = vpack.c.b16 %v5350, %v5349
  %v5460 = vpack.c.b16 %v5352, %v5351
  %v5461 = vpack.c.b16 %v5354, %v5353
  %v5462 = vpack.c.b16 %v5356, %v5355
  %v5463 = vpack.c.b16 %v5358, %v5357
  %v5464 = vpack.c.b16 %v5360, %v5359
  %v5465 = vpack.c.b16 %v5362, %v5361
  %v5466 = vpack.c.b16 %v5364, %v5363
  %v5467 = vpack.c.b16 %v5366, %v5365
  %v5468 = vpack.c.b16 %v5368, %v5367
  %v5469 = vpack.c.b16 %v5370, %v5369
  %v5470 = vpack.c.b16 %v5372, %v5371
  %v5471 = vpack.c.b16 %v5374, %v5373
  %v5472 = vpack.c.b16 %v5376, %v5375
  %v5473 = vpack.c.b16 %v5378, %v5377
  %v5474 = vpack.c.b16 %v5380, %v5379
  %v5475 = vpack.c.b16 %v5382, %v5381
  %v5476 = vpack.c.b16 %v5384, %v5383
  %v5477 = vpack.c.b16 %v5386, %v5385
  %v5478 = vpack.c.b16 %v5388, %v5387
  %v5479 = vpack.c.b16 %v5390, %v5389
  %v5480 = vpack.c.b16 %v5392, %v5391
  %v5481 = vpack.c.b16 %v5394, %v5393
  %v5482 = vpack.c.b16 %v5396, %v5395
  %v5483 = vpack.c.b16 %v5398, %v5397
  %v5484 = vpack.c.b16 %v5400, %v5399
  %v5485 = vpack.c.b16 %v5402, %v5401
  %v5486 = vpack.c.b16 %v5404, %v5403
  %v5487 = vpack.c.b16 %v5406, %v5405
  %v5488 = vpack.c.b16 %v5408, %v5407
  %v5489 = vpack.c.b16 %v5410, %v5409
  %v5490 = vpack.c.b16 %v5412, %v5411
  %v5491 = vpack.c.b16 %v5414, %v5413
  %v5492 = vpack.c.b16 %v5416, %v5415
  %v5493 = vpack.c.b16 %v5418, %v5417
  %v5494 = vpack.c.b16 %v5420, %v5419
  %v5495 = vpack.c.b16 %v5422, %v5421
  %v5496 = vpack.c.b16 %v5424, %v5423
  %5569 = vmatprep.subr.bf16.mxu0 0
  %5570 = vmatpush1.bf16.msra.mxu0 %v5425
  %5571 = vmatprep.subr.bf16.mxu0 0
  %5572 = vmatpush1.bf16.msra.mxu0 %v5426
  %5573 = vmatprep.subr.bf16.mxu0 0
  %5574 = vmatpush1.bf16.msra.mxu0 %v5427
  %5575 = vmatprep.subr.bf16.mxu0 0
  %5576 = vmatpush1.bf16.msra.mxu0 %v5428
  %5577 = vmatprep.subr.bf16.mxu0 0
  %5578 = vmatpush1.bf16.msra.mxu0 %v5429
  %5579 = vmatprep.subr.bf16.mxu0 0
  %5580 = vmatpush1.bf16.msra.mxu0 %v5430
  %5581 = vmatprep.subr.bf16.mxu0 0
  %5582 = vmatpush1.bf16.msra.mxu0 %v5431
  %5583 = vmatprep.subr.bf16.mxu0 0
  %5584 = vmatpush1.bf16.msra.mxu0 %v5432
  %5585 = vmatprep.subr.bf16.mxu0 0
  %5586 = vmatpush1.bf16.msra.mxu0 %v5433
  %5587 = vmatprep.subr.bf16.mxu0 0
  %5588 = vmatpush1.bf16.msra.mxu0 %v5434
  %5589 = vmatprep.subr.bf16.mxu0 0
  %5590 = vmatpush1.bf16.msra.mxu0 %v5435
  %5591 = vmatprep.subr.bf16.mxu0 0
  %5592 = vmatpush1.bf16.msra.mxu0 %v5436
  %5593 = vmatprep.subr.bf16.mxu0 0
  %5594 = vmatpush1.bf16.msra.mxu0 %v5437
  %5595 = vmatprep.subr.bf16.mxu0 0
  %5596 = vmatpush1.bf16.msra.mxu0 %v5438
  %5597 = vmatprep.subr.bf16.mxu0 0
  %5598 = vmatpush1.bf16.msra.mxu0 %v5439
  %5599 = vmatprep.subr.bf16.mxu0 0
  %5600 = vmatpush1.bf16.msra.mxu0 %v5440
  %5601 = vmatprep.mubr.bf16.mxu0 %v4870
  %5602 = vmatmul.mubr.bf16.gmra.mrb[0].mxu0 %v4869
  %v5603 = vpop.f32.mrb[0].mxu0
  %v5604 = vadd.f32 %v5135, %v5603
  %v5605 = vpop.f32.mrb[0].mxu0
  %v5606 = vpop.f32.mrb[0].mxu0
  %v5607 = vadd.f32 %v5135, %v5606
  %v5608 = vpop.f32.mrb[0].mxu0
  %5609 = vmatprep.mubr.bf16.mxu0 %v4879
  %5610 = vmatmul.mubr.bf16.gmra.mrb[0].mxu0 %v4878
  %v5611 = vpop.f32.mrb[0].mxu0
  %v5612 = vadd.f32 %v5135, %v5611
  %v5613 = vpop.f32.mrb[0].mxu0
  %v5614 = vpop.f32.mrb[0].mxu0
  %v5615 = vadd.f32 %v5135, %v5614
  %v5616 = vpop.f32.mrb[0].mxu0
  %5617 = vmatprep.mubr.bf16.mxu0 %v4888
  %5618 = vmatmul.mubr.bf16.gmra.mrb[0].mxu0 %v4887
  %v5619 = vpop.f32.mrb[0].mxu0
  %v5620 = vadd.f32 %v5135, %v5619
  %v5621 = vpop.f32.mrb[0].mxu0
  %v5622 = vpop.f32.mrb[0].mxu0
  %v5623 = vadd.f32 %v5135, %v5622
  %v5624 = vpop.f32.mrb[0].mxu0
  %5625 = vmatprep.mubr.bf16.mxu0 %v4897
  %5626 = vmatmul.mubr.bf16.gmra.mrb[0].mxu0 %v4896
  %v5627 = vpop.f32.mrb[0].mxu0
  %v5628 = vadd.f32 %v5135, %v5627
  %v5629 = vpop.f32.mrb[0].mxu0
  %v5630 = vpop.f32.mrb[0].mxu0
  %v5631 = vadd.f32 %v5135, %v5630
  %v5632 = vpop.f32.mrb[0].mxu0
  %5633 = vmatprep.mubr.bf16.mxu0 %v4906
  %5634 = vmatmul.mubr.bf16.gmra.mrb[0].mxu0 %v4905
  %v5635 = vpop.f32.mrb[0].mxu0
  %v5636 = vadd.f32 %v5135, %v5635
  %v5637 = vpop.f32.mrb[0].mxu0
  %v5638 = vpop.f32.mrb[0].mxu0
  %v5639 = vadd.f32 %v5135, %v5638
  %v5640 = vpop.f32.mrb[0].mxu0
  %5641 = vmatprep.mubr.bf16.mxu0 %v4915
  %5642 = vmatmul.mubr.bf16.gmra.mrb[0].mxu0 %v4914
  %v5643 = vpop.f32.mrb[0].mxu0
  %v5644 = vadd.f32 %v5135, %v5643
  %v5645 = vpop.f32.mrb[0].mxu0
  %v5646 = vpop.f32.mrb[0].mxu0
  %v5647 = vadd.f32 %v5135, %v5646
  %v5648 = vpop.f32.mrb[0].mxu0
  %5649 = vmatprep.mubr.bf16.mxu0 %v4924
  %5650 = vmatmul.mubr.bf16.gmra.mrb[0].mxu0 %v4923
  %v5651 = vpop.f32.mrb[0].mxu0
  %v5652 = vadd.f32 %v5135, %v5651
  %v5653 = vpop.f32.mrb[0].mxu0
  %v5654 = vpop.f32.mrb[0].mxu0
  %v5655 = vadd.f32 %v5135, %v5654
  %v5656 = vpop.f32.mrb[0].mxu0
  %5657 = vmatprep.mubr.bf16.mxu0 %v4933
  %5658 = vmatmul.mubr.bf16.gmra.mrb[0].mxu0 %v4932
  %v5659 = vpop.f32.mrb[0].mxu0
  %v5660 = vadd.f32 %v5135, %v5659
  %v5661 = vpop.f32.mrb[0].mxu0
  %v5662 = vpop.f32.mrb[0].mxu0
  %v5663 = vadd.f32 %v5135, %v5662
  %v5664 = vpop.f32.mrb[0].mxu0
  %5665 = vmatprep.mubr.bf16.mxu0 %v4942
  %5666 = vmatmul.mubr.bf16.gmra.mrb[0].mxu0 %v4941
  %v5667 = vpop.f32.mrb[0].mxu0
  %v5668 = vadd.f32 %v5135, %v5667
  %v5669 = vpop.f32.mrb[0].mxu0
  %v5670 = vpop.f32.mrb[0].mxu0
  %v5671 = vadd.f32 %v5135, %v5670
  %v5672 = vpop.f32.mrb[0].mxu0
  %5673 = vmatprep.mubr.bf16.mxu0 %v4951
  %5674 = vmatmul.mubr.bf16.gmra.mrb[0].mxu0 %v4950
  %v5675 = vpop.f32.mrb[0].mxu0
  %v5676 = vadd.f32 %v5135, %v5675
  %v5677 = vpop.f32.mrb[0].mxu0
  %v5678 = vpop.f32.mrb[0].mxu0
  %v5679 = vadd.f32 %v5135, %v5678
  %v5680 = vpop.f32.mrb[0].mxu0
  %5681 = vmatprep.mubr.bf16.mxu0 %v4960
  %5682 = vmatmul.mubr.bf16.gmra.mrb[0].mxu0 %v4959
  %v5683 = vpop.f32.mrb[0].mxu0
  %v5684 = vadd.f32 %v5135, %v5683
  %v5685 = vpop.f32.mrb[0].mxu0
  %v5686 = vpop.f32.mrb[0].mxu0
  %v5687 = vadd.f32 %v5135, %v5686
  %v5688 = vpop.f32.mrb[0].mxu0
  %5689 = vmatprep.mubr.bf16.mxu0 %v4969
  %5690 = vmatmul.mubr.bf16.gmra.mrb[0].mxu0 %v4968
  %v5691 = vpop.f32.mrb[0].mxu0
  %v5692 = vadd.f32 %v5135, %v5691
  %v5693 = vpop.f32.mrb[0].mxu0
  %v5694 = vpop.f32.mrb[0].mxu0
  %v5695 = vadd.f32 %v5135, %v5694
  %v5696 = vpop.f32.mrb[0].mxu0
  %5697 = vmatprep.mubr.bf16.mxu0 %v4978
  %5698 = vmatmul.mubr.bf16.gmra.mrb[0].mxu0 %v4977
  %v5699 = vpop.f32.mrb[0].mxu0
  %v5700 = vadd.f32 %v5135, %v5699
  %v5701 = vpop.f32.mrb[0].mxu0
  %v5702 = vpop.f32.mrb[0].mxu0
  %v5703 = vpop.f32.mrb[0].mxu0
  %5704 = vdwg.mxu0
  %5705 = vmatprep.subr.bf16.mxu0 0
  %5706 = vmatpush1.bf16.msra.mxu0 %v5441
  %5707 = vmatprep.subr.bf16.mxu0 0
  %5708 = vmatpush1.bf16.msra.mxu0 %v5442
  %5709 = vmatprep.subr.bf16.mxu0 0
  %5710 = vmatpush1.bf16.msra.mxu0 %v5443
  %5711 = vmatprep.subr.bf16.mxu0 0
  %5712 = vmatpush1.bf16.msra.mxu0 %v5444
  %5713 = vmatprep.subr.bf16.mxu0 0
  %5714 = vmatpush1.bf16.msra.mxu0 %v5445
  %5715 = vmatprep.subr.bf16.mxu0 0
  %5716 = vmatpush1.bf16.msra.mxu0 %v5446
  %5717 = vmatprep.subr.bf16.mxu0 0
  %5718 = vmatpush1.bf16.msra.mxu0 %v5447
  %5719 = vmatprep.subr.bf16.mxu0 0
  %5720 = vmatpush1.bf16.msra.mxu0 %v5448
  %5721 = vmatprep.subr.bf16.mxu0 0
  %5722 = vmatpush1.bf16.msra.mxu0 %v5449
  %5723 = vmatprep.subr.bf16.mxu0 0
  %5724 = vmatpush1.bf16.msra.mxu0 %v5450
  %5725 = vmatprep.subr.bf16.mxu0 0
  %5726 = vmatpush1.bf16.msra.mxu0 %v5451
  %5727 = vmatprep.subr.bf16.mxu0 0
  %5728 = vmatpush1.bf16.msra.mxu0 %v5452
  %5729 = vmatprep.subr.bf16.mxu0 0
  %5730 = vmatpush1.bf16.msra.mxu0 %v5453
  %5731 = vmatprep.subr.bf16.mxu0 0
  %5732 = vmatpush1.bf16.msra.mxu0 %v5454
  %5733 = vmatprep.subr.bf16.mxu0 0
  %5734 = vmatpush1.bf16.msra.mxu0 %v5455
  %5735 = vmatprep.subr.bf16.mxu0 0
  %5736 = vmatpush1.bf16.msra.mxu0 %v5456
  %5737 = vmatprep.mubr.bf16.mxu0 %v4872
  %5738 = vmatmul.mubr.bf16.gmra.mrb[0].mxu0 %v4871
  %v5739 = vpop.f32.mrb[0].mxu0
  %v5740 = vadd.f32 %v5604, %v5739
  %v5741 = vpop.f32.mrb[0].mxu0
  %v5742 = vpop.f32.mrb[0].mxu0
  %v5743 = vadd.f32 %v5607, %v5742
  %v5744 = vpop.f32.mrb[0].mxu0
  %5745 = vmatprep.mubr.bf16.mxu0 %v4881
  %5746 = vmatmul.mubr.bf16.gmra.mrb[0].mxu0 %v4880
  %v5747 = vpop.f32.mrb[0].mxu0
  %v5748 = vadd.f32 %v5612, %v5747
  %v5749 = vpop.f32.mrb[0].mxu0
  %v5750 = vpop.f32.mrb[0].mxu0
  %v5751 = vadd.f32 %v5615, %v5750
  %v5752 = vpop.f32.mrb[0].mxu0
  %5753 = vmatprep.mubr.bf16.mxu0 %v4890
  %5754 = vmatmul.mubr.bf16.gmra.mrb[0].mxu0 %v4889
  %v5755 = vpop.f32.mrb[0].mxu0
  %v5756 = vadd.f32 %v5620, %v5755
  %v5757 = vpop.f32.mrb[0].mxu0
  %v5758 = vpop.f32.mrb[0].mxu0
  %v5759 = vadd.f32 %v5623, %v5758
  %v5760 = vpop.f32.mrb[0].mxu0
  %5761 = vmatprep.mubr.bf16.mxu0 %v4899
  %5762 = vmatmul.mubr.bf16.gmra.mrb[0].mxu0 %v4898
  %v5763 = vpop.f32.mrb[0].mxu0
  %v5764 = vadd.f32 %v5628, %v5763
  %v5765 = vpop.f32.mrb[0].mxu0
  %v5766 = vpop.f32.mrb[0].mxu0
  %v5767 = vadd.f32 %v5631, %v5766
  %v5768 = vpop.f32.mrb[0].mxu0
  %5769 = vmatprep.mubr.bf16.mxu0 %v4908
  %5770 = vmatmul.mubr.bf16.gmra.mrb[0].mxu0 %v4907
  %v5771 = vpop.f32.mrb[0].mxu0
  %v5772 = vadd.f32 %v5636, %v5771
  %v5773 = vpop.f32.mrb[0].mxu0
  %v5774 = vpop.f32.mrb[0].mxu0
  %v5775 = vadd.f32 %v5639, %v5774
  %v5776 = vpop.f32.mrb[0].mxu0
  %5777 = vmatprep.mubr.bf16.mxu0 %v4917
  %5778 = vmatmul.mubr.bf16.gmra.mrb[0].mxu0 %v4916
  %v5779 = vpop.f32.mrb[0].mxu0
  %v5780 = vadd.f32 %v5644, %v5779
  %v5781 = vpop.f32.mrb[0].mxu0
  %v5782 = vpop.f32.mrb[0].mxu0
  %v5783 = vadd.f32 %v5647, %v5782
  %v5784 = vpop.f32.mrb[0].mxu0
  %5785 = vmatprep.mubr.bf16.mxu0 %v4926
  %5786 = vmatmul.mubr.bf16.gmra.mrb[0].mxu0 %v4925
  %v5787 = vpop.f32.mrb[0].mxu0
  %v5788 = vadd.f32 %v5652, %v5787
  %v5789 = vpop.f32.mrb[0].mxu0
  %v5790 = vpop.f32.mrb[0].mxu0
  %v5791 = vadd.f32 %v5655, %v5790
  %v5792 = vpop.f32.mrb[0].mxu0
  %5793 = vmatprep.mubr.bf16.mxu0 %v4935
  %5794 = vmatmul.mubr.bf16.gmra.mrb[0].mxu0 %v4934
  %v5795 = vpop.f32.mrb[0].mxu0
  %v5796 = vadd.f32 %v5660, %v5795
  %v5797 = vpop.f32.mrb[0].mxu0
  %v5798 = vpop.f32.mrb[0].mxu0
  %v5799 = vadd.f32 %v5663, %v5798
  %v5800 = vpop.f32.mrb[0].mxu0
  %5801 = vmatprep.mubr.bf16.mxu0 %v4944
  %5802 = vmatmul.mubr.bf16.gmra.mrb[0].mxu0 %v4943
  %v5803 = vpop.f32.mrb[0].mxu0
  %v5804 = vadd.f32 %v5668, %v5803
  %v5805 = vpop.f32.mrb[0].mxu0
  %v5806 = vpop.f32.mrb[0].mxu0
  %v5807 = vadd.f32 %v5671, %v5806
  %v5808 = vpop.f32.mrb[0].mxu0
  %5809 = vmatprep.mubr.bf16.mxu0 %v4953
  %5810 = vmatmul.mubr.bf16.gmra.mrb[0].mxu0 %v4952
  %v5811 = vpop.f32.mrb[0].mxu0
  %v5812 = vadd.f32 %v5676, %v5811
  %v5813 = vpop.f32.mrb[0].mxu0
  %v5814 = vpop.f32.mrb[0].mxu0
  %v5815 = vadd.f32 %v5679, %v5814
  %v5816 = vpop.f32.mrb[0].mxu0
  %5817 = vmatprep.mubr.bf16.mxu0 %v4962
  %5818 = vmatmul.mubr.bf16.gmra.mrb[0].mxu0 %v4961
  %v5819 = vpop.f32.mrb[0].mxu0
  %v5820 = vadd.f32 %v5684, %v5819
  %v5821 = vpop.f32.mrb[0].mxu0
  %v5822 = vpop.f32.mrb[0].mxu0
  %v5823 = vadd.f32 %v5687, %v5822
  %v5824 = vpop.f32.mrb[0].mxu0
  %5825 = vmatprep.mubr.bf16.mxu0 %v4971
  %5826 = vmatmul.mubr.bf16.gmra.mrb[0].mxu0 %v4970
  %v5827 = vpop.f32.mrb[0].mxu0
  %v5828 = vadd.f32 %v5692, %v5827
  %v5829 = vpop.f32.mrb[0].mxu0
  %v5830 = vpop.f32.mrb[0].mxu0
  %v5831 = vadd.f32 %v5695, %v5830
  %v5832 = vpop.f32.mrb[0].mxu0
  %5833 = vmatprep.mubr.bf16.mxu0 %v4980
  %5834 = vmatmul.mubr.bf16.gmra.mrb[0].mxu0 %v4979
  %v5835 = vpop.f32.mrb[0].mxu0
  %v5836 = vadd.f32 %v5700, %v5835
  %v5837 = vpop.f32.mrb[0].mxu0
  %v5838 = vpop.f32.mrb[0].mxu0
  %v5839 = vpop.f32.mrb[0].mxu0
  %5840 = vdwg.mxu0
  %5841 = vmatprep.subr.bf16.mxu0 0
  %5842 = vmatpush1.bf16.msra.mxu0 %v5457
  %5843 = vmatprep.subr.bf16.mxu0 0
  %5844 = vmatpush1.bf16.msra.mxu0 %v5458
  %5845 = vmatprep.subr.bf16.mxu0 0
  %5846 = vmatpush1.bf16.msra.mxu0 %v5459
  %5847 = vmatprep.subr.bf16.mxu0 0
  %5848 = vmatpush1.bf16.msra.mxu0 %v5460
  %5849 = vmatprep.subr.bf16.mxu0 0
  %5850 = vmatpush1.bf16.msra.mxu0 %v5461
  %5851 = vmatprep.subr.bf16.mxu0 0
  %5852 = vmatpush1.bf16.msra.mxu0 %v5462
  %5853 = vmatprep.subr.bf16.mxu0 0
  %5854 = vmatpush1.bf16.msra.mxu0 %v5463
  %5855 = vmatprep.subr.bf16.mxu0 0
  %5856 = vmatpush1.bf16.msra.mxu0 %v5464
  %5857 = vmatprep.subr.bf16.mxu0 0
  %5858 = vmatpush1.bf16.msra.mxu0 %v5465
  %5859 = vmatprep.subr.bf16.mxu0 0
  %5860 = vmatpush1.bf16.msra.mxu0 %v5466
  %5861 = vmatprep.subr.bf16.mxu0 0
  %5862 = vmatpush1.bf16.msra.mxu0 %v5467
  %5863 = vmatprep.subr.bf16.mxu0 0
  %5864 = vmatpush1.bf16.msra.mxu0 %v5468
  %5865 = vmatprep.subr.bf16.mxu0 0
  %5866 = vmatpush1.bf16.msra.mxu0 %v5469
  %5867 = vmatprep.subr.bf16.mxu0 0
  %5868 = vmatpush1.bf16.msra.mxu0 %v5470
  %5869 = vmatprep.subr.bf16.mxu0 0
  %5870 = vmatpush1.bf16.msra.mxu0 %v5471
  %5871 = vmatprep.subr.bf16.mxu0 0
  %5872 = vmatpush1.bf16.msra.mxu0 %v5472
  %5873 = vmatprep.mubr.bf16.mxu0 %v4874
  %5874 = vmatmul.mubr.bf16.gmra.mrb[0].mxu0 %v4873
  %v5875 = vpop.f32.mrb[0].mxu0
  %v5876 = vadd.f32 %v5740, %v5875
  %v5877 = vpop.f32.mrb[0].mxu0
  %v5878 = vpop.f32.mrb[0].mxu0
  %v5879 = vadd.f32 %v5743, %v5878
  %v5880 = vpop.f32.mrb[0].mxu0
  %5881 = vmatprep.mubr.bf16.mxu0 %v4883
  %5882 = vmatmul.mubr.bf16.gmra.mrb[0].mxu0 %v4882
  %v5883 = vpop.f32.mrb[0].mxu0
  %v5884 = vadd.f32 %v5748, %v5883
  %v5885 = vpop.f32.mrb[0].mxu0
  %v5886 = vpop.f32.mrb[0].mxu0
  %v5887 = vadd.f32 %v5751, %v5886
  %v5888 = vpop.f32.mrb[0].mxu0
  %5889 = vmatprep.mubr.bf16.mxu0 %v4892
  %5890 = vmatmul.mubr.bf16.gmra.mrb[0].mxu0 %v4891
  %v5891 = vpop.f32.mrb[0].mxu0
  %v5892 = vadd.f32 %v5756, %v5891
  %v5893 = vpop.f32.mrb[0].mxu0
  %v5894 = vpop.f32.mrb[0].mxu0
  %v5895 = vadd.f32 %v5759, %v5894
  %v5896 = vpop.f32.mrb[0].mxu0
  %5897 = vmatprep.mubr.bf16.mxu0 %v4901
  %5898 = vmatmul.mubr.bf16.gmra.mrb[0].mxu0 %v4900
  %v5899 = vpop.f32.mrb[0].mxu0
  %v5900 = vadd.f32 %v5764, %v5899
  %v5901 = vpop.f32.mrb[0].mxu0
  %v5902 = vpop.f32.mrb[0].mxu0
  %v5903 = vadd.f32 %v5767, %v5902
  %v5904 = vpop.f32.mrb[0].mxu0
  %5905 = vmatprep.mubr.bf16.mxu0 %v4910
  %5906 = vmatmul.mubr.bf16.gmra.mrb[0].mxu0 %v4909
  %v5907 = vpop.f32.mrb[0].mxu0
  %v5908 = vadd.f32 %v5772, %v5907
  %v5909 = vpop.f32.mrb[0].mxu0
  %v5910 = vpop.f32.mrb[0].mxu0
  %v5911 = vadd.f32 %v5775, %v5910
  %v5912 = vpop.f32.mrb[0].mxu0
  %5913 = vmatprep.mubr.bf16.mxu0 %v4919
  %5914 = vmatmul.mubr.bf16.gmra.mrb[0].mxu0 %v4918
  %v5915 = vpop.f32.mrb[0].mxu0
  %v5916 = vadd.f32 %v5780, %v5915
  %v5917 = vpop.f32.mrb[0].mxu0
  %v5918 = vpop.f32.mrb[0].mxu0
  %v5919 = vadd.f32 %v5783, %v5918
  %v5920 = vpop.f32.mrb[0].mxu0
  %5921 = vmatprep.mubr.bf16.mxu0 %v4928
  %5922 = vmatmul.mubr.bf16.gmra.mrb[0].mxu0 %v4927
  %v5923 = vpop.f32.mrb[0].mxu0
  %v5924 = vadd.f32 %v5788, %v5923
  %v5925 = vpop.f32.mrb[0].mxu0
  %v5926 = vpop.f32.mrb[0].mxu0
  %v5927 = vadd.f32 %v5791, %v5926
  %v5928 = vpop.f32.mrb[0].mxu0
  %5929 = vmatprep.mubr.bf16.mxu0 %v4937
  %5930 = vmatmul.mubr.bf16.gmra.mrb[0].mxu0 %v4936
  %v5931 = vpop.f32.mrb[0].mxu0
  %v5932 = vadd.f32 %v5796, %v5931
  %v5933 = vpop.f32.mrb[0].mxu0
  %v5934 = vpop.f32.mrb[0].mxu0
  %v5935 = vadd.f32 %v5799, %v5934
  %v5936 = vpop.f32.mrb[0].mxu0
  %5937 = vmatprep.mubr.bf16.mxu0 %v4946
  %5938 = vmatmul.mubr.bf16.gmra.mrb[0].mxu0 %v4945
  %v5939 = vpop.f32.mrb[0].mxu0
  %v5940 = vadd.f32 %v5804, %v5939
  %v5941 = vpop.f32.mrb[0].mxu0
  %v5942 = vpop.f32.mrb[0].mxu0
  %v5943 = vadd.f32 %v5807, %v5942
  %v5944 = vpop.f32.mrb[0].mxu0
  %5945 = vmatprep.mubr.bf16.mxu0 %v4955
  %5946 = vmatmul.mubr.bf16.gmra.mrb[0].mxu0 %v4954
  %v5947 = vpop.f32.mrb[0].mxu0
  %v5948 = vadd.f32 %v5812, %v5947
  %v5949 = vpop.f32.mrb[0].mxu0
  %v5950 = vpop.f32.mrb[0].mxu0
  %v5951 = vadd.f32 %v5815, %v5950
  %v5952 = vpop.f32.mrb[0].mxu0
  %5953 = vmatprep.mubr.bf16.mxu0 %v4964
  %5954 = vmatmul.mubr.bf16.gmra.mrb[0].mxu0 %v4963
  %v5955 = vpop.f32.mrb[0].mxu0
  %v5956 = vadd.f32 %v5820, %v5955
  %v5957 = vpop.f32.mrb[0].mxu0
  %v5958 = vpop.f32.mrb[0].mxu0
  %v5959 = vadd.f32 %v5823, %v5958
  %v5960 = vpop.f32.mrb[0].mxu0
  %5961 = vmatprep.mubr.bf16.mxu0 %v4973
  %5962 = vmatmul.mubr.bf16.gmra.mrb[0].mxu0 %v4972
  %v5963 = vpop.f32.mrb[0].mxu0
  %v5964 = vadd.f32 %v5828, %v5963
  %v5965 = vpop.f32.mrb[0].mxu0
  %v5966 = vpop.f32.mrb[0].mxu0
  %v5967 = vadd.f32 %v5831, %v5966
  %v5968 = vpop.f32.mrb[0].mxu0
  %5969 = vmatprep.mubr.bf16.mxu0 %v4982
  %5970 = vmatmul.mubr.bf16.gmra.mrb[0].mxu0 %v4981
  %v5971 = vpop.f32.mrb[0].mxu0
  %v5972 = vadd.f32 %v5836, %v5971
  %v5973 = vpop.f32.mrb[0].mxu0
  %v5974 = vpop.f32.mrb[0].mxu0
  %v5975 = vpop.f32.mrb[0].mxu0
  %5976 = vdwg.mxu0
  %5977 = vmatprep.subr.bf16.mxu0 0
  %5978 = vmatpush1.bf16.msra.mxu0 %v5473
  %5979 = vmatprep.subr.bf16.mxu0 0
  %5980 = vmatpush1.bf16.msra.mxu0 %v5474
  %5981 = vmatprep.subr.bf16.mxu0 0
  %5982 = vmatpush1.bf16.msra.mxu0 %v5475
  %5983 = vmatprep.subr.bf16.mxu0 0
  %5984 = vmatpush1.bf16.msra.mxu0 %v5476
  %5985 = vmatprep.subr.bf16.mxu0 0
  %5986 = vmatpush1.bf16.msra.mxu0 %v5477
  %5987 = vmatprep.subr.bf16.mxu0 0
  %5988 = vmatpush1.bf16.msra.mxu0 %v5478
  %5989 = vmatprep.subr.bf16.mxu0 0
  %5990 = vmatpush1.bf16.msra.mxu0 %v5479
  %5991 = vmatprep.subr.bf16.mxu0 0
  %5992 = vmatpush1.bf16.msra.mxu0 %v5480
  %5993 = vmatprep.subr.bf16.mxu0 0
  %5994 = vmatpush1.bf16.msra.mxu0 %v5481
  %5995 = vmatprep.subr.bf16.mxu0 0
  %5996 = vmatpush1.bf16.msra.mxu0 %v5482
  %5997 = vmatprep.subr.bf16.mxu0 0
  %5998 = vmatpush1.bf16.msra.mxu0 %v5483
  %5999 = vmatprep.subr.bf16.mxu0 0
  %6000 = vmatpush1.bf16.msra.mxu0 %v5484
  %6001 = vmatprep.subr.bf16.mxu0 0
  %6002 = vmatpush1.bf16.msra.mxu0 %v5485
  %6003 = vmatprep.subr.bf16.mxu0 0
  %6004 = vmatpush1.bf16.msra.mxu0 %v5486
  %6005 = vmatprep.subr.bf16.mxu0 0
  %6006 = vmatpush1.bf16.msra.mxu0 %v5487
  %6007 = vmatprep.subr.bf16.mxu0 0
  %6008 = vmatpush1.bf16.msra.mxu0 %v5488
  %6009 = vmatprep.mubr.bf16.mxu0 %v4876
  %6010 = vmatmul.mubr.bf16.gmra.mrb[0].mxu0 %v4875
  %v6011 = vpop.f32.mrb[0].mxu0
  %v6012 = vadd.f32 %v5876, %v6011
  %v6013 = vpop.f32.mrb[0].mxu0
  %v6014 = vpop.f32.mrb[0].mxu0
  %v6015 = vadd.f32 %v5879, %v6014
  %v6016 = vpop.f32.mrb[0].mxu0
  %6017 = vmatprep.mubr.bf16.mxu0 %v4885
  %6018 = vmatmul.mubr.bf16.gmra.mrb[0].mxu0 %v4884
  %v6019 = vpop.f32.mrb[0].mxu0
  %v6020 = vadd.f32 %v5884, %v6019
  %v6021 = vpop.f32.mrb[0].mxu0
  %v6022 = vpop.f32.mrb[0].mxu0
  %v6023 = vadd.f32 %v5887, %v6022
  %v6024 = vpop.f32.mrb[0].mxu0
  %6025 = vmatprep.mubr.bf16.mxu0 %v4894
  %6026 = vmatmul.mubr.bf16.gmra.mrb[0].mxu0 %v4893
  %v6027 = vpop.f32.mrb[0].mxu0
  %v6028 = vadd.f32 %v5892, %v6027
  %v6029 = vpop.f32.mrb[0].mxu0
  %v6030 = vpop.f32.mrb[0].mxu0
  %v6031 = vadd.f32 %v5895, %v6030
  %v6032 = vpop.f32.mrb[0].mxu0
  %6033 = vmatprep.mubr.bf16.mxu0 %v4903
  %6034 = vmatmul.mubr.bf16.gmra.mrb[0].mxu0 %v4902
  %v6035 = vpop.f32.mrb[0].mxu0
  %v6036 = vadd.f32 %v5900, %v6035
  %v6037 = vpop.f32.mrb[0].mxu0
  %v6038 = vpop.f32.mrb[0].mxu0
  %v6039 = vadd.f32 %v5903, %v6038
  %v6040 = vpop.f32.mrb[0].mxu0
  %6041 = vmatprep.mubr.bf16.mxu0 %v4912
  %6042 = vmatmul.mubr.bf16.gmra.mrb[0].mxu0 %v4911
  %v6043 = vpop.f32.mrb[0].mxu0
  %v6044 = vadd.f32 %v5908, %v6043
  %v6045 = vpop.f32.mrb[0].mxu0
  %v6046 = vpop.f32.mrb[0].mxu0
  %v6047 = vadd.f32 %v5911, %v6046
  %v6048 = vpop.f32.mrb[0].mxu0
  %6049 = vmatprep.mubr.bf16.mxu0 %v4921
  %6050 = vmatmul.mubr.bf16.gmra.mrb[0].mxu0 %v4920
  %v6051 = vpop.f32.mrb[0].mxu0
  %v6052 = vadd.f32 %v5916, %v6051
  %v6053 = vpop.f32.mrb[0].mxu0
  %v6054 = vpop.f32.mrb[0].mxu0
  %v6055 = vadd.f32 %v5919, %v6054
  %v6056 = vpop.f32.mrb[0].mxu0
  %6057 = vmatprep.mubr.bf16.mxu0 %v4930
  %6058 = vmatmul.mubr.bf16.gmra.mrb[0].mxu0 %v4929
  %v6059 = vpop.f32.mrb[0].mxu0
  %v6060 = vadd.f32 %v5924, %v6059
  %v6061 = vpop.f32.mrb[0].mxu0
  %v6062 = vpop.f32.mrb[0].mxu0
  %v6063 = vadd.f32 %v5927, %v6062
  %v6064 = vpop.f32.mrb[0].mxu0
  %6065 = vmatprep.mubr.bf16.mxu0 %v4939
  %6066 = vmatmul.mubr.bf16.gmra.mrb[0].mxu0 %v4938
  %v6067 = vpop.f32.mrb[0].mxu0
  %v6068 = vadd.f32 %v5932, %v6067
  %v6069 = vpop.f32.mrb[0].mxu0
  %v6070 = vpop.f32.mrb[0].mxu0
  %v6071 = vadd.f32 %v5935, %v6070
  %v6072 = vpop.f32.mrb[0].mxu0
  %6073 = vmatprep.mubr.bf16.mxu0 %v4948
  %6074 = vmatmul.mubr.bf16.gmra.mrb[0].mxu0 %v4947
  %v6075 = vpop.f32.mrb[0].mxu0
  %v6076 = vadd.f32 %v5940, %v6075
  %v6077 = vpop.f32.mrb[0].mxu0
  %v6078 = vpop.f32.mrb[0].mxu0
  %v6079 = vadd.f32 %v5943, %v6078
  %v6080 = vpop.f32.mrb[0].mxu0
  %6081 = vmatprep.mubr.bf16.mxu0 %v4957
  %6082 = vmatmul.mubr.bf16.gmra.mrb[0].mxu0 %v4956
  %v6083 = vpop.f32.mrb[0].mxu0
  %v6084 = vadd.f32 %v5948, %v6083
  %v6085 = vpop.f32.mrb[0].mxu0
  %v6086 = vpop.f32.mrb[0].mxu0
  %v6087 = vadd.f32 %v5951, %v6086
  %v6088 = vpop.f32.mrb[0].mxu0
  %6089 = vmatprep.mubr.bf16.mxu0 %v4966
  %6090 = vmatmul.mubr.bf16.gmra.mrb[0].mxu0 %v4965
  %v6091 = vpop.f32.mrb[0].mxu0
  %v6092 = vadd.f32 %v5956, %v6091
  %v6093 = vpop.f32.mrb[0].mxu0
  %v6094 = vpop.f32.mrb[0].mxu0
  %v6095 = vadd.f32 %v5959, %v6094
  %v6096 = vpop.f32.mrb[0].mxu0
  %6097 = vmatprep.mubr.bf16.mxu0 %v4975
  %6098 = vmatmul.mubr.bf16.gmra.mrb[0].mxu0 %v4974
  %v6099 = vpop.f32.mrb[0].mxu0
  %v6100 = vadd.f32 %v5964, %v6099
  %v6101 = vpop.f32.mrb[0].mxu0
  %v6102 = vpop.f32.mrb[0].mxu0
  %v6103 = vadd.f32 %v5967, %v6102
  %v6104 = vpop.f32.mrb[0].mxu0
  %6105 = vmatprep.mubr.bf16.mxu0 %v4984
  %6106 = vmatmul.mubr.bf16.gmra.mrb[0].mxu0 %v4983
  %v6107 = vpop.f32.mrb[0].mxu0
  %v6108 = vadd.f32 %v5972, %v6107
  %v6109 = vpop.f32.mrb[0].mxu0
  %v6110 = vpop.f32.mrb[0].mxu0
  %v6111 = vpop.f32.mrb[0].mxu0
  %6112 = vdwg.mxu0
  %6113 = vmatprep.subr.bf16.mxu0 0
  %6114 = vmatpush1.bf16.msra.mxu0 %v5489
  %6115 = vmatprep.subr.bf16.mxu0 0
  %6116 = vmatpush1.bf16.msra.mxu0 %v5490
  %6117 = vmatprep.subr.bf16.mxu0 0
  %6118 = vmatpush1.bf16.msra.mxu0 %v5491
  %6119 = vmatprep.subr.bf16.mxu0 0
  %6120 = vmatpush1.bf16.msra.mxu0 %v5492
  %6121 = vmatprep.subr.bf16.mxu0 0
  %6122 = vmatpush1.bf16.msra.mxu0 %v5493
  %6123 = vmatprep.subr.bf16.mxu0 0
  %6124 = vmatpush1.bf16.msra.mxu0 %v5494
  %6125 = vmatprep.subr.bf16.mxu0 0
  %6126 = vmatpush1.bf16.msra.mxu0 %v5495
  %6127 = vmatprep.subr.bf16.mxu0 0
  %6128 = vmatpush1.bf16.msra.mxu0 %v5496
  %6129 = vmatprep.subr.bf16.mxu0 0
  %6130 = vmatpush1.bf16.msra.mxu0 0
  %6131 = vmatprep.subr.bf16.mxu0 0
  %6132 = vmatpush1.bf16.msra.mxu0 0
  %6133 = vmatprep.subr.bf16.mxu0 0
  %6134 = vmatpush1.bf16.msra.mxu0 0
  %6135 = vmatprep.subr.bf16.mxu0 0
  %6136 = vmatpush1.bf16.msra.mxu0 0
  %6137 = vmatprep.subr.bf16.mxu0 0
  %6138 = vmatpush1.bf16.msra.mxu0 0
  %6139 = vmatprep.subr.bf16.mxu0 0
  %6140 = vmatpush1.bf16.msra.mxu0 0
  %6141 = vmatprep.subr.bf16.mxu0 0
  %6142 = vmatpush1.bf16.msra.mxu0 0
  %6143 = vmatprep.subr.bf16.mxu0 0
  %6144 = vmatpush1.bf16.msra.mxu0 0
  %6145 = vmatprep.mubr.bf16.mxu0 0
  %6146 = vmatmul.mubr.bf16.gmra.mrb[0].mxu0 %v4877
  %v6147 = vpop.f32.mrb[0].mxu0
  %v6148 = vadd.f32 %v6012, %v6147
  %v6149 = vpop.f32.mrb[0].mxu0
  %v6150 = vpop.f32.mrb[0].mxu0
  %v6151 = vadd.f32 %v6015, %v6150
  %v6152 = vpop.f32.mrb[0].mxu0
  %6153 = vmatprep.mubr.bf16.mxu0 0
  %6154 = vmatmul.mubr.bf16.gmra.mrb[0].mxu0 %v4886
  %v6155 = vpop.f32.mrb[0].mxu0
  %v6156 = vadd.f32 %v6020, %v6155
  %v6157 = vpop.f32.mrb[0].mxu0
  %v6158 = vpop.f32.mrb[0].mxu0
  %v6159 = vadd.f32 %v6023, %v6158
  %v6160 = vpop.f32.mrb[0].mxu0
  %6161 = vmatprep.mubr.bf16.mxu0 0
  %6162 = vmatmul.mubr.bf16.gmra.mrb[0].mxu0 %v4895
  %v6163 = vpop.f32.mrb[0].mxu0
  %v6164 = vadd.f32 %v6028, %v6163
  %v6165 = vpop.f32.mrb[0].mxu0
  %v6166 = vpop.f32.mrb[0].mxu0
  %v6167 = vadd.f32 %v6031, %v6166
  %v6168 = vpop.f32.mrb[0].mxu0
  %6169 = vmatprep.mubr.bf16.mxu0 0
  %6170 = vmatmul.mubr.bf16.gmra.mrb[0].mxu0 %v4904
  %v6171 = vpop.f32.mrb[0].mxu0
  %v6172 = vadd.f32 %v6036, %v6171
  %v6173 = vpop.f32.mrb[0].mxu0
  %v6174 = vpop.f32.mrb[0].mxu0
  %v6175 = vadd.f32 %v6039, %v6174
  %v6176 = vpop.f32.mrb[0].mxu0
  %6177 = vmatprep.mubr.bf16.mxu0 0
  %6178 = vmatmul.mubr.bf16.gmra.mrb[0].mxu0 %v4913
  %v6179 = vpop.f32.mrb[0].mxu0
  %v6180 = vadd.f32 %v6044, %v6179
  %v6181 = vpop.f32.mrb[0].mxu0
  %v6182 = vpop.f32.mrb[0].mxu0
  %v6183 = vadd.f32 %v6047, %v6182
  %v6184 = vpop.f32.mrb[0].mxu0
  %6185 = vmatprep.mubr.bf16.mxu0 0
  %6186 = vmatmul.mubr.bf16.gmra.mrb[0].mxu0 %v4922
  %v6187 = vpop.f32.mrb[0].mxu0
  %v6188 = vadd.f32 %v6052, %v6187
  %v6189 = vpop.f32.mrb[0].mxu0
  %v6190 = vpop.f32.mrb[0].mxu0
  %v6191 = vadd.f32 %v6055, %v6190
  %v6192 = vpop.f32.mrb[0].mxu0
  %6193 = vmatprep.mubr.bf16.mxu0 0
  %6194 = vmatmul.mubr.bf16.gmra.mrb[0].mxu0 %v4931
  %v6195 = vpop.f32.mrb[0].mxu0
  %v6196 = vadd.f32 %v6060, %v6195
  %v6197 = vpop.f32.mrb[0].mxu0
  %v6198 = vpop.f32.mrb[0].mxu0
  %v6199 = vadd.f32 %v6063, %v6198
  %v6200 = vpop.f32.mrb[0].mxu0
  %6201 = vmatprep.mubr.bf16.mxu0 0
  %6202 = vmatmul.mubr.bf16.gmra.mrb[0].mxu0 %v4940
  %v6203 = vpop.f32.mrb[0].mxu0
  %v6204 = vadd.f32 %v6068, %v6203
  %v6205 = vpop.f32.mrb[0].mxu0
  %v6206 = vpop.f32.mrb[0].mxu0
  %v6207 = vadd.f32 %v6071, %v6206
  %v6208 = vpop.f32.mrb[0].mxu0
  %6209 = vmatprep.mubr.bf16.mxu0 0
  %6210 = vmatmul.mubr.bf16.gmra.mrb[0].mxu0 %v4949
  %v6211 = vpop.f32.mrb[0].mxu0
  %v6212 = vadd.f32 %v6076, %v6211
  %v6213 = vpop.f32.mrb[0].mxu0
  %v6214 = vpop.f32.mrb[0].mxu0
  %v6215 = vadd.f32 %v6079, %v6214
  %v6216 = vpop.f32.mrb[0].mxu0
  %6217 = vmatprep.mubr.bf16.mxu0 0
  %6218 = vmatmul.mubr.bf16.gmra.mrb[0].mxu0 %v4958
  %v6219 = vpop.f32.mrb[0].mxu0
  %v6220 = vadd.f32 %v6084, %v6219
  %v6221 = vpop.f32.mrb[0].mxu0
  %v6222 = vpop.f32.mrb[0].mxu0
  %v6223 = vadd.f32 %v6087, %v6222
  %v6224 = vpop.f32.mrb[0].mxu0
  %6225 = vmatprep.mubr.bf16.mxu0 0
  %6226 = vmatmul.mubr.bf16.gmra.mrb[0].mxu0 %v4967
  %v6227 = vpop.f32.mrb[0].mxu0
  %v6228 = vadd.f32 %v6092, %v6227
  %v6229 = vpop.f32.mrb[0].mxu0
  %v6230 = vpop.f32.mrb[0].mxu0
  %v6231 = vadd.f32 %v6095, %v6230
  %v6232 = vpop.f32.mrb[0].mxu0
  %6233 = vmatprep.mubr.bf16.mxu0 0
  %6234 = vmatmul.mubr.bf16.gmra.mrb[0].mxu0 %v4976
  %v6235 = vpop.f32.mrb[0].mxu0
  %v6236 = vadd.f32 %v6100, %v6235
  %v6237 = vpop.f32.mrb[0].mxu0
  %v6238 = vpop.f32.mrb[0].mxu0
  %v6239 = vadd.f32 %v6103, %v6238
  %v6240 = vpop.f32.mrb[0].mxu0
  %6241 = vmatprep.mubr.bf16.mxu0 0
  %6242 = vmatmul.mubr.bf16.gmra.mrb[0].mxu0 %v4985
  %v6243 = vpop.f32.mrb[0].mxu0
  %v6244 = vadd.f32 %v6108, %v6243
  %v6245 = vpop.f32.mrb[0].mxu0
  %v6246 = vpop.f32.mrb[0].mxu0
  %v6247 = vpop.f32.mrb[0].mxu0
  %6248 = vdwg.mxu0
  %v6249 = vmax.f32 %v6148, 0.0
  %v6250 = vmax.f32 %v6151, 0.0
  %v6251 = vmax.f32 %v6156, 0.0
  %v6252 = vmax.f32 %v6159, 0.0
  %v6253 = vmax.f32 %v6164, 0.0
  %v6254 = vmax.f32 %v6167, 0.0
  %v6255 = vmax.f32 %v6172, 0.0
  %v6256 = vmax.f32 %v6175, 0.0
  %v6257 = vmax.f32 %v6180, 0.0
  %v6258 = vmax.f32 %v6183, 0.0
  %v6259 = vmax.f32 %v6188, 0.0
  %v6260 = vmax.f32 %v6191, 0.0
  %v6261 = vmax.f32 %v6196, 0.0
  %v6262 = vmax.f32 %v6199, 0.0
  %v6263 = vmax.f32 %v6204, 0.0
  %v6264 = vmax.f32 %v6207, 0.0
  %v6265 = vmax.f32 %v6212, 0.0
  %v6266 = vmax.f32 %v6215, 0.0
  %v6267 = vmax.f32 %v6220, 0.0
  %v6268 = vmax.f32 %v6223, 0.0
  %v6269 = vmax.f32 %v6228, 0.0
  %v6270 = vmax.f32 %v6231, 0.0
  %v6271 = vmax.f32 %v6236, 0.0
  %v6272 = vmax.f32 %v6239, 0.0
  %v6273 = vmax.f32 %v6244, 0.0
  %v6298 = vrot.slane %v6250, 2
  %v6299 = vrot.slane %v6251, 2
  %v6300 = vsel %vm4201, %v6298, %v6299
  %v6301 = vrot.slane %v6252, 2
  %v6302 = vsel %vm4201, %v6299, %v6301
  %v6303 = vrot.slane %v6253, 2
  %v6304 = vsel %vm4201, %v6301, %v6303
  %v6305 = vrot.slane %v6254, 2
  %v6306 = vsel %vm4201, %v6303, %v6305
  %v6307 = vrot.slane %v6255, 2
  %v6308 = vsel %vm4201, %v6305, %v6307
  %v6309 = vrot.slane %v6256, 2
  %v6310 = vsel %vm4201, %v6307, %v6309
  %v6311 = vrot.slane %v6257, 2
  %v6312 = vsel %vm4201, %v6309, %v6311
  %v6313 = vrot.slane %v6258, 2
  %v6314 = vsel %vm4201, %v6311, %v6313
  %v6315 = vrot.slane %v6259, 2
  %v6316 = vsel %vm4201, %v6313, %v6315
  %v6317 = vrot.slane %v6260, 2
  %v6318 = vsel %vm4201, %v6315, %v6317
  %v6319 = vrot.slane %v6261, 2
  %v6320 = vsel %vm4201, %v6317, %v6319
  %v6321 = vrot.slane %v6262, 2
  %v6322 = vsel %vm4201, %v6319, %v6321
  %v6323 = vrot.slane %v6263, 2
  %v6324 = vsel %vm4201, %v6321, %v6323
  %v6325 = vrot.slane %v6264, 2
  %v6326 = vsel %vm4201, %v6323, %v6325
  %v6327 = vrot.slane %v6265, 2
  %v6328 = vsel %vm4201, %v6325, %v6327
  %v6329 = vrot.slane %v6266, 2
  %v6330 = vsel %vm4201, %v6327, %v6329
  %v6331 = vrot.slane %v6267, 2
  %v6332 = vsel %vm4201, %v6329, %v6331
  %v6333 = vrot.slane %v6268, 2
  %v6334 = vsel %vm4201, %v6331, %v6333
  %v6335 = vrot.slane %v6269, 2
  %v6336 = vsel %vm4201, %v6333, %v6335
  %v6337 = vrot.slane %v6270, 2
  %v6338 = vsel %vm4201, %v6335, %v6337
  %v6339 = vrot.slane %v6271, 2
  %v6340 = vsel %vm4201, %v6337, %v6339
  %v6341 = vrot.slane %v6272, 2
  %v6342 = vsel %vm4201, %v6339, %v6341
  %v6343 = vrot.slane %v6273, 2
  %v6344 = vsel %vm4201, %v6341, %v6343
  %v6369 = vmax.f32 %v6249, %v6300
  %v6370 = vmax.f32 %v6250, %v6302
  %v6371 = vmax.f32 %v6251, %v6304
  %v6372 = vmax.f32 %v6252, %v6306
  %v6373 = vmax.f32 %v6253, %v6308
  %v6374 = vmax.f32 %v6254, %v6310
  %v6375 = vmax.f32 %v6255, %v6312
  %v6376 = vmax.f32 %v6256, %v6314
  %v6377 = vmax.f32 %v6257, %v6316
  %v6378 = vmax.f32 %v6258, %v6318
  %v6379 = vmax.f32 %v6259, %v6320
  %v6380 = vmax.f32 %v6260, %v6322
  %v6381 = vmax.f32 %v6261, %v6324
  %v6382 = vmax.f32 %v6262, %v6326
  %v6383 = vmax.f32 %v6263, %v6328
  %v6384 = vmax.f32 %v6264, %v6330
  %v6385 = vmax.f32 %v6265, %v6332
  %v6386 = vmax.f32 %v6266, %v6334
  %v6387 = vmax.f32 %v6267, %v6336
  %v6388 = vmax.f32 %v6268, %v6338
  %v6389 = vmax.f32 %v6269, %v6340
  %v6390 = vmax.f32 %v6270, %v6342
  %v6391 = vmax.f32 %v6271, %v6344
  %v6392 = vmax.f32 %v6272, %v6343
  %6393 = vst [vmem:[#allocation6] sm:$0xff] %v6369
  %6394 = vst [vmem:[#allocation6 + $0x8] sm:$0xff] %v6370
  %6395 = vst [vmem:[#allocation6 + $0x10] sm:$0xff] %v6371
  %6396 = vst [vmem:[#allocation6 + $0x18] sm:$0xff] %v6372
  %6397 = vst [vmem:[#allocation6 + $0x20] sm:$0xff] %v6373
  %6398 = vst [vmem:[#allocation6 + $0x28] sm:$0xff] %v6374
  %6399 = vst [vmem:[#allocation6 + $0x30] sm:$0xff] %v6375
  %6400 = vst [vmem:[#allocation6 + $0x38] sm:$0xff] %v6376
  %6401 = vst [vmem:[#allocation6 + $0x40] sm:$0xff] %v6377
  %6402 = vst [vmem:[#allocation6 + $0x48] sm:$0xff] %v6378
  %6403 = vst [vmem:[#allocation6 + $0x50] sm:$0xff] %v6379
  %6404 = vst [vmem:[#allocation6 + $0x58] sm:$0xff] %v6380
  %6405 = vst [vmem:[#allocation6 + $0x60] sm:$0xff] %v6381
  %6406 = vst [vmem:[#allocation6 + $0x68] sm:$0xff] %v6382
  %6407 = vst [vmem:[#allocation6 + $0x70] sm:$0xff] %v6383
  %6408 = vst [vmem:[#allocation6 + $0x78] sm:$0xff] %v6384
  %6409 = vst [vmem:[#allocation6 + $0x80] sm:$0xff] %v6385
  %6410 = vst [vmem:[#allocation6 + $0x88] sm:$0xff] %v6386
  %6411 = vst [vmem:[#allocation6 + $0x90] sm:$0xff] %v6387
  %6412 = vst [vmem:[#allocation6 + $0x98] sm:$0xff] %v6388
  %6413 = vst [vmem:[#allocation6 + $0xa0] sm:$0xff] %v6389
  %6414 = vst [vmem:[#allocation6 + $0xa8] sm:$0xff] %v6390
  %6415 = vst [vmem:[#allocation6 + $0xb0] sm:$0xff] %v6391
  %6416 = vst [vmem:[#allocation6 + $0xb8] sm:$0x3f] %v6392
  %s6417 = scalar_lea.vmem [#allocation6], 11
  %v6418 = vld [vmem:[%s6417] ss:$2 sm:$0xf]
  %s6419 = scalar_lea.vmem [#allocation6], 12
  %v6420 = vld [vmem:[%s6419] ss:$2 sm:$0xf]
  %v6421 = vmax.f32 %v6418, %v6420
  %6422 = vst [vmem:[#allocation3 + $0xe] sm:$0xf] %v6421
  %s6423 = scalar_lea.vmem [#allocation6], 31
  %v6424 = vld [vmem:[%s6423] ss:$2 sm:$0xf]
  %s6425 = scalar_lea.vmem [#allocation6], 32
  %v6426 = vld [vmem:[%s6425] ss:$2 sm:$0xf]
  %v6427 = vmax.f32 %v6424, %v6426
  %6428 = vst [vmem:[#allocation3 + $0x14] sm:$0xf] %v6427
  %s6429 = scalar_lea.vmem [#allocation6], 51
  %v6430 = vld [vmem:[%s6429] ss:$2 sm:$0xf]
  %s6431 = scalar_lea.vmem [#allocation6], 52
  %v6432 = vld [vmem:[%s6431] ss:$2 sm:$0xf]
  %v6433 = vmax.f32 %v6430, %v6432
  %6434 = vst [vmem:[#allocation3 + $0x1a] sm:$0xf] %v6433
  %s6435 = scalar_lea.vmem [#allocation6], 71
  %v6436 = vld [vmem:[%s6435] ss:$2 sm:$0xf]
  %s6437 = scalar_lea.vmem [#allocation6], 72
  %v6438 = vld [vmem:[%s6437] ss:$2 sm:$0xf]
  %v6439 = vmax.f32 %v6436, %v6438
  %6440 = vst [vmem:[#allocation3 + $0x20] sm:$0xf] %v6439
  %s6441 = scalar_lea.vmem [#allocation6], 111
  %v6442 = vld [vmem:[%s6441] ss:$2 sm:$0xf]
  %s6443 = scalar_lea.vmem [#allocation6], 112
  %v6444 = vld [vmem:[%s6443] ss:$2 sm:$0xf]
  %v6445 = vmax.f32 %v6442, %v6444
  %6446 = vst [vmem:[#allocation3 + $0x32] sm:$0xf] %v6445
  %s6447 = scalar_lea.vmem [#allocation6], 131
  %v6448 = vld [vmem:[%s6447] ss:$2 sm:$0xf]
  %s6449 = scalar_lea.vmem [#allocation6], 132
  %v6450 = vld [vmem:[%s6449] ss:$2 sm:$0xf]
  %v6451 = vmax.f32 %v6448, %v6450
  %6452 = vst [vmem:[#allocation3 + $0x38] sm:$0xf] %v6451
  %s6453 = scalar_lea.vmem [#allocation6], 151
  %v6454 = vld [vmem:[%s6453] ss:$2 sm:$0xf]
  %s6455 = scalar_lea.vmem [#allocation6], 152
  %v6456 = vld [vmem:[%s6455] ss:$2 sm:$0xf]
  %v6457 = vmax.f32 %v6454, %v6456
  %6458 = vst [vmem:[#allocation3 + $0x3e] sm:$0xf] %v6457
  %s6459 = scalar_lea.vmem [#allocation6], 171
  %v6460 = vld [vmem:[%s6459] ss:$2 sm:$0xf]
  %s6461 = scalar_lea.vmem [#allocation6], 172
  %v6462 = vld [vmem:[%s6461] ss:$2 sm:$0xf]
  %v6463 = vmax.f32 %v6460, %v6462
  %6464 = vst [vmem:[#allocation3 + $0x44] sm:$0xf] %v6463
  %v6465 = vld [vmem:[#allocation3] sm:$0xff]
  %v6466 = vld [vmem:[#allocation3 + $0x8] sm:$0xff]
  %v6467 = vld [vmem:[#allocation3 + $0x10] sm:$0xff]
  %v6468 = vld [vmem:[#allocation3 + $0x18] sm:$0xff]
  %v6469 = vld [vmem:[#allocation3 + $0x20] sm:$0xff]
  %v6470 = vld [vmem:[#allocation3 + $0x28] sm:$0xff]
  %v6471 = vld [vmem:[#allocation3 + $0x30] sm:$0xff]
  %v6472 = vld [vmem:[#allocation3 + $0x38] sm:$0xff]
  %v6473 = vld [vmem:[#allocation3 + $0x40] sm:$0xff]
  %v6474 = vld [vmem:[#allocation3 + $0x1] sm:$0xff]
  %v6475 = vld [vmem:[#allocation3 + $0x9] sm:$0xff]
  %v6476 = vld [vmem:[#allocation3 + $0x11] sm:$0xff]
  %v6477 = vld [vmem:[#allocation3 + $0x19] sm:$0xff]
  %v6478 = vld [vmem:[#allocation3 + $0x21] sm:$0xff]
  %v6479 = vld [vmem:[#allocation3 + $0x29] sm:$0xff]
  %v6480 = vld [vmem:[#allocation3 + $0x31] sm:$0xff]
  %v6481 = vld [vmem:[#allocation3 + $0x39] sm:$0xff]
  %v6482 = vld [vmem:[#allocation3 + $0x41] sm:$0xff]
  %v6483 = vld [vmem:[#allocation3 + $0x2] sm:$0xff]
  %v6484 = vld [vmem:[#allocation3 + $0xa] sm:$0xff]
  %v6485 = vld [vmem:[#allocation3 + $0x12] sm:$0xff]
  %v6486 = vld [vmem:[#allocation3 + $0x1a] sm:$0xff]
  %v6487 = vld [vmem:[#allocation3 + $0x22] sm:$0xff]
  %v6488 = vld [vmem:[#allocation3 + $0x2a] sm:$0xff]
  %v6489 = vld [vmem:[#allocation3 + $0x32] sm:$0xff]
  %v6490 = vld [vmem:[#allocation3 + $0x3a] sm:$0xff]
  %v6491 = vld [vmem:[#allocation3 + $0x42] sm:$0xff]
  %v6492 = vld [vmem:[#allocation3 + $0x6] sm:$0xff]
  %v6493 = vld [vmem:[#allocation3 + $0xe] sm:$0xff]
  %v6494 = vld [vmem:[#allocation3 + $0x16] sm:$0xff]
  %v6495 = vld [vmem:[#allocation3 + $0x1e] sm:$0xff]
  %v6496 = vld [vmem:[#allocation3 + $0x26] sm:$0xff]
  %v6497 = vld [vmem:[#allocation3 + $0x2e] sm:$0xff]
  %v6498 = vld [vmem:[#allocation3 + $0x36] sm:$0xff]
  %v6499 = vld [vmem:[#allocation3 + $0x3e] sm:$0xff]
  %v6500 = vld [vmem:[#allocation3 + $0x46] sm:$0xff]
  %v6501 = vld [vmem:[#allocation3 + $0x7] sm:$0xff]
  %v6502 = vld [vmem:[#allocation3 + $0xf] sm:$0xff]
  %v6503 = vld [vmem:[#allocation3 + $0x17] sm:$0xff]
  %v6504 = vld [vmem:[#allocation3 + $0x1f] sm:$0xff]
  %v6505 = vld [vmem:[#allocation3 + $0x27] sm:$0xff]
  %v6506 = vld [vmem:[#allocation3 + $0x2f] sm:$0xff]
  %v6507 = vld [vmem:[#allocation3 + $0x37] sm:$0xff]
  %v6508 = vld [vmem:[#allocation3 + $0x3f] sm:$0xff]
  %v6509 = vld [vmem:[#allocation3 + $0x47] sm:$0xff]
  %v6510 = vld [vmem:[#allocation3 + $0x48] sm:$0xff]
  %v6511 = vld [vmem:[#allocation3 + $0xc] sm:$0xff]
  %v6512 = vld [vmem:[#allocation3 + $0x14] sm:$0xff]
  %v6513 = vld [vmem:[#allocation3 + $0x1c] sm:$0xff]
  %v6514 = vld [vmem:[#allocation3 + $0x24] sm:$0xff]
  %v6515 = vld [vmem:[#allocation3 + $0x2c] sm:$0xff]
  %v6516 = vld [vmem:[#allocation3 + $0x34] sm:$0xff]
  %v6517 = vld [vmem:[#allocation3 + $0x3c] sm:$0xff]
  %v6518 = vld [vmem:[#allocation3 + $0x44] sm:$0xff]
  %v6519 = vld [vmem:[#allocation3 + $0x4c] sm:$0xff]
  %v6520 = vld [vmem:[#allocation3 + $0xd] sm:$0xff]
  %v6521 = vld [vmem:[#allocation3 + $0x15] sm:$0xff]
  %v6522 = vld [vmem:[#allocation3 + $0x1d] sm:$0xff]
  %v6523 = vld [vmem:[#allocation3 + $0x25] sm:$0xff]
  %v6524 = vld [vmem:[#allocation3 + $0x2d] sm:$0xff]
  %v6525 = vld [vmem:[#allocation3 + $0x35] sm:$0xff]
  %v6526 = vld [vmem:[#allocation3 + $0x3d] sm:$0xff]
  %v6527 = vld [vmem:[#allocation3 + $0x45] sm:$0xff]
  %v6528 = vld [vmem:[#allocation3 + $0x4d] sm:$0xff]
  %v6529 = vld [vmem:[#allocation3 + $0xe] sm:$0xff]
  %v6530 = vld [vmem:[#allocation3 + $0x16] sm:$0xff]
  %v6531 = vld [vmem:[#allocation3 + $0x1e] sm:$0xff]
  %v6532 = vld [vmem:[#allocation3 + $0x26] sm:$0xff]
  %v6533 = vld [vmem:[#allocation3 + $0x2e] sm:$0xff]
  %v6534 = vld [vmem:[#allocation3 + $0x36] sm:$0xff]
  %v6535 = vld [vmem:[#allocation3 + $0x3e] sm:$0xff]
  %v6536 = vld [vmem:[#allocation3 + $0x46] sm:$0xff]
  %v6537 = vld [vmem:[#allocation3 + $0x4e] sm:$0xff]
  %v6538 = vpack.c.bf16 %v6466, %v6465
  %v6539 = vpack.c.bf16 %v6475, %v6474
  %v6540 = vpack.c.bf16 %v6484, %v6483
  %v6541 = vpack.c.bf16 %v6493, %v6492
  %v6542 = vpack.c.bf16 %v6502, %v6501
  %v6543 = vpack.c.bf16 %v6467, %v6466
  %v6544 = vpack.c.bf16 %v6512, %v6511
  %v6545 = vpack.c.bf16 %v6521, %v6520
  %v6546 = vpack.c.bf16 %v6530, %v6529
  %v6547 = vpack.c.bf16 %v6468, %v6467
  %v6548 = vpack.c.bf16 %v6477, %v6476
  %v6549 = vpack.c.bf16 %v6486, %v6485
  %v6550 = vpack.c.bf16 %v6495, %v6494
  %v6551 = vpack.c.bf16 %v6504, %v6503
  %v6552 = vpack.c.bf16 %v6469, %v6468
  %v6553 = vpack.c.bf16 %v6514, %v6513
  %v6554 = vpack.c.bf16 %v6523, %v6522
  %v6555 = vpack.c.bf16 %v6532, %v6531
  %v6556 = vpack.c.bf16 %v6470, %v6469
  %v6557 = vpack.c.bf16 %v6479, %v6478
  %v6558 = vpack.c.bf16 %v6488, %v6487
  %v6559 = vpack.c.bf16 %v6497, %v6496
  %v6560 = vpack.c.bf16 %v6506, %v6505
  %v6561 = vpack.c.bf16 %v6471, %v6470
  %v6562 = vpack.c.bf16 %v6516, %v6515
  %v6563 = vpack.c.bf16 %v6525, %v6524
  %v6564 = vpack.c.bf16 %v6534, %v6533
  %v6565 = vpack.c.bf16 %v6472, %v6471
  %v6566 = vpack.c.bf16 %v6481, %v6480
  %v6567 = vpack.c.bf16 %v6490, %v6489
  %v6568 = vpack.c.bf16 %v6499, %v6498
  %v6569 = vpack.c.bf16 %v6508, %v6507
  %v6570 = vpack.c.bf16 %v6473, %v6472
  %v6571 = vpack.c.bf16 %v6518, %v6517
  %v6572 = vpack.c.bf16 %v6527, %v6526
  %v6573 = vpack.c.bf16 %v6536, %v6535
  %v6574 = vpack.c.bf16 %v6473, %v6473
  %v6575 = vpack.c.bf16 %v6482, %v6482
  %v6576 = vpack.c.bf16 %v6491, %v6491
  %v6577 = vpack.c.bf16 %v6500, %v6500
  %v6578 = vpack.c.bf16 %v6509, %v6509
  %v6579 = vpack.c.bf16 %v6510, %v6510
  %v6580 = vpack.c.bf16 %v6519, %v6519
  %v6581 = vpack.c.bf16 %v6528, %v6528
  %v6582 = vpack.c.bf16 %v6537, %v6537
  %v6583 = vld [vmem:[%s3] sm:$0xf]
  %v6584 = vld [vmem:[%s3 + $0x4] sm:$0xf]
  %v6585 = vld [vmem:[%s3 + $0x8] sm:$0xf]
  %v6586 = vld [vmem:[%s3 + $0xc] sm:$0xf]
  %v6587 = vld [vmem:[%s3 + $0x10] sm:$0xf]
  %v6588 = vld [vmem:[%s3 + $0x14] sm:$0xf]
  %v6589 = vld [vmem:[%s3 + $0x18] sm:$0xf]
  %v6590 = vld [vmem:[%s3 + $0x1c] sm:$0xf]
  %v6591 = vld [vmem:[%s3 + $0x20] sm:$0xf]
  %v6592 = vld [vmem:[%s3 + $0x24] sm:$0xf]
  %v6593 = vld [vmem:[%s3 + $0x28] sm:$0xf]
  %v6594 = vld [vmem:[%s3 + $0x2c] sm:$0xf]
  %v6595 = vld [vmem:[%s3 + $0x30] sm:$0xf]
  %v6596 = vld [vmem:[%s3 + $0x34] sm:$0xf]
  %v6597 = vld [vmem:[%s3 + $0x38] sm:$0xf]
  %v6598 = vld [vmem:[%s3 + $0x3c] sm:$0xf]
  %v6599 = vld [vmem:[%s3 + $0x40] sm:$0xf]
  %v6600 = vld [vmem:[%s3 + $0x44] sm:$0xf]
  %v6601 = vld [vmem:[%s3 + $0x48] sm:$0xf]
  %v6602 = vld [vmem:[%s3 + $0x4c] sm:$0xf]
  %v6603 = vld [vmem:[%s3 + $0x50] sm:$0xf]
  %v6604 = vld [vmem:[%s3 + $0x54] sm:$0xf]
  %v6605 = vld [vmem:[%s3 + $0x58] sm:$0xf]
  %v6606 = vld [vmem:[%s3 + $0x5c] sm:$0xf]
  %v6607 = vld [vmem:[%s3 + $0x60] sm:$0xf]
  %v6608 = vld [vmem:[%s3 + $0x64] sm:$0xf]
  %v6609 = vld [vmem:[%s3 + $0x68] sm:$0xf]
  %v6610 = vld [vmem:[%s3 + $0x6c] sm:$0xf]
  %v6611 = vld [vmem:[%s3 + $0x70] sm:$0xf]
  %v6612 = vld [vmem:[%s3 + $0x74] sm:$0xf]
  %v6613 = vld [vmem:[%s3 + $0x78] sm:$0xf]
  %v6614 = vld [vmem:[%s3 + $0x7c] sm:$0xf]
  %v6615 = vld [vmem:[%s3 + $0x80] sm:$0xf]
  %v6616 = vld [vmem:[%s3 + $0x84] sm:$0xf]
  %v6617 = vld [vmem:[%s3 + $0x88] sm:$0xf]
  %v6618 = vld [vmem:[%s3 + $0x8c] sm:$0xf]
  %v6619 = vld [vmem:[%s3 + $0x90] sm:$0xf]
  %v6620 = vld [vmem:[%s3 + $0x94] sm:$0xf]
  %v6621 = vld [vmem:[%s3 + $0x98] sm:$0xf]
  %v6622 = vld [vmem:[%s3 + $0x9c] sm:$0xf]
  %v6623 = vld [vmem:[%s3 + $0xa0] sm:$0xf]
  %v6624 = vld [vmem:[%s3 + $0xa4] sm:$0xf]
  %v6625 = vld [vmem:[%s3 + $0xa8] sm:$0xf]
  %v6626 = vld [vmem:[%s3 + $0xac] sm:$0xf]
  %v6627 = vld [vmem:[%s3 + $0xb0] sm:$0xf]
  %v6628 = vld [vmem:[%s3 + $0xb4] sm:$0xf]
  %v6629 = vld [vmem:[%s3 + $0xb8] sm:$0xf]
  %v6630 = vld [vmem:[%s3 + $0xbc] sm:$0xf]
  %v6631 = vld [vmem:[%s3 + $0xc0] sm:$0xf]
  %v6632 = vld [vmem:[%s3 + $0xc4] sm:$0xf]
  %v6633 = vld [vmem:[%s3 + $0xc8] sm:$0xf]
  %v6634 = vld [vmem:[%s3 + $0xcc] sm:$0xf]
  %v6635 = vld [vmem:[%s3 + $0xd0] sm:$0xf]
  %v6636 = vld [vmem:[%s3 + $0xd4] sm:$0xf]
  %v6637 = vld [vmem:[%s3 + $0xd8] sm:$0xf]
  %v6638 = vld [vmem:[%s3 + $0xdc] sm:$0xf]
  %v6639 = vld [vmem:[%s3 + $0xe0] sm:$0xf]
  %v6640 = vld [vmem:[%s3 + $0xe4] sm:$0xf]
  %v6641 = vld [vmem:[%s3 + $0xe8] sm:$0xf]
  %v6642 = vld [vmem:[%s3 + $0xec] sm:$0xf]
  %v6643 = vld [vmem:[%s3 + $0xf0] sm:$0xf]
  %v6644 = vld [vmem:[%s3 + $0xf4] sm:$0xf]
  %v6645 = vld [vmem:[%s3 + $0xf8] sm:$0xf]
  %v6646 = vld [vmem:[%s3 + $0xfc] sm:$0xf]
  %v6647 = vld [vmem:[%s3 + $0x100] sm:$0xf]
  %v6648 = vld [vmem:[%s3 + $0x104] sm:$0xf]
  %v6649 = vld [vmem:[%s3 + $0x108] sm:$0xf]
  %v6650 = vld [vmem:[%s3 + $0x10c] sm:$0xf]
  %v6651 = vld [vmem:[%s3 + $0x110] sm:$0xf]
  %v6652 = vld [vmem:[%s3 + $0x114] sm:$0xf]
  %v6653 = vld [vmem:[%s3 + $0x118] sm:$0xf]
  %v6654 = vld [vmem:[%s3 + $0x11c] sm:$0xf]
  %v6655 = vld [vmem:[%s3 + $0x120] sm:$0xf]
  %v6656 = vld [vmem:[%s3 + $0x124] sm:$0xf]
  %v6657 = vld [vmem:[%s3 + $0x128] sm:$0xf]
  %v6658 = vld [vmem:[%s3 + $0x12c] sm:$0xf]
  %v6659 = vld [vmem:[%s3 + $0x130] sm:$0xf]
  %v6660 = vld [vmem:[%s3 + $0x134] sm:$0xf]
  %v6661 = vld [vmem:[%s3 + $0x138] sm:$0xf]
  %v6662 = vld [vmem:[%s3 + $0x13c] sm:$0xf]
  %v6663 = vld [vmem:[%s3 + $0x140] sm:$0xf]
  %v6664 = vld [vmem:[%s3 + $0x144] sm:$0xf]
  %v6665 = vld [vmem:[%s3 + $0x148] sm:$0xf]
  %v6666 = vld [vmem:[%s3 + $0x14c] sm:$0xf]
  %v6667 = vld [vmem:[%s3 + $0x150] sm:$0xf]
  %v6668 = vld [vmem:[%s3 + $0x154] sm:$0xf]
  %v6669 = vld [vmem:[%s3 + $0x158] sm:$0xf]
  %v6670 = vld [vmem:[%s3 + $0x15c] sm:$0xf]
  %v6671 = vld [vmem:[%s3 + $0x160] sm:$0xf]
  %v6672 = vld [vmem:[%s3 + $0x164] sm:$0xf]
  %v6673 = vld [vmem:[%s3 + $0x168] sm:$0xf]
  %v6674 = vld [vmem:[%s3 + $0x16c] sm:$0xf]
  %v6675 = vld [vmem:[%s3 + $0x170] sm:$0xf]
  %v6676 = vld [vmem:[%s3 + $0x174] sm:$0xf]
  %v6677 = vld [vmem:[%s3 + $0x178] sm:$0xf]
  %v6678 = vld [vmem:[%s3 + $0x17c] sm:$0xf]
  %v6679 = vld [vmem:[%s3 + $0x180] sm:$0xf]
  %v6680 = vld [vmem:[%s3 + $0x184] sm:$0xf]
  %v6681 = vld [vmem:[%s3 + $0x188] sm:$0xf]
  %v6682 = vld [vmem:[%s3 + $0x18c] sm:$0xf]
  %v6683 = vld [vmem:[%s3 + $0x190] sm:$0xf]
  %v6684 = vld [vmem:[%s3 + $0x194] sm:$0xf]
  %v6685 = vld [vmem:[%s3 + $0x198] sm:$0xf]
  %v6686 = vld [vmem:[%s3 + $0x19c] sm:$0xf]
  %v6687 = vld [vmem:[%s3 + $0x1a0] sm:$0xf]
  %v6688 = vld [vmem:[%s3 + $0x1a4] sm:$0xf]
  %v6689 = vld [vmem:[%s3 + $0x1a8] sm:$0xf]
  %v6690 = vld [vmem:[%s3 + $0x1ac] sm:$0xf]
  %v6691 = vld [vmem:[%s3 + $0x1b0] sm:$0xf]
  %v6692 = vld [vmem:[%s3 + $0x1b4] sm:$0xf]
  %v6693 = vld [vmem:[%s3 + $0x1b8] sm:$0xf]
  %v6694 = vld [vmem:[%s3 + $0x1bc] sm:$0xf]
  %v6695 = vld [vmem:[%s3 + $0x1c0] sm:$0xf]
  %v6696 = vld [vmem:[%s3 + $0x1c4] sm:$0xf]
  %v6697 = vld [vmem:[%s3 + $0x1c8] sm:$0xf]
  %v6698 = vld [vmem:[%s3 + $0x1cc] sm:$0xf]
  %v6699 = vld [vmem:[%s3 + $0x1d0] sm:$0xf]
  %v6700 = vld [vmem:[%s3 + $0x1d4] sm:$0xf]
  %v6701 = vld [vmem:[%s3 + $0x1d8] sm:$0xf]
  %v6702 = vld [vmem:[%s3 + $0x1dc] sm:$0xf]
  %v6703 = vld [vmem:[%s3 + $0x1e0] sm:$0xf]
  %v6704 = vld [vmem:[%s3 + $0x1e4] sm:$0xf]
  %v6705 = vld [vmem:[%s3 + $0x1e8] sm:$0xf]
  %v6706 = vld [vmem:[%s3 + $0x1ec] sm:$0xf]
  %v6707 = vld [vmem:[%s3 + $0x1f0] sm:$0xf]
  %v6708 = vld [vmem:[%s3 + $0x1f4] sm:$0xf]
  %v6709 = vld [vmem:[%s3 + $0x1f8] sm:$0xf]
  %v6710 = vld [vmem:[%s3 + $0x1fc] sm:$0xf]
  %v6711 = vld [vmem:[%s3 + $0x200] sm:$0xf]
  %v6712 = vld [vmem:[%s3 + $0x204] sm:$0xf]
  %v6713 = vld [vmem:[%s3 + $0x208] sm:$0xf]
  %v6714 = vld [vmem:[%s3 + $0x20c] sm:$0xf]
  %v6715 = vld [vmem:[%s3 + $0x210] sm:$0xf]
  %v6716 = vld [vmem:[%s3 + $0x214] sm:$0xf]
  %v6717 = vld [vmem:[%s3 + $0x218] sm:$0xf]
  %v6718 = vld [vmem:[%s3 + $0x21c] sm:$0xf]
  %v6719 = vld [vmem:[%s3 + $0x220] sm:$0xf]
  %v6720 = vld [vmem:[%s3 + $0x224] sm:$0xf]
  %v6721 = vld [vmem:[%s3 + $0x228] sm:$0xf]
  %v6722 = vld [vmem:[%s3 + $0x22c] sm:$0xf]
  %v6723 = vld [vmem:[%s3 + $0x230] sm:$0xf]
  %v6724 = vld [vmem:[%s3 + $0x234] sm:$0xf]
  %v6725 = vld [vmem:[%s3 + $0x238] sm:$0xf]
  %v6726 = vld [vmem:[%s3 + $0x23c] sm:$0xf]
  %v6727 = vld [vmem:[%s7] sm:$0x1]
  %v6729 = vlaneseq
  %v6730 = vshrl.u32 %v6729, 7
  %v6731 = vsub.s32 0, %v6730
  %v6732 = vrot.slane %v6727, %v6731
  %v6878 = vunpack.c.l.b16 %v6583
  %v6879 = vunpack.c.l.b16 %v6584
  %v6880 = vunpack.c.l.b16 %v6585
  %v6881 = vunpack.c.l.b16 %v6586
  %v6882 = vunpack.c.l.b16 %v6587
  %v6883 = vunpack.c.l.b16 %v6588
  %v6884 = vunpack.c.l.b16 %v6589
  %v6885 = vunpack.c.l.b16 %v6590
  %v6886 = vunpack.c.l.b16 %v6591
  %v6887 = vunpack.c.l.b16 %v6592
  %v6888 = vunpack.c.l.b16 %v6593
  %v6889 = vunpack.c.l.b16 %v6594
  %v6890 = vunpack.c.l.b16 %v6595
  %v6891 = vunpack.c.l.b16 %v6596
  %v6892 = vunpack.c.l.b16 %v6597
  %v6893 = vunpack.c.l.b16 %v6598
  %v6894 = vunpack.c.l.b16 %v6599
  %v6895 = vunpack.c.l.b16 %v6600
  %v6896 = vunpack.c.l.b16 %v6601
  %v6897 = vunpack.c.l.b16 %v6602
  %v6898 = vunpack.c.l.b16 %v6603
  %v6899 = vunpack.c.l.b16 %v6604
  %v6900 = vunpack.c.l.b16 %v6605
  %v6901 = vunpack.c.l.b16 %v6606
  %v6902 = vunpack.c.l.b16 %v6607
  %v6903 = vunpack.c.l.b16 %v6608
  %v6904 = vunpack.c.l.b16 %v6609
  %v6905 = vunpack.c.l.b16 %v6610
  %v6906 = vunpack.c.l.b16 %v6611
  %v6907 = vunpack.c.l.b16 %v6612
  %v6908 = vunpack.c.l.b16 %v6613
  %v6909 = vunpack.c.l.b16 %v6614
  %v6910 = vunpack.c.l.b16 %v6615
  %v6911 = vunpack.c.l.b16 %v6616
  %v6912 = vunpack.c.l.b16 %v6617
  %v6913 = vunpack.c.l.b16 %v6618
  %v6914 = vunpack.c.l.b16 %v6619
  %v6915 = vunpack.c.l.b16 %v6620
  %v6916 = vunpack.c.l.b16 %v6621
  %v6917 = vunpack.c.l.b16 %v6622
  %v6918 = vunpack.c.l.b16 %v6623
  %v6919 = vunpack.c.l.b16 %v6624
  %v6920 = vunpack.c.l.b16 %v6625
  %v6921 = vunpack.c.l.b16 %v6626
  %v6922 = vunpack.c.l.b16 %v6627
  %v6923 = vunpack.c.l.b16 %v6628
  %v6924 = vunpack.c.l.b16 %v6629
  %v6925 = vunpack.c.l.b16 %v6630
  %v6926 = vunpack.c.l.b16 %v6631
  %v6927 = vunpack.c.l.b16 %v6632
  %v6928 = vunpack.c.l.b16 %v6633
  %v6929 = vunpack.c.l.b16 %v6634
  %v6930 = vunpack.c.l.b16 %v6635
  %v6931 = vunpack.c.l.b16 %v6636
  %v6932 = vunpack.c.l.b16 %v6637
  %v6933 = vunpack.c.l.b16 %v6638
  %v6934 = vunpack.c.l.b16 %v6639
  %v6935 = vunpack.c.l.b16 %v6640
  %v6936 = vunpack.c.l.b16 %v6641
  %v6937 = vunpack.c.l.b16 %v6642
  %v6938 = vunpack.c.l.b16 %v6643
  %v6939 = vunpack.c.l.b16 %v6644
  %v6940 = vunpack.c.l.b16 %v6645
  %v6941 = vunpack.c.l.b16 %v6646
  %v6942 = vunpack.c.l.b16 %v6647
  %v6943 = vunpack.c.l.b16 %v6648
  %v6944 = vunpack.c.l.b16 %v6649
  %v6945 = vunpack.c.l.b16 %v6650
  %v6946 = vunpack.c.l.b16 %v6651
  %v6947 = vunpack.c.l.b16 %v6652
  %v6948 = vunpack.c.l.b16 %v6653
  %v6949 = vunpack.c.l.b16 %v6654
  %v6950 = vunpack.c.l.b16 %v6655
  %v6951 = vunpack.c.l.b16 %v6656
  %v6952 = vunpack.c.l.b16 %v6657
  %v6953 = vunpack.c.l.b16 %v6658
  %v6954 = vunpack.c.l.b16 %v6659
  %v6955 = vunpack.c.l.b16 %v6660
  %v6956 = vunpack.c.l.b16 %v6661
  %v6957 = vunpack.c.l.b16 %v6662
  %v6958 = vunpack.c.l.b16 %v6663
  %v6959 = vunpack.c.l.b16 %v6664
  %v6960 = vunpack.c.l.b16 %v6665
  %v6961 = vunpack.c.l.b16 %v6666
  %v6962 = vunpack.c.l.b16 %v6667
  %v6963 = vunpack.c.l.b16 %v6668
  %v6964 = vunpack.c.l.b16 %v6669
  %v6965 = vunpack.c.l.b16 %v6670
  %v6966 = vunpack.c.l.b16 %v6671
  %v6967 = vunpack.c.l.b16 %v6672
  %v6968 = vunpack.c.l.b16 %v6673
  %v6969 = vunpack.c.l.b16 %v6674
  %v6970 = vunpack.c.l.b16 %v6675
  %v6971 = vunpack.c.l.b16 %v6676
  %v6972 = vunpack.c.l.b16 %v6677
  %v6973 = vunpack.c.l.b16 %v6678
  %v6974 = vunpack.c.l.b16 %v6679
  %v6975 = vunpack.c.l.b16 %v6680
  %v6976 = vunpack.c.l.b16 %v6681
  %v6977 = vunpack.c.l.b16 %v6682
  %v6978 = vunpack.c.l.b16 %v6683
  %v6979 = vunpack.c.l.b16 %v6684
  %v6980 = vunpack.c.l.b16 %v6685
  %v6981 = vunpack.c.l.b16 %v6686
  %v6982 = vunpack.c.l.b16 %v6687
  %v6983 = vunpack.c.l.b16 %v6688
  %v6984 = vunpack.c.l.b16 %v6689
  %v6985 = vunpack.c.l.b16 %v6690
  %v6986 = vunpack.c.l.b16 %v6691
  %v6987 = vunpack.c.l.b16 %v6692
  %v6988 = vunpack.c.l.b16 %v6693
  %v6989 = vunpack.c.l.b16 %v6694
  %v6990 = vunpack.c.l.b16 %v6695
  %v6991 = vunpack.c.l.b16 %v6696
  %v6992 = vunpack.c.l.b16 %v6697
  %v6993 = vunpack.c.l.b16 %v6698
  %v6994 = vunpack.c.l.b16 %v6699
  %v6995 = vunpack.c.l.b16 %v6700
  %v6996 = vunpack.c.l.b16 %v6701
  %v6997 = vunpack.c.l.b16 %v6702
  %v6998 = vunpack.c.l.b16 %v6703
  %v6999 = vunpack.c.l.b16 %v6704
  %v7000 = vunpack.c.l.b16 %v6705
  %v7001 = vunpack.c.l.b16 %v6706
  %v7002 = vunpack.c.l.b16 %v6707
  %v7003 = vunpack.c.l.b16 %v6708
  %v7004 = vunpack.c.l.b16 %v6709
  %v7005 = vunpack.c.l.b16 %v6710
  %v7006 = vunpack.c.l.b16 %v6711
  %v7007 = vunpack.c.l.b16 %v6712
  %v7008 = vunpack.c.l.b16 %v6713
  %v7009 = vunpack.c.l.b16 %v6714
  %v7010 = vunpack.c.l.b16 %v6715
  %v7011 = vunpack.c.l.b16 %v6716
  %v7012 = vunpack.c.l.b16 %v6717
  %v7013 = vunpack.c.l.b16 %v6718
  %v7014 = vunpack.c.l.b16 %v6719
  %v7015 = vunpack.c.l.b16 %v6720
  %v7016 = vunpack.c.l.b16 %v6721
  %v7017 = vunpack.c.l.b16 %v6722
  %v7018 = vunpack.c.l.b16 %v6723
  %v7019 = vunpack.c.l.b16 %v6724
  %v7020 = vunpack.c.l.b16 %v6725
  %v7021 = vunpack.c.l.b16 %v6726
  %v7022 = vpack.c.b16 %v6879, %v6878
  %v7023 = vpack.c.b16 %v6881, %v6880
  %v7024 = vpack.c.b16 %v6883, %v6882
  %v7025 = vpack.c.b16 %v6885, %v6884
  %v7026 = vpack.c.b16 %v6887, %v6886
  %v7027 = vpack.c.b16 %v6889, %v6888
  %v7028 = vpack.c.b16 %v6891, %v6890
  %v7029 = vpack.c.b16 %v6893, %v6892
  %v7030 = vpack.c.b16 %v6895, %v6894
  %v7031 = vpack.c.b16 %v6897, %v6896
  %v7032 = vpack.c.b16 %v6899, %v6898
  %v7033 = vpack.c.b16 %v6901, %v6900
  %v7034 = vpack.c.b16 %v6903, %v6902
  %v7035 = vpack.c.b16 %v6905, %v6904
  %v7036 = vpack.c.b16 %v6907, %v6906
  %v7037 = vpack.c.b16 %v6909, %v6908
  %v7038 = vpack.c.b16 %v6911, %v6910
  %v7039 = vpack.c.b16 %v6913, %v6912
  %v7040 = vpack.c.b16 %v6915, %v6914
  %v7041 = vpack.c.b16 %v6917, %v6916
  %v7042 = vpack.c.b16 %v6919, %v6918
  %v7043 = vpack.c.b16 %v6921, %v6920
  %v7044 = vpack.c.b16 %v6923, %v6922
  %v7045 = vpack.c.b16 %v6925, %v6924
  %v7046 = vpack.c.b16 %v6927, %v6926
  %v7047 = vpack.c.b16 %v6929, %v6928
  %v7048 = vpack.c.b16 %v6931, %v6930
  %v7049 = vpack.c.b16 %v6933, %v6932
  %v7050 = vpack.c.b16 %v6935, %v6934
  %v7051 = vpack.c.b16 %v6937, %v6936
  %v7052 = vpack.c.b16 %v6939, %v6938
  %v7053 = vpack.c.b16 %v6941, %v6940
  %v7054 = vpack.c.b16 %v6943, %v6942
  %v7055 = vpack.c.b16 %v6945, %v6944
  %v7056 = vpack.c.b16 %v6947, %v6946
  %v7057 = vpack.c.b16 %v6949, %v6948
  %v7058 = vpack.c.b16 %v6951, %v6950
  %v7059 = vpack.c.b16 %v6953, %v6952
  %v7060 = vpack.c.b16 %v6955, %v6954
  %v7061 = vpack.c.b16 %v6957, %v6956
  %v7062 = vpack.c.b16 %v6959, %v6958
  %v7063 = vpack.c.b16 %v6961, %v6960
  %v7064 = vpack.c.b16 %v6963, %v6962
  %v7065 = vpack.c.b16 %v6965, %v6964
  %v7066 = vpack.c.b16 %v6967, %v6966
  %v7067 = vpack.c.b16 %v6969, %v6968
  %v7068 = vpack.c.b16 %v6971, %v6970
  %v7069 = vpack.c.b16 %v6973, %v6972
  %v7070 = vpack.c.b16 %v6975, %v6974
  %v7071 = vpack.c.b16 %v6977, %v6976
  %v7072 = vpack.c.b16 %v6979, %v6978
  %v7073 = vpack.c.b16 %v6981, %v6980
  %v7074 = vpack.c.b16 %v6983, %v6982
  %v7075 = vpack.c.b16 %v6985, %v6984
  %v7076 = vpack.c.b16 %v6987, %v6986
  %v7077 = vpack.c.b16 %v6989, %v6988
  %v7078 = vpack.c.b16 %v6991, %v6990
  %v7079 = vpack.c.b16 %v6993, %v6992
  %v7080 = vpack.c.b16 %v6995, %v6994
  %v7081 = vpack.c.b16 %v6997, %v6996
  %v7082 = vpack.c.b16 %v6999, %v6998
  %v7083 = vpack.c.b16 %v7001, %v7000
  %v7084 = vpack.c.b16 %v7003, %v7002
  %v7085 = vpack.c.b16 %v7005, %v7004
  %v7086 = vpack.c.b16 %v7007, %v7006
  %v7087 = vpack.c.b16 %v7009, %v7008
  %v7088 = vpack.c.b16 %v7011, %v7010
  %v7089 = vpack.c.b16 %v7013, %v7012
  %v7090 = vpack.c.b16 %v7015, %v7014
  %v7091 = vpack.c.b16 %v7017, %v7016
  %v7092 = vpack.c.b16 %v7019, %v7018
  %v7093 = vpack.c.b16 %v7021, %v7020
  %7166 = vmatprep.subr.bf16.mxu0 0
  %7167 = vmatpush1.bf16.msra.mxu0 %v7022
  %7168 = vmatprep.subr.bf16.mxu0 0
  %7169 = vmatpush1.bf16.msra.mxu0 %v7023
  %7170 = vmatprep.subr.bf16.mxu0 0
  %7171 = vmatpush1.bf16.msra.mxu0 %v7024
  %7172 = vmatprep.subr.bf16.mxu0 0
  %7173 = vmatpush1.bf16.msra.mxu0 %v7025
  %7174 = vmatprep.subr.bf16.mxu0 0
  %7175 = vmatpush1.bf16.msra.mxu0 %v7026
  %7176 = vmatprep.subr.bf16.mxu0 0
  %7177 = vmatpush1.bf16.msra.mxu0 %v7027
  %7178 = vmatprep.subr.bf16.mxu0 0
  %7179 = vmatpush1.bf16.msra.mxu0 %v7028
  %7180 = vmatprep.subr.bf16.mxu0 0
  %7181 = vmatpush1.bf16.msra.mxu0 %v7029
  %7182 = vmatprep.subr.bf16.mxu0 0
  %7183 = vmatpush1.bf16.msra.mxu0 %v7030
  %7184 = vmatprep.subr.bf16.mxu0 0
  %7185 = vmatpush1.bf16.msra.mxu0 %v7031
  %7186 = vmatprep.subr.bf16.mxu0 0
  %7187 = vmatpush1.bf16.msra.mxu0 %v7032
  %7188 = vmatprep.subr.bf16.mxu0 0
  %7189 = vmatpush1.bf16.msra.mxu0 %v7033
  %7190 = vmatprep.subr.bf16.mxu0 0
  %7191 = vmatpush1.bf16.msra.mxu0 %v7034
  %7192 = vmatprep.subr.bf16.mxu0 0
  %7193 = vmatpush1.bf16.msra.mxu0 %v7035
  %7194 = vmatprep.subr.bf16.mxu0 0
  %7195 = vmatpush1.bf16.msra.mxu0 %v7036
  %7196 = vmatprep.subr.bf16.mxu0 0
  %7197 = vmatpush1.bf16.msra.mxu0 %v7037
  %7198 = vmatprep.mubr.bf16.mxu0 %v6539
  %7199 = vmatmul.mubr.bf16.gmra.mrb[0].mxu0 %v6538
  %v7200 = vpop.f32.mrb[0].mxu0
  %v7201 = vadd.f32 %v6732, %v7200
  %v7202 = vpop.f32.mrb[0].mxu0
  %v7203 = vpop.f32.mrb[0].mxu0
  %v7204 = vadd.f32 %v6732, %v7203
  %v7205 = vpop.f32.mrb[0].mxu0
  %7206 = vmatprep.mubr.bf16.mxu0 %v6548
  %7207 = vmatmul.mubr.bf16.gmra.mrb[0].mxu0 %v6547
  %v7208 = vpop.f32.mrb[0].mxu0
  %v7209 = vadd.f32 %v6732, %v7208
  %v7210 = vpop.f32.mrb[0].mxu0
  %v7211 = vpop.f32.mrb[0].mxu0
  %v7212 = vadd.f32 %v6732, %v7211
  %v7213 = vpop.f32.mrb[0].mxu0
  %7214 = vmatprep.mubr.bf16.mxu0 %v6557
  %7215 = vmatmul.mubr.bf16.gmra.mrb[0].mxu0 %v6556
  %v7216 = vpop.f32.mrb[0].mxu0
  %v7217 = vadd.f32 %v6732, %v7216
  %v7218 = vpop.f32.mrb[0].mxu0
  %v7219 = vpop.f32.mrb[0].mxu0
  %v7220 = vadd.f32 %v6732, %v7219
  %v7221 = vpop.f32.mrb[0].mxu0
  %7222 = vmatprep.mubr.bf16.mxu0 %v6566
  %7223 = vmatmul.mubr.bf16.gmra.mrb[0].mxu0 %v6565
  %v7224 = vpop.f32.mrb[0].mxu0
  %v7225 = vadd.f32 %v6732, %v7224
  %v7226 = vpop.f32.mrb[0].mxu0
  %v7227 = vpop.f32.mrb[0].mxu0
  %v7228 = vadd.f32 %v6732, %v7227
  %v7229 = vpop.f32.mrb[0].mxu0
  %7230 = vmatprep.mubr.bf16.mxu0 %v6575
  %7231 = vmatmul.mubr.bf16.gmra.mrb[0].mxu0 %v6574
  %v7232 = vpop.f32.mrb[0].mxu0
  %v7233 = vadd.f32 %v6732, %v7232
  %v7234 = vpop.f32.mrb[0].mxu0
  %v7235 = vpop.f32.mrb[0].mxu0
  %v7236 = vpop.f32.mrb[0].mxu0
  %7237 = vdwg.mxu0
  %7238 = vmatprep.subr.bf16.mxu0 0
  %7239 = vmatpush1.bf16.msra.mxu0 %v7038
  %7240 = vmatprep.subr.bf16.mxu0 0
  %7241 = vmatpush1.bf16.msra.mxu0 %v7039
  %7242 = vmatprep.subr.bf16.mxu0 0
  %7243 = vmatpush1.bf16.msra.mxu0 %v7040
  %7244 = vmatprep.subr.bf16.mxu0 0
  %7245 = vmatpush1.bf16.msra.mxu0 %v7041
  %7246 = vmatprep.subr.bf16.mxu0 0
  %7247 = vmatpush1.bf16.msra.mxu0 %v7042
  %7248 = vmatprep.subr.bf16.mxu0 0
  %7249 = vmatpush1.bf16.msra.mxu0 %v7043
  %7250 = vmatprep.subr.bf16.mxu0 0
  %7251 = vmatpush1.bf16.msra.mxu0 %v7044
  %7252 = vmatprep.subr.bf16.mxu0 0
  %7253 = vmatpush1.bf16.msra.mxu0 %v7045
  %7254 = vmatprep.subr.bf16.mxu0 0
  %7255 = vmatpush1.bf16.msra.mxu0 %v7046
  %7256 = vmatprep.subr.bf16.mxu0 0
  %7257 = vmatpush1.bf16.msra.mxu0 %v7047
  %7258 = vmatprep.subr.bf16.mxu0 0
  %7259 = vmatpush1.bf16.msra.mxu0 %v7048
  %7260 = vmatprep.subr.bf16.mxu0 0
  %7261 = vmatpush1.bf16.msra.mxu0 %v7049
  %7262 = vmatprep.subr.bf16.mxu0 0
  %7263 = vmatpush1.bf16.msra.mxu0 %v7050
  %7264 = vmatprep.subr.bf16.mxu0 0
  %7265 = vmatpush1.bf16.msra.mxu0 %v7051
  %7266 = vmatprep.subr.bf16.mxu0 0
  %7267 = vmatpush1.bf16.msra.mxu0 %v7052
  %7268 = vmatprep.subr.bf16.mxu0 0
  %7269 = vmatpush1.bf16.msra.mxu0 %v7053
  %7270 = vmatprep.mubr.bf16.mxu0 %v6541
  %7271 = vmatmul.mubr.bf16.gmra.mrb[0].mxu0 %v6540
  %v7272 = vpop.f32.mrb[0].mxu0
  %v7273 = vadd.f32 %v7201, %v7272
  %v7274 = vpop.f32.mrb[0].mxu0
  %v7275 = vpop.f32.mrb[0].mxu0
  %v7276 = vadd.f32 %v7204, %v7275
  %v7277 = vpop.f32.mrb[0].mxu0
  %7278 = vmatprep.mubr.bf16.mxu0 %v6550
  %7279 = vmatmul.mubr.bf16.gmra.mrb[0].mxu0 %v6549
  %v7280 = vpop.f32.mrb[0].mxu0
  %v7281 = vadd.f32 %v7209, %v7280
  %v7282 = vpop.f32.mrb[0].mxu0
  %v7283 = vpop.f32.mrb[0].mxu0
  %v7284 = vadd.f32 %v7212, %v7283
  %v7285 = vpop.f32.mrb[0].mxu0
  %7286 = vmatprep.mubr.bf16.mxu0 %v6559
  %7287 = vmatmul.mubr.bf16.gmra.mrb[0].mxu0 %v6558
  %v7288 = vpop.f32.mrb[0].mxu0
  %v7289 = vadd.f32 %v7217, %v7288
  %v7290 = vpop.f32.mrb[0].mxu0
  %v7291 = vpop.f32.mrb[0].mxu0
  %v7292 = vadd.f32 %v7220, %v7291
  %v7293 = vpop.f32.mrb[0].mxu0
  %7294 = vmatprep.mubr.bf16.mxu0 %v6568
  %7295 = vmatmul.mubr.bf16.gmra.mrb[0].mxu0 %v6567
  %v7296 = vpop.f32.mrb[0].mxu0
  %v7297 = vadd.f32 %v7225, %v7296
  %v7298 = vpop.f32.mrb[0].mxu0
  %v7299 = vpop.f32.mrb[0].mxu0
  %v7300 = vadd.f32 %v7228, %v7299
  %v7301 = vpop.f32.mrb[0].mxu0
  %7302 = vmatprep.mubr.bf16.mxu0 %v6577
  %7303 = vmatmul.mubr.bf16.gmra.mrb[0].mxu0 %v6576
  %v7304 = vpop.f32.mrb[0].mxu0
  %v7305 = vadd.f32 %v7233, %v7304
  %v7306 = vpop.f32.mrb[0].mxu0
  %v7307 = vpop.f32.mrb[0].mxu0
  %v7308 = vpop.f32.mrb[0].mxu0
  %7309 = vdwg.mxu0
  %7310 = vmatprep.subr.bf16.mxu0 0
  %7311 = vmatpush1.bf16.msra.mxu0 %v7054
  %7312 = vmatprep.subr.bf16.mxu0 0
  %7313 = vmatpush1.bf16.msra.mxu0 %v7055
  %7314 = vmatprep.subr.bf16.mxu0 0
  %7315 = vmatpush1.bf16.msra.mxu0 %v7056
  %7316 = vmatprep.subr.bf16.mxu0 0
  %7317 = vmatpush1.bf16.msra.mxu0 %v7057
  %7318 = vmatprep.subr.bf16.mxu0 0
  %7319 = vmatpush1.bf16.msra.mxu0 %v7058
  %7320 = vmatprep.subr.bf16.mxu0 0
  %7321 = vmatpush1.bf16.msra.mxu0 %v7059
  %7322 = vmatprep.subr.bf16.mxu0 0
  %7323 = vmatpush1.bf16.msra.mxu0 %v7060
  %7324 = vmatprep.subr.bf16.mxu0 0
  %7325 = vmatpush1.bf16.msra.mxu0 %v7061
  %7326 = vmatprep.subr.bf16.mxu0 0
  %7327 = vmatpush1.bf16.msra.mxu0 %v7062
  %7328 = vmatprep.subr.bf16.mxu0 0
  %7329 = vmatpush1.bf16.msra.mxu0 %v7063
  %7330 = vmatprep.subr.bf16.mxu0 0
  %7331 = vmatpush1.bf16.msra.mxu0 %v7064
  %7332 = vmatprep.subr.bf16.mxu0 0
  %7333 = vmatpush1.bf16.msra.mxu0 %v7065
  %7334 = vmatprep.subr.bf16.mxu0 0
  %7335 = vmatpush1.bf16.msra.mxu0 %v7066
  %7336 = vmatprep.subr.bf16.mxu0 0
  %7337 = vmatpush1.bf16.msra.mxu0 %v7067
  %7338 = vmatprep.subr.bf16.mxu0 0
  %7339 = vmatpush1.bf16.msra.mxu0 %v7068
  %7340 = vmatprep.subr.bf16.mxu0 0
  %7341 = vmatpush1.bf16.msra.mxu0 %v7069
  %7342 = vmatprep.mubr.bf16.mxu0 %v6543
  %7343 = vmatmul.mubr.bf16.gmra.mrb[0].mxu0 %v6542
  %v7344 = vpop.f32.mrb[0].mxu0
  %v7345 = vadd.f32 %v7273, %v7344
  %v7346 = vpop.f32.mrb[0].mxu0
  %v7347 = vpop.f32.mrb[0].mxu0
  %v7348 = vadd.f32 %v7276, %v7347
  %v7349 = vpop.f32.mrb[0].mxu0
  %7350 = vmatprep.mubr.bf16.mxu0 %v6552
  %7351 = vmatmul.mubr.bf16.gmra.mrb[0].mxu0 %v6551
  %v7352 = vpop.f32.mrb[0].mxu0
  %v7353 = vadd.f32 %v7281, %v7352
  %v7354 = vpop.f32.mrb[0].mxu0
  %v7355 = vpop.f32.mrb[0].mxu0
  %v7356 = vadd.f32 %v7284, %v7355
  %v7357 = vpop.f32.mrb[0].mxu0
  %7358 = vmatprep.mubr.bf16.mxu0 %v6561
  %7359 = vmatmul.mubr.bf16.gmra.mrb[0].mxu0 %v6560
  %v7360 = vpop.f32.mrb[0].mxu0
  %v7361 = vadd.f32 %v7289, %v7360
  %v7362 = vpop.f32.mrb[0].mxu0
  %v7363 = vpop.f32.mrb[0].mxu0
  %v7364 = vadd.f32 %v7292, %v7363
  %v7365 = vpop.f32.mrb[0].mxu0
  %7366 = vmatprep.mubr.bf16.mxu0 %v6570
  %7367 = vmatmul.mubr.bf16.gmra.mrb[0].mxu0 %v6569
  %v7368 = vpop.f32.mrb[0].mxu0
  %v7369 = vadd.f32 %v7297, %v7368
  %v7370 = vpop.f32.mrb[0].mxu0
  %v7371 = vpop.f32.mrb[0].mxu0
  %v7372 = vadd.f32 %v7300, %v7371
  %v7373 = vpop.f32.mrb[0].mxu0
  %7374 = vmatprep.mubr.bf16.mxu0 %v6579
  %7375 = vmatmul.mubr.bf16.gmra.mrb[0].mxu0 %v6578
  %v7376 = vpop.f32.mrb[0].mxu0
  %v7377 = vadd.f32 %v7305, %v7376
  %v7378 = vpop.f32.mrb[0].mxu0
  %v7379 = vpop.f32.mrb[0].mxu0
  %v7380 = vpop.f32.mrb[0].mxu0
  %7381 = vdwg.mxu0
  %7382 = vmatprep.subr.bf16.mxu0 0
  %7383 = vmatpush1.bf16.msra.mxu0 %v7070
  %7384 = vmatprep.subr.bf16.mxu0 0
  %7385 = vmatpush1.bf16.msra.mxu0 %v7071
  %7386 = vmatprep.subr.bf16.mxu0 0
  %7387 = vmatpush1.bf16.msra.mxu0 %v7072
  %7388 = vmatprep.subr.bf16.mxu0 0
  %7389 = vmatpush1.bf16.msra.mxu0 %v7073
  %7390 = vmatprep.subr.bf16.mxu0 0
  %7391 = vmatpush1.bf16.msra.mxu0 %v7074
  %7392 = vmatprep.subr.bf16.mxu0 0
  %7393 = vmatpush1.bf16.msra.mxu0 %v7075
  %7394 = vmatprep.subr.bf16.mxu0 0
  %7395 = vmatpush1.bf16.msra.mxu0 %v7076
  %7396 = vmatprep.subr.bf16.mxu0 0
  %7397 = vmatpush1.bf16.msra.mxu0 %v7077
  %7398 = vmatprep.subr.bf16.mxu0 0
  %7399 = vmatpush1.bf16.msra.mxu0 %v7078
  %7400 = vmatprep.subr.bf16.mxu0 0
  %7401 = vmatpush1.bf16.msra.mxu0 %v7079
  %7402 = vmatprep.subr.bf16.mxu0 0
  %7403 = vmatpush1.bf16.msra.mxu0 %v7080
  %7404 = vmatprep.subr.bf16.mxu0 0
  %7405 = vmatpush1.bf16.msra.mxu0 %v7081
  %7406 = vmatprep.subr.bf16.mxu0 0
  %7407 = vmatpush1.bf16.msra.mxu0 %v7082
  %7408 = vmatprep.subr.bf16.mxu0 0
  %7409 = vmatpush1.bf16.msra.mxu0 %v7083
  %7410 = vmatprep.subr.bf16.mxu0 0
  %7411 = vmatpush1.bf16.msra.mxu0 %v7084
  %7412 = vmatprep.subr.bf16.mxu0 0
  %7413 = vmatpush1.bf16.msra.mxu0 %v7085
  %7414 = vmatprep.mubr.bf16.mxu0 %v6545
  %7415 = vmatmul.mubr.bf16.gmra.mrb[0].mxu0 %v6544
  %v7416 = vpop.f32.mrb[0].mxu0
  %v7417 = vadd.f32 %v7345, %v7416
  %v7418 = vpop.f32.mrb[0].mxu0
  %v7419 = vpop.f32.mrb[0].mxu0
  %v7420 = vadd.f32 %v7348, %v7419
  %v7421 = vpop.f32.mrb[0].mxu0
  %7422 = vmatprep.mubr.bf16.mxu0 %v6554
  %7423 = vmatmul.mubr.bf16.gmra.mrb[0].mxu0 %v6553
  %v7424 = vpop.f32.mrb[0].mxu0
  %v7425 = vadd.f32 %v7353, %v7424
  %v7426 = vpop.f32.mrb[0].mxu0
  %v7427 = vpop.f32.mrb[0].mxu0
  %v7428 = vadd.f32 %v7356, %v7427
  %v7429 = vpop.f32.mrb[0].mxu0
  %7430 = vmatprep.mubr.bf16.mxu0 %v6563
  %7431 = vmatmul.mubr.bf16.gmra.mrb[0].mxu0 %v6562
  %v7432 = vpop.f32.mrb[0].mxu0
  %v7433 = vadd.f32 %v7361, %v7432
  %v7434 = vpop.f32.mrb[0].mxu0
  %v7435 = vpop.f32.mrb[0].mxu0
  %v7436 = vadd.f32 %v7364, %v7435
  %v7437 = vpop.f32.mrb[0].mxu0
  %7438 = vmatprep.mubr.bf16.mxu0 %v6572
  %7439 = vmatmul.mubr.bf16.gmra.mrb[0].mxu0 %v6571
  %v7440 = vpop.f32.mrb[0].mxu0
  %v7441 = vadd.f32 %v7369, %v7440
  %v7442 = vpop.f32.mrb[0].mxu0
  %v7443 = vpop.f32.mrb[0].mxu0
  %v7444 = vadd.f32 %v7372, %v7443
  %v7445 = vpop.f32.mrb[0].mxu0
  %7446 = vmatprep.mubr.bf16.mxu0 %v6581
  %7447 = vmatmul.mubr.bf16.gmra.mrb[0].mxu0 %v6580
  %v7448 = vpop.f32.mrb[0].mxu0
  %v7449 = vadd.f32 %v7377, %v7448
  %v7450 = vpop.f32.mrb[0].mxu0
  %v7451 = vpop.f32.mrb[0].mxu0
  %v7452 = vpop.f32.mrb[0].mxu0
  %7453 = vdwg.mxu0
  %7454 = vmatprep.subr.bf16.mxu0 0
  %7455 = vmatpush1.bf16.msra.mxu0 %v7086
  %7456 = vmatprep.subr.bf16.mxu0 0
  %7457 = vmatpush1.bf16.msra.mxu0 %v7087
  %7458 = vmatprep.subr.bf16.mxu0 0
  %7459 = vmatpush1.bf16.msra.mxu0 %v7088
  %7460 = vmatprep.subr.bf16.mxu0 0
  %7461 = vmatpush1.bf16.msra.mxu0 %v7089
  %7462 = vmatprep.subr.bf16.mxu0 0
  %7463 = vmatpush1.bf16.msra.mxu0 %v7090
  %7464 = vmatprep.subr.bf16.mxu0 0
  %7465 = vmatpush1.bf16.msra.mxu0 %v7091
  %7466 = vmatprep.subr.bf16.mxu0 0
  %7467 = vmatpush1.bf16.msra.mxu0 %v7092
  %7468 = vmatprep.subr.bf16.mxu0 0
  %7469 = vmatpush1.bf16.msra.mxu0 %v7093
  %7470 = vmatprep.subr.bf16.mxu0 0
  %7471 = vmatpush1.bf16.msra.mxu0 0
  %7472 = vmatprep.subr.bf16.mxu0 0
  %7473 = vmatpush1.bf16.msra.mxu0 0
  %7474 = vmatprep.subr.bf16.mxu0 0
  %7475 = vmatpush1.bf16.msra.mxu0 0
  %7476 = vmatprep.subr.bf16.mxu0 0
  %7477 = vmatpush1.bf16.msra.mxu0 0
  %7478 = vmatprep.subr.bf16.mxu0 0
  %7479 = vmatpush1.bf16.msra.mxu0 0
  %7480 = vmatprep.subr.bf16.mxu0 0
  %7481 = vmatpush1.bf16.msra.mxu0 0
  %7482 = vmatprep.subr.bf16.mxu0 0
  %7483 = vmatpush1.bf16.msra.mxu0 0
  %7484 = vmatprep.subr.bf16.mxu0 0
  %7485 = vmatpush1.bf16.msra.mxu0 0
  %7486 = vmatprep.mubr.bf16.mxu0 0
  %7487 = vmatmul.mubr.bf16.gmra.mrb[0].mxu0 %v6546
  %v7488 = vpop.f32.mrb[0].mxu0
  %v7489 = vadd.f32 %v7417, %v7488
  %v7490 = vpop.f32.mrb[0].mxu0
  %v7491 = vpop.f32.mrb[0].mxu0
  %v7492 = vadd.f32 %v7420, %v7491
  %v7493 = vpop.f32.mrb[0].mxu0
  %7494 = vmatprep.mubr.bf16.mxu0 0
  %7495 = vmatmul.mubr.bf16.gmra.mrb[0].mxu0 %v6555
  %v7496 = vpop.f32.mrb[0].mxu0
  %v7497 = vadd.f32 %v7425, %v7496
  %v7498 = vpop.f32.mrb[0].mxu0
  %v7499 = vpop.f32.mrb[0].mxu0
  %v7500 = vadd.f32 %v7428, %v7499
  %v7501 = vpop.f32.mrb[0].mxu0
  %7502 = vmatprep.mubr.bf16.mxu0 0
  %7503 = vmatmul.mubr.bf16.gmra.mrb[0].mxu0 %v6564
  %v7504 = vpop.f32.mrb[0].mxu0
  %v7505 = vadd.f32 %v7433, %v7504
  %v7506 = vpop.f32.mrb[0].mxu0
  %v7507 = vpop.f32.mrb[0].mxu0
  %v7508 = vadd.f32 %v7436, %v7507
  %v7509 = vpop.f32.mrb[0].mxu0
  %7510 = vmatprep.mubr.bf16.mxu0 0
  %7511 = vmatmul.mubr.bf16.gmra.mrb[0].mxu0 %v6573
  %v7512 = vpop.f32.mrb[0].mxu0
  %v7513 = vadd.f32 %v7441, %v7512
  %v7514 = vpop.f32.mrb[0].mxu0
  %v7515 = vpop.f32.mrb[0].mxu0
  %v7516 = vadd.f32 %v7444, %v7515
  %v7517 = vpop.f32.mrb[0].mxu0
  %7518 = vmatprep.mubr.bf16.mxu0 0
  %7519 = vmatmul.mubr.bf16.gmra.mrb[0].mxu0 %v6582
  %v7520 = vpop.f32.mrb[0].mxu0
  %v7521 = vadd.f32 %v7449, %v7520
  %v7522 = vpop.f32.mrb[0].mxu0
  %v7523 = vpop.f32.mrb[0].mxu0
  %v7524 = vpop.f32.mrb[0].mxu0
  %7525 = vdwg.mxu0
  %v7526 = vmax.f32 %v7489, 0.0
  %v7527 = vmax.f32 %v7492, 0.0
  %v7528 = vmax.f32 %v7497, 0.0
  %v7529 = vmax.f32 %v7500, 0.0
  %v7530 = vmax.f32 %v7505, 0.0
  %v7531 = vmax.f32 %v7508, 0.0
  %v7532 = vmax.f32 %v7513, 0.0
  %v7533 = vmax.f32 %v7516, 0.0
  %v7534 = vmax.f32 %v7521, 0.0
  %vm7544 = vcmask 1041408
  %v7545 = vrot.slane %v7526, 6
  %v7546 = vrot.slane %v7527, 6
  %v7547 = vsel %vm7544, %v7545, %v7546
  %v7548 = vrot.slane %v7528, 6
  %v7549 = vsel %vm7544, %v7546, %v7548
  %v7550 = vrot.slane %v7529, 6
  %v7551 = vsel %vm7544, %v7548, %v7550
  %v7552 = vrot.slane %v7530, 6
  %v7553 = vsel %vm7544, %v7550, %v7552
  %v7554 = vrot.slane %v7531, 6
  %v7555 = vsel %vm7544, %v7552, %v7554
  %v7556 = vrot.slane %v7532, 6
  %v7557 = vsel %vm7544, %v7554, %v7556
  %v7558 = vrot.slane %v7533, 6
  %v7559 = vsel %vm7544, %v7556, %v7558
  %v7560 = vrot.slane %v7534, 6
  %v7561 = vsel %vm7544, %v7558, %v7560
  %v7571 = vmax.f32 %v7526, %v7547
  %v7572 = vmax.f32 %v7527, %v7549
  %v7573 = vmax.f32 %v7528, %v7551
  %v7574 = vmax.f32 %v7529, %v7553
  %v7575 = vmax.f32 %v7530, %v7555
  %v7576 = vmax.f32 %v7531, %v7557
  %v7577 = vmax.f32 %v7532, %v7559
  %v7578 = vmax.f32 %v7533, %v7561
  %v7579 = vmax.f32 %v7534, %v7560
  %7580 = vst [vmem:[#allocation7] sm:$0xff] %v7571
  %7581 = vst [vmem:[#allocation7 + $0x8] sm:$0xff] %v7572
  %7582 = vst [vmem:[#allocation7 + $0x10] sm:$0xff] %v7573
  %7583 = vst [vmem:[#allocation7 + $0x18] sm:$0xff] %v7574
  %7584 = vst [vmem:[#allocation7 + $0x20] sm:$0xff] %v7575
  %7585 = vst [vmem:[#allocation7 + $0x28] sm:$0xff] %v7576
  %7586 = vst [vmem:[#allocation7 + $0x30] sm:$0xff] %v7577
  %7587 = vst [vmem:[#allocation7 + $0x38] sm:$0xff] %v7578
  %7588 = vst [vmem:[#allocation7 + $0x40] sm:$0x3] %v7579
  %s7589 = scalar_lea.vmem [#allocation7], 7
  %v7590 = vld [vmem:[%s7589] ss:$2 sm:$0x3]
  %s7591 = scalar_lea.vmem [#allocation7], 8
  %v7592 = vld [vmem:[%s7591] ss:$2 sm:$0x3]
  %v7593 = vmax.f32 %v7590, %v7592
  %7594 = vst [vmem:[#allocation4 + $0xa] sm:$0x3] %v7593
  %s7595 = scalar_lea.vmem [#allocation7], 19
  %v7596 = vld [vmem:[%s7595] ss:$2 sm:$0x3]
  %s7597 = scalar_lea.vmem [#allocation7], 20
  %v7598 = vld [vmem:[%s7597] ss:$2 sm:$0x3]
  %v7599 = vmax.f32 %v7596, %v7598
  %7600 = vst [vmem:[#allocation4 + $0xe] sm:$0x3] %v7599
  %s7601 = scalar_lea.vmem [#allocation7], 43
  %v7602 = vld [vmem:[%s7601] ss:$2 sm:$0x3]
  %s7603 = scalar_lea.vmem [#allocation7], 44
  %v7604 = vld [vmem:[%s7603] ss:$2 sm:$0x3]
  %v7605 = vmax.f32 %v7602, %v7604
  %7606 = vst [vmem:[#allocation4 + $0x1a] sm:$0x3] %v7605
  %s7607 = scalar_lea.vmem [#allocation7], 55
  %v7608 = vld [vmem:[%s7607] ss:$2 sm:$0x3]
  %s7609 = scalar_lea.vmem [#allocation7], 56
  %v7610 = vld [vmem:[%s7609] ss:$2 sm:$0x3]
  %v7611 = vmax.f32 %v7608, %v7610
  %7612 = vst [vmem:[#allocation4 + $0x1e] sm:$0x3] %v7611
  %v7613 = vld [vmem:[#allocation4] sm:$0xff]
  %v7614 = vld [vmem:[#allocation4 + $0x8] sm:$0xff]
  %v7615 = vld [vmem:[#allocation4 + $0x10] sm:$0xff]
  %v7616 = vld [vmem:[#allocation4 + $0x18] sm:$0xff]
  %v7617 = vld [vmem:[#allocation4 + $0x1] sm:$0xff]
  %v7618 = vld [vmem:[#allocation4 + $0x9] sm:$0xff]
  %v7619 = vld [vmem:[#allocation4 + $0x11] sm:$0xff]
  %v7620 = vld [vmem:[#allocation4 + $0x19] sm:$0xff]
  %v7621 = vld [vmem:[#allocation4 + $0x2] sm:$0xff]
  %v7622 = vld [vmem:[#allocation4 + $0xa] sm:$0xff]
  %v7623 = vld [vmem:[#allocation4 + $0x12] sm:$0xff]
  %v7624 = vld [vmem:[#allocation4 + $0x1a] sm:$0xff]
  %v7625 = vld [vmem:[#allocation4 + $0x4] sm:$0xff]
  %v7626 = vld [vmem:[#allocation4 + $0xc] sm:$0xff]
  %v7627 = vld [vmem:[#allocation4 + $0x14] sm:$0xff]
  %v7628 = vld [vmem:[#allocation4 + $0x1c] sm:$0xff]
  %v7629 = vld [vmem:[#allocation4 + $0x5] sm:$0xff]
  %v7630 = vld [vmem:[#allocation4 + $0xd] sm:$0xff]
  %v7631 = vld [vmem:[#allocation4 + $0x15] sm:$0xff]
  %v7632 = vld [vmem:[#allocation4 + $0x1d] sm:$0xff]
  %v7633 = vld [vmem:[#allocation4 + $0x6] sm:$0xff]
  %v7634 = vld [vmem:[#allocation4 + $0xe] sm:$0xff]
  %v7635 = vld [vmem:[#allocation4 + $0x16] sm:$0xff]
  %v7636 = vld [vmem:[#allocation4 + $0x1e] sm:$0xff]
  %v7637 = vld [vmem:[#allocation4 + $0x20] sm:$0xff]
  %v7638 = vld [vmem:[#allocation4 + $0x21] sm:$0xff]
  %v7639 = vld [vmem:[#allocation4 + $0xa] sm:$0xff]
  %v7640 = vld [vmem:[#allocation4 + $0x12] sm:$0xff]
  %v7641 = vld [vmem:[#allocation4 + $0x1a] sm:$0xff]
  %v7642 = vld [vmem:[#allocation4 + $0x22] sm:$0xff]
  %v7643 = vpack.c.bf16 %v7614, %v7613
  %v7644 = vpack.c.bf16 %v7618, %v7617
  %v7645 = vpack.c.bf16 %v7622, %v7621
  %v7646 = vpack.c.bf16 %v7626, %v7625
  %v7647 = vpack.c.bf16 %v7630, %v7629
  %v7648 = vpack.c.bf16 %v7634, %v7633
  %v7649 = vpack.c.bf16 %v7615, %v7614
  %v7650 = vpack.c.bf16 %v7619, %v7618
  %v7651 = vpack.c.bf16 %v7640, %v7639
  %v7652 = vpack.c.bf16 %v7616, %v7615
  %v7653 = vpack.c.bf16 %v7620, %v7619
  %v7654 = vpack.c.bf16 %v7624, %v7623
  %v7655 = vpack.c.bf16 %v7628, %v7627
  %v7656 = vpack.c.bf16 %v7632, %v7631
  %v7657 = vpack.c.bf16 %v7636, %v7635
  %v7658 = vpack.c.bf16 %v7637, %v7616
  %v7659 = vpack.c.bf16 %v7638, %v7620
  %v7660 = vpack.c.bf16 %v7642, %v7641
  %v7661 = vld [vmem:[%s4] sm:$0xff]
  %v7662 = vld [vmem:[%s4 + $0x8] sm:$0xff]
  %v7663 = vld [vmem:[%s4 + $0x10] sm:$0xff]
  %v7664 = vld [vmem:[%s4 + $0x18] sm:$0xff]
  %v7665 = vld [vmem:[%s4 + $0x20] sm:$0xff]
  %v7666 = vld [vmem:[%s4 + $0x28] sm:$0xff]
  %v7667 = vld [vmem:[%s4 + $0x30] sm:$0xff]
  %v7668 = vld [vmem:[%s4 + $0x38] sm:$0xff]
  %v7669 = vld [vmem:[%s4 + $0x40] sm:$0xff]
  %v7670 = vld [vmem:[%s4 + $0x48] sm:$0xff]
  %v7671 = vld [vmem:[%s4 + $0x50] sm:$0xff]
  %v7672 = vld [vmem:[%s4 + $0x58] sm:$0xff]
  %v7673 = vld [vmem:[%s4 + $0x60] sm:$0xff]
  %v7674 = vld [vmem:[%s4 + $0x68] sm:$0xff]
  %v7675 = vld [vmem:[%s4 + $0x70] sm:$0xff]
  %v7676 = vld [vmem:[%s4 + $0x78] sm:$0xff]
  %v7677 = vld [vmem:[%s4 + $0x80] sm:$0xff]
  %v7678 = vld [vmem:[%s4 + $0x88] sm:$0xff]
  %v7679 = vld [vmem:[%s4 + $0x90] sm:$0xff]
  %v7680 = vld [vmem:[%s4 + $0x98] sm:$0xff]
  %v7681 = vld [vmem:[%s4 + $0xa0] sm:$0xff]
  %v7682 = vld [vmem:[%s4 + $0xa8] sm:$0xff]
  %v7683 = vld [vmem:[%s4 + $0xb0] sm:$0xff]
  %v7684 = vld [vmem:[%s4 + $0xb8] sm:$0xff]
  %v7685 = vld [vmem:[%s4 + $0xc0] sm:$0xff]
  %v7686 = vld [vmem:[%s4 + $0xc8] sm:$0xff]
  %v7687 = vld [vmem:[%s4 + $0xd0] sm:$0xff]
  %v7688 = vld [vmem:[%s4 + $0xd8] sm:$0xff]
  %v7689 = vld [vmem:[%s4 + $0xe0] sm:$0xff]
  %v7690 = vld [vmem:[%s4 + $0xe8] sm:$0xff]
  %v7691 = vld [vmem:[%s4 + $0xf0] sm:$0xff]
  %v7692 = vld [vmem:[%s4 + $0xf8] sm:$0xff]
  %v7693 = vld [vmem:[%s4 + $0x100] sm:$0xff]
  %v7694 = vld [vmem:[%s4 + $0x108] sm:$0xff]
  %v7695 = vld [vmem:[%s4 + $0x110] sm:$0xff]
  %v7696 = vld [vmem:[%s4 + $0x118] sm:$0xff]
  %v7697 = vld [vmem:[%s4 + $0x120] sm:$0xff]
  %v7698 = vld [vmem:[%s4 + $0x128] sm:$0xff]
  %v7699 = vld [vmem:[%s4 + $0x130] sm:$0xff]
  %v7700 = vld [vmem:[%s4 + $0x138] sm:$0xff]
  %v7701 = vld [vmem:[%s4 + $0x140] sm:$0xff]
  %v7702 = vld [vmem:[%s4 + $0x148] sm:$0xff]
  %v7703 = vld [vmem:[%s4 + $0x150] sm:$0xff]
  %v7704 = vld [vmem:[%s4 + $0x158] sm:$0xff]
  %v7705 = vld [vmem:[%s4 + $0x160] sm:$0xff]
  %v7706 = vld [vmem:[%s4 + $0x168] sm:$0xff]
  %v7707 = vld [vmem:[%s4 + $0x170] sm:$0xff]
  %v7708 = vld [vmem:[%s4 + $0x178] sm:$0xff]
  %v7709 = vld [vmem:[%s4 + $0x180] sm:$0xff]
  %v7710 = vld [vmem:[%s4 + $0x188] sm:$0xff]
  %v7711 = vld [vmem:[%s4 + $0x190] sm:$0xff]
  %v7712 = vld [vmem:[%s4 + $0x198] sm:$0xff]
  %v7713 = vld [vmem:[%s4 + $0x1a0] sm:$0xff]
  %v7714 = vld [vmem:[%s4 + $0x1a8] sm:$0xff]
  %v7715 = vld [vmem:[%s4 + $0x1b0] sm:$0xff]
  %v7716 = vld [vmem:[%s4 + $0x1b8] sm:$0xff]
  %v7717 = vld [vmem:[%s4 + $0x1c0] sm:$0xff]
  %v7718 = vld [vmem:[%s4 + $0x1c8] sm:$0xff]
  %v7719 = vld [vmem:[%s4 + $0x1d0] sm:$0xff]
  %v7720 = vld [vmem:[%s4 + $0x1d8] sm:$0xff]
  %v7721 = vld [vmem:[%s4 + $0x1e0] sm:$0xff]
  %v7722 = vld [vmem:[%s4 + $0x1e8] sm:$0xff]
  %v7723 = vld [vmem:[%s4 + $0x1f0] sm:$0xff]
  %v7724 = vld [vmem:[%s4 + $0x1f8] sm:$0xff]
  %v7725 = vld [vmem:[%s4 + $0x200] sm:$0xff]
  %v7726 = vld [vmem:[%s4 + $0x208] sm:$0xff]
  %v7727 = vld [vmem:[%s4 + $0x210] sm:$0xff]
  %v7728 = vld [vmem:[%s4 + $0x218] sm:$0xff]
  %v7729 = vld [vmem:[%s4 + $0x220] sm:$0xff]
  %v7730 = vld [vmem:[%s4 + $0x228] sm:$0xff]
  %v7731 = vld [vmem:[%s4 + $0x230] sm:$0xff]
  %v7732 = vld [vmem:[%s4 + $0x238] sm:$0xff]
  %v7733 = vld [vmem:[%s4 + $0x240] sm:$0xff]
  %v7734 = vld [vmem:[%s4 + $0x248] sm:$0xff]
  %v7735 = vld [vmem:[%s4 + $0x250] sm:$0xff]
  %v7736 = vld [vmem:[%s4 + $0x258] sm:$0xff]
  %v7737 = vld [vmem:[%s4 + $0x260] sm:$0xff]
  %v7738 = vld [vmem:[%s4 + $0x268] sm:$0xff]
  %v7739 = vld [vmem:[%s4 + $0x270] sm:$0xff]
  %v7740 = vld [vmem:[%s4 + $0x278] sm:$0xff]
  %v7741 = vld [vmem:[%s4 + $0x280] sm:$0xff]
  %v7742 = vld [vmem:[%s4 + $0x288] sm:$0xff]
  %v7743 = vld [vmem:[%s4 + $0x290] sm:$0xff]
  %v7744 = vld [vmem:[%s4 + $0x298] sm:$0xff]
  %v7745 = vld [vmem:[%s4 + $0x2a0] sm:$0xff]
  %v7746 = vld [vmem:[%s4 + $0x2a8] sm:$0xff]
  %v7747 = vld [vmem:[%s4 + $0x2b0] sm:$0xff]
  %v7748 = vld [vmem:[%s4 + $0x2b8] sm:$0xff]
  %v7749 = vld [vmem:[%s4 + $0x2c0] sm:$0xff]
  %v7750 = vld [vmem:[%s4 + $0x2c8] sm:$0xff]
  %v7751 = vld [vmem:[%s4 + $0x2d0] sm:$0xff]
  %v7752 = vld [vmem:[%s4 + $0x2d8] sm:$0xff]
  %v7753 = vld [vmem:[%s4 + $0x2e0] sm:$0xff]
  %v7754 = vld [vmem:[%s4 + $0x2e8] sm:$0xff]
  %v7755 = vld [vmem:[%s4 + $0x2f0] sm:$0xff]
  %v7756 = vld [vmem:[%s4 + $0x2f8] sm:$0xff]
  %v7757 = vld [vmem:[%s4 + $0x300] sm:$0xff]
  %v7758 = vld [vmem:[%s4 + $0x308] sm:$0xff]
  %v7759 = vld [vmem:[%s4 + $0x310] sm:$0xff]
  %v7760 = vld [vmem:[%s4 + $0x318] sm:$0xff]
  %v7761 = vld [vmem:[%s4 + $0x320] sm:$0xff]
  %v7762 = vld [vmem:[%s4 + $0x328] sm:$0xff]
  %v7763 = vld [vmem:[%s4 + $0x330] sm:$0xff]
  %v7764 = vld [vmem:[%s4 + $0x338] sm:$0xff]
  %v7765 = vld [vmem:[%s4 + $0x340] sm:$0xff]
  %v7766 = vld [vmem:[%s4 + $0x348] sm:$0xff]
  %v7767 = vld [vmem:[%s4 + $0x350] sm:$0xff]
  %v7768 = vld [vmem:[%s4 + $0x358] sm:$0xff]
  %v7769 = vld [vmem:[%s4 + $0x360] sm:$0xff]
  %v7770 = vld [vmem:[%s4 + $0x368] sm:$0xff]
  %v7771 = vld [vmem:[%s4 + $0x370] sm:$0xff]
  %v7772 = vld [vmem:[%s4 + $0x378] sm:$0xff]
  %v7773 = vld [vmem:[%s4 + $0x380] sm:$0xff]
  %v7774 = vld [vmem:[%s4 + $0x388] sm:$0xff]
  %v7775 = vld [vmem:[%s4 + $0x390] sm:$0xff]
  %v7776 = vld [vmem:[%s4 + $0x398] sm:$0xff]
  %v7777 = vld [vmem:[%s4 + $0x3a0] sm:$0xff]
  %v7778 = vld [vmem:[%s4 + $0x3a8] sm:$0xff]
  %v7779 = vld [vmem:[%s4 + $0x3b0] sm:$0xff]
  %v7780 = vld [vmem:[%s4 + $0x3b8] sm:$0xff]
  %v7781 = vld [vmem:[%s4 + $0x3c0] sm:$0xff]
  %v7782 = vld [vmem:[%s4 + $0x3c8] sm:$0xff]
  %v7783 = vld [vmem:[%s4 + $0x3d0] sm:$0xff]
  %v7784 = vld [vmem:[%s4 + $0x3d8] sm:$0xff]
  %v7785 = vld [vmem:[%s4 + $0x3e0] sm:$0xff]
  %v7786 = vld [vmem:[%s4 + $0x3e8] sm:$0xff]
  %v7787 = vld [vmem:[%s4 + $0x3f0] sm:$0xff]
  %v7788 = vld [vmem:[%s4 + $0x3f8] sm:$0xff]
  %v7789 = vld [vmem:[%s4 + $0x400] sm:$0xff]
  %v7790 = vld [vmem:[%s4 + $0x408] sm:$0xff]
  %v7791 = vld [vmem:[%s4 + $0x410] sm:$0xff]
  %v7792 = vld [vmem:[%s4 + $0x418] sm:$0xff]
  %v7793 = vld [vmem:[%s4 + $0x420] sm:$0xff]
  %v7794 = vld [vmem:[%s4 + $0x428] sm:$0xff]
  %v7795 = vld [vmem:[%s4 + $0x430] sm:$0xff]
  %v7796 = vld [vmem:[%s4 + $0x438] sm:$0xff]
  %v7797 = vld [vmem:[%s4 + $0x440] sm:$0xff]
  %v7798 = vld [vmem:[%s4 + $0x448] sm:$0xff]
  %v7799 = vld [vmem:[%s4 + $0x450] sm:$0xff]
  %v7800 = vld [vmem:[%s4 + $0x458] sm:$0xff]
  %v7801 = vld [vmem:[%s4 + $0x460] sm:$0xff]
  %v7802 = vld [vmem:[%s4 + $0x468] sm:$0xff]
  %v7803 = vld [vmem:[%s4 + $0x470] sm:$0xff]
  %v7804 = vld [vmem:[%s4 + $0x478] sm:$0xff]
  %v7805 = vld [vmem:[%s8] sm:$0x3]
  %v7807 = vlaneseq
  %v7808 = vshrl.u32 %v7807, 7
  %v7809 = vsub.s32 0, %v7808
  %v7810 = vrot.slane %v7805, %v7809
  %v7811 = vlaneseq
  %v7812 = vshrl.u32 %v7811, 7
  %v7813 = vsub.s32 1, %v7812
  %v7814 = vrot.slane %v7805, %v7813
  %v7961 = vunpack.c.l.b16 %v7661
  %v7962 = vunpack.c.h.b16 %v7661
  %v7963 = vunpack.c.l.b16 %v7662
  %v7964 = vunpack.c.h.b16 %v7662
  %v7965 = vunpack.c.l.b16 %v7663
  %v7966 = vunpack.c.h.b16 %v7663
  %v7967 = vunpack.c.l.b16 %v7664
  %v7968 = vunpack.c.h.b16 %v7664
  %v7969 = vunpack.c.l.b16 %v7665
  %v7970 = vunpack.c.h.b16 %v7665
  %v7971 = vunpack.c.l.b16 %v7666
  %v7972 = vunpack.c.h.b16 %v7666
  %v7973 = vunpack.c.l.b16 %v7667
  %v7974 = vunpack.c.h.b16 %v7667
  %v7975 = vunpack.c.l.b16 %v7668
  %v7976 = vunpack.c.h.b16 %v7668
  %v7977 = vunpack.c.l.b16 %v7669
  %v7978 = vunpack.c.h.b16 %v7669
  %v7979 = vunpack.c.l.b16 %v7670
  %v7980 = vunpack.c.h.b16 %v7670
  %v7981 = vunpack.c.l.b16 %v7671
  %v7982 = vunpack.c.h.b16 %v7671
  %v7983 = vunpack.c.l.b16 %v7672
  %v7984 = vunpack.c.h.b16 %v7672
  %v7985 = vunpack.c.l.b16 %v7673
  %v7986 = vunpack.c.h.b16 %v7673
  %v7987 = vunpack.c.l.b16 %v7674
  %v7988 = vunpack.c.h.b16 %v7674
  %v7989 = vunpack.c.l.b16 %v7675
  %v7990 = vunpack.c.h.b16 %v7675
  %v7991 = vunpack.c.l.b16 %v7676
  %v7992 = vunpack.c.h.b16 %v7676
  %v7993 = vunpack.c.l.b16 %v7677
  %v7994 = vunpack.c.h.b16 %v7677
  %v7995 = vunpack.c.l.b16 %v7678
  %v7996 = vunpack.c.h.b16 %v7678
  %v7997 = vunpack.c.l.b16 %v7679
  %v7998 = vunpack.c.h.b16 %v7679
  %v7999 = vunpack.c.l.b16 %v7680
  %v8000 = vunpack.c.h.b16 %v7680
  %v8001 = vunpack.c.l.b16 %v7681
  %v8002 = vunpack.c.h.b16 %v7681
  %v8003 = vunpack.c.l.b16 %v7682
  %v8004 = vunpack.c.h.b16 %v7682
  %v8005 = vunpack.c.l.b16 %v7683
  %v8006 = vunpack.c.h.b16 %v7683
  %v8007 = vunpack.c.l.b16 %v7684
  %v8008 = vunpack.c.h.b16 %v7684
  %v8009 = vunpack.c.l.b16 %v7685
  %v8010 = vunpack.c.h.b16 %v7685
  %v8011 = vunpack.c.l.b16 %v7686
  %v8012 = vunpack.c.h.b16 %v7686
  %v8013 = vunpack.c.l.b16 %v7687
  %v8014 = vunpack.c.h.b16 %v7687
  %v8015 = vunpack.c.l.b16 %v7688
  %v8016 = vunpack.c.h.b16 %v7688
  %v8017 = vunpack.c.l.b16 %v7689
  %v8018 = vunpack.c.h.b16 %v7689
  %v8019 = vunpack.c.l.b16 %v7690
  %v8020 = vunpack.c.h.b16 %v7690
  %v8021 = vunpack.c.l.b16 %v7691
  %v8022 = vunpack.c.h.b16 %v7691
  %v8023 = vunpack.c.l.b16 %v7692
  %v8024 = vunpack.c.h.b16 %v7692
  %v8025 = vunpack.c.l.b16 %v7693
  %v8026 = vunpack.c.h.b16 %v7693
  %v8027 = vunpack.c.l.b16 %v7694
  %v8028 = vunpack.c.h.b16 %v7694
  %v8029 = vunpack.c.l.b16 %v7695
  %v8030 = vunpack.c.h.b16 %v7695
  %v8031 = vunpack.c.l.b16 %v7696
  %v8032 = vunpack.c.h.b16 %v7696
  %v8033 = vunpack.c.l.b16 %v7697
  %v8034 = vunpack.c.h.b16 %v7697
  %v8035 = vunpack.c.l.b16 %v7698
  %v8036 = vunpack.c.h.b16 %v7698
  %v8037 = vunpack.c.l.b16 %v7699
  %v8038 = vunpack.c.h.b16 %v7699
  %v8039 = vunpack.c.l.b16 %v7700
  %v8040 = vunpack.c.h.b16 %v7700
  %v8041 = vunpack.c.l.b16 %v7701
  %v8042 = vunpack.c.h.b16 %v7701
  %v8043 = vunpack.c.l.b16 %v7702
  %v8044 = vunpack.c.h.b16 %v7702
  %v8045 = vunpack.c.l.b16 %v7703
  %v8046 = vunpack.c.h.b16 %v7703
  %v8047 = vunpack.c.l.b16 %v7704
  %v8048 = vunpack.c.h.b16 %v7704
  %v8049 = vunpack.c.l.b16 %v7705
  %v8050 = vunpack.c.h.b16 %v7705
  %v8051 = vunpack.c.l.b16 %v7706
  %v8052 = vunpack.c.h.b16 %v7706
  %v8053 = vunpack.c.l.b16 %v7707
  %v8054 = vunpack.c.h.b16 %v7707
  %v8055 = vunpack.c.l.b16 %v7708
  %v8056 = vunpack.c.h.b16 %v7708
  %v8057 = vunpack.c.l.b16 %v7709
  %v8058 = vunpack.c.h.b16 %v7709
  %v8059 = vunpack.c.l.b16 %v7710
  %v8060 = vunpack.c.h.b16 %v7710
  %v8061 = vunpack.c.l.b16 %v7711
  %v8062 = vunpack.c.h.b16 %v7711
  %v8063 = vunpack.c.l.b16 %v7712
  %v8064 = vunpack.c.h.b16 %v7712
  %v8065 = vunpack.c.l.b16 %v7713
  %v8066 = vunpack.c.h.b16 %v7713
  %v8067 = vunpack.c.l.b16 %v7714
  %v8068 = vunpack.c.h.b16 %v7714
  %v8069 = vunpack.c.l.b16 %v7715
  %v8070 = vunpack.c.h.b16 %v7715
  %v8071 = vunpack.c.l.b16 %v7716
  %v8072 = vunpack.c.h.b16 %v7716
  %v8073 = vunpack.c.l.b16 %v7717
  %v8074 = vunpack.c.h.b16 %v7717
  %v8075 = vunpack.c.l.b16 %v7718
  %v8076 = vunpack.c.h.b16 %v7718
  %v8077 = vunpack.c.l.b16 %v7719
  %v8078 = vunpack.c.h.b16 %v7719
  %v8079 = vunpack.c.l.b16 %v7720
  %v8080 = vunpack.c.h.b16 %v7720
  %v8081 = vunpack.c.l.b16 %v7721
  %v8082 = vunpack.c.h.b16 %v7721
  %v8083 = vunpack.c.l.b16 %v7722
  %v8084 = vunpack.c.h.b16 %v7722
  %v8085 = vunpack.c.l.b16 %v7723
  %v8086 = vunpack.c.h.b16 %v7723
  %v8087 = vunpack.c.l.b16 %v7724
  %v8088 = vunpack.c.h.b16 %v7724
  %v8089 = vunpack.c.l.b16 %v7725
  %v8090 = vunpack.c.h.b16 %v7725
  %v8091 = vunpack.c.l.b16 %v7726
  %v8092 = vunpack.c.h.b16 %v7726
  %v8093 = vunpack.c.l.b16 %v7727
  %v8094 = vunpack.c.h.b16 %v7727
  %v8095 = vunpack.c.l.b16 %v7728
  %v8096 = vunpack.c.h.b16 %v7728
  %v8097 = vunpack.c.l.b16 %v7729
  %v8098 = vunpack.c.h.b16 %v7729
  %v8099 = vunpack.c.l.b16 %v7730
  %v8100 = vunpack.c.h.b16 %v7730
  %v8101 = vunpack.c.l.b16 %v7731
  %v8102 = vunpack.c.h.b16 %v7731
  %v8103 = vunpack.c.l.b16 %v7732
  %v8104 = vunpack.c.h.b16 %v7732
  %v8105 = vunpack.c.l.b16 %v7733
  %v8106 = vunpack.c.h.b16 %v7733
  %v8107 = vunpack.c.l.b16 %v7734
  %v8108 = vunpack.c.h.b16 %v7734
  %v8109 = vunpack.c.l.b16 %v7735
  %v8110 = vunpack.c.h.b16 %v7735
  %v8111 = vunpack.c.l.b16 %v7736
  %v8112 = vunpack.c.h.b16 %v7736
  %v8113 = vunpack.c.l.b16 %v7737
  %v8114 = vunpack.c.h.b16 %v7737
  %v8115 = vunpack.c.l.b16 %v7738
  %v8116 = vunpack.c.h.b16 %v7738
  %v8117 = vunpack.c.l.b16 %v7739
  %v8118 = vunpack.c.h.b16 %v7739
  %v8119 = vunpack.c.l.b16 %v7740
  %v8120 = vunpack.c.h.b16 %v7740
  %v8121 = vunpack.c.l.b16 %v7741
  %v8122 = vunpack.c.h.b16 %v7741
  %v8123 = vunpack.c.l.b16 %v7742
  %v8124 = vunpack.c.h.b16 %v7742
  %v8125 = vunpack.c.l.b16 %v7743
  %v8126 = vunpack.c.h.b16 %v7743
  %v8127 = vunpack.c.l.b16 %v7744
  %v8128 = vunpack.c.h.b16 %v7744
  %v8129 = vunpack.c.l.b16 %v7745
  %v8130 = vunpack.c.h.b16 %v7745
  %v8131 = vunpack.c.l.b16 %v7746
  %v8132 = vunpack.c.h.b16 %v7746
  %v8133 = vunpack.c.l.b16 %v7747
  %v8134 = vunpack.c.h.b16 %v7747
  %v8135 = vunpack.c.l.b16 %v7748
  %v8136 = vunpack.c.h.b16 %v7748
  %v8137 = vunpack.c.l.b16 %v7749
  %v8138 = vunpack.c.h.b16 %v7749
  %v8139 = vunpack.c.l.b16 %v7750
  %v8140 = vunpack.c.h.b16 %v7750
  %v8141 = vunpack.c.l.b16 %v7751
  %v8142 = vunpack.c.h.b16 %v7751
  %v8143 = vunpack.c.l.b16 %v7752
  %v8144 = vunpack.c.h.b16 %v7752
  %v8145 = vunpack.c.l.b16 %v7753
  %v8146 = vunpack.c.h.b16 %v7753
  %v8147 = vunpack.c.l.b16 %v7754
  %v8148 = vunpack.c.h.b16 %v7754
  %v8149 = vunpack.c.l.b16 %v7755
  %v8150 = vunpack.c.h.b16 %v7755
  %v8151 = vunpack.c.l.b16 %v7756
  %v8152 = vunpack.c.h.b16 %v7756
  %v8153 = vunpack.c.l.b16 %v7757
  %v8154 = vunpack.c.h.b16 %v7757
  %v8155 = vunpack.c.l.b16 %v7758
  %v8156 = vunpack.c.h.b16 %v7758
  %v8157 = vunpack.c.l.b16 %v7759
  %v8158 = vunpack.c.h.b16 %v7759
  %v8159 = vunpack.c.l.b16 %v7760
  %v8160 = vunpack.c.h.b16 %v7760
  %v8161 = vunpack.c.l.b16 %v7761
  %v8162 = vunpack.c.h.b16 %v7761
  %v8163 = vunpack.c.l.b16 %v7762
  %v8164 = vunpack.c.h.b16 %v7762
  %v8165 = vunpack.c.l.b16 %v7763
  %v8166 = vunpack.c.h.b16 %v7763
  %v8167 = vunpack.c.l.b16 %v7764
  %v8168 = vunpack.c.h.b16 %v7764
  %v8169 = vunpack.c.l.b16 %v7765
  %v8170 = vunpack.c.h.b16 %v7765
  %v8171 = vunpack.c.l.b16 %v7766
  %v8172 = vunpack.c.h.b16 %v7766
  %v8173 = vunpack.c.l.b16 %v7767
  %v8174 = vunpack.c.h.b16 %v7767
  %v8175 = vunpack.c.l.b16 %v7768
  %v8176 = vunpack.c.h.b16 %v7768
  %v8177 = vunpack.c.l.b16 %v7769
  %v8178 = vunpack.c.h.b16 %v7769
  %v8179 = vunpack.c.l.b16 %v7770
  %v8180 = vunpack.c.h.b16 %v7770
  %v8181 = vunpack.c.l.b16 %v7771
  %v8182 = vunpack.c.h.b16 %v7771
  %v8183 = vunpack.c.l.b16 %v7772
  %v8184 = vunpack.c.h.b16 %v7772
  %v8185 = vunpack.c.l.b16 %v7773
  %v8186 = vunpack.c.h.b16 %v7773
  %v8187 = vunpack.c.l.b16 %v7774
  %v8188 = vunpack.c.h.b16 %v7774
  %v8189 = vunpack.c.l.b16 %v7775
  %v8190 = vunpack.c.h.b16 %v7775
  %v8191 = vunpack.c.l.b16 %v7776
  %v8192 = vunpack.c.h.b16 %v7776
  %v8193 = vunpack.c.l.b16 %v7777
  %v8194 = vunpack.c.h.b16 %v7777
  %v8195 = vunpack.c.l.b16 %v7778
  %v8196 = vunpack.c.h.b16 %v7778
  %v8197 = vunpack.c.l.b16 %v7779
  %v8198 = vunpack.c.h.b16 %v7779
  %v8199 = vunpack.c.l.b16 %v7780
  %v8200 = vunpack.c.h.b16 %v7780
  %v8201 = vunpack.c.l.b16 %v7781
  %v8202 = vunpack.c.h.b16 %v7781
  %v8203 = vunpack.c.l.b16 %v7782
  %v8204 = vunpack.c.h.b16 %v7782
  %v8205 = vunpack.c.l.b16 %v7783
  %v8206 = vunpack.c.h.b16 %v7783
  %v8207 = vunpack.c.l.b16 %v7784
  %v8208 = vunpack.c.h.b16 %v7784
  %v8209 = vunpack.c.l.b16 %v7785
  %v8210 = vunpack.c.h.b16 %v7785
  %v8211 = vunpack.c.l.b16 %v7786
  %v8212 = vunpack.c.h.b16 %v7786
  %v8213 = vunpack.c.l.b16 %v7787
  %v8214 = vunpack.c.h.b16 %v7787
  %v8215 = vunpack.c.l.b16 %v7788
  %v8216 = vunpack.c.h.b16 %v7788
  %v8217 = vunpack.c.l.b16 %v7789
  %v8218 = vunpack.c.h.b16 %v7789
  %v8219 = vunpack.c.l.b16 %v7790
  %v8220 = vunpack.c.h.b16 %v7790
  %v8221 = vunpack.c.l.b16 %v7791
  %v8222 = vunpack.c.h.b16 %v7791
  %v8223 = vunpack.c.l.b16 %v7792
  %v8224 = vunpack.c.h.b16 %v7792
  %v8225 = vunpack.c.l.b16 %v7793
  %v8226 = vunpack.c.h.b16 %v7793
  %v8227 = vunpack.c.l.b16 %v7794
  %v8228 = vunpack.c.h.b16 %v7794
  %v8229 = vunpack.c.l.b16 %v7795
  %v8230 = vunpack.c.h.b16 %v7795
  %v8231 = vunpack.c.l.b16 %v7796
  %v8232 = vunpack.c.h.b16 %v7796
  %v8233 = vunpack.c.l.b16 %v7797
  %v8234 = vunpack.c.h.b16 %v7797
  %v8235 = vunpack.c.l.b16 %v7798
  %v8236 = vunpack.c.h.b16 %v7798
  %v8237 = vunpack.c.l.b16 %v7799
  %v8238 = vunpack.c.h.b16 %v7799
  %v8239 = vunpack.c.l.b16 %v7800
  %v8240 = vunpack.c.h.b16 %v7800
  %v8241 = vunpack.c.l.b16 %v7801
  %v8242 = vunpack.c.h.b16 %v7801
  %v8243 = vunpack.c.l.b16 %v7802
  %v8244 = vunpack.c.h.b16 %v7802
  %v8245 = vunpack.c.l.b16 %v7803
  %v8246 = vunpack.c.h.b16 %v7803
  %v8247 = vunpack.c.l.b16 %v7804
  %v8248 = vunpack.c.h.b16 %v7804
  %v8249 = vpack.c.b16 %v7963, %v7961
  %v8250 = vpack.c.b16 %v7964, %v7962
  %v8251 = vpack.c.b16 %v7967, %v7965
  %v8252 = vpack.c.b16 %v7968, %v7966
  %v8253 = vpack.c.b16 %v7971, %v7969
  %v8254 = vpack.c.b16 %v7972, %v7970
  %v8255 = vpack.c.b16 %v7975, %v7973
  %v8256 = vpack.c.b16 %v7976, %v7974
  %v8257 = vpack.c.b16 %v7979, %v7977
  %v8258 = vpack.c.b16 %v7980, %v7978
  %v8259 = vpack.c.b16 %v7983, %v7981
  %v8260 = vpack.c.b16 %v7984, %v7982
  %v8261 = vpack.c.b16 %v7987, %v7985
  %v8262 = vpack.c.b16 %v7988, %v7986
  %v8263 = vpack.c.b16 %v7991, %v7989
  %v8264 = vpack.c.b16 %v7992, %v7990
  %v8265 = vpack.c.b16 %v7995, %v7993
  %v8266 = vpack.c.b16 %v7996, %v7994
  %v8267 = vpack.c.b16 %v7999, %v7997
  %v8268 = vpack.c.b16 %v8000, %v7998
  %v8269 = vpack.c.b16 %v8003, %v8001
  %v8270 = vpack.c.b16 %v8004, %v8002
  %v8271 = vpack.c.b16 %v8007, %v8005
  %v8272 = vpack.c.b16 %v8008, %v8006
  %v8273 = vpack.c.b16 %v8011, %v8009
  %v8274 = vpack.c.b16 %v8012, %v8010
  %v8275 = vpack.c.b16 %v8015, %v8013
  %v8276 = vpack.c.b16 %v8016, %v8014
  %v8277 = vpack.c.b16 %v8019, %v8017
  %v8278 = vpack.c.b16 %v8020, %v8018
  %v8279 = vpack.c.b16 %v8023, %v8021
  %v8280 = vpack.c.b16 %v8024, %v8022
  %v8281 = vpack.c.b16 %v8027, %v8025
  %v8282 = vpack.c.b16 %v8028, %v8026
  %v8283 = vpack.c.b16 %v8031, %v8029
  %v8284 = vpack.c.b16 %v8032, %v8030
  %v8285 = vpack.c.b16 %v8035, %v8033
  %v8286 = vpack.c.b16 %v8036, %v8034
  %v8287 = vpack.c.b16 %v8039, %v8037
  %v8288 = vpack.c.b16 %v8040, %v8038
  %v8289 = vpack.c.b16 %v8043, %v8041
  %v8290 = vpack.c.b16 %v8044, %v8042
  %v8291 = vpack.c.b16 %v8047, %v8045
  %v8292 = vpack.c.b16 %v8048, %v8046
  %v8293 = vpack.c.b16 %v8051, %v8049
  %v8294 = vpack.c.b16 %v8052, %v8050
  %v8295 = vpack.c.b16 %v8055, %v8053
  %v8296 = vpack.c.b16 %v8056, %v8054
  %v8297 = vpack.c.b16 %v8059, %v8057
  %v8298 = vpack.c.b16 %v8060, %v8058
  %v8299 = vpack.c.b16 %v8063, %v8061
  %v8300 = vpack.c.b16 %v8064, %v8062
  %v8301 = vpack.c.b16 %v8067, %v8065
  %v8302 = vpack.c.b16 %v8068, %v8066
  %v8303 = vpack.c.b16 %v8071, %v8069
  %v8304 = vpack.c.b16 %v8072, %v8070
  %v8305 = vpack.c.b16 %v8075, %v8073
  %v8306 = vpack.c.b16 %v8076, %v8074
  %v8307 = vpack.c.b16 %v8079, %v8077
  %v8308 = vpack.c.b16 %v8080, %v8078
  %v8309 = vpack.c.b16 %v8083, %v8081
  %v8310 = vpack.c.b16 %v8084, %v8082
  %v8311 = vpack.c.b16 %v8087, %v8085
  %v8312 = vpack.c.b16 %v8088, %v8086
  %v8313 = vpack.c.b16 %v8091, %v8089
  %v8314 = vpack.c.b16 %v8092, %v8090
  %v8315 = vpack.c.b16 %v8095, %v8093
  %v8316 = vpack.c.b16 %v8096, %v8094
  %v8317 = vpack.c.b16 %v8099, %v8097
  %v8318 = vpack.c.b16 %v8100, %v8098
  %v8319 = vpack.c.b16 %v8103, %v8101
  %v8320 = vpack.c.b16 %v8104, %v8102
  %v8321 = vpack.c.b16 %v8107, %v8105
  %v8322 = vpack.c.b16 %v8108, %v8106
  %v8323 = vpack.c.b16 %v8111, %v8109
  %v8324 = vpack.c.b16 %v8112, %v8110
  %v8325 = vpack.c.b16 %v8115, %v8113
  %v8326 = vpack.c.b16 %v8116, %v8114
  %v8327 = vpack.c.b16 %v8119, %v8117
  %v8328 = vpack.c.b16 %v8120, %v8118
  %v8329 = vpack.c.b16 %v8123, %v8121
  %v8330 = vpack.c.b16 %v8124, %v8122
  %v8331 = vpack.c.b16 %v8127, %v8125
  %v8332 = vpack.c.b16 %v8128, %v8126
  %v8333 = vpack.c.b16 %v8131, %v8129
  %v8334 = vpack.c.b16 %v8132, %v8130
  %v8335 = vpack.c.b16 %v8135, %v8133
  %v8336 = vpack.c.b16 %v8136, %v8134
  %v8337 = vpack.c.b16 %v8139, %v8137
  %v8338 = vpack.c.b16 %v8140, %v8138
  %v8339 = vpack.c.b16 %v8143, %v8141
  %v8340 = vpack.c.b16 %v8144, %v8142
  %v8341 = vpack.c.b16 %v8147, %v8145
  %v8342 = vpack.c.b16 %v8148, %v8146
  %v8343 = vpack.c.b16 %v8151, %v8149
  %v8344 = vpack.c.b16 %v8152, %v8150
  %v8345 = vpack.c.b16 %v8155, %v8153
  %v8346 = vpack.c.b16 %v8156, %v8154
  %v8347 = vpack.c.b16 %v8159, %v8157
  %v8348 = vpack.c.b16 %v8160, %v8158
  %v8349 = vpack.c.b16 %v8163, %v8161
  %v8350 = vpack.c.b16 %v8164, %v8162
  %v8351 = vpack.c.b16 %v8167, %v8165
  %v8352 = vpack.c.b16 %v8168, %v8166
  %v8353 = vpack.c.b16 %v8171, %v8169
  %v8354 = vpack.c.b16 %v8172, %v8170
  %v8355 = vpack.c.b16 %v8175, %v8173
  %v8356 = vpack.c.b16 %v8176, %v8174
  %v8357 = vpack.c.b16 %v8179, %v8177
  %v8358 = vpack.c.b16 %v8180, %v8178
  %v8359 = vpack.c.b16 %v8183, %v8181
  %v8360 = vpack.c.b16 %v8184, %v8182
  %v8361 = vpack.c.b16 %v8187, %v8185
  %v8362 = vpack.c.b16 %v8188, %v8186
  %v8363 = vpack.c.b16 %v8191, %v8189
  %v8364 = vpack.c.b16 %v8192, %v8190
  %v8365 = vpack.c.b16 %v8195, %v8193
  %v8366 = vpack.c.b16 %v8196, %v8194
  %v8367 = vpack.c.b16 %v8199, %v8197
  %v8368 = vpack.c.b16 %v8200, %v8198
  %v8369 = vpack.c.b16 %v8203, %v8201
  %v8370 = vpack.c.b16 %v8204, %v8202
  %v8371 = vpack.c.b16 %v8207, %v8205
  %v8372 = vpack.c.b16 %v8208, %v8206
  %v8373 = vpack.c.b16 %v8211, %v8209
  %v8374 = vpack.c.b16 %v8212, %v8210
  %v8375 = vpack.c.b16 %v8215, %v8213
  %v8376 = vpack.c.b16 %v8216, %v8214
  %v8377 = vpack.c.b16 %v8219, %v8217
  %v8378 = vpack.c.b16 %v8220, %v8218
  %v8379 = vpack.c.b16 %v8223, %v8221
  %v8380 = vpack.c.b16 %v8224, %v8222
  %v8381 = vpack.c.b16 %v8227, %v8225
  %v8382 = vpack.c.b16 %v8228, %v8226
  %v8383 = vpack.c.b16 %v8231, %v8229
  %v8384 = vpack.c.b16 %v8232, %v8230
  %v8385 = vpack.c.b16 %v8235, %v8233
  %v8386 = vpack.c.b16 %v8236, %v8234
  %v8387 = vpack.c.b16 %v8239, %v8237
  %v8388 = vpack.c.b16 %v8240, %v8238
  %v8389 = vpack.c.b16 %v8243, %v8241
  %v8390 = vpack.c.b16 %v8244, %v8242
  %v8391 = vpack.c.b16 %v8247, %v8245
  %v8392 = vpack.c.b16 %v8248, %v8246
  %8537 = vmatprep.subr.bf16.mxu0 %v8250
  %8538 = vmatpush1.bf16.msra.mxu0 %v8249
  %8539 = vmatprep.subr.bf16.mxu0 %v8252
  %8540 = vmatpush1.bf16.msra.mxu0 %v8251
  %8541 = vmatprep.subr.bf16.mxu0 %v8254
  %8542 = vmatpush1.bf16.msra.mxu0 %v8253
  %8543 = vmatprep.subr.bf16.mxu0 %v8256
  %8544 = vmatpush1.bf16.msra.mxu0 %v8255
  %8545 = vmatprep.subr.bf16.mxu0 %v8258
  %8546 = vmatpush1.bf16.msra.mxu0 %v8257
  %8547 = vmatprep.subr.bf16.mxu0 %v8260
  %8548 = vmatpush1.bf16.msra.mxu0 %v8259
  %8549 = vmatprep.subr.bf16.mxu0 %v8262
  %8550 = vmatpush1.bf16.msra.mxu0 %v8261
  %8551 = vmatprep.subr.bf16.mxu0 %v8264
  %8552 = vmatpush1.bf16.msra.mxu0 %v8263
  %8553 = vmatprep.subr.bf16.mxu0 %v8266
  %8554 = vmatpush1.bf16.msra.mxu0 %v8265
  %8555 = vmatprep.subr.bf16.mxu0 %v8268
  %8556 = vmatpush1.bf16.msra.mxu0 %v8267
  %8557 = vmatprep.subr.bf16.mxu0 %v8270
  %8558 = vmatpush1.bf16.msra.mxu0 %v8269
  %8559 = vmatprep.subr.bf16.mxu0 %v8272
  %8560 = vmatpush1.bf16.msra.mxu0 %v8271
  %8561 = vmatprep.subr.bf16.mxu0 %v8274
  %8562 = vmatpush1.bf16.msra.mxu0 %v8273
  %8563 = vmatprep.subr.bf16.mxu0 %v8276
  %8564 = vmatpush1.bf16.msra.mxu0 %v8275
  %8565 = vmatprep.subr.bf16.mxu0 %v8278
  %8566 = vmatpush1.bf16.msra.mxu0 %v8277
  %8567 = vmatprep.subr.bf16.mxu0 %v8280
  %8568 = vmatpush1.bf16.msra.mxu0 %v8279
  %8569 = vmatprep.mubr.bf16.mxu0 %v7644
  %8570 = vmatmul.mubr.bf16.gmra.mrb[0].mxu0 %v7643
  %v8571 = vpop.f32.mrb[0].mxu0
  %v8572 = vadd.f32 %v7810, %v8571
  %v8573 = vpop.f32.mrb[0].mxu0
  %v8574 = vadd.f32 %v7814, %v8573
  %v8575 = vpop.f32.mrb[0].mxu0
  %v8576 = vadd.f32 %v7810, %v8575
  %v8577 = vpop.f32.mrb[0].mxu0
  %v8578 = vadd.f32 %v7814, %v8577
  %8579 = vmatprep.mubr.bf16.mxu0 %v7653
  %8580 = vmatmul.mubr.bf16.gmra.mrb[0].mxu0 %v7652
  %v8581 = vpop.f32.mrb[0].mxu0
  %v8582 = vadd.f32 %v7810, %v8581
  %v8583 = vpop.f32.mrb[0].mxu0
  %v8584 = vadd.f32 %v7814, %v8583
  %v8585 = vpop.f32.mrb[0].mxu0
  %v8586 = vadd.f32 %v7810, %v8585
  %v8587 = vpop.f32.mrb[0].mxu0
  %v8588 = vadd.f32 %v7814, %v8587
  %8589 = vdwg.mxu0
  %8590 = vmatprep.subr.bf16.mxu0 %v8282
  %8591 = vmatpush1.bf16.msra.mxu0 %v8281
  %8592 = vmatprep.subr.bf16.mxu0 %v8284
  %8593 = vmatpush1.bf16.msra.mxu0 %v8283
  %8594 = vmatprep.subr.bf16.mxu0 %v8286
  %8595 = vmatpush1.bf16.msra.mxu0 %v8285
  %8596 = vmatprep.subr.bf16.mxu0 %v8288
  %8597 = vmatpush1.bf16.msra.mxu0 %v8287
  %8598 = vmatprep.subr.bf16.mxu0 %v8290
  %8599 = vmatpush1.bf16.msra.mxu0 %v8289
  %8600 = vmatprep.subr.bf16.mxu0 %v8292
  %8601 = vmatpush1.bf16.msra.mxu0 %v8291
  %8602 = vmatprep.subr.bf16.mxu0 %v8294
  %8603 = vmatpush1.bf16.msra.mxu0 %v8293
  %8604 = vmatprep.subr.bf16.mxu0 %v8296
  %8605 = vmatpush1.bf16.msra.mxu0 %v8295
  %8606 = vmatprep.subr.bf16.mxu0 %v8298
  %8607 = vmatpush1.bf16.msra.mxu0 %v8297
  %8608 = vmatprep.subr.bf16.mxu0 %v8300
  %8609 = vmatpush1.bf16.msra.mxu0 %v8299
  %8610 = vmatprep.subr.bf16.mxu0 %v8302
  %8611 = vmatpush1.bf16.msra.mxu0 %v8301
  %8612 = vmatprep.subr.bf16.mxu0 %v8304
  %8613 = vmatpush1.bf16.msra.mxu0 %v8303
  %8614 = vmatprep.subr.bf16.mxu0 %v8306
  %8615 = vmatpush1.bf16.msra.mxu0 %v8305
  %8616 = vmatprep.subr.bf16.mxu0 %v8308
  %8617 = vmatpush1.bf16.msra.mxu0 %v8307
  %8618 = vmatprep.subr.bf16.mxu0 %v8310
  %8619 = vmatpush1.bf16.msra.mxu0 %v8309
  %8620 = vmatprep.subr.bf16.mxu0 %v8312
  %8621 = vmatpush1.bf16.msra.mxu0 %v8311
  %8622 = vmatprep.mubr.bf16.mxu0 %v7646
  %8623 = vmatmul.mubr.bf16.gmra.mrb[0].mxu0 %v7645
  %v8624 = vpop.f32.mrb[0].mxu0
  %v8625 = vadd.f32 %v8572, %v8624
  %v8626 = vpop.f32.mrb[0].mxu0
  %v8627 = vadd.f32 %v8574, %v8626
  %v8628 = vpop.f32.mrb[0].mxu0
  %v8629 = vadd.f32 %v8576, %v8628
  %v8630 = vpop.f32.mrb[0].mxu0
  %v8631 = vadd.f32 %v8578, %v8630
  %8632 = vmatprep.mubr.bf16.mxu0 %v7655
  %8633 = vmatmul.mubr.bf16.gmra.mrb[0].mxu0 %v7654
  %v8634 = vpop.f32.mrb[0].mxu0
  %v8635 = vadd.f32 %v8582, %v8634
  %v8636 = vpop.f32.mrb[0].mxu0
  %v8637 = vadd.f32 %v8584, %v8636
  %v8638 = vpop.f32.mrb[0].mxu0
  %v8639 = vadd.f32 %v8586, %v8638
  %v8640 = vpop.f32.mrb[0].mxu0
  %v8641 = vadd.f32 %v8588, %v8640
  %8642 = vdwg.mxu0
  %8643 = vmatprep.subr.bf16.mxu0 %v8314
  %8644 = vmatpush1.bf16.msra.mxu0 %v8313
  %8645 = vmatprep.subr.bf16.mxu0 %v8316
  %8646 = vmatpush1.bf16.msra.mxu0 %v8315
  %8647 = vmatprep.subr.bf16.mxu0 %v8318
  %8648 = vmatpush1.bf16.msra.mxu0 %v8317
  %8649 = vmatprep.subr.bf16.mxu0 %v8320
  %8650 = vmatpush1.bf16.msra.mxu0 %v8319
  %8651 = vmatprep.subr.bf16.mxu0 %v8322
  %8652 = vmatpush1.bf16.msra.mxu0 %v8321
  %8653 = vmatprep.subr.bf16.mxu0 %v8324
  %8654 = vmatpush1.bf16.msra.mxu0 %v8323
  %8655 = vmatprep.subr.bf16.mxu0 %v8326
  %8656 = vmatpush1.bf16.msra.mxu0 %v8325
  %8657 = vmatprep.subr.bf16.mxu0 %v8328
  %8658 = vmatpush1.bf16.msra.mxu0 %v8327
  %8659 = vmatprep.subr.bf16.mxu0 %v8330
  %8660 = vmatpush1.bf16.msra.mxu0 %v8329
  %8661 = vmatprep.subr.bf16.mxu0 %v8332
  %8662 = vmatpush1.bf16.msra.mxu0 %v8331
  %8663 = vmatprep.subr.bf16.mxu0 %v8334
  %8664 = vmatpush1.bf16.msra.mxu0 %v8333
  %8665 = vmatprep.subr.bf16.mxu0 %v8336
  %8666 = vmatpush1.bf16.msra.mxu0 %v8335
  %8667 = vmatprep.subr.bf16.mxu0 %v8338
  %8668 = vmatpush1.bf16.msra.mxu0 %v8337
  %8669 = vmatprep.subr.bf16.mxu0 %v8340
  %8670 = vmatpush1.bf16.msra.mxu0 %v8339
  %8671 = vmatprep.subr.bf16.mxu0 %v8342
  %8672 = vmatpush1.bf16.msra.mxu0 %v8341
  %8673 = vmatprep.subr.bf16.mxu0 %v8344
  %8674 = vmatpush1.bf16.msra.mxu0 %v8343
  %8675 = vmatprep.mubr.bf16.mxu0 %v7648
  %8676 = vmatmul.mubr.bf16.gmra.mrb[0].mxu0 %v7647
  %v8677 = vpop.f32.mrb[0].mxu0
  %v8678 = vadd.f32 %v8625, %v8677
  %v8679 = vpop.f32.mrb[0].mxu0
  %v8680 = vadd.f32 %v8627, %v8679
  %v8681 = vpop.f32.mrb[0].mxu0
  %v8682 = vadd.f32 %v8629, %v8681
  %v8683 = vpop.f32.mrb[0].mxu0
  %v8684 = vadd.f32 %v8631, %v8683
  %8685 = vmatprep.mubr.bf16.mxu0 %v7657
  %8686 = vmatmul.mubr.bf16.gmra.mrb[0].mxu0 %v7656
  %v8687 = vpop.f32.mrb[0].mxu0
  %v8688 = vadd.f32 %v8635, %v8687
  %v8689 = vpop.f32.mrb[0].mxu0
  %v8690 = vadd.f32 %v8637, %v8689
  %v8691 = vpop.f32.mrb[0].mxu0
  %v8692 = vadd.f32 %v8639, %v8691
  %v8693 = vpop.f32.mrb[0].mxu0
  %v8694 = vadd.f32 %v8641, %v8693
  %8695 = vdwg.mxu0
  %8696 = vmatprep.subr.bf16.mxu0 %v8346
  %8697 = vmatpush1.bf16.msra.mxu0 %v8345
  %8698 = vmatprep.subr.bf16.mxu0 %v8348
  %8699 = vmatpush1.bf16.msra.mxu0 %v8347
  %8700 = vmatprep.subr.bf16.mxu0 %v8350
  %8701 = vmatpush1.bf16.msra.mxu0 %v8349
  %8702 = vmatprep.subr.bf16.mxu0 %v8352
  %8703 = vmatpush1.bf16.msra.mxu0 %v8351
  %8704 = vmatprep.subr.bf16.mxu0 %v8354
  %8705 = vmatpush1.bf16.msra.mxu0 %v8353
  %8706 = vmatprep.subr.bf16.mxu0 %v8356
  %8707 = vmatpush1.bf16.msra.mxu0 %v8355
  %8708 = vmatprep.subr.bf16.mxu0 %v8358
  %8709 = vmatpush1.bf16.msra.mxu0 %v8357
  %8710 = vmatprep.subr.bf16.mxu0 %v8360
  %8711 = vmatpush1.bf16.msra.mxu0 %v8359
  %8712 = vmatprep.subr.bf16.mxu0 %v8362
  %8713 = vmatpush1.bf16.msra.mxu0 %v8361
  %8714 = vmatprep.subr.bf16.mxu0 %v8364
  %8715 = vmatpush1.bf16.msra.mxu0 %v8363
  %8716 = vmatprep.subr.bf16.mxu0 %v8366
  %8717 = vmatpush1.bf16.msra.mxu0 %v8365
  %8718 = vmatprep.subr.bf16.mxu0 %v8368
  %8719 = vmatpush1.bf16.msra.mxu0 %v8367
  %8720 = vmatprep.subr.bf16.mxu0 %v8370
  %8721 = vmatpush1.bf16.msra.mxu0 %v8369
  %8722 = vmatprep.subr.bf16.mxu0 %v8372
  %8723 = vmatpush1.bf16.msra.mxu0 %v8371
  %8724 = vmatprep.subr.bf16.mxu0 %v8374
  %8725 = vmatpush1.bf16.msra.mxu0 %v8373
  %8726 = vmatprep.subr.bf16.mxu0 %v8376
  %8727 = vmatpush1.bf16.msra.mxu0 %v8375
  %8728 = vmatprep.mubr.bf16.mxu0 %v7650
  %8729 = vmatmul.mubr.bf16.gmra.mrb[0].mxu0 %v7649
  %v8730 = vpop.f32.mrb[0].mxu0
  %v8731 = vadd.f32 %v8678, %v8730
  %v8732 = vpop.f32.mrb[0].mxu0
  %v8733 = vadd.f32 %v8680, %v8732
  %v8734 = vpop.f32.mrb[0].mxu0
  %v8735 = vadd.f32 %v8682, %v8734
  %v8736 = vpop.f32.mrb[0].mxu0
  %v8737 = vadd.f32 %v8684, %v8736
  %8738 = vmatprep.mubr.bf16.mxu0 %v7659
  %8739 = vmatmul.mubr.bf16.gmra.mrb[0].mxu0 %v7658
  %v8740 = vpop.f32.mrb[0].mxu0
  %v8741 = vadd.f32 %v8688, %v8740
  %v8742 = vpop.f32.mrb[0].mxu0
  %v8743 = vadd.f32 %v8690, %v8742
  %v8744 = vpop.f32.mrb[0].mxu0
  %v8745 = vadd.f32 %v8692, %v8744
  %v8746 = vpop.f32.mrb[0].mxu0
  %v8747 = vadd.f32 %v8694, %v8746
  %8748 = vdwg.mxu0
  %8749 = vmatprep.subr.bf16.mxu0 %v8378
  %8750 = vmatpush1.bf16.msra.mxu0 %v8377
  %8751 = vmatprep.subr.bf16.mxu0 %v8380
  %8752 = vmatpush1.bf16.msra.mxu0 %v8379
  %8753 = vmatprep.subr.bf16.mxu0 %v8382
  %8754 = vmatpush1.bf16.msra.mxu0 %v8381
  %8755 = vmatprep.subr.bf16.mxu0 %v8384
  %8756 = vmatpush1.bf16.msra.mxu0 %v8383
  %8757 = vmatprep.subr.bf16.mxu0 %v8386
  %8758 = vmatpush1.bf16.msra.mxu0 %v8385
  %8759 = vmatprep.subr.bf16.mxu0 %v8388
  %8760 = vmatpush1.bf16.msra.mxu0 %v8387
  %8761 = vmatprep.subr.bf16.mxu0 %v8390
  %8762 = vmatpush1.bf16.msra.mxu0 %v8389
  %8763 = vmatprep.subr.bf16.mxu0 %v8392
  %8764 = vmatpush1.bf16.msra.mxu0 %v8391
  %8765 = vmatprep.subr.bf16.mxu0 0
  %8766 = vmatpush1.bf16.msra.mxu0 0
  %8767 = vmatprep.subr.bf16.mxu0 0
  %8768 = vmatpush1.bf16.msra.mxu0 0
  %8769 = vmatprep.subr.bf16.mxu0 0
  %8770 = vmatpush1.bf16.msra.mxu0 0
  %8771 = vmatprep.subr.bf16.mxu0 0
  %8772 = vmatpush1.bf16.msra.mxu0 0
  %8773 = vmatprep.subr.bf16.mxu0 0
  %8774 = vmatpush1.bf16.msra.mxu0 0
  %8775 = vmatprep.subr.bf16.mxu0 0
  %8776 = vmatpush1.bf16.msra.mxu0 0
  %8777 = vmatprep.subr.bf16.mxu0 0
  %8778 = vmatpush1.bf16.msra.mxu0 0
  %8779 = vmatprep.subr.bf16.mxu0 0
  %8780 = vmatpush1.bf16.msra.mxu0 0
  %8781 = vmatprep.mubr.bf16.mxu0 0
  %8782 = vmatmul.mubr.bf16.gmra.mrb[0].mxu0 %v7651
  %v8783 = vpop.f32.mrb[0].mxu0
  %v8784 = vadd.f32 %v8731, %v8783
  %v8785 = vpop.f32.mrb[0].mxu0
  %v8786 = vadd.f32 %v8733, %v8785
  %v8787 = vpop.f32.mrb[0].mxu0
  %v8788 = vadd.f32 %v8735, %v8787
  %v8789 = vpop.f32.mrb[0].mxu0
  %v8790 = vadd.f32 %v8737, %v8789
  %8791 = vmatprep.mubr.bf16.mxu0 0
  %8792 = vmatmul.mubr.bf16.gmra.mrb[0].mxu0 %v7660
  %v8793 = vpop.f32.mrb[0].mxu0
  %v8794 = vadd.f32 %v8741, %v8793
  %v8795 = vpop.f32.mrb[0].mxu0
  %v8796 = vadd.f32 %v8743, %v8795
  %v8797 = vpop.f32.mrb[0].mxu0
  %v8798 = vadd.f32 %v8745, %v8797
  %v8799 = vpop.f32.mrb[0].mxu0
  %v8800 = vadd.f32 %v8747, %v8799
  %8801 = vdwg.mxu0
  %v8802 = vmax.f32 %v8784, 0.0
  %v8803 = vmax.f32 %v8786, 0.0
  %v8804 = vmax.f32 %v8788, 0.0
  %v8805 = vmax.f32 %v8790, 0.0
  %v8806 = vmax.f32 %v8794, 0.0
  %v8807 = vmax.f32 %v8796, 0.0
  %v8808 = vmax.f32 %v8798, 0.0
  %v8809 = vmax.f32 %v8800, 0.0
  %vm8818 = vcmask 1043456
  %v8819 = vrot.slane %v8802, 4
  %v8820 = vrot.slane %v8804, 4
  %v8821 = vsel %vm8818, %v8819, %v8820
  %v8822 = vrot.slane %v8803, 4
  %v8823 = vrot.slane %v8805, 4
  %v8824 = vsel %vm8818, %v8822, %v8823
  %v8825 = vrot.slane %v8806, 4
  %v8826 = vrot.slane %v8808, 4
  %v8827 = vsel %vm8818, %v8825, %v8826
  %v8828 = vrot.slane %v8807, 4
  %v8829 = vrot.slane %v8809, 4
  %v8830 = vsel %vm8818, %v8828, %v8829
  %v8835 = vmax.f32 %v8802, %v8821
  %v8836 = vmax.f32 %v8803, %v8824
  %v8837 = vmax.f32 %v8806, %v8827
  %v8838 = vmax.f32 %v8807, %v8830
  %v8841 = vrot.slane %v8835, 1
  %v8842 = vrot.slane %v8836, 1
  %v8845 = vmax.f32 %v8835, %v8841
  %v8846 = vmax.f32 %v8836, %v8842
  %v8849 = vrot.slane %v8837, 1
  %v8850 = vrot.slane %v8838, 1
  %v8853 = vmax.f32 %v8837, %v8849
  %v8854 = vmax.f32 %v8838, %v8850
  %v8857 = vrot.slane %v8845, 5
  %v8858 = vrot.slane %v8846, 5
  %v8863 = vrot.slane %v8853, 4
  %v8864 = vrot.slane %v8854, 4
  %vm8867 = vcmask 1040384
  %v8868 = vsel %vm8867, %v8857, %v8863
  %v8869 = vsel %vm8867, %v8858, %v8864
  %v8872 = vcombine.low %v8868, %v8869
  %v8874 = vunpack.c.l.s4 1983009808
  %v8875 = vunpack.c.0.s8 %v8874
  %v8876 = vlaneseq
  %v8877 = vshrl.u32 %v8876, 7
  %v8878 = vsub.s32 %v8875, %v8877
  %v8879 = vrot.slane %v8872, %v8878
  %8881 = vst [vmem:[%s9] sm:$0xf] %v8879
  // Predicated region
  $region38: #{convnet256_forward.1} parent=0 // pred_check
    _
  $region39: #{convnet256_forward.1} parent=0 // pred_check_branch
    %8883 = sbr.rel (0) target = $region41
  $region40: #{convnet256_forward.1} parent=0 // pred_region
    _
  $region41: #{convnet256_forward.1} parent=0 // pred_fallthru
    _
  // Predicated region
  $region42: #{convnet256_forward.1} parent=0 // pred_check
    _
  $region43: #{convnet256_forward.1} parent=0 // pred_check_branch
    %8885 = sbr.rel (0) target = $region45
  $region44: #{convnet256_forward.1} parent=0 // pred_region
    _
  $region45: #{convnet256_forward.1} parent=0 // pred_fallthru
    _

</llo_original>
